<compile_context>
chip_gen: v7x
topology: tpu7x:2x2x1
jax: 0.10.0
libtpu: 0.0.40
codegen_flags: <defaults>
</compile_context>

<pallas_src>
import functools

import jax
import jax.numpy as jnp
from jax import lax
from jax.experimental import pallas as pl
from jax.experimental.pallas import tpu as pltpu


# MXU operands (f32 accumulation via preferred_element_type).  bf16 is
# MXU-native on v5e/v6e/v7x and halves the VMEM/vreg footprint of the dot
# operands; all elementwise math stays f32.
_MXU_DTYPE = jnp.bfloat16

_EPS = 1e-5                      # nn.BatchNorm2d default
_VMEM_LIMIT = 32 * 1024 * 1024   # explicit scoped-VMEM cap (v5e default 16MB)


# ------------------------------ small helpers ------------------------------

def _gelu(x):
    # exact erf form, same as nn.GELU()
    return 0.5 * x * (1.0 + lax.erf(x * 0.7071067811865476))


def _mm(w, x):
    """(Cout, Cin) @ (Cin, M) matmul, bf16 operands, f32 accumulation."""
    return lax.dot_general(
        w.astype(_MXU_DTYPE), x.astype(_MXU_DTYPE),
        dimension_numbers=(((1,), (0,)), ((), ())),
        preferred_element_type=jnp.float32)


def _dw_masks_shifts(H, W, B):
    """Boundary masks (9, 1, B*H*W) and static lane-roll amounts for the nine
    taps of a 3x3 depthwise conv (padding=1, cross-correlation) acting on a
    lane-dense (C, B*H*W) slab whose columns hold the row-major (h, w) pixels
    of image b at lane offset b*H*W.

    pltpu.roll follows the jnp.roll convention result[i] = x[(i - shift) % n],
    so tap offset off = di*W + dj uses shift = -off (mod the slab length).
    Any value rolled across a row / image / batch boundary is zeroed by the
    mask, so wrap-around reads are harmless.
    """
    N = H * W
    pos = jnp.arange(N, dtype=jnp.int32)
    hh, ww = pos // W, pos % W
    masks, shifts = [], []
    for di in (-1, 0, 1):
        for dj in (-1, 0, 1):
            ok = ((hh + di >= 0) & (hh + di < H) &
                  (ww + dj >= 0) & (ww + dj < W))
            masks.append(ok.astype(jnp.float32))
            shifts.append((-(di * W + dj)) % (B * N))
    m = jnp.stack(masks, axis=0).reshape(9, 1, N)
    return jnp.tile(m, (1, 1, B)), tuple(shifts)


# -------------------- DynamicConv2d scale path (plain XLA) ------------------

def _adaptive_avg_pool2d(x, oh, ow):
    # Exact PyTorch AdaptiveAvgPool2d window semantics (tiny: oh*ow means).
    B, C, H, W = x.shape
    rows = []
    for i in range(oh):
        hs = (i * H) // oh
        he = -((-(i + 1) * H) // oh)
        cols = []
        for j in range(ow):
            ws = (j * W) // ow
            we = -((-(j + 1) * W) // ow)
            cols.append(jnp.mean(x[:, :, hs:he, ws:we], axis=(2, 3)))
        rows.append(jnp.stack(cols, axis=-1))
    return jnp.stack(rows, axis=-2)


def _dyn_scale(x1_img, p):
    """DynamicConv2d dynamic weight / bias generation.

    The matmuls are (4x16)@(16x~20): far below a single MXU pass, so a Pallas
    launch + HBM round trip would dominate.  Plain XLA fuses the whole path.
    Each proj() call is a separate BatchNorm batch (training-mode stats), as
    in the PyTorch reference.
    """
    B, d = x1_img.shape[:2]
    G = p["dyn_weight"].shape[0]

    def proj(y):                                   # y: (B, d, h, w)
        h = jnp.einsum("rc,bchw->brhw", p["dyn_proj1_w"], y)
        m = jnp.mean(h, axis=(0, 2, 3), keepdims=True)
        v = jnp.mean(h * h, axis=(0, 2, 3), keepdims=True) - m * m
        g = p["dyn_proj1_bn_g"].reshape(1, -1, 1, 1)
        b = p["dyn_proj1_bn_b"].reshape(1, -1, 1, 1)
        hn = _gelu((h - m) * (g * lax.rsqrt(v + _EPS)) + b)
        return (jnp.einsum("or,brhw->bohw", p["dyn_proj2_w"], hn)
                + p["dyn_proj2_b"].reshape(1, -1, 1, 1))

    sw = proj(_adaptive_avg_pool2d(x1_img, 3, 3)).reshape(B, G, d, 3, 3)
    sb = proj(jnp.mean(x1_img, axis=(2, 3), keepdims=True)).reshape(B, G, d)
    dyn_w = jnp.sum(jax.nn.softmax(sw, axis=1) * p["dyn_weight"][None], axis=1)
    dyn_b = jnp.sum(jax.nn.softmax(sb, axis=1) * p["dyn_bias"][None], axis=1)
    return dyn_w, dyn_b                            # (B, d, 3, 3), (B, d)


# --------------------------- K2: fused attention ---------------------------

def _attention_kernel(x_ref, wq_ref, bq_ref, wkv_ref, bkv_ref, wloc_ref,
                      bloc_ref, m_ref, o_ref, *, scale, shifts, batch, n):
    # Single invocation over all batches: build a lane-dense (d, B*N) slab so
    # the local depthwise conv and the q / kv 1x1 projections each run once.
    B, N = batch, n
    d = x_ref.shape[1]
    x = jnp.concatenate([x_ref[b] for b in range(B)], axis=1)   # (d, B*N)
    mask = m_ref[...]                                           # (9, 1, B*N)
    wloc = wloc_ref[...]                                        # (9, d, 1)

    # local_conv (depthwise 3x3) + residual via XLU lane rolls + masks.
    kv = x + bloc_ref[...]
    for t in range(9):
        xt = x if shifts[t] == 0 else pltpu.roll(x, shifts[t], axis=1)
        kv = kv + wloc[t] * (mask[t] * xt)

    # fused 1x1 projections over the whole slab (one MXU pass each).
    q = _mm(wq_ref[...], x) + bq_ref[...]                       # (d, B*N)
    kvp = _mm(wkv_ref[...], kv) + bkv_ref[...]                  # (2d, B*N)
    k = kvp[:d]
    v = kvp[d:]

    # per-batch softmax(q^T k) v; score matrix is (N, N) in f32.
    # TODO(synk): switch to a KV-blocked online-softmax (flash) variant for
    # large N (N^2 f32 exceeds scoped VMEM around N ~ 2.8k).
    for b in range(B):
        lo, hi = b * N, (b + 1) * N
        qb, kb, vb = q[:, lo:hi], k[:, lo:hi], v[:, lo:hi]
        s = lax.dot_general(
            qb.astype(_MXU_DTYPE), kb.astype(_MXU_DTYPE),
            dimension_numbers=(((0,), (0,)), ((), ())),
            preferred_element_type=jnp.float32) * scale          # (N, N)
        s = s - jnp.max(s, axis=-1, keepdims=True)
        e = jnp.exp(s)
        prob = e * pl.reciprocal(jnp.sum(e, axis=-1, keepdims=True),
                                 approx=True)
        # o[c, n] = sum_m v[c, m] * prob[n, m]  -> lane-dense (d, N) output.
        o_ref[b] = lax.dot_general(
            vb.astype(_MXU_DTYPE), prob.astype(_MXU_DTYPE),
            dimension_numbers=(((1,), (1,)), ((), ())),
            preferred_element_type=jnp.float32)


def attention_fused(x3, p, masks, shifts):
    """Fused Attention branch on the upper channel half of x3 (B, 2d, N)."""
    # TODO(synk): relative_pos_enc bicubic-resize path not implemented (the
    # module's forward here is always called with relative_pos_enc=None).
    B, dim, N = x3.shape
    d = dim // 2
    scale = float(d) ** -0.5
    wloc = jnp.transpose(p["att_local_w"].reshape(d, 9), (1, 0))[..., None]
    kern = functools.partial(_attention_kernel, scale=scale, shifts=shifts,
                             batch=B, n=N)
    return pl.pallas_call(
        kern,
        out_shape=jax.ShapeDtypeStruct((B, d, N), jnp.float32),
        grid=(1,),
        in_specs=[
            # channel block 1 == upper half of x3; avoids an XLA slice copy.
            pl.BlockSpec((B, d, N), lambda i: (0, 1, 0)),
            pl.BlockSpec((d, d), lambda i: (0, 0)),
            pl.BlockSpec((d, 1), lambda i: (0, 0)),
            pl.BlockSpec((2 * d, d), lambda i: (0, 0)),
            pl.BlockSpec((2 * d, 1), lambda i: (0, 0)),
            pl.BlockSpec((9, d, 1), lambda i: (0, 0, 0)),
            pl.BlockSpec((d, 1), lambda i: (0, 0)),
            pl.BlockSpec((9, 1, B * N), lambda i: (0, 0, 0)),
        ],
        out_specs=pl.BlockSpec((B, d, N), lambda i: (0, 0, 0)),
        compiler_params=pltpu.CompilerParams(
            dimension_semantics=("arbitrary",),
            vmem_limit_bytes=_VMEM_LIMIT),
    )(x3, p["att_q_w"], p["att_q_b"].reshape(d, 1), p["att_kv_w"],
      p["att_kv_b"].reshape(2 * d, 1), wloc, p["att_local_b"].reshape(d, 1),
      masks)


# ----------------- K3: dynamic conv + proj tail + residual -----------------

def _tail_kernel(x1_ref, x2_ref, dynw_ref, dynb_ref, pdww_ref, pdwb_ref,
                 g1_ref, be1_ref, w1_ref, b1_ref, g2_ref, be2_ref,
                 w2_ref, b2_ref, g3_ref, be3_ref, m_ref, o_ref, *,
                 shifts, eps, batch, n):
    # Fuses: dynamic per-(batch, channel) depthwise 3x3 on the local half,
    # channel concat with the attention half, the whole proj tail
    # (dw3x3 -> GELU -> BN -> 1x1 -> GELU -> BN -> 1x1 -> BN) and the
    # residual.  Everything runs on lane-dense (C, B*N) slabs: one matmul per
    # 1x1 stage and one lane reduction per BatchNorm (exact training-mode
    # batch stats over the B*N pixels), one HBM round trip total.
    B, N = batch, n
    d = x1_ref.shape[1]
    inv = 1.0 / (B * N)
    mask = m_ref[...]                                           # (9, 1, B*N)
    dynw = dynw_ref[...]                                        # (9, d, B*N)
    pdww = pdww_ref[...]                                        # (9, 2d, 1)

    x1 = jnp.concatenate([x1_ref[b] for b in range(B)], axis=1)  # (d, B*N)
    x2 = jnp.concatenate([x2_ref[b] for b in range(B)], axis=1)  # (d, B*N)

    def dw3x3(xs, tapw, bias):
        acc = bias
        for t in range(9):
            xt = xs if shifts[t] == 0 else pltpu.roll(xs, shifts[t], axis=1)
            acc = acc + tapw[t] * (mask[t] * xt)
        return acc

    def bn_coeffs(y, g, b):
        m = jnp.sum(y, axis=1, keepdims=True) * inv
        var = jnp.sum(y * y, axis=1, keepdims=True) * inv - m * m
        a = g * lax.rsqrt(var + eps)
        return a, b - m * a

    # dynamic per-(batch, channel) depthwise conv on the local half + concat
    x1o = dw3x3(x1, dynw, dynb_ref[...])                        # (d, B*N)
    xc = jnp.concatenate([x1o, x2], axis=0)                     # (2d, B*N)

    # proj tail: dw3x3 -> GELU -> BN1 -> 1x1 -> GELU -> BN2 -> 1x1 -> BN3
    y1 = _gelu(dw3x3(xc, pdww, pdwb_ref[...]))
    a1, c1 = bn_coeffs(y1, g1_ref[...], be1_ref[...])
    z = _gelu(_mm(w1_ref[...], y1 * a1 + c1) + b1_ref[...])     # (inner, B*N)
    a2, c2 = bn_coeffs(z, g2_ref[...], be2_ref[...])
    h = _mm(w2_ref[...], z * a2 + c2) + b2_ref[...]             # (2d, B*N)
    a3, c3 = bn_coeffs(h, g3_ref[...], be3_ref[...])

    out = h * a3 + c3 + xc                                      # + residual
    for b in range(B):
        o_ref[b] = out[:, b * N:(b + 1) * N]


def mixer_tail(x3, x2o, dyn_w, dyn_b, p, masks, shifts):
    B, dim, N = x3.shape
    d = dim // 2
    inner = p["proj_pw1_w"].shape[0]
    # Per-batch dynamic depthwise weights / bias in lane-slab form:
    #   dynw_slab[t, c, b*N + n] = dyn_w[b, c, t]   (tiny, built by XLA once)
    dynw_slab = jnp.repeat(
        jnp.transpose(dyn_w.reshape(B, d, 9), (2, 1, 0)), N, axis=2)
    dynb_slab = jnp.repeat(jnp.transpose(dyn_b, (1, 0)), N, axis=1)
    pdww = jnp.transpose(p["proj_dw_w"].reshape(dim, 9), (1, 0))[..., None]
    kern = functools.partial(_tail_kernel, shifts=shifts, eps=_EPS,
                             batch=B, n=N)
    # TODO(synk): for much larger B*H*W, grid this over batch with BN
    # sum/sum-sq accumulators in scratch (2-phase finalize) to restore
    # pipelining; fine whole-tensor at this size.
    return pl.pallas_call(
        kern,
        out_shape=jax.ShapeDtypeStruct((B, dim, N), jnp.float32),
        grid=(1,),
        in_specs=[
            # channel block 0 == lower half of x3; avoids an XLA slice copy.
            pl.BlockSpec((B, d, N), lambda i: (0, 0, 0)),
            pl.BlockSpec((B, d, N), lambda i: (0, 0, 0)),
            pl.BlockSpec((9, d, B * N), lambda i: (0, 0, 0)),
            pl.BlockSpec((d, B * N), lambda i: (0, 0)),
            pl.BlockSpec((9, dim, 1), lambda i: (0, 0, 0)),
            pl.BlockSpec((dim, 1), lambda i: (0, 0)),
            pl.BlockSpec((dim, 1), lambda i: (0, 0)),
            pl.BlockSpec((dim, 1), lambda i: (0, 0)),
            pl.BlockSpec((inner, dim), lambda i: (0, 0)),
            pl.BlockSpec((inner, 1), lambda i: (0, 0)),
            pl.BlockSpec((inner, 1), lambda i: (0, 0)),
            pl.BlockSpec((inner, 1), lambda i: (0, 0)),
            pl.BlockSpec((dim, inner), lambda i: (0, 0)),
            pl.BlockSpec((dim, 1), lambda i: (0, 0)),
            pl.BlockSpec((dim, 1), lambda i: (0, 0)),
            pl.BlockSpec((dim, 1), lambda i: (0, 0)),
            pl.BlockSpec((9, 1, B * N), lambda i: (0, 0, 0)),
        ],
        out_specs=pl.BlockSpec((B, dim, N), lambda i: (0, 0, 0)),
        compiler_params=pltpu.CompilerParams(
            dimension_semantics=("arbitrary",),
            vmem_limit_bytes=_VMEM_LIMIT),
    )(x3, x2o, dynw_slab, dynb_slab, pdww,
      p["proj_dw_b"].reshape(dim, 1),
      p["proj_bn1_g"].reshape(dim, 1), p["proj_bn1_b"].reshape(dim, 1),
      p["proj_pw1_w"], p["proj_pw1_b"].reshape(inner, 1),
      p["proj_bn2_g"].reshape(inner, 1), p["proj_bn2_b"].reshape(inner, 1),
      p["proj_pw2_w"], p["proj_pw2_b"].reshape(dim, 1),
      p["proj_bn3_g"].reshape(dim, 1), p["proj_bn3_b"].reshape(dim, 1),
      masks)


# --------------------------- Module forward pass ---------------------------

def hybrid_token_mixer(x, p):
    """HybridTokenMixer.forward.  x: (B, dim, H, W) float32 (NCHW)."""
    B, dim, H, W = x.shape
    d = dim // 2
    N = H * W

    # Internal layout is (B, C, N) = NCHW with spatial flattened, so the
    # entry/exit conversion is a free reshape.
    x3 = x.reshape(B, dim, N)
    masks, shifts = _dw_masks_shifts(H, W, B)

    # DynamicConv2d weight / bias generation (tiny -> plain XLA).
    dyn_w, dyn_b = _dyn_scale(x[:, :d], p)                       # (B,d,3,3),(B,d)

    # Attention branch (K2), upper channel half selected via BlockSpec.
    x2o = attention_fused(x3, p, masks, shifts)                  # (B, d, N)

    # dynamic depthwise conv + concat + proj tail + residual (K3).
    out = mixer_tail(x3, x2o, dyn_w, dyn_b, p, masks, shifts)    # (B, dim, N)
    return out.reshape(B, dim, H, W)


# ------------------------------ Parameter init ------------------------------

def init_params(key, dim=32, kernel_size=3, num_groups=2, reduction_ratio=8):
    d = dim // 2
    inner = max(16, dim // reduction_ratio)
    K, G = kernel_size, num_groups
    keys = iter(jax.random.split(key, 32))

    def nrm(shape, std=0.02):
        return std * jax.random.normal(next(keys), shape, jnp.float32)

    p = {}
    # DynamicConv2d (local_unit): dim=d, its own reduction_ratio default = 4
    dr = d // 4
    p["dyn_weight"] = nrm((G, d, K, K))
    p["dyn_bias"] = nrm((G, d))
    p["dyn_proj1_w"] = nrm((dr, d))                 # 1x1 conv, bias=False (BN)
    p["dyn_proj1_bn_g"] = jnp.ones((dr,), jnp.float32)
    p["dyn_proj1_bn_b"] = jnp.zeros((dr,), jnp.float32)
    p["dyn_proj2_w"] = nrm((d * G, dr))
    p["dyn_proj2_b"] = nrm((d * G,))
    # Attention (global_unit): dim=d, heads=1, sr_ratio=1
    p["att_q_w"] = nrm((d, d))
    p["att_q_b"] = nrm((d,))
    p["att_kv_w"] = nrm((2 * d, d))
    p["att_kv_b"] = nrm((2 * d,))
    p["att_local_w"] = nrm((d, 3, 3))               # depthwise 3x3
    p["att_local_b"] = nrm((d,))
    # proj head
    p["proj_dw_w"] = nrm((dim, 3, 3))
    p["proj_dw_b"] = nrm((dim,))
    p["proj_bn1_g"] = jnp.ones((dim,), jnp.float32)
    p["proj_bn1_b"] = jnp.zeros((dim,), jnp.float32)
    p["proj_pw1_w"] = nrm((inner, dim))
    p["proj_pw1_b"] = nrm((inner,))
    p["proj_bn2_g"] = jnp.ones((inner,), jnp.float32)
    p["proj_bn2_b"] = jnp.zeros((inner,), jnp.float32)
    p["proj_pw2_w"] = nrm((dim, inner))
    p["proj_pw2_b"] = nrm((dim,))
    p["proj_bn3_g"] = jnp.ones((dim,), jnp.float32)
    p["proj_bn3_b"] = jnp.zeros((dim,), jnp.float32)
    return p


# ----------------------------------- Main -----------------------------------

if __name__ == "__main__":
    key = jax.random.PRNGKey(0)
    kx, kp = jax.random.split(key)
    B, dim, H, W = 2, 32, 16, 16
    x = jax.random.normal(kx, (B, dim, H, W), jnp.float32)
    params = init_params(kp, dim=dim)

    fn = jax.jit(hybrid_token_mixer)
    out = fn(x, params)
    jax.block_until_ready(out)
    assert out.shape == (B, dim, H, W), out.shape
    assert bool(jnp.all(jnp.isfinite(out)))
    print("KERNEL_OK")
</pallas_src>

<mosaic_0001>
module attributes {stable_mosaic.version = 11 : i64} {
  func.func @_tail_kernel(%arg0: i32, %arg1: memref<2x16x256xf32, #tpu.memory_space<vmem>>, %arg2: memref<2x16x256xf32, #tpu.memory_space<vmem>>, %arg3: memref<9x16x512xf32, #tpu.memory_space<vmem>>, %arg4: memref<16x512xf32, #tpu.memory_space<vmem>>, %arg5: memref<9x32x1xf32, #tpu.memory_space<vmem>>, %arg6: memref<32x1xf32, #tpu.memory_space<vmem>>, %arg7: memref<32x1xf32, #tpu.memory_space<vmem>>, %arg8: memref<32x1xf32, #tpu.memory_space<vmem>>, %arg9: memref<16x32xf32, #tpu.memory_space<vmem>>, %arg10: memref<16x1xf32, #tpu.memory_space<vmem>>, %arg11: memref<16x1xf32, #tpu.memory_space<vmem>>, %arg12: memref<16x1xf32, #tpu.memory_space<vmem>>, %arg13: memref<32x16xf32, #tpu.memory_space<vmem>>, %arg14: memref<32x1xf32, #tpu.memory_space<vmem>>, %arg15: memref<32x1xf32, #tpu.memory_space<vmem>>, %arg16: memref<32x1xf32, #tpu.memory_space<vmem>>, %arg17: memref<9x1x512xf32, #tpu.memory_space<vmem>>, %arg18: memref<2x32x256xf32, #tpu.memory_space<vmem>>) attributes {dimension_semantics = [#tpu.dimension_semantics<arbitrary>], iteration_bounds = array<i64: 1>, scalar_prefetch = 0 : i64, scratch_operands = 0 : i64, tpu.core_type = #tpu.core_type<tc>, window_params = [{transform_indices = @transform_0, window_bounds = array<i64: 2, 16, 256>}, {pipeline_mode = #tpu.pipeline_mode<synchronous>, transform_indices = @transform_1, window_bounds = array<i64: 2, 16, 256>}, {pipeline_mode = #tpu.pipeline_mode<synchronous>, transform_indices = @transform_2, window_bounds = array<i64: 9, 16, 512>}, {pipeline_mode = #tpu.pipeline_mode<synchronous>, transform_indices = @transform_3, window_bounds = array<i64: 16, 512>}, {pipeline_mode = #tpu.pipeline_mode<synchronous>, transform_indices = @transform_4, window_bounds = array<i64: 9, 32, 1>}, {pipeline_mode = #tpu.pipeline_mode<synchronous>, transform_indices = @transform_5, window_bounds = array<i64: 32, 1>}, {pipeline_mode = #tpu.pipeline_mode<synchronous>, transform_indices = @transform_6, window_bounds = array<i64: 32, 1>}, {pipeline_mode = #tpu.pipeline_mode<synchronous>, transform_indices = @transform_7, window_bounds = array<i64: 32, 1>}, {pipeline_mode = #tpu.pipeline_mode<synchronous>, transform_indices = @transform_8, window_bounds = array<i64: 16, 32>}, {pipeline_mode = #tpu.pipeline_mode<synchronous>, transform_indices = @transform_9, window_bounds = array<i64: 16, 1>}, {pipeline_mode = #tpu.pipeline_mode<synchronous>, transform_indices = @transform_10, window_bounds = array<i64: 16, 1>}, {pipeline_mode = #tpu.pipeline_mode<synchronous>, transform_indices = @transform_11, window_bounds = array<i64: 16, 1>}, {pipeline_mode = #tpu.pipeline_mode<synchronous>, transform_indices = @transform_12, window_bounds = array<i64: 32, 16>}, {pipeline_mode = #tpu.pipeline_mode<synchronous>, transform_indices = @transform_13, window_bounds = array<i64: 32, 1>}, {pipeline_mode = #tpu.pipeline_mode<synchronous>, transform_indices = @transform_14, window_bounds = array<i64: 32, 1>}, {pipeline_mode = #tpu.pipeline_mode<synchronous>, transform_indices = @transform_15, window_bounds = array<i64: 32, 1>}, {pipeline_mode = #tpu.pipeline_mode<synchronous>, transform_indices = @transform_16, window_bounds = array<i64: 9, 1, 512>}, {pipeline_mode = #tpu.pipeline_mode<synchronous>, transform_indices = @transform_17, window_bounds = array<i64: 2, 32, 256>}]} {
    %c0 = arith.constant 0 : index
    %c0_0 = arith.constant 0 : index
    %c0_1 = arith.constant 0 : index
    %0 = vector.load %arg17[%c0, %c0_0, %c0_1] : memref<9x1x512xf32, #tpu.memory_space<vmem>>, vector<9x1x512xf32>
    %c0_2 = arith.constant 0 : index
    %c0_3 = arith.constant 0 : index
    %c0_4 = arith.constant 0 : index
    %1 = vector.load %arg3[%c0_2, %c0_3, %c0_4] : memref<9x16x512xf32, #tpu.memory_space<vmem>>, vector<9x16x512xf32>
    %c0_5 = arith.constant 0 : index
    %c0_6 = arith.constant 0 : index
    %c0_7 = arith.constant 0 : index
    %2 = vector.load %arg5[%c0_5, %c0_6, %c0_7] : memref<9x32x1xf32, #tpu.memory_space<vmem>>, vector<9x32x1xf32>
    %c0_8 = arith.constant 0 : index
    %c0_9 = arith.constant 0 : index
    %c0_10 = arith.constant 0 : index
    %3 = vector.load %arg1[%c0_8, %c0_9, %c0_10] : memref<2x16x256xf32, #tpu.memory_space<vmem>>, vector<1x16x256xf32>
    %4 = vector.shape_cast %3 : vector<1x16x256xf32> to vector<16x256xf32>
    %c1 = arith.constant 1 : index
    %c0_11 = arith.constant 0 : index
    %c0_12 = arith.constant 0 : index
    %5 = vector.load %arg1[%c1, %c0_11, %c0_12] : memref<2x16x256xf32, #tpu.memory_space<vmem>>, vector<1x16x256xf32>
    %6 = vector.shape_cast %5 : vector<1x16x256xf32> to vector<16x256xf32>
    %7 = tpu.concatenate %4, %6 in 1 : vector<16x256xf32>, vector<16x256xf32> -> vector<16x512xf32>
    %c0_13 = arith.constant 0 : index
    %c0_14 = arith.constant 0 : index
    %c0_15 = arith.constant 0 : index
    %8 = vector.load %arg2[%c0_13, %c0_14, %c0_15] : memref<2x16x256xf32, #tpu.memory_space<vmem>>, vector<1x16x256xf32>
    %9 = vector.shape_cast %8 : vector<1x16x256xf32> to vector<16x256xf32>
    %c1_16 = arith.constant 1 : index
    %c0_17 = arith.constant 0 : index
    %c0_18 = arith.constant 0 : index
    %10 = vector.load %arg2[%c1_16, %c0_17, %c0_18] : memref<2x16x256xf32, #tpu.memory_space<vmem>>, vector<1x16x256xf32>
    %11 = vector.shape_cast %10 : vector<1x16x256xf32> to vector<16x256xf32>
    %12 = tpu.concatenate %9, %11 in 1 : vector<16x256xf32>, vector<16x256xf32> -> vector<16x512xf32>
    %c0_19 = arith.constant 0 : index
    %c0_20 = arith.constant 0 : index
    %13 = vector.load %arg4[%c0_19, %c0_20] : memref<16x512xf32, #tpu.memory_space<vmem>>, vector<16x512xf32>
    %c17_i32 = arith.constant 17 : i32
    %14 = tpu.dynamic_rotate %7 by %c17_i32 dim 1 : vector<16x512xf32>, i32 -> vector<16x512xf32>
    %15 = vector.extract_strided_slice %1 {offsets = [0, 0, 0], sizes = [1, 16, 512], strides = [1, 1, 1]} : vector<9x16x512xf32> to vector<1x16x512xf32>
    %16 = vector.shape_cast %15 : vector<1x16x512xf32> to vector<16x512xf32>
    %17 = vector.extract_strided_slice %0 {offsets = [0, 0, 0], sizes = [1, 1, 512], strides = [1, 1, 1]} : vector<9x1x512xf32> to vector<1x1x512xf32>
    %18 = vector.shape_cast %17 : vector<1x1x512xf32> to vector<1x512xf32>
    %19 = vector.broadcast %18 : vector<1x512xf32> to vector<16x512xf32>
    %20 = arith.mulf %19, %14 : vector<16x512xf32>
    %21 = arith.mulf %16, %20 : vector<16x512xf32>
    %22 = arith.addf %13, %21 : vector<16x512xf32>
    %c16_i32 = arith.constant 16 : i32
    %23 = tpu.dynamic_rotate %7 by %c16_i32 dim 1 : vector<16x512xf32>, i32 -> vector<16x512xf32>
    %24 = vector.extract_strided_slice %1 {offsets = [1, 0, 0], sizes = [1, 16, 512], strides = [1, 1, 1]} : vector<9x16x512xf32> to vector<1x16x512xf32>
    %25 = vector.shape_cast %24 : vector<1x16x512xf32> to vector<16x512xf32>
    %26 = vector.extract_strided_slice %0 {offsets = [1, 0, 0], sizes = [1, 1, 512], strides = [1, 1, 1]} : vector<9x1x512xf32> to vector<1x1x512xf32>
    %27 = vector.shape_cast %26 : vector<1x1x512xf32> to vector<1x512xf32>
    %28 = vector.broadcast %27 : vector<1x512xf32> to vector<16x512xf32>
    %29 = arith.mulf %28, %23 : vector<16x512xf32>
    %30 = arith.mulf %25, %29 : vector<16x512xf32>
    %31 = arith.addf %22, %30 : vector<16x512xf32>
    %c15_i32 = arith.constant 15 : i32
    %32 = tpu.dynamic_rotate %7 by %c15_i32 dim 1 : vector<16x512xf32>, i32 -> vector<16x512xf32>
    %33 = vector.extract_strided_slice %1 {offsets = [2, 0, 0], sizes = [1, 16, 512], strides = [1, 1, 1]} : vector<9x16x512xf32> to vector<1x16x512xf32>
    %34 = vector.shape_cast %33 : vector<1x16x512xf32> to vector<16x512xf32>
    %35 = vector.extract_strided_slice %0 {offsets = [2, 0, 0], sizes = [1, 1, 512], strides = [1, 1, 1]} : vector<9x1x512xf32> to vector<1x1x512xf32>
    %36 = vector.shape_cast %35 : vector<1x1x512xf32> to vector<1x512xf32>
    %37 = vector.broadcast %36 : vector<1x512xf32> to vector<16x512xf32>
    %38 = arith.mulf %37, %32 : vector<16x512xf32>
    %39 = arith.mulf %34, %38 : vector<16x512xf32>
    %40 = arith.addf %31, %39 : vector<16x512xf32>
    %c1_i32 = arith.constant 1 : i32
    %41 = tpu.dynamic_rotate %7 by %c1_i32 dim 1 : vector<16x512xf32>, i32 -> vector<16x512xf32>
    %42 = vector.extract_strided_slice %1 {offsets = [3, 0, 0], sizes = [1, 16, 512], strides = [1, 1, 1]} : vector<9x16x512xf32> to vector<1x16x512xf32>
    %43 = vector.shape_cast %42 : vector<1x16x512xf32> to vector<16x512xf32>
    %44 = vector.extract_strided_slice %0 {offsets = [3, 0, 0], sizes = [1, 1, 512], strides = [1, 1, 1]} : vector<9x1x512xf32> to vector<1x1x512xf32>
    %45 = vector.shape_cast %44 : vector<1x1x512xf32> to vector<1x512xf32>
    %46 = vector.broadcast %45 : vector<1x512xf32> to vector<16x512xf32>
    %47 = arith.mulf %46, %41 : vector<16x512xf32>
    %48 = arith.mulf %43, %47 : vector<16x512xf32>
    %49 = arith.addf %40, %48 : vector<16x512xf32>
    %50 = vector.extract_strided_slice %1 {offsets = [4, 0, 0], sizes = [1, 16, 512], strides = [1, 1, 1]} : vector<9x16x512xf32> to vector<1x16x512xf32>
    %51 = vector.shape_cast %50 : vector<1x16x512xf32> to vector<16x512xf32>
    %52 = vector.extract_strided_slice %0 {offsets = [4, 0, 0], sizes = [1, 1, 512], strides = [1, 1, 1]} : vector<9x1x512xf32> to vector<1x1x512xf32>
    %53 = vector.shape_cast %52 : vector<1x1x512xf32> to vector<1x512xf32>
    %54 = vector.broadcast %53 : vector<1x512xf32> to vector<16x512xf32>
    %55 = arith.mulf %54, %7 : vector<16x512xf32>
    %56 = arith.mulf %51, %55 : vector<16x512xf32>
    %57 = arith.addf %49, %56 : vector<16x512xf32>
    %c511_i32 = arith.constant 511 : i32
    %58 = tpu.dynamic_rotate %7 by %c511_i32 dim 1 : vector<16x512xf32>, i32 -> vector<16x512xf32>
    %59 = vector.extract_strided_slice %1 {offsets = [5, 0, 0], sizes = [1, 16, 512], strides = [1, 1, 1]} : vector<9x16x512xf32> to vector<1x16x512xf32>
    %60 = vector.shape_cast %59 : vector<1x16x512xf32> to vector<16x512xf32>
    %61 = vector.extract_strided_slice %0 {offsets = [5, 0, 0], sizes = [1, 1, 512], strides = [1, 1, 1]} : vector<9x1x512xf32> to vector<1x1x512xf32>
    %62 = vector.shape_cast %61 : vector<1x1x512xf32> to vector<1x512xf32>
    %63 = vector.broadcast %62 : vector<1x512xf32> to vector<16x512xf32>
    %64 = arith.mulf %63, %58 : vector<16x512xf32>
    %65 = arith.mulf %60, %64 : vector<16x512xf32>
    %66 = arith.addf %57, %65 : vector<16x512xf32>
    %c497_i32 = arith.constant 497 : i32
    %67 = tpu.dynamic_rotate %7 by %c497_i32 dim 1 : vector<16x512xf32>, i32 -> vector<16x512xf32>
    %68 = vector.extract_strided_slice %1 {offsets = [6, 0, 0], sizes = [1, 16, 512], strides = [1, 1, 1]} : vector<9x16x512xf32> to vector<1x16x512xf32>
    %69 = vector.shape_cast %68 : vector<1x16x512xf32> to vector<16x512xf32>
    %70 = vector.extract_strided_slice %0 {offsets = [6, 0, 0], sizes = [1, 1, 512], strides = [1, 1, 1]} : vector<9x1x512xf32> to vector<1x1x512xf32>
    %71 = vector.shape_cast %70 : vector<1x1x512xf32> to vector<1x512xf32>
    %72 = vector.broadcast %71 : vector<1x512xf32> to vector<16x512xf32>
    %73 = arith.mulf %72, %67 : vector<16x512xf32>
    %74 = arith.mulf %69, %73 : vector<16x512xf32>
    %75 = arith.addf %66, %74 : vector<16x512xf32>
    %c496_i32 = arith.constant 496 : i32
    %76 = tpu.dynamic_rotate %7 by %c496_i32 dim 1 : vector<16x512xf32>, i32 -> vector<16x512xf32>
    %77 = vector.extract_strided_slice %1 {offsets = [7, 0, 0], sizes = [1, 16, 512], strides = [1, 1, 1]} : vector<9x16x512xf32> to vector<1x16x512xf32>
    %78 = vector.shape_cast %77 : vector<1x16x512xf32> to vector<16x512xf32>
    %79 = vector.extract_strided_slice %0 {offsets = [7, 0, 0], sizes = [1, 1, 512], strides = [1, 1, 1]} : vector<9x1x512xf32> to vector<1x1x512xf32>
    %80 = vector.shape_cast %79 : vector<1x1x512xf32> to vector<1x512xf32>
    %81 = vector.broadcast %80 : vector<1x512xf32> to vector<16x512xf32>
    %82 = arith.mulf %81, %76 : vector<16x512xf32>
    %83 = arith.mulf %78, %82 : vector<16x512xf32>
    %84 = arith.addf %75, %83 : vector<16x512xf32>
    %c495_i32 = arith.constant 495 : i32
    %85 = tpu.dynamic_rotate %7 by %c495_i32 dim 1 : vector<16x512xf32>, i32 -> vector<16x512xf32>
    %86 = vector.extract_strided_slice %1 {offsets = [8, 0, 0], sizes = [1, 16, 512], strides = [1, 1, 1]} : vector<9x16x512xf32> to vector<1x16x512xf32>
    %87 = vector.shape_cast %86 : vector<1x16x512xf32> to vector<16x512xf32>
    %88 = vector.extract_strided_slice %0 {offsets = [8, 0, 0], sizes = [1, 1, 512], strides = [1, 1, 1]} : vector<9x1x512xf32> to vector<1x1x512xf32>
    %89 = vector.shape_cast %88 : vector<1x1x512xf32> to vector<1x512xf32>
    %90 = vector.broadcast %89 : vector<1x512xf32> to vector<16x512xf32>
    %91 = arith.mulf %90, %85 : vector<16x512xf32>
    %92 = arith.mulf %87, %91 : vector<16x512xf32>
    %93 = arith.addf %84, %92 : vector<16x512xf32>
    %94 = tpu.concatenate %93, %12 in 0 : vector<16x512xf32>, vector<16x512xf32> -> vector<32x512xf32>
    %c0_21 = arith.constant 0 : index
    %c0_22 = arith.constant 0 : index
    %95 = vector.load %arg6[%c0_21, %c0_22] : memref<32x1xf32, #tpu.memory_space<vmem>>, vector<32x1xf32>
    %c17_i32_23 = arith.constant 17 : i32
    %96 = tpu.dynamic_rotate %94 by %c17_i32_23 dim 1 : vector<32x512xf32>, i32 -> vector<32x512xf32>
    %97 = vector.extract_strided_slice %2 {offsets = [0, 0, 0], sizes = [1, 32, 1], strides = [1, 1, 1]} : vector<9x32x1xf32> to vector<1x32x1xf32>
    %98 = vector.shape_cast %97 : vector<1x32x1xf32> to vector<32x1xf32>
    %99 = vector.extract_strided_slice %0 {offsets = [0, 0, 0], sizes = [1, 1, 512], strides = [1, 1, 1]} : vector<9x1x512xf32> to vector<1x1x512xf32>
    %100 = vector.shape_cast %99 : vector<1x1x512xf32> to vector<1x512xf32>
    %101 = vector.broadcast %100 : vector<1x512xf32> to vector<32x512xf32>
    %102 = arith.mulf %101, %96 : vector<32x512xf32>
    %103 = vector.broadcast %98 : vector<32x1xf32> to vector<32x512xf32>
    %104 = arith.mulf %103, %102 : vector<32x512xf32>
    %105 = vector.broadcast %95 : vector<32x1xf32> to vector<32x512xf32>
    %106 = arith.addf %105, %104 : vector<32x512xf32>
    %c16_i32_24 = arith.constant 16 : i32
    %107 = tpu.dynamic_rotate %94 by %c16_i32_24 dim 1 : vector<32x512xf32>, i32 -> vector<32x512xf32>
    %108 = vector.extract_strided_slice %2 {offsets = [1, 0, 0], sizes = [1, 32, 1], strides = [1, 1, 1]} : vector<9x32x1xf32> to vector<1x32x1xf32>
    %109 = vector.shape_cast %108 : vector<1x32x1xf32> to vector<32x1xf32>
    %110 = vector.extract_strided_slice %0 {offsets = [1, 0, 0], sizes = [1, 1, 512], strides = [1, 1, 1]} : vector<9x1x512xf32> to vector<1x1x512xf32>
    %111 = vector.shape_cast %110 : vector<1x1x512xf32> to vector<1x512xf32>
    %112 = vector.broadcast %111 : vector<1x512xf32> to vector<32x512xf32>
    %113 = arith.mulf %112, %107 : vector<32x512xf32>
    %114 = vector.broadcast %109 : vector<32x1xf32> to vector<32x512xf32>
    %115 = arith.mulf %114, %113 : vector<32x512xf32>
    %116 = arith.addf %106, %115 : vector<32x512xf32>
    %c15_i32_25 = arith.constant 15 : i32
    %117 = tpu.dynamic_rotate %94 by %c15_i32_25 dim 1 : vector<32x512xf32>, i32 -> vector<32x512xf32>
    %118 = vector.extract_strided_slice %2 {offsets = [2, 0, 0], sizes = [1, 32, 1], strides = [1, 1, 1]} : vector<9x32x1xf32> to vector<1x32x1xf32>
    %119 = vector.shape_cast %118 : vector<1x32x1xf32> to vector<32x1xf32>
    %120 = vector.extract_strided_slice %0 {offsets = [2, 0, 0], sizes = [1, 1, 512], strides = [1, 1, 1]} : vector<9x1x512xf32> to vector<1x1x512xf32>
    %121 = vector.shape_cast %120 : vector<1x1x512xf32> to vector<1x512xf32>
    %122 = vector.broadcast %121 : vector<1x512xf32> to vector<32x512xf32>
    %123 = arith.mulf %122, %117 : vector<32x512xf32>
    %124 = vector.broadcast %119 : vector<32x1xf32> to vector<32x512xf32>
    %125 = arith.mulf %124, %123 : vector<32x512xf32>
    %126 = arith.addf %116, %125 : vector<32x512xf32>
    %c1_i32_26 = arith.constant 1 : i32
    %127 = tpu.dynamic_rotate %94 by %c1_i32_26 dim 1 : vector<32x512xf32>, i32 -> vector<32x512xf32>
    %128 = vector.extract_strided_slice %2 {offsets = [3, 0, 0], sizes = [1, 32, 1], strides = [1, 1, 1]} : vector<9x32x1xf32> to vector<1x32x1xf32>
    %129 = vector.shape_cast %128 : vector<1x32x1xf32> to vector<32x1xf32>
    %130 = vector.extract_strided_slice %0 {offsets = [3, 0, 0], sizes = [1, 1, 512], strides = [1, 1, 1]} : vector<9x1x512xf32> to vector<1x1x512xf32>
    %131 = vector.shape_cast %130 : vector<1x1x512xf32> to vector<1x512xf32>
    %132 = vector.broadcast %131 : vector<1x512xf32> to vector<32x512xf32>
    %133 = arith.mulf %132, %127 : vector<32x512xf32>
    %134 = vector.broadcast %129 : vector<32x1xf32> to vector<32x512xf32>
    %135 = arith.mulf %134, %133 : vector<32x512xf32>
    %136 = arith.addf %126, %135 : vector<32x512xf32>
    %137 = vector.extract_strided_slice %2 {offsets = [4, 0, 0], sizes = [1, 32, 1], strides = [1, 1, 1]} : vector<9x32x1xf32> to vector<1x32x1xf32>
    %138 = vector.shape_cast %137 : vector<1x32x1xf32> to vector<32x1xf32>
    %139 = vector.extract_strided_slice %0 {offsets = [4, 0, 0], sizes = [1, 1, 512], strides = [1, 1, 1]} : vector<9x1x512xf32> to vector<1x1x512xf32>
    %140 = vector.shape_cast %139 : vector<1x1x512xf32> to vector<1x512xf32>
    %141 = vector.broadcast %140 : vector<1x512xf32> to vector<32x512xf32>
    %142 = arith.mulf %141, %94 : vector<32x512xf32>
    %143 = vector.broadcast %138 : vector<32x1xf32> to vector<32x512xf32>
    %144 = arith.mulf %143, %142 : vector<32x512xf32>
    %145 = arith.addf %136, %144 : vector<32x512xf32>
    %c511_i32_27 = arith.constant 511 : i32
    %146 = tpu.dynamic_rotate %94 by %c511_i32_27 dim 1 : vector<32x512xf32>, i32 -> vector<32x512xf32>
    %147 = vector.extract_strided_slice %2 {offsets = [5, 0, 0], sizes = [1, 32, 1], strides = [1, 1, 1]} : vector<9x32x1xf32> to vector<1x32x1xf32>
    %148 = vector.shape_cast %147 : vector<1x32x1xf32> to vector<32x1xf32>
    %149 = vector.extract_strided_slice %0 {offsets = [5, 0, 0], sizes = [1, 1, 512], strides = [1, 1, 1]} : vector<9x1x512xf32> to vector<1x1x512xf32>
    %150 = vector.shape_cast %149 : vector<1x1x512xf32> to vector<1x512xf32>
    %151 = vector.broadcast %150 : vector<1x512xf32> to vector<32x512xf32>
    %152 = arith.mulf %151, %146 : vector<32x512xf32>
    %153 = vector.broadcast %148 : vector<32x1xf32> to vector<32x512xf32>
    %154 = arith.mulf %153, %152 : vector<32x512xf32>
    %155 = arith.addf %145, %154 : vector<32x512xf32>
    %c497_i32_28 = arith.constant 497 : i32
    %156 = tpu.dynamic_rotate %94 by %c497_i32_28 dim 1 : vector<32x512xf32>, i32 -> vector<32x512xf32>
    %157 = vector.extract_strided_slice %2 {offsets = [6, 0, 0], sizes = [1, 32, 1], strides = [1, 1, 1]} : vector<9x32x1xf32> to vector<1x32x1xf32>
    %158 = vector.shape_cast %157 : vector<1x32x1xf32> to vector<32x1xf32>
    %159 = vector.extract_strided_slice %0 {offsets = [6, 0, 0], sizes = [1, 1, 512], strides = [1, 1, 1]} : vector<9x1x512xf32> to vector<1x1x512xf32>
    %160 = vector.shape_cast %159 : vector<1x1x512xf32> to vector<1x512xf32>
    %161 = vector.broadcast %160 : vector<1x512xf32> to vector<32x512xf32>
    %162 = arith.mulf %161, %156 : vector<32x512xf32>
    %163 = vector.broadcast %158 : vector<32x1xf32> to vector<32x512xf32>
    %164 = arith.mulf %163, %162 : vector<32x512xf32>
    %165 = arith.addf %155, %164 : vector<32x512xf32>
    %c496_i32_29 = arith.constant 496 : i32
    %166 = tpu.dynamic_rotate %94 by %c496_i32_29 dim 1 : vector<32x512xf32>, i32 -> vector<32x512xf32>
    %167 = vector.extract_strided_slice %2 {offsets = [7, 0, 0], sizes = [1, 32, 1], strides = [1, 1, 1]} : vector<9x32x1xf32> to vector<1x32x1xf32>
    %168 = vector.shape_cast %167 : vector<1x32x1xf32> to vector<32x1xf32>
    %169 = vector.extract_strided_slice %0 {offsets = [7, 0, 0], sizes = [1, 1, 512], strides = [1, 1, 1]} : vector<9x1x512xf32> to vector<1x1x512xf32>
    %170 = vector.shape_cast %169 : vector<1x1x512xf32> to vector<1x512xf32>
    %171 = vector.broadcast %170 : vector<1x512xf32> to vector<32x512xf32>
    %172 = arith.mulf %171, %166 : vector<32x512xf32>
    %173 = vector.broadcast %168 : vector<32x1xf32> to vector<32x512xf32>
    %174 = arith.mulf %173, %172 : vector<32x512xf32>
    %175 = arith.addf %165, %174 : vector<32x512xf32>
    %c495_i32_30 = arith.constant 495 : i32
    %176 = tpu.dynamic_rotate %94 by %c495_i32_30 dim 1 : vector<32x512xf32>, i32 -> vector<32x512xf32>
    %177 = vector.extract_strided_slice %2 {offsets = [8, 0, 0], sizes = [1, 32, 1], strides = [1, 1, 1]} : vector<9x32x1xf32> to vector<1x32x1xf32>
    %178 = vector.shape_cast %177 : vector<1x32x1xf32> to vector<32x1xf32>
    %179 = vector.extract_strided_slice %0 {offsets = [8, 0, 0], sizes = [1, 1, 512], strides = [1, 1, 1]} : vector<9x1x512xf32> to vector<1x1x512xf32>
    %180 = vector.shape_cast %179 : vector<1x1x512xf32> to vector<1x512xf32>
    %181 = vector.broadcast %180 : vector<1x512xf32> to vector<32x512xf32>
    %182 = arith.mulf %181, %176 : vector<32x512xf32>
    %183 = vector.broadcast %178 : vector<32x1xf32> to vector<32x512xf32>
    %184 = arith.mulf %183, %182 : vector<32x512xf32>
    %185 = arith.addf %175, %184 : vector<32x512xf32>
    %cst = arith.constant 5.000000e-01 : f32
    %186 = vector.broadcast %cst : f32 to vector<32x512xf32>
    %187 = arith.mulf %186, %185 : vector<32x512xf32>
    %cst_31 = arith.constant 0.707106769 : f32
    %188 = vector.broadcast %cst_31 : f32 to vector<32x512xf32>
    %189 = arith.mulf %185, %188 : vector<32x512xf32>
    %190 = math.erf %189 : vector<32x512xf32>
    %cst_32 = arith.constant 1.000000e+00 : f32
    %191 = vector.broadcast %cst_32 : f32 to vector<32x512xf32>
    %192 = arith.addf %191, %190 : vector<32x512xf32>
    %193 = arith.mulf %187, %192 : vector<32x512xf32>
    %c0_33 = arith.constant 0 : index
    %c0_34 = arith.constant 0 : index
    %194 = vector.load %arg7[%c0_33, %c0_34] : memref<32x1xf32, #tpu.memory_space<vmem>>, vector<32x1xf32>
    %c0_35 = arith.constant 0 : index
    %c0_36 = arith.constant 0 : index
    %195 = vector.load %arg8[%c0_35, %c0_36] : memref<32x1xf32, #tpu.memory_space<vmem>>, vector<32x1xf32>
    %cst_37 = arith.constant dense<0.000000e+00> : vector<32xf32>
    %196 = vector.multi_reduction <add>, %193, %cst_37 [1] : vector<32x512xf32> to vector<32xf32>
    %197 = vector.shape_cast %196 : vector<32xf32> to vector<32x1xf32>
    %cst_38 = arith.constant 0.001953125 : f32
    %198 = vector.broadcast %cst_38 : f32 to vector<32x1xf32>
    %199 = arith.mulf %197, %198 : vector<32x1xf32>
    %200 = arith.mulf %193, %193 : vector<32x512xf32>
    %cst_39 = arith.constant dense<0.000000e+00> : vector<32xf32>
    %201 = vector.multi_reduction <add>, %200, %cst_39 [1] : vector<32x512xf32> to vector<32xf32>
    %202 = vector.shape_cast %201 : vector<32xf32> to vector<32x1xf32>
    %cst_40 = arith.constant 0.001953125 : f32
    %203 = vector.broadcast %cst_40 : f32 to vector<32x1xf32>
    %204 = arith.mulf %202, %203 : vector<32x1xf32>
    %205 = arith.mulf %199, %199 : vector<32x1xf32>
    %206 = arith.subf %204, %205 : vector<32x1xf32>
    %cst_41 = arith.constant 9.99999974E-6 : f32
    %207 = vector.broadcast %cst_41 : f32 to vector<32x1xf32>
    %208 = arith.addf %206, %207 : vector<32x1xf32>
    %209 = math.rsqrt %208 : vector<32x1xf32>
    %210 = arith.mulf %194, %209 : vector<32x1xf32>
    %211 = arith.mulf %199, %210 : vector<32x1xf32>
    %212 = arith.subf %195, %211 : vector<32x1xf32>
    %c0_42 = arith.constant 0 : index
    %c0_43 = arith.constant 0 : index
    %213 = vector.load %arg9[%c0_42, %c0_43] : memref<16x32xf32, #tpu.memory_space<vmem>>, vector<16x32xf32>
    %214 = vector.broadcast %210 : vector<32x1xf32> to vector<32x512xf32>
    %215 = arith.mulf %193, %214 : vector<32x512xf32>
    %216 = vector.broadcast %212 : vector<32x1xf32> to vector<32x512xf32>
    %217 = arith.addf %215, %216 : vector<32x512xf32>
    %218 = arith.truncf %213 : vector<16x32xf32> to vector<16x32xbf16>
    %219 = arith.truncf %217 : vector<32x512xf32> to vector<32x512xbf16>
    %cst_44 = arith.constant dense<0.000000e+00> : vector<16x512xf32>
    %220 = tpu.matmul %218, %219, %cst_44 {dimension_numbers = #tpu.dot_dimension_numbers<[1], [0], [0], [1], [0, 0, 1, 1], [], []>} : vector<16x32xbf16>, vector<32x512xbf16>, vector<16x512xf32> -> vector<16x512xf32>
    %c0_45 = arith.constant 0 : index
    %c0_46 = arith.constant 0 : index
    %221 = vector.load %arg10[%c0_45, %c0_46] : memref<16x1xf32, #tpu.memory_space<vmem>>, vector<16x1xf32>
    %222 = vector.broadcast %221 : vector<16x1xf32> to vector<16x512xf32>
    %223 = arith.addf %220, %222 : vector<16x512xf32>
    %cst_47 = arith.constant 5.000000e-01 : f32
    %224 = vector.broadcast %cst_47 : f32 to vector<16x512xf32>
    %225 = arith.mulf %224, %223 : vector<16x512xf32>
    %cst_48 = arith.constant 0.707106769 : f32
    %226 = vector.broadcast %cst_48 : f32 to vector<16x512xf32>
    %227 = arith.mulf %223, %226 : vector<16x512xf32>
    %228 = math.erf %227 : vector<16x512xf32>
    %cst_49 = arith.constant 1.000000e+00 : f32
    %229 = vector.broadcast %cst_49 : f32 to vector<16x512xf32>
    %230 = arith.addf %229, %228 : vector<16x512xf32>
    %231 = arith.mulf %225, %230 : vector<16x512xf32>
    %c0_50 = arith.constant 0 : index
    %c0_51 = arith.constant 0 : index
    %232 = vector.load %arg11[%c0_50, %c0_51] : memref<16x1xf32, #tpu.memory_space<vmem>>, vector<16x1xf32>
    %c0_52 = arith.constant 0 : index
    %c0_53 = arith.constant 0 : index
    %233 = vector.load %arg12[%c0_52, %c0_53] : memref<16x1xf32, #tpu.memory_space<vmem>>, vector<16x1xf32>
    %cst_54 = arith.constant dense<0.000000e+00> : vector<16xf32>
    %234 = vector.multi_reduction <add>, %231, %cst_54 [1] : vector<16x512xf32> to vector<16xf32>
    %235 = vector.shape_cast %234 : vector<16xf32> to vector<16x1xf32>
    %cst_55 = arith.constant 0.001953125 : f32
    %236 = vector.broadcast %cst_55 : f32 to vector<16x1xf32>
    %237 = arith.mulf %235, %236 : vector<16x1xf32>
    %238 = arith.mulf %231, %231 : vector<16x512xf32>
    %cst_56 = arith.constant dense<0.000000e+00> : vector<16xf32>
    %239 = vector.multi_reduction <add>, %238, %cst_56 [1] : vector<16x512xf32> to vector<16xf32>
    %240 = vector.shape_cast %239 : vector<16xf32> to vector<16x1xf32>
    %cst_57 = arith.constant 0.001953125 : f32
    %241 = vector.broadcast %cst_57 : f32 to vector<16x1xf32>
    %242 = arith.mulf %240, %241 : vector<16x1xf32>
    %243 = arith.mulf %237, %237 : vector<16x1xf32>
    %244 = arith.subf %242, %243 : vector<16x1xf32>
    %cst_58 = arith.constant 9.99999974E-6 : f32
    %245 = vector.broadcast %cst_58 : f32 to vector<16x1xf32>
    %246 = arith.addf %244, %245 : vector<16x1xf32>
    %247 = math.rsqrt %246 : vector<16x1xf32>
    %248 = arith.mulf %232, %247 : vector<16x1xf32>
    %249 = arith.mulf %237, %248 : vector<16x1xf32>
    %250 = arith.subf %233, %249 : vector<16x1xf32>
    %c0_59 = arith.constant 0 : index
    %c0_60 = arith.constant 0 : index
    %251 = vector.load %arg13[%c0_59, %c0_60] : memref<32x16xf32, #tpu.memory_space<vmem>>, vector<32x16xf32>
    %252 = vector.broadcast %248 : vector<16x1xf32> to vector<16x512xf32>
    %253 = arith.mulf %231, %252 : vector<16x512xf32>
    %254 = vector.broadcast %250 : vector<16x1xf32> to vector<16x512xf32>
    %255 = arith.addf %253, %254 : vector<16x512xf32>
    %256 = arith.truncf %251 : vector<32x16xf32> to vector<32x16xbf16>
    %257 = arith.truncf %255 : vector<16x512xf32> to vector<16x512xbf16>
    %cst_61 = arith.constant dense<0.000000e+00> : vector<32x512xf32>
    %258 = tpu.matmul %256, %257, %cst_61 {dimension_numbers = #tpu.dot_dimension_numbers<[1], [0], [0], [1], [0, 0, 1, 1], [], []>} : vector<32x16xbf16>, vector<16x512xbf16>, vector<32x512xf32> -> vector<32x512xf32>
    %c0_62 = arith.constant 0 : index
    %c0_63 = arith.constant 0 : index
    %259 = vector.load %arg14[%c0_62, %c0_63] : memref<32x1xf32, #tpu.memory_space<vmem>>, vector<32x1xf32>
    %260 = vector.broadcast %259 : vector<32x1xf32> to vector<32x512xf32>
    %261 = arith.addf %258, %260 : vector<32x512xf32>
    %c0_64 = arith.constant 0 : index
    %c0_65 = arith.constant 0 : index
    %262 = vector.load %arg15[%c0_64, %c0_65] : memref<32x1xf32, #tpu.memory_space<vmem>>, vector<32x1xf32>
    %c0_66 = arith.constant 0 : index
    %c0_67 = arith.constant 0 : index
    %263 = vector.load %arg16[%c0_66, %c0_67] : memref<32x1xf32, #tpu.memory_space<vmem>>, vector<32x1xf32>
    %cst_68 = arith.constant dense<0.000000e+00> : vector<32xf32>
    %264 = vector.multi_reduction <add>, %261, %cst_68 [1] : vector<32x512xf32> to vector<32xf32>
    %265 = vector.shape_cast %264 : vector<32xf32> to vector<32x1xf32>
    %cst_69 = arith.constant 0.001953125 : f32
    %266 = vector.broadcast %cst_69 : f32 to vector<32x1xf32>
    %267 = arith.mulf %265, %266 : vector<32x1xf32>
    %268 = arith.mulf %261, %261 : vector<32x512xf32>
    %cst_70 = arith.constant dense<0.000000e+00> : vector<32xf32>
    %269 = vector.multi_reduction <add>, %268, %cst_70 [1] : vector<32x512xf32> to vector<32xf32>
    %270 = vector.shape_cast %269 : vector<32xf32> to vector<32x1xf32>
    %cst_71 = arith.constant 0.001953125 : f32
    %271 = vector.broadcast %cst_71 : f32 to vector<32x1xf32>
    %272 = arith.mulf %270, %271 : vector<32x1xf32>
    %273 = arith.mulf %267, %267 : vector<32x1xf32>
    %274 = arith.subf %272, %273 : vector<32x1xf32>
    %cst_72 = arith.constant 9.99999974E-6 : f32
    %275 = vector.broadcast %cst_72 : f32 to vector<32x1xf32>
    %276 = arith.addf %274, %275 : vector<32x1xf32>
    %277 = math.rsqrt %276 : vector<32x1xf32>
    %278 = arith.mulf %262, %277 : vector<32x1xf32>
    %279 = arith.mulf %267, %278 : vector<32x1xf32>
    %280 = arith.subf %263, %279 : vector<32x1xf32>
    %281 = vector.broadcast %278 : vector<32x1xf32> to vector<32x512xf32>
    %282 = arith.mulf %261, %281 : vector<32x512xf32>
    %283 = vector.broadcast %280 : vector<32x1xf32> to vector<32x512xf32>
    %284 = arith.addf %282, %283 : vector<32x512xf32>
    %285 = arith.addf %284, %94 : vector<32x512xf32>
    %286 = vector.extract_strided_slice %285 {offsets = [0, 0], sizes = [32, 256], strides = [1, 1]} : vector<32x512xf32> to vector<32x256xf32>
    %c0_73 = arith.constant 0 : index
    %c0_74 = arith.constant 0 : index
    %c0_75 = arith.constant 0 : index
    %287 = vector.load %arg18[%c0_73, %c0_74, %c0_75] : memref<2x32x256xf32, #tpu.memory_space<vmem>>, vector<1x32x256xf32>
    %288 = vector.shape_cast %287 : vector<1x32x256xf32> to vector<32x256xf32>
    %289 = vector.shape_cast %286 : vector<32x256xf32> to vector<1x32x256xf32>
    tpu.vector_store %arg18[%c0_73, %c0_74, %c0_75], %289 {strides = array<i32>} : memref<2x32x256xf32, #tpu.memory_space<vmem>>, vector<1x32x256xf32>,
    %290 = vector.extract_strided_slice %285 {offsets = [0, 256], sizes = [32, 256], strides = [1, 1]} : vector<32x512xf32> to vector<32x256xf32>
    %c1_76 = arith.constant 1 : index
    %c0_77 = arith.constant 0 : index
    %c0_78 = arith.constant 0 : index
    %291 = vector.load %arg18[%c1_76, %c0_77, %c0_78] : memref<2x32x256xf32, #tpu.memory_space<vmem>>, vector<1x32x256xf32>
    %292 = vector.shape_cast %291 : vector<1x32x256xf32> to vector<32x256xf32>
    %293 = vector.shape_cast %290 : vector<32x256xf32> to vector<1x32x256xf32>
    tpu.vector_store %arg18[%c1_76, %c0_77, %c0_78], %293 {strides = array<i32>} : memref<2x32x256xf32, #tpu.memory_space<vmem>>, vector<1x32x256xf32>,
    return
  }
  func.func @transform_0(%arg0: i32) -> (i32, i32, i32) {
    %c0_i32 = arith.constant 0 : i32
    %c0_i32_0 = arith.constant 0 : i32
    %c0_i32_1 = arith.constant 0 : i32
    %c0_i32_2 = arith.constant 0 : i32
    return %c0_i32, %c0_i32_0, %c0_i32_1 : i32, i32, i32
  }
  func.func @transform_1(%arg0: i32) -> (i32, i32, i32) {
    %c0_i32 = arith.constant 0 : i32
    %c0_i32_0 = arith.constant 0 : i32
    %c0_i32_1 = arith.constant 0 : i32
    %c0_i32_2 = arith.constant 0 : i32
    return %c0_i32, %c0_i32_0, %c0_i32_1 : i32, i32, i32
  }
  func.func @transform_2(%arg0: i32) -> (i32, i32, i32) {
    %c0_i32 = arith.constant 0 : i32
    %c0_i32_0 = arith.constant 0 : i32
    %c0_i32_1 = arith.constant 0 : i32
    %c0_i32_2 = arith.constant 0 : i32
    return %c0_i32, %c0_i32_0, %c0_i32_1 : i32, i32, i32
  }
  func.func @transform_3(%arg0: i32) -> (i32, i32) {
    %c0_i32 = arith.constant 0 : i32
    %c0_i32_0 = arith.constant 0 : i32
    %c0_i32_1 = arith.constant 0 : i32
    return %c0_i32, %c0_i32_0 : i32, i32
  }
  func.func @transform_4(%arg0: i32) -> (i32, i32, i32) {
    %c0_i32 = arith.constant 0 : i32
    %c0_i32_0 = arith.constant 0 : i32
    %c0_i32_1 = arith.constant 0 : i32
    %c0_i32_2 = arith.constant 0 : i32
    return %c0_i32, %c0_i32_0, %c0_i32_1 : i32, i32, i32
  }
  func.func @transform_5(%arg0: i32) -> (i32, i32) {
    %c0_i32 = arith.constant 0 : i32
    %c0_i32_0 = arith.constant 0 : i32
    %c0_i32_1 = arith.constant 0 : i32
    return %c0_i32, %c0_i32_0 : i32, i32
  }
  func.func @transform_6(%arg0: i32) -> (i32, i32) {
    %c0_i32 = arith.constant 0 : i32
    %c0_i32_0 = arith.constant 0 : i32
    %c0_i32_1 = arith.constant 0 : i32
    return %c0_i32, %c0_i32_0 : i32, i32
  }
  func.func @transform_7(%arg0: i32) -> (i32, i32) {
    %c0_i32 = arith.constant 0 : i32
    %c0_i32_0 = arith.constant 0 : i32
    %c0_i32_1 = arith.constant 0 : i32
    return %c0_i32, %c0_i32_0 : i32, i32
  }
  func.func @transform_8(%arg0: i32) -> (i32, i32) {
    %c0_i32 = arith.constant 0 : i32
    %c0_i32_0 = arith.constant 0 : i32
    %c0_i32_1 = arith.constant 0 : i32
    return %c0_i32, %c0_i32_0 : i32, i32
  }
  func.func @transform_9(%arg0: i32) -> (i32, i32) {
    %c0_i32 = arith.constant 0 : i32
    %c0_i32_0 = arith.constant 0 : i32
    %c0_i32_1 = arith.constant 0 : i32
    return %c0_i32, %c0_i32_0 : i32, i32
  }
  func.func @transform_10(%arg0: i32) -> (i32, i32) {
    %c0_i32 = arith.constant 0 : i32
    %c0_i32_0 = arith.constant 0 : i32
    %c0_i32_1 = arith.constant 0 : i32
    return %c0_i32, %c0_i32_0 : i32, i32
  }
  func.func @transform_11(%arg0: i32) -> (i32, i32) {
    %c0_i32 = arith.constant 0 : i32
    %c0_i32_0 = arith.constant 0 : i32
    %c0_i32_1 = arith.constant 0 : i32
    return %c0_i32, %c0_i32_0 : i32, i32
  }
  func.func @transform_12(%arg0: i32) -> (i32, i32) {
    %c0_i32 = arith.constant 0 : i32
    %c0_i32_0 = arith.constant 0 : i32
    %c0_i32_1 = arith.constant 0 : i32
    return %c0_i32, %c0_i32_0 : i32, i32
  }
  func.func @transform_13(%arg0: i32) -> (i32, i32) {
    %c0_i32 = arith.constant 0 : i32
    %c0_i32_0 = arith.constant 0 : i32
    %c0_i32_1 = arith.constant 0 : i32
    return %c0_i32, %c0_i32_0 : i32, i32
  }
  func.func @transform_14(%arg0: i32) -> (i32, i32) {
    %c0_i32 = arith.constant 0 : i32
    %c0_i32_0 = arith.constant 0 : i32
    %c0_i32_1 = arith.constant 0 : i32
    return %c0_i32, %c0_i32_0 : i32, i32
  }
  func.func @transform_15(%arg0: i32) -> (i32, i32) {
    %c0_i32 = arith.constant 0 : i32
    %c0_i32_0 = arith.constant 0 : i32
    %c0_i32_1 = arith.constant 0 : i32
    return %c0_i32, %c0_i32_0 : i32, i32
  }
  func.func @transform_16(%arg0: i32) -> (i32, i32, i32) {
    %c0_i32 = arith.constant 0 : i32
    %c0_i32_0 = arith.constant 0 : i32
    %c0_i32_1 = arith.constant 0 : i32
    %c0_i32_2 = arith.constant 0 : i32
    return %c0_i32, %c0_i32_0, %c0_i32_1 : i32, i32, i32
  }
  func.func @transform_17(%arg0: i32) -> (i32, i32, i32) {
    %c0_i32 = arith.constant 0 : i32
    %c0_i32_0 = arith.constant 0 : i32
    %c0_i32_1 = arith.constant 0 : i32
    %c0_i32_2 = arith.constant 0 : i32
    return %c0_i32, %c0_i32_0, %c0_i32_1 : i32, i32, i32
  }
}

module attributes {stable_mosaic.version = 11 : i64} {
  func.func @_attention_kernel(%arg0: i32, %arg1: memref<2x16x256xf32, #tpu.memory_space<vmem>>, %arg2: memref<16x16xf32, #tpu.memory_space<vmem>>, %arg3: memref<16x1xf32, #tpu.memory_space<vmem>>, %arg4: memref<32x16xf32, #tpu.memory_space<vmem>>, %arg5: memref<32x1xf32, #tpu.memory_space<vmem>>, %arg6: memref<9x16x1xf32, #tpu.memory_space<vmem>>, %arg7: memref<16x1xf32, #tpu.memory_space<vmem>>, %arg8: memref<9x1x512xf32, #tpu.memory_space<vmem>>, %arg9: memref<2x16x256xf32, #tpu.memory_space<vmem>>) attributes {dimension_semantics = [#tpu.dimension_semantics<arbitrary>], iteration_bounds = array<i64: 1>, scalar_prefetch = 0 : i64, scratch_operands = 0 : i64, tpu.core_type = #tpu.core_type<tc>, window_params = [{transform_indices = @transform_0, window_bounds = array<i64: 2, 16, 256>}, {pipeline_mode = #tpu.pipeline_mode<synchronous>, transform_indices = @transform_1, window_bounds = array<i64: 16, 16>}, {pipeline_mode = #tpu.pipeline_mode<synchronous>, transform_indices = @transform_2, window_bounds = array<i64: 16, 1>}, {pipeline_mode = #tpu.pipeline_mode<synchronous>, transform_indices = @transform_3, window_bounds = array<i64: 32, 16>}, {pipeline_mode = #tpu.pipeline_mode<synchronous>, transform_indices = @transform_4, window_bounds = array<i64: 32, 1>}, {pipeline_mode = #tpu.pipeline_mode<synchronous>, transform_indices = @transform_5, window_bounds = array<i64: 9, 16, 1>}, {pipeline_mode = #tpu.pipeline_mode<synchronous>, transform_indices = @transform_6, window_bounds = array<i64: 16, 1>}, {pipeline_mode = #tpu.pipeline_mode<synchronous>, transform_indices = @transform_7, window_bounds = array<i64: 9, 1, 512>}, {pipeline_mode = #tpu.pipeline_mode<synchronous>, transform_indices = @transform_8, window_bounds = array<i64: 2, 16, 256>}]} {
    %c0 = arith.constant 0 : index
    %c0_0 = arith.constant 0 : index
    %c0_1 = arith.constant 0 : index
    %0 = vector.load %arg1[%c0, %c0_0, %c0_1] : memref<2x16x256xf32, #tpu.memory_space<vmem>>, vector<1x16x256xf32>
    %1 = vector.shape_cast %0 : vector<1x16x256xf32> to vector<16x256xf32>
    %c1 = arith.constant 1 : index
    %c0_2 = arith.constant 0 : index
    %c0_3 = arith.constant 0 : index
    %2 = vector.load %arg1[%c1, %c0_2, %c0_3] : memref<2x16x256xf32, #tpu.memory_space<vmem>>, vector<1x16x256xf32>
    %3 = vector.shape_cast %2 : vector<1x16x256xf32> to vector<16x256xf32>
    %4 = tpu.concatenate %1, %3 in 1 : vector<16x256xf32>, vector<16x256xf32> -> vector<16x512xf32>
    %c0_4 = arith.constant 0 : index
    %c0_5 = arith.constant 0 : index
    %c0_6 = arith.constant 0 : index
    %5 = vector.load %arg8[%c0_4, %c0_5, %c0_6] : memref<9x1x512xf32, #tpu.memory_space<vmem>>, vector<9x1x512xf32>
    %c0_7 = arith.constant 0 : index
    %c0_8 = arith.constant 0 : index
    %c0_9 = arith.constant 0 : index
    %6 = vector.load %arg6[%c0_7, %c0_8, %c0_9] : memref<9x16x1xf32, #tpu.memory_space<vmem>>, vector<9x16x1xf32>
    %c0_10 = arith.constant 0 : index
    %c0_11 = arith.constant 0 : index
    %7 = vector.load %arg7[%c0_10, %c0_11] : memref<16x1xf32, #tpu.memory_space<vmem>>, vector<16x1xf32>
    %8 = vector.broadcast %7 : vector<16x1xf32> to vector<16x512xf32>
    %9 = arith.addf %4, %8 : vector<16x512xf32>
    %c17_i32 = arith.constant 17 : i32
    %10 = tpu.dynamic_rotate %4 by %c17_i32 dim 1 : vector<16x512xf32>, i32 -> vector<16x512xf32>
    %11 = vector.extract_strided_slice %6 {offsets = [0, 0, 0], sizes = [1, 16, 1], strides = [1, 1, 1]} : vector<9x16x1xf32> to vector<1x16x1xf32>
    %12 = vector.shape_cast %11 : vector<1x16x1xf32> to vector<16x1xf32>
    %13 = vector.extract_strided_slice %5 {offsets = [0, 0, 0], sizes = [1, 1, 512], strides = [1, 1, 1]} : vector<9x1x512xf32> to vector<1x1x512xf32>
    %14 = vector.shape_cast %13 : vector<1x1x512xf32> to vector<1x512xf32>
    %15 = vector.broadcast %14 : vector<1x512xf32> to vector<16x512xf32>
    %16 = arith.mulf %15, %10 : vector<16x512xf32>
    %17 = vector.broadcast %12 : vector<16x1xf32> to vector<16x512xf32>
    %18 = arith.mulf %17, %16 : vector<16x512xf32>
    %19 = arith.addf %9, %18 : vector<16x512xf32>
    %c16_i32 = arith.constant 16 : i32
    %20 = tpu.dynamic_rotate %4 by %c16_i32 dim 1 : vector<16x512xf32>, i32 -> vector<16x512xf32>
    %21 = vector.extract_strided_slice %6 {offsets = [1, 0, 0], sizes = [1, 16, 1], strides = [1, 1, 1]} : vector<9x16x1xf32> to vector<1x16x1xf32>
    %22 = vector.shape_cast %21 : vector<1x16x1xf32> to vector<16x1xf32>
    %23 = vector.extract_strided_slice %5 {offsets = [1, 0, 0], sizes = [1, 1, 512], strides = [1, 1, 1]} : vector<9x1x512xf32> to vector<1x1x512xf32>
    %24 = vector.shape_cast %23 : vector<1x1x512xf32> to vector<1x512xf32>
    %25 = vector.broadcast %24 : vector<1x512xf32> to vector<16x512xf32>
    %26 = arith.mulf %25, %20 : vector<16x512xf32>
    %27 = vector.broadcast %22 : vector<16x1xf32> to vector<16x512xf32>
    %28 = arith.mulf %27, %26 : vector<16x512xf32>
    %29 = arith.addf %19, %28 : vector<16x512xf32>
    %c15_i32 = arith.constant 15 : i32
    %30 = tpu.dynamic_rotate %4 by %c15_i32 dim 1 : vector<16x512xf32>, i32 -> vector<16x512xf32>
    %31 = vector.extract_strided_slice %6 {offsets = [2, 0, 0], sizes = [1, 16, 1], strides = [1, 1, 1]} : vector<9x16x1xf32> to vector<1x16x1xf32>
    %32 = vector.shape_cast %31 : vector<1x16x1xf32> to vector<16x1xf32>
    %33 = vector.extract_strided_slice %5 {offsets = [2, 0, 0], sizes = [1, 1, 512], strides = [1, 1, 1]} : vector<9x1x512xf32> to vector<1x1x512xf32>
    %34 = vector.shape_cast %33 : vector<1x1x512xf32> to vector<1x512xf32>
    %35 = vector.broadcast %34 : vector<1x512xf32> to vector<16x512xf32>
    %36 = arith.mulf %35, %30 : vector<16x512xf32>
    %37 = vector.broadcast %32 : vector<16x1xf32> to vector<16x512xf32>
    %38 = arith.mulf %37, %36 : vector<16x512xf32>
    %39 = arith.addf %29, %38 : vector<16x512xf32>
    %c1_i32 = arith.constant 1 : i32
    %40 = tpu.dynamic_rotate %4 by %c1_i32 dim 1 : vector<16x512xf32>, i32 -> vector<16x512xf32>
    %41 = vector.extract_strided_slice %6 {offsets = [3, 0, 0], sizes = [1, 16, 1], strides = [1, 1, 1]} : vector<9x16x1xf32> to vector<1x16x1xf32>
    %42 = vector.shape_cast %41 : vector<1x16x1xf32> to vector<16x1xf32>
    %43 = vector.extract_strided_slice %5 {offsets = [3, 0, 0], sizes = [1, 1, 512], strides = [1, 1, 1]} : vector<9x1x512xf32> to vector<1x1x512xf32>
    %44 = vector.shape_cast %43 : vector<1x1x512xf32> to vector<1x512xf32>
    %45 = vector.broadcast %44 : vector<1x512xf32> to vector<16x512xf32>
    %46 = arith.mulf %45, %40 : vector<16x512xf32>
    %47 = vector.broadcast %42 : vector<16x1xf32> to vector<16x512xf32>
    %48 = arith.mulf %47, %46 : vector<16x512xf32>
    %49 = arith.addf %39, %48 : vector<16x512xf32>
    %50 = vector.extract_strided_slice %6 {offsets = [4, 0, 0], sizes = [1, 16, 1], strides = [1, 1, 1]} : vector<9x16x1xf32> to vector<1x16x1xf32>
    %51 = vector.shape_cast %50 : vector<1x16x1xf32> to vector<16x1xf32>
    %52 = vector.extract_strided_slice %5 {offsets = [4, 0, 0], sizes = [1, 1, 512], strides = [1, 1, 1]} : vector<9x1x512xf32> to vector<1x1x512xf32>
    %53 = vector.shape_cast %52 : vector<1x1x512xf32> to vector<1x512xf32>
    %54 = vector.broadcast %53 : vector<1x512xf32> to vector<16x512xf32>
    %55 = arith.mulf %54, %4 : vector<16x512xf32>
    %56 = vector.broadcast %51 : vector<16x1xf32> to vector<16x512xf32>
    %57 = arith.mulf %56, %55 : vector<16x512xf32>
    %58 = arith.addf %49, %57 : vector<16x512xf32>
    %c511_i32 = arith.constant 511 : i32
    %59 = tpu.dynamic_rotate %4 by %c511_i32 dim 1 : vector<16x512xf32>, i32 -> vector<16x512xf32>
    %60 = vector.extract_strided_slice %6 {offsets = [5, 0, 0], sizes = [1, 16, 1], strides = [1, 1, 1]} : vector<9x16x1xf32> to vector<1x16x1xf32>
    %61 = vector.shape_cast %60 : vector<1x16x1xf32> to vector<16x1xf32>
    %62 = vector.extract_strided_slice %5 {offsets = [5, 0, 0], sizes = [1, 1, 512], strides = [1, 1, 1]} : vector<9x1x512xf32> to vector<1x1x512xf32>
    %63 = vector.shape_cast %62 : vector<1x1x512xf32> to vector<1x512xf32>
    %64 = vector.broadcast %63 : vector<1x512xf32> to vector<16x512xf32>
    %65 = arith.mulf %64, %59 : vector<16x512xf32>
    %66 = vector.broadcast %61 : vector<16x1xf32> to vector<16x512xf32>
    %67 = arith.mulf %66, %65 : vector<16x512xf32>
    %68 = arith.addf %58, %67 : vector<16x512xf32>
    %c497_i32 = arith.constant 497 : i32
    %69 = tpu.dynamic_rotate %4 by %c497_i32 dim 1 : vector<16x512xf32>, i32 -> vector<16x512xf32>
    %70 = vector.extract_strided_slice %6 {offsets = [6, 0, 0], sizes = [1, 16, 1], strides = [1, 1, 1]} : vector<9x16x1xf32> to vector<1x16x1xf32>
    %71 = vector.shape_cast %70 : vector<1x16x1xf32> to vector<16x1xf32>
    %72 = vector.extract_strided_slice %5 {offsets = [6, 0, 0], sizes = [1, 1, 512], strides = [1, 1, 1]} : vector<9x1x512xf32> to vector<1x1x512xf32>
    %73 = vector.shape_cast %72 : vector<1x1x512xf32> to vector<1x512xf32>
    %74 = vector.broadcast %73 : vector<1x512xf32> to vector<16x512xf32>
    %75 = arith.mulf %74, %69 : vector<16x512xf32>
    %76 = vector.broadcast %71 : vector<16x1xf32> to vector<16x512xf32>
    %77 = arith.mulf %76, %75 : vector<16x512xf32>
    %78 = arith.addf %68, %77 : vector<16x512xf32>
    %c496_i32 = arith.constant 496 : i32
    %79 = tpu.dynamic_rotate %4 by %c496_i32 dim 1 : vector<16x512xf32>, i32 -> vector<16x512xf32>
    %80 = vector.extract_strided_slice %6 {offsets = [7, 0, 0], sizes = [1, 16, 1], strides = [1, 1, 1]} : vector<9x16x1xf32> to vector<1x16x1xf32>
    %81 = vector.shape_cast %80 : vector<1x16x1xf32> to vector<16x1xf32>
    %82 = vector.extract_strided_slice %5 {offsets = [7, 0, 0], sizes = [1, 1, 512], strides = [1, 1, 1]} : vector<9x1x512xf32> to vector<1x1x512xf32>
    %83 = vector.shape_cast %82 : vector<1x1x512xf32> to vector<1x512xf32>
    %84 = vector.broadcast %83 : vector<1x512xf32> to vector<16x512xf32>
    %85 = arith.mulf %84, %79 : vector<16x512xf32>
    %86 = vector.broadcast %81 : vector<16x1xf32> to vector<16x512xf32>
    %87 = arith.mulf %86, %85 : vector<16x512xf32>
    %88 = arith.addf %78, %87 : vector<16x512xf32>
    %c495_i32 = arith.constant 495 : i32
    %89 = tpu.dynamic_rotate %4 by %c495_i32 dim 1 : vector<16x512xf32>, i32 -> vector<16x512xf32>
    %90 = vector.extract_strided_slice %6 {offsets = [8, 0, 0], sizes = [1, 16, 1], strides = [1, 1, 1]} : vector<9x16x1xf32> to vector<1x16x1xf32>
    %91 = vector.shape_cast %90 : vector<1x16x1xf32> to vector<16x1xf32>
    %92 = vector.extract_strided_slice %5 {offsets = [8, 0, 0], sizes = [1, 1, 512], strides = [1, 1, 1]} : vector<9x1x512xf32> to vector<1x1x512xf32>
    %93 = vector.shape_cast %92 : vector<1x1x512xf32> to vector<1x512xf32>
    %94 = vector.broadcast %93 : vector<1x512xf32> to vector<16x512xf32>
    %95 = arith.mulf %94, %89 : vector<16x512xf32>
    %96 = vector.broadcast %91 : vector<16x1xf32> to vector<16x512xf32>
    %97 = arith.mulf %96, %95 : vector<16x512xf32>
    %98 = arith.addf %88, %97 : vector<16x512xf32>
    %c0_12 = arith.constant 0 : index
    %c0_13 = arith.constant 0 : index
    %99 = vector.load %arg2[%c0_12, %c0_13] : memref<16x16xf32, #tpu.memory_space<vmem>>, vector<16x16xf32>
    %100 = arith.truncf %99 : vector<16x16xf32> to vector<16x16xbf16>
    %101 = arith.truncf %4 : vector<16x512xf32> to vector<16x512xbf16>
    %cst = arith.constant dense<0.000000e+00> : vector<16x512xf32>
    %102 = tpu.matmul %100, %101, %cst {dimension_numbers = #tpu.dot_dimension_numbers<[1], [0], [0], [1], [0, 0, 1, 1], [], []>} : vector<16x16xbf16>, vector<16x512xbf16>, vector<16x512xf32> -> vector<16x512xf32>
    %c0_14 = arith.constant 0 : index
    %c0_15 = arith.constant 0 : index
    %103 = vector.load %arg3[%c0_14, %c0_15] : memref<16x1xf32, #tpu.memory_space<vmem>>, vector<16x1xf32>
    %104 = vector.broadcast %103 : vector<16x1xf32> to vector<16x512xf32>
    %105 = arith.addf %102, %104 : vector<16x512xf32>
    %c0_16 = arith.constant 0 : index
    %c0_17 = arith.constant 0 : index
    %106 = vector.load %arg4[%c0_16, %c0_17] : memref<32x16xf32, #tpu.memory_space<vmem>>, vector<32x16xf32>
    %107 = arith.truncf %106 : vector<32x16xf32> to vector<32x16xbf16>
    %108 = arith.truncf %98 : vector<16x512xf32> to vector<16x512xbf16>
    %cst_18 = arith.constant dense<0.000000e+00> : vector<32x512xf32>
    %109 = tpu.matmul %107, %108, %cst_18 {dimension_numbers = #tpu.dot_dimension_numbers<[1], [0], [0], [1], [0, 0, 1, 1], [], []>} : vector<32x16xbf16>, vector<16x512xbf16>, vector<32x512xf32> -> vector<32x512xf32>
    %c0_19 = arith.constant 0 : index
    %c0_20 = arith.constant 0 : index
    %110 = vector.load %arg5[%c0_19, %c0_20] : memref<32x1xf32, #tpu.memory_space<vmem>>, vector<32x1xf32>
    %111 = vector.broadcast %110 : vector<32x1xf32> to vector<32x512xf32>
    %112 = arith.addf %109, %111 : vector<32x512xf32>
    %113 = vector.extract_strided_slice %112 {offsets = [0, 0], sizes = [16, 512], strides = [1, 1]} : vector<32x512xf32> to vector<16x512xf32>
    %114 = vector.extract_strided_slice %112 {offsets = [16, 0], sizes = [16, 512], strides = [1, 1]} : vector<32x512xf32> to vector<16x512xf32>
    %115 = vector.extract_strided_slice %105 {offsets = [0, 0], sizes = [16, 256], strides = [1, 1]} : vector<16x512xf32> to vector<16x256xf32>
    %116 = vector.extract_strided_slice %113 {offsets = [0, 0], sizes = [16, 256], strides = [1, 1]} : vector<16x512xf32> to vector<16x256xf32>
    %117 = vector.extract_strided_slice %114 {offsets = [0, 0], sizes = [16, 256], strides = [1, 1]} : vector<16x512xf32> to vector<16x256xf32>
    %118 = arith.truncf %115 : vector<16x256xf32> to vector<16x256xbf16>
    %119 = arith.truncf %116 : vector<16x256xf32> to vector<16x256xbf16>
    %cst_21 = arith.constant dense<0.000000e+00> : vector<256x256xf32>
    %120 = tpu.matmul %118, %119, %cst_21 {dimension_numbers = #tpu.dot_dimension_numbers<[0], [0], [1], [1], [0, 1, 1, 1], [], []>} : vector<16x256xbf16>, vector<16x256xbf16>, vector<256x256xf32> -> vector<256x256xf32>
    %cst_22 = arith.constant 2.500000e-01 : f32
    %121 = vector.broadcast %cst_22 : f32 to vector<256x256xf32>
    %122 = arith.mulf %120, %121 : vector<256x256xf32>
    %cst_23 = arith.constant dense<0xFF800000> : vector<256xf32>
    %123 = vector.multi_reduction <maximumf>, %122, %cst_23 [1] : vector<256x256xf32> to vector<256xf32>
    %124 = vector.shape_cast %123 : vector<256xf32> to vector<256x1xf32>
    %125 = vector.broadcast %124 : vector<256x1xf32> to vector<256x256xf32>
    %126 = arith.subf %122, %125 : vector<256x256xf32>
    %127 = math.exp %126 : vector<256x256xf32>
    %cst_24 = arith.constant dense<0.000000e+00> : vector<256xf32>
    %128 = vector.multi_reduction <add>, %127, %cst_24 [1] : vector<256x256xf32> to vector<256xf32>
    %129 = vector.shape_cast %128 : vector<256xf32> to vector<256x1xf32>
    %130 = tpu.reciprocal %129 {approx = true} : vector<256x1xf32> -> vector<256x1xf32>
    %131 = vector.broadcast %130 : vector<256x1xf32> to vector<256x256xf32>
    %132 = arith.mulf %127, %131 : vector<256x256xf32>
    %133 = arith.truncf %117 : vector<16x256xf32> to vector<16x256xbf16>
    %134 = arith.truncf %132 : vector<256x256xf32> to vector<256x256xbf16>
    %cst_25 = arith.constant dense<0.000000e+00> : vector<16x256xf32>
    %135 = tpu.matmul %133, %134, %cst_25 {dimension_numbers = #tpu.dot_dimension_numbers<[1], [1], [0], [0], [0, 0, 1, 0], [], []>} : vector<16x256xbf16>, vector<256x256xbf16>, vector<16x256xf32> -> vector<16x256xf32>
    %c0_26 = arith.constant 0 : index
    %c0_27 = arith.constant 0 : index
    %c0_28 = arith.constant 0 : index
    %136 = vector.load %arg9[%c0_26, %c0_27, %c0_28] : memref<2x16x256xf32, #tpu.memory_space<vmem>>, vector<1x16x256xf32>
    %137 = vector.shape_cast %136 : vector<1x16x256xf32> to vector<16x256xf32>
    %138 = vector.shape_cast %135 : vector<16x256xf32> to vector<1x16x256xf32>
    tpu.vector_store %arg9[%c0_26, %c0_27, %c0_28], %138 {strides = array<i32>} : memref<2x16x256xf32, #tpu.memory_space<vmem>>, vector<1x16x256xf32>,
    %139 = vector.extract_strided_slice %105 {offsets = [0, 256], sizes = [16, 256], strides = [1, 1]} : vector<16x512xf32> to vector<16x256xf32>
    %140 = vector.extract_strided_slice %113 {offsets = [0, 256], sizes = [16, 256], strides = [1, 1]} : vector<16x512xf32> to vector<16x256xf32>
    %141 = vector.extract_strided_slice %114 {offsets = [0, 256], sizes = [16, 256], strides = [1, 1]} : vector<16x512xf32> to vector<16x256xf32>
    %142 = arith.truncf %139 : vector<16x256xf32> to vector<16x256xbf16>
    %143 = arith.truncf %140 : vector<16x256xf32> to vector<16x256xbf16>
    %cst_29 = arith.constant dense<0.000000e+00> : vector<256x256xf32>
    %144 = tpu.matmul %142, %143, %cst_29 {dimension_numbers = #tpu.dot_dimension_numbers<[0], [0], [1], [1], [0, 1, 1, 1], [], []>} : vector<16x256xbf16>, vector<16x256xbf16>, vector<256x256xf32> -> vector<256x256xf32>
    %cst_30 = arith.constant 2.500000e-01 : f32
    %145 = vector.broadcast %cst_30 : f32 to vector<256x256xf32>
    %146 = arith.mulf %144, %145 : vector<256x256xf32>
    %cst_31 = arith.constant dense<0xFF800000> : vector<256xf32>
    %147 = vector.multi_reduction <maximumf>, %146, %cst_31 [1] : vector<256x256xf32> to vector<256xf32>
    %148 = vector.shape_cast %147 : vector<256xf32> to vector<256x1xf32>
    %149 = vector.broadcast %148 : vector<256x1xf32> to vector<256x256xf32>
    %150 = arith.subf %146, %149 : vector<256x256xf32>
    %151 = math.exp %150 : vector<256x256xf32>
    %cst_32 = arith.constant dense<0.000000e+00> : vector<256xf32>
    %152 = vector.multi_reduction <add>, %151, %cst_32 [1] : vector<256x256xf32> to vector<256xf32>
    %153 = vector.shape_cast %152 : vector<256xf32> to vector<256x1xf32>
    %154 = tpu.reciprocal %153 {approx = true} : vector<256x1xf32> -> vector<256x1xf32>
    %155 = vector.broadcast %154 : vector<256x1xf32> to vector<256x256xf32>
    %156 = arith.mulf %151, %155 : vector<256x256xf32>
    %157 = arith.truncf %141 : vector<16x256xf32> to vector<16x256xbf16>
    %158 = arith.truncf %156 : vector<256x256xf32> to vector<256x256xbf16>
    %cst_33 = arith.constant dense<0.000000e+00> : vector<16x256xf32>
    %159 = tpu.matmul %157, %158, %cst_33 {dimension_numbers = #tpu.dot_dimension_numbers<[1], [1], [0], [0], [0, 0, 1, 0], [], []>} : vector<16x256xbf16>, vector<256x256xbf16>, vector<16x256xf32> -> vector<16x256xf32>
    %c1_34 = arith.constant 1 : index
    %c0_35 = arith.constant 0 : index
    %c0_36 = arith.constant 0 : index
    %160 = vector.load %arg9[%c1_34, %c0_35, %c0_36] : memref<2x16x256xf32, #tpu.memory_space<vmem>>, vector<1x16x256xf32>
    %161 = vector.shape_cast %160 : vector<1x16x256xf32> to vector<16x256xf32>
    %162 = vector.shape_cast %159 : vector<16x256xf32> to vector<1x16x256xf32>
    tpu.vector_store %arg9[%c1_34, %c0_35, %c0_36], %162 {strides = array<i32>} : memref<2x16x256xf32, #tpu.memory_space<vmem>>, vector<1x16x256xf32>,
    return
  }
  func.func @transform_0(%arg0: i32) -> (i32, i32, i32) {
    %c0_i32 = arith.constant 0 : i32
    %c1_i32 = arith.constant 1 : i32
    %c0_i32_0 = arith.constant 0 : i32
    %c0_i32_1 = arith.constant 0 : i32
    return %c0_i32, %c1_i32, %c0_i32_0 : i32, i32, i32
  }
  func.func @transform_1(%arg0: i32) -> (i32, i32) {
    %c0_i32 = arith.constant 0 : i32
    %c0_i32_0 = arith.constant 0 : i32
    %c0_i32_1 = arith.constant 0 : i32
    return %c0_i32, %c0_i32_0 : i32, i32
  }
  func.func @transform_2(%arg0: i32) -> (i32, i32) {
    %c0_i32 = arith.constant 0 : i32
    %c0_i32_0 = arith.constant 0 : i32
    %c0_i32_1 = arith.constant 0 : i32
    return %c0_i32, %c0_i32_0 : i32, i32
  }
  func.func @transform_3(%arg0: i32) -> (i32, i32) {
    %c0_i32 = arith.constant 0 : i32
    %c0_i32_0 = arith.constant 0 : i32
    %c0_i32_1 = arith.constant 0 : i32
    return %c0_i32, %c0_i32_0 : i32, i32
  }
  func.func @transform_4(%arg0: i32) -> (i32, i32) {
    %c0_i32 = arith.constant 0 : i32
    %c0_i32_0 = arith.constant 0 : i32
    %c0_i32_1 = arith.constant 0 : i32
    return %c0_i32, %c0_i32_0 : i32, i32
  }
  func.func @transform_5(%arg0: i32) -> (i32, i32, i32) {
    %c0_i32 = arith.constant 0 : i32
    %c0_i32_0 = arith.constant 0 : i32
    %c0_i32_1 = arith.constant 0 : i32
    %c0_i32_2 = arith.constant 0 : i32
    return %c0_i32, %c0_i32_0, %c0_i32_1 : i32, i32, i32
  }
  func.func @transform_6(%arg0: i32) -> (i32, i32) {
    %c0_i32 = arith.constant 0 : i32
    %c0_i32_0 = arith.constant 0 : i32
    %c0_i32_1 = arith.constant 0 : i32
    return %c0_i32, %c0_i32_0 : i32, i32
  }
  func.func @transform_7(%arg0: i32) -> (i32, i32, i32) {
    %c0_i32 = arith.constant 0 : i32
    %c0_i32_0 = arith.constant 0 : i32
    %c0_i32_1 = arith.constant 0 : i32
    %c0_i32_2 = arith.constant 0 : i32
    return %c0_i32, %c0_i32_0, %c0_i32_1 : i32, i32, i32
  }
  func.func @transform_8(%arg0: i32) -> (i32, i32, i32) {
    %c0_i32 = arith.constant 0 : i32
    %c0_i32_0 = arith.constant 0 : i32
    %c0_i32_1 = arith.constant 0 : i32
    %c0_i32_2 = arith.constant 0 : i32
    return %c0_i32, %c0_i32_0, %c0_i32_1 : i32, i32, i32
  }
}

</mosaic_0001>

<llo_original>
// kernel: hybrid_token_mixer.3
$region0: #{hybrid_token_mixer.3}
  #allocation0 [shape = 'u32[]', space=smem, size = 0x4, offset = 0x4, fixed_abs, tag = 'smem constant byte address 0x4 - core index']
  #allocation1 [shape = 'u32[144,128]{1,0:T(1,128)}', space=vmem, size = 0x12000, scoped, tag = 'internal scratch']
  %s0 = inlined_call_operand.vmem [shape: f32[2,32,256], index: 0, kind: input, shape index: {}]
  %s1 = inlined_call_operand.vmem [shape: f32[2,16,256], index: 1, kind: input, shape index: {}]
  %s2 = inlined_call_operand.vmem [shape: f32[9,16,512], index: 2, kind: input, shape index: {}]
  %s3 = inlined_call_operand.vmem [shape: f32[16,512], index: 3, kind: input, shape index: {}]
  %s4 = inlined_call_operand.vmem [shape: f32[9,32,1], index: 4, kind: input, shape index: {}]
  %s5 = inlined_call_operand.vmem [shape: f32[32,1], index: 5, kind: input, shape index: {}]
  %s6 = inlined_call_operand.vmem [shape: f32[32,1], index: 6, kind: input, shape index: {}]
  %s7 = inlined_call_operand.vmem [shape: f32[32,1], index: 7, kind: input, shape index: {}]
  %s8 = inlined_call_operand.vmem [shape: f32[16,32], index: 8, kind: input, shape index: {}]
  %s9 = inlined_call_operand.vmem [shape: f32[16,1], index: 9, kind: input, shape index: {}]
  %s10 = inlined_call_operand.vmem [shape: f32[16,1], index: 10, kind: input, shape index: {}]
  %s11 = inlined_call_operand.vmem [shape: f32[16,1], index: 11, kind: input, shape index: {}]
  %s12 = inlined_call_operand.vmem [shape: f32[32,16], index: 12, kind: input, shape index: {}]
  %s13 = inlined_call_operand.vmem [shape: f32[32,1], index: 13, kind: input, shape index: {}]
  %s14 = inlined_call_operand.vmem [shape: f32[32,1], index: 14, kind: input, shape index: {}]
  %s15 = inlined_call_operand.vmem [shape: f32[32,1], index: 15, kind: input, shape index: {}]
  %s16 = inlined_call_operand.vmem [shape: f32[9,1,512], index: 16, kind: input, shape index: {}]
  %s17 = inlined_call_operand.vmem [shape: f32[2,32,256], index: 17, kind: output, shape index: {}]
  %s18 = sld [smem:[#allocation0]]
  $region101: #{hybrid_token_mixer.3} parent=0
    _
  %s20 = ssub.s32 1, %s18
  %s21 = scalar_select 0, %s20, %s18
  $region1: #{hybrid_token_mixer.3} parent=0
    #allocation2 [shape = 'u8[32768]{0}', space=vmem, size = 0x8000, scoped, tag = 'input window, operand 0, single buffered']
    // Predicated region
    $region2: #{hybrid_token_mixer.3} parent=1 // pred_check
      _
    $region3: #{hybrid_token_mixer.3} parent=1 // pred_check_branch
      %23 = sbr.rel (0) target = $region5
    $region4: #{hybrid_token_mixer.3} parent=1 // pred_region
      // Predicated region
      $region6: #{hybrid_token_mixer.3} parent=4 // pred_check
        _
      $region7: #{hybrid_token_mixer.3} parent=4 // pred_check_branch
        %25 = sbr.rel (0) target = $region9
      $region8: #{hybrid_token_mixer.3} parent=4 // pred_region
        // Predicated region
        $region10: #{hybrid_token_mixer.3} parent=8 // pred_check
          _
        $region11: #{hybrid_token_mixer.3} parent=8 // pred_check_branch
          %27 = sbr.rel (0) target = $region13
        $region12: #{hybrid_token_mixer.3} parent=8 // pred_region
          loop: start=0, step=1, limit=1
          $region14: #{hybrid_token_mixer.3} parent=12 // loop_pre_header
            _
          $region15: #{hybrid_token_mixer.3} parent=12 // loop_header
            %s29 = sphi 0, %s33
            %p30 = scmp.ge.s32.totalorder %s29, 1
            %s34 = sphi %s0, %s0
            %s35 = sphi [#allocation2], [#allocation2]
          $region16: #{hybrid_token_mixer.3} parent=12 // loop_header_branch
            %32 = sbr.rel (%p30) target = $region20
          $region17: #{hybrid_token_mixer.3} parent=12 // loop_body
            %v36 = vld [vmem:[%s34] sm:$0xff]
            %37 = vst [vmem:[%s35] sm:$0xff] %v36
            %v38 = vld [vmem:[%s34 + $0x8] sm:$0xff]
            %39 = vst [vmem:[%s35 + $0x8] sm:$0xff] %v38
            %v40 = vld [vmem:[%s34 + $0x10] sm:$0xff]
            %41 = vst [vmem:[%s35 + $0x10] sm:$0xff] %v40
            %v42 = vld [vmem:[%s34 + $0x18] sm:$0xff]
            %43 = vst [vmem:[%s35 + $0x18] sm:$0xff] %v42
            %v44 = vld [vmem:[%s34 + $0x40] sm:$0xff]
            %45 = vst [vmem:[%s35 + $0x20] sm:$0xff] %v44
            %v46 = vld [vmem:[%s34 + $0x48] sm:$0xff]
            %47 = vst [vmem:[%s35 + $0x28] sm:$0xff] %v46
            %v48 = vld [vmem:[%s34 + $0x50] sm:$0xff]
            %49 = vst [vmem:[%s35 + $0x30] sm:$0xff] %v48
            %v50 = vld [vmem:[%s34 + $0x58] sm:$0xff]
            %51 = vst [vmem:[%s35 + $0x38] sm:$0xff] %v50
          $region18: #{hybrid_token_mixer.3} parent=12 // loop_footer
            %s33 = sadd.s32 1, %s29
          $region19: #{hybrid_token_mixer.3} parent=12 // loop_footer_branch
            %28 = sbr.rel target = $region15
          $region20: #{hybrid_token_mixer.3} parent=12 // loop_exit
            _
        $region13: #{hybrid_token_mixer.3} parent=8 // pred_fallthru
          _
        // Predicated region
        $region21: #{hybrid_token_mixer.3} parent=8 // pred_check
          _
        $region22: #{hybrid_token_mixer.3} parent=8 // pred_check_branch
          %53 = sbr.rel target = $region24
        $region23: #{hybrid_token_mixer.3} parent=8 // pred_region
          _
        $region24: #{hybrid_token_mixer.3} parent=8 // pred_fallthru
          _
      $region9: #{hybrid_token_mixer.3} parent=4 // pred_fallthru
        _
      %54 = vnop
    $region5: #{hybrid_token_mixer.3} parent=1 // pred_fallthru
      _
    // Predicated region
    $region25: #{hybrid_token_mixer.3} parent=1 // pred_check
      _
    $region26: #{hybrid_token_mixer.3} parent=1 // pred_check_branch
      %56 = sbr.rel (0) target = $region28
    $region27: #{hybrid_token_mixer.3} parent=1 // pred_region
      _
    $region28: #{hybrid_token_mixer.3} parent=1 // pred_fallthru
      _
    // Predicated region
    $region29: #{hybrid_token_mixer.3} parent=1 // pred_check
      _
    $region30: #{hybrid_token_mixer.3} parent=1 // pred_check_branch
      %58 = sbr.rel (0) target = $region32
    $region31: #{hybrid_token_mixer.3} parent=1 // pred_region
      _
    $region32: #{hybrid_token_mixer.3} parent=1 // pred_fallthru
      _
    // Predicated region
    $region33: #{hybrid_token_mixer.3} parent=1 // pred_check
      _
    $region34: #{hybrid_token_mixer.3} parent=1 // pred_check_branch
      %60 = sbr.rel (0) target = $region36
    $region35: #{hybrid_token_mixer.3} parent=1 // pred_region
      _
    $region36: #{hybrid_token_mixer.3} parent=1 // pred_fallthru
      _
    // Predicated region
    $region37: #{hybrid_token_mixer.3} parent=1 // pred_check
      _
    $region38: #{hybrid_token_mixer.3} parent=1 // pred_check_branch
      %62 = sbr.rel (0) target = $region40
    $region39: #{hybrid_token_mixer.3} parent=1 // pred_region
      _
    $region40: #{hybrid_token_mixer.3} parent=1 // pred_fallthru
      _
    // Predicated region
    $region41: #{hybrid_token_mixer.3} parent=1 // pred_check
      _
    $region42: #{hybrid_token_mixer.3} parent=1 // pred_check_branch
      %64 = sbr.rel (0) target = $region44
    $region43: #{hybrid_token_mixer.3} parent=1 // pred_region
      _
    $region44: #{hybrid_token_mixer.3} parent=1 // pred_fallthru
      _
    // Predicated region
    $region45: #{hybrid_token_mixer.3} parent=1 // pred_check
      _
    $region46: #{hybrid_token_mixer.3} parent=1 // pred_check_branch
      %66 = sbr.rel (0) target = $region48
    $region47: #{hybrid_token_mixer.3} parent=1 // pred_region
      _
    $region48: #{hybrid_token_mixer.3} parent=1 // pred_fallthru
      _
    // Predicated region
    $region49: #{hybrid_token_mixer.3} parent=1 // pred_check
      _
    $region50: #{hybrid_token_mixer.3} parent=1 // pred_check_branch
      %68 = sbr.rel (0) target = $region52
    $region51: #{hybrid_token_mixer.3} parent=1 // pred_region
      _
    $region52: #{hybrid_token_mixer.3} parent=1 // pred_fallthru
      _
    // Predicated region
    $region53: #{hybrid_token_mixer.3} parent=1 // pred_check
      _
    $region54: #{hybrid_token_mixer.3} parent=1 // pred_check_branch
      %70 = sbr.rel (0) target = $region56
    $region55: #{hybrid_token_mixer.3} parent=1 // pred_region
      _
    $region56: #{hybrid_token_mixer.3} parent=1 // pred_fallthru
      _
    // Predicated region
    $region57: #{hybrid_token_mixer.3} parent=1 // pred_check
      _
    $region58: #{hybrid_token_mixer.3} parent=1 // pred_check_branch
      %72 = sbr.rel (0) target = $region60
    $region59: #{hybrid_token_mixer.3} parent=1 // pred_region
      _
    $region60: #{hybrid_token_mixer.3} parent=1 // pred_fallthru
      _
    // Predicated region
    $region61: #{hybrid_token_mixer.3} parent=1 // pred_check
      _
    $region62: #{hybrid_token_mixer.3} parent=1 // pred_check_branch
      %74 = sbr.rel (0) target = $region64
    $region63: #{hybrid_token_mixer.3} parent=1 // pred_region
      _
    $region64: #{hybrid_token_mixer.3} parent=1 // pred_fallthru
      _
    // Predicated region
    $region65: #{hybrid_token_mixer.3} parent=1 // pred_check
      _
    $region66: #{hybrid_token_mixer.3} parent=1 // pred_check_branch
      %76 = sbr.rel (0) target = $region68
    $region67: #{hybrid_token_mixer.3} parent=1 // pred_region
      _
    $region68: #{hybrid_token_mixer.3} parent=1 // pred_fallthru
      _
    // Predicated region
    $region69: #{hybrid_token_mixer.3} parent=1 // pred_check
      _
    $region70: #{hybrid_token_mixer.3} parent=1 // pred_check_branch
      %78 = sbr.rel (0) target = $region72
    $region71: #{hybrid_token_mixer.3} parent=1 // pred_region
      _
    $region72: #{hybrid_token_mixer.3} parent=1 // pred_fallthru
      _
    // Predicated region
    $region73: #{hybrid_token_mixer.3} parent=1 // pred_check
      _
    $region74: #{hybrid_token_mixer.3} parent=1 // pred_check_branch
      %80 = sbr.rel (0) target = $region76
    $region75: #{hybrid_token_mixer.3} parent=1 // pred_region
      _
    $region76: #{hybrid_token_mixer.3} parent=1 // pred_fallthru
      _
    // Predicated region
    $region77: #{hybrid_token_mixer.3} parent=1 // pred_check
      _
    $region78: #{hybrid_token_mixer.3} parent=1 // pred_check_branch
      %82 = sbr.rel (0) target = $region80
    $region79: #{hybrid_token_mixer.3} parent=1 // pred_region
      _
    $region80: #{hybrid_token_mixer.3} parent=1 // pred_fallthru
      _
    // Predicated region
    $region81: #{hybrid_token_mixer.3} parent=1 // pred_check
      _
    $region82: #{hybrid_token_mixer.3} parent=1 // pred_check_branch
      %84 = sbr.rel (0) target = $region84
    $region83: #{hybrid_token_mixer.3} parent=1 // pred_region
      _
    $region84: #{hybrid_token_mixer.3} parent=1 // pred_fallthru
      _
    // Predicated region
    $region85: #{hybrid_token_mixer.3} parent=1 // pred_check
      _
    $region86: #{hybrid_token_mixer.3} parent=1 // pred_check_branch
      %86 = sbr.rel (0) target = $region88
    $region87: #{hybrid_token_mixer.3} parent=1 // pred_region
      _
    $region88: #{hybrid_token_mixer.3} parent=1 // pred_fallthru
      _
    // Predicated region
    $region89: #{hybrid_token_mixer.3} parent=1 // pred_check
      _
    $region90: #{hybrid_token_mixer.3} parent=1 // pred_check_branch
      %88 = sbr.rel (0) target = $region92
    $region91: #{hybrid_token_mixer.3} parent=1 // pred_region
      _
    $region92: #{hybrid_token_mixer.3} parent=1 // pred_fallthru
      _
    %v90 = vld [vmem:[%s16] sm:$0xf]
    %v91 = vld [vmem:[%s16 + $0x4] sm:$0xf]
    %v92 = vld [vmem:[%s16 + $0x8] sm:$0xf]
    %v93 = vld [vmem:[%s16 + $0xc] sm:$0xf]
    %v94 = vld [vmem:[%s16 + $0x10] sm:$0xf]
    %v95 = vld [vmem:[%s16 + $0x14] sm:$0xf]
    %v96 = vld [vmem:[%s16 + $0x18] sm:$0xf]
    %v97 = vld [vmem:[%s16 + $0x1c] sm:$0xf]
    %v98 = vld [vmem:[%s16 + $0x20] sm:$0xf]
    %v99 = vld [vmem:[%s2] sm:$0xff]
    %v100 = vld [vmem:[%s2 + $0x8] sm:$0xff]
    %v101 = vld [vmem:[%s2 + $0x10] sm:$0xff]
    %v102 = vld [vmem:[%s2 + $0x18] sm:$0xff]
    %v103 = vld [vmem:[%s2 + $0x20] sm:$0xff]
    %v104 = vld [vmem:[%s2 + $0x28] sm:$0xff]
    %v105 = vld [vmem:[%s2 + $0x30] sm:$0xff]
    %v106 = vld [vmem:[%s2 + $0x38] sm:$0xff]
    %v107 = vld [vmem:[%s2 + $0x40] sm:$0xff]
    %v108 = vld [vmem:[%s2 + $0x48] sm:$0xff]
    %v109 = vld [vmem:[%s2 + $0x50] sm:$0xff]
    %v110 = vld [vmem:[%s2 + $0x58] sm:$0xff]
    %v111 = vld [vmem:[%s2 + $0x60] sm:$0xff]
    %v112 = vld [vmem:[%s2 + $0x68] sm:$0xff]
    %v113 = vld [vmem:[%s2 + $0x70] sm:$0xff]
    %v114 = vld [vmem:[%s2 + $0x78] sm:$0xff]
    %v115 = vld [vmem:[%s2 + $0x80] sm:$0xff]
    %v116 = vld [vmem:[%s2 + $0x88] sm:$0xff]
    %v117 = vld [vmem:[%s2 + $0x90] sm:$0xff]
    %v118 = vld [vmem:[%s2 + $0x98] sm:$0xff]
    %v119 = vld [vmem:[%s2 + $0xa0] sm:$0xff]
    %v120 = vld [vmem:[%s2 + $0xa8] sm:$0xff]
    %v121 = vld [vmem:[%s2 + $0xb0] sm:$0xff]
    %v122 = vld [vmem:[%s2 + $0xb8] sm:$0xff]
    %v123 = vld [vmem:[%s2 + $0xc0] sm:$0xff]
    %v124 = vld [vmem:[%s2 + $0xc8] sm:$0xff]
    %v125 = vld [vmem:[%s2 + $0xd0] sm:$0xff]
    %v126 = vld [vmem:[%s2 + $0xd8] sm:$0xff]
    %v127 = vld [vmem:[%s2 + $0xe0] sm:$0xff]
    %v128 = vld [vmem:[%s2 + $0xe8] sm:$0xff]
    %v129 = vld [vmem:[%s2 + $0xf0] sm:$0xff]
    %v130 = vld [vmem:[%s2 + $0xf8] sm:$0xff]
    %v131 = vld [vmem:[%s2 + $0x100] sm:$0xff]
    %v132 = vld [vmem:[%s2 + $0x108] sm:$0xff]
    %v133 = vld [vmem:[%s2 + $0x110] sm:$0xff]
    %v134 = vld [vmem:[%s2 + $0x118] sm:$0xff]
    %v135 = vld [vmem:[%s2 + $0x120] sm:$0xff]
    %v136 = vld [vmem:[%s2 + $0x128] sm:$0xff]
    %v137 = vld [vmem:[%s2 + $0x130] sm:$0xff]
    %v138 = vld [vmem:[%s2 + $0x138] sm:$0xff]
    %v139 = vld [vmem:[%s2 + $0x140] sm:$0xff]
    %v140 = vld [vmem:[%s2 + $0x148] sm:$0xff]
    %v141 = vld [vmem:[%s2 + $0x150] sm:$0xff]
    %v142 = vld [vmem:[%s2 + $0x158] sm:$0xff]
    %v143 = vld [vmem:[%s2 + $0x160] sm:$0xff]
    %v144 = vld [vmem:[%s2 + $0x168] sm:$0xff]
    %v145 = vld [vmem:[%s2 + $0x170] sm:$0xff]
    %v146 = vld [vmem:[%s2 + $0x178] sm:$0xff]
    %v147 = vld [vmem:[%s2 + $0x180] sm:$0xff]
    %v148 = vld [vmem:[%s2 + $0x188] sm:$0xff]
    %v149 = vld [vmem:[%s2 + $0x190] sm:$0xff]
    %v150 = vld [vmem:[%s2 + $0x198] sm:$0xff]
    %v151 = vld [vmem:[%s2 + $0x1a0] sm:$0xff]
    %v152 = vld [vmem:[%s2 + $0x1a8] sm:$0xff]
    %v153 = vld [vmem:[%s2 + $0x1b0] sm:$0xff]
    %v154 = vld [vmem:[%s2 + $0x1b8] sm:$0xff]
    %v155 = vld [vmem:[%s2 + $0x1c0] sm:$0xff]
    %v156 = vld [vmem:[%s2 + $0x1c8] sm:$0xff]
    %v157 = vld [vmem:[%s2 + $0x1d0] sm:$0xff]
    %v158 = vld [vmem:[%s2 + $0x1d8] sm:$0xff]
    %v159 = vld [vmem:[%s2 + $0x1e0] sm:$0xff]
    %v160 = vld [vmem:[%s2 + $0x1e8] sm:$0xff]
    %v161 = vld [vmem:[%s2 + $0x1f0] sm:$0xff]
    %v162 = vld [vmem:[%s2 + $0x1f8] sm:$0xff]
    %v163 = vld [vmem:[%s2 + $0x200] sm:$0xff]
    %v164 = vld [vmem:[%s2 + $0x208] sm:$0xff]
    %v165 = vld [vmem:[%s2 + $0x210] sm:$0xff]
    %v166 = vld [vmem:[%s2 + $0x218] sm:$0xff]
    %v167 = vld [vmem:[%s2 + $0x220] sm:$0xff]
    %v168 = vld [vmem:[%s2 + $0x228] sm:$0xff]
    %v169 = vld [vmem:[%s2 + $0x230] sm:$0xff]
    %v170 = vld [vmem:[%s2 + $0x238] sm:$0xff]
    %v171 = vld [vmem:[%s4] sm:$0xff]
    %v172 = vld [vmem:[%s4 + $0x8] sm:$0xff]
    %v173 = vld [vmem:[%s4 + $0x10] sm:$0xff]
    %v174 = vld [vmem:[%s4 + $0x18] sm:$0xff]
    %v175 = vld [vmem:[%s4 + $0x20] sm:$0xff]
    %v176 = vld [vmem:[%s4 + $0x28] sm:$0xff]
    %v177 = vld [vmem:[%s4 + $0x30] sm:$0xff]
    %v178 = vld [vmem:[%s4 + $0x38] sm:$0xff]
    %v179 = vld [vmem:[%s4 + $0x40] sm:$0xff]
    %v180 = vld [vmem:[%s4 + $0x48] sm:$0xff]
    %v181 = vld [vmem:[%s4 + $0x50] sm:$0xff]
    %v182 = vld [vmem:[%s4 + $0x58] sm:$0xff]
    %v183 = vld [vmem:[%s4 + $0x60] sm:$0xff]
    %v184 = vld [vmem:[%s4 + $0x68] sm:$0xff]
    %v185 = vld [vmem:[%s4 + $0x70] sm:$0xff]
    %v186 = vld [vmem:[%s4 + $0x78] sm:$0xff]
    %v187 = vld [vmem:[%s4 + $0x80] sm:$0xff]
    %v188 = vld [vmem:[%s4 + $0x88] sm:$0xff]
    %v189 = vld [vmem:[%s4 + $0x90] sm:$0xff]
    %v190 = vld [vmem:[%s4 + $0x98] sm:$0xff]
    %v191 = vld [vmem:[%s4 + $0xa0] sm:$0xff]
    %v192 = vld [vmem:[%s4 + $0xa8] sm:$0xff]
    %v193 = vld [vmem:[%s4 + $0xb0] sm:$0xff]
    %v194 = vld [vmem:[%s4 + $0xb8] sm:$0xff]
    %v195 = vld [vmem:[%s4 + $0xc0] sm:$0xff]
    %v196 = vld [vmem:[%s4 + $0xc8] sm:$0xff]
    %v197 = vld [vmem:[%s4 + $0xd0] sm:$0xff]
    %v198 = vld [vmem:[%s4 + $0xd8] sm:$0xff]
    %v199 = vld [vmem:[%s4 + $0xe0] sm:$0xff]
    %v200 = vld [vmem:[%s4 + $0xe8] sm:$0xff]
    %v201 = vld [vmem:[%s4 + $0xf0] sm:$0xff]
    %v202 = vld [vmem:[%s4 + $0xf8] sm:$0xff]
    %v203 = vld [vmem:[%s4 + $0x100] sm:$0xff]
    %v204 = vld [vmem:[%s4 + $0x108] sm:$0xff]
    %v205 = vld [vmem:[%s4 + $0x110] sm:$0xff]
    %v206 = vld [vmem:[%s4 + $0x118] sm:$0xff]
    %v207 = vld [vmem:[#allocation2] sm:$0xff]
    %v208 = vld [vmem:[#allocation2 + $0x8] sm:$0xff]
    %v209 = vld [vmem:[#allocation2 + $0x10] sm:$0xff]
    %v210 = vld [vmem:[#allocation2 + $0x18] sm:$0xff]
    %s211 = scalar_lea.vmem [#allocation2], 32
    %v212 = vld [vmem:[%s211] sm:$0xff]
    %v213 = vld [vmem:[%s211 + $0x8] sm:$0xff]
    %v214 = vld [vmem:[%s211 + $0x10] sm:$0xff]
    %v215 = vld [vmem:[%s211 + $0x18] sm:$0xff]
    %v216 = vld [vmem:[%s1] sm:$0xff]
    %v217 = vld [vmem:[%s1 + $0x8] sm:$0xff]
    %v218 = vld [vmem:[%s1 + $0x10] sm:$0xff]
    %v219 = vld [vmem:[%s1 + $0x18] sm:$0xff]
    %s220 = scalar_lea.vmem %s1, 32
    %v221 = vld [vmem:[%s220] sm:$0xff]
    %v222 = vld [vmem:[%s220 + $0x8] sm:$0xff]
    %v223 = vld [vmem:[%s220 + $0x10] sm:$0xff]
    %v224 = vld [vmem:[%s220 + $0x18] sm:$0xff]
    %v225 = vld [vmem:[%s3] sm:$0xff]
    %v226 = vld [vmem:[%s3 + $0x8] sm:$0xff]
    %v227 = vld [vmem:[%s3 + $0x10] sm:$0xff]
    %v228 = vld [vmem:[%s3 + $0x18] sm:$0xff]
    %v229 = vld [vmem:[%s3 + $0x20] sm:$0xff]
    %v230 = vld [vmem:[%s3 + $0x28] sm:$0xff]
    %v231 = vld [vmem:[%s3 + $0x30] sm:$0xff]
    %v232 = vld [vmem:[%s3 + $0x38] sm:$0xff]
    %233 = vrot.lane.b32.xlu0 %v207, 17
    %v234 = vpop.permute.xlu0 %233
    %235 = vrot.lane.b32.xlu0 %v209, 17
    %v236 = vpop.permute.xlu0 %235
    %237 = vrot.lane.b32.xlu0 %v208, 17
    %v238 = vpop.permute.xlu0 %237
    %239 = vrot.lane.b32.xlu0 %v210, 17
    %v240 = vpop.permute.xlu0 %239
    %241 = vrot.lane.b32.xlu0 %v212, 17
    %v242 = vpop.permute.xlu0 %241
    %243 = vrot.lane.b32.xlu0 %v214, 17
    %v244 = vpop.permute.xlu0 %243
    %245 = vrot.lane.b32.xlu0 %v213, 17
    %v246 = vpop.permute.xlu0 %245
    %247 = vrot.lane.b32.xlu0 %v215, 17
    %v248 = vpop.permute.xlu0 %247
    %v249 = vlaneseq
    %v250 = vand.u32 %v249, 127
    %vm251 = vcmp.lt.s32.totalorder %v250, 17
    %v252 = vsel %vm251, %v242, %v246
    %v253 = vsel %vm251, %v244, %v248
    %v254 = vsel %vm251, %v238, %v242
    %v255 = vsel %vm251, %v240, %v244
    %v256 = vsel %vm251, %v234, %v238
    %v257 = vsel %vm251, %v236, %v240
    %v258 = vsel %vm251, %v246, %v234
    %v259 = vsel %vm251, %v248, %v236
    %v261 = vlaneseq
    %v262 = vshrl.u32 %v261, 7
    %v263 = vsub.s32 0, %v262
    %v264 = vrot.slane %v90, %v263
    %v265 = vlaneseq
    %v266 = vshrl.u32 %v265, 7
    %v267 = vsub.s32 1, %v266
    %v268 = vrot.slane %v90, %v267
    %v269 = vlaneseq
    %v270 = vshrl.u32 %v269, 7
    %v271 = vsub.s32 2, %v270
    %v272 = vrot.slane %v90, %v271
    %v273 = vlaneseq
    %v274 = vshrl.u32 %v273, 7
    %v275 = vsub.s32 3, %v274
    %v276 = vrot.slane %v90, %v275
    %v281 = vmul.f32 %v264, %v258
    %v282 = vmul.f32 %v268, %v256
    %v283 = vmul.f32 %v272, %v254
    %v284 = vmul.f32 %v276, %v252
    %v285 = vmul.f32 %v264, %v259
    %v286 = vmul.f32 %v268, %v257
    %v287 = vmul.f32 %v272, %v255
    %v288 = vmul.f32 %v276, %v253
    %v289 = vmul.f32 %v99, %v281
    %v290 = vmul.f32 %v100, %v282
    %v291 = vmul.f32 %v101, %v283
    %v292 = vmul.f32 %v102, %v284
    %v293 = vmul.f32 %v103, %v285
    %v294 = vmul.f32 %v104, %v286
    %v295 = vmul.f32 %v105, %v287
    %v296 = vmul.f32 %v106, %v288
    %v297 = vadd.f32 %v225, %v289
    %v298 = vadd.f32 %v226, %v290
    %v299 = vadd.f32 %v227, %v291
    %v300 = vadd.f32 %v228, %v292
    %v301 = vadd.f32 %v229, %v293
    %v302 = vadd.f32 %v230, %v294
    %v303 = vadd.f32 %v231, %v295
    %v304 = vadd.f32 %v232, %v296
    %305 = vrot.lane.b32.xlu0 %v207, 16
    %v306 = vpop.permute.xlu0 %305
    %307 = vrot.lane.b32.xlu0 %v209, 16
    %v308 = vpop.permute.xlu0 %307
    %309 = vrot.lane.b32.xlu0 %v208, 16
    %v310 = vpop.permute.xlu0 %309
    %311 = vrot.lane.b32.xlu0 %v210, 16
    %v312 = vpop.permute.xlu0 %311
    %313 = vrot.lane.b32.xlu0 %v212, 16
    %v314 = vpop.permute.xlu0 %313
    %315 = vrot.lane.b32.xlu0 %v214, 16
    %v316 = vpop.permute.xlu0 %315
    %317 = vrot.lane.b32.xlu0 %v213, 16
    %v318 = vpop.permute.xlu0 %317
    %319 = vrot.lane.b32.xlu0 %v215, 16
    %v320 = vpop.permute.xlu0 %319
    %vm321 = vcmp.lt.s32.totalorder %v250, 16
    %v322 = vsel %vm321, %v314, %v318
    %v323 = vsel %vm321, %v316, %v320
    %v324 = vsel %vm321, %v310, %v314
    %v325 = vsel %vm321, %v312, %v316
    %v326 = vsel %vm321, %v306, %v310
    %v327 = vsel %vm321, %v308, %v312
    %v328 = vsel %vm321, %v318, %v306
    %v329 = vsel %vm321, %v320, %v308
    %v331 = vlaneseq
    %v332 = vshrl.u32 %v331, 7
    %v333 = vsub.s32 0, %v332
    %v334 = vrot.slane %v91, %v333
    %v335 = vlaneseq
    %v336 = vshrl.u32 %v335, 7
    %v337 = vsub.s32 1, %v336
    %v338 = vrot.slane %v91, %v337
    %v339 = vlaneseq
    %v340 = vshrl.u32 %v339, 7
    %v341 = vsub.s32 2, %v340
    %v342 = vrot.slane %v91, %v341
    %v343 = vlaneseq
    %v344 = vshrl.u32 %v343, 7
    %v345 = vsub.s32 3, %v344
    %v346 = vrot.slane %v91, %v345
    %v351 = vmul.f32 %v334, %v328
    %v352 = vmul.f32 %v338, %v326
    %v353 = vmul.f32 %v342, %v324
    %v354 = vmul.f32 %v346, %v322
    %v355 = vmul.f32 %v334, %v329
    %v356 = vmul.f32 %v338, %v327
    %v357 = vmul.f32 %v342, %v325
    %v358 = vmul.f32 %v346, %v323
    %v359 = vmul.f32 %v107, %v351
    %v360 = vmul.f32 %v108, %v352
    %v361 = vmul.f32 %v109, %v353
    %v362 = vmul.f32 %v110, %v354
    %v363 = vmul.f32 %v111, %v355
    %v364 = vmul.f32 %v112, %v356
    %v365 = vmul.f32 %v113, %v357
    %v366 = vmul.f32 %v114, %v358
    %v367 = vadd.f32 %v297, %v359
    %v368 = vadd.f32 %v298, %v360
    %v369 = vadd.f32 %v299, %v361
    %v370 = vadd.f32 %v300, %v362
    %v371 = vadd.f32 %v301, %v363
    %v372 = vadd.f32 %v302, %v364
    %v373 = vadd.f32 %v303, %v365
    %v374 = vadd.f32 %v304, %v366
    %375 = vrot.lane.b32.xlu0 %v207, 15
    %v376 = vpop.permute.xlu0 %375
    %377 = vrot.lane.b32.xlu0 %v209, 15
    %v378 = vpop.permute.xlu0 %377
    %379 = vrot.lane.b32.xlu0 %v208, 15
    %v380 = vpop.permute.xlu0 %379
    %381 = vrot.lane.b32.xlu0 %v210, 15
    %v382 = vpop.permute.xlu0 %381
    %383 = vrot.lane.b32.xlu0 %v212, 15
    %v384 = vpop.permute.xlu0 %383
    %385 = vrot.lane.b32.xlu0 %v214, 15
    %v386 = vpop.permute.xlu0 %385
    %387 = vrot.lane.b32.xlu0 %v213, 15
    %v388 = vpop.permute.xlu0 %387
    %389 = vrot.lane.b32.xlu0 %v215, 15
    %v390 = vpop.permute.xlu0 %389
    %vm391 = vcmp.lt.s32.totalorder %v250, 15
    %v392 = vsel %vm391, %v384, %v388
    %v393 = vsel %vm391, %v386, %v390
    %v394 = vsel %vm391, %v380, %v384
    %v395 = vsel %vm391, %v382, %v386
    %v396 = vsel %vm391, %v376, %v380
    %v397 = vsel %vm391, %v378, %v382
    %v398 = vsel %vm391, %v388, %v376
    %v399 = vsel %vm391, %v390, %v378
    %v401 = vlaneseq
    %v402 = vshrl.u32 %v401, 7
    %v403 = vsub.s32 0, %v402
    %v404 = vrot.slane %v92, %v403
    %v405 = vlaneseq
    %v406 = vshrl.u32 %v405, 7
    %v407 = vsub.s32 1, %v406
    %v408 = vrot.slane %v92, %v407
    %v409 = vlaneseq
    %v410 = vshrl.u32 %v409, 7
    %v411 = vsub.s32 2, %v410
    %v412 = vrot.slane %v92, %v411
    %v413 = vlaneseq
    %v414 = vshrl.u32 %v413, 7
    %v415 = vsub.s32 3, %v414
    %v416 = vrot.slane %v92, %v415
    %v421 = vmul.f32 %v404, %v398
    %v422 = vmul.f32 %v408, %v396
    %v423 = vmul.f32 %v412, %v394
    %v424 = vmul.f32 %v416, %v392
    %v425 = vmul.f32 %v404, %v399
    %v426 = vmul.f32 %v408, %v397
    %v427 = vmul.f32 %v412, %v395
    %v428 = vmul.f32 %v416, %v393
    %v429 = vmul.f32 %v115, %v421
    %v430 = vmul.f32 %v116, %v422
    %v431 = vmul.f32 %v117, %v423
    %v432 = vmul.f32 %v118, %v424
    %v433 = vmul.f32 %v119, %v425
    %v434 = vmul.f32 %v120, %v426
    %v435 = vmul.f32 %v121, %v427
    %v436 = vmul.f32 %v122, %v428
    %v437 = vadd.f32 %v367, %v429
    %v438 = vadd.f32 %v368, %v430
    %v439 = vadd.f32 %v369, %v431
    %v440 = vadd.f32 %v370, %v432
    %v441 = vadd.f32 %v371, %v433
    %v442 = vadd.f32 %v372, %v434
    %v443 = vadd.f32 %v373, %v435
    %v444 = vadd.f32 %v374, %v436
    %445 = vrot.lane.b32.xlu0 %v207, 1
    %v446 = vpop.permute.xlu0 %445
    %447 = vrot.lane.b32.xlu0 %v209, 1
    %v448 = vpop.permute.xlu0 %447
    %449 = vrot.lane.b32.xlu0 %v208, 1
    %v450 = vpop.permute.xlu0 %449
    %451 = vrot.lane.b32.xlu0 %v210, 1
    %v452 = vpop.permute.xlu0 %451
    %453 = vrot.lane.b32.xlu0 %v212, 1
    %v454 = vpop.permute.xlu0 %453
    %455 = vrot.lane.b32.xlu0 %v214, 1
    %v456 = vpop.permute.xlu0 %455
    %457 = vrot.lane.b32.xlu0 %v213, 1
    %v458 = vpop.permute.xlu0 %457
    %459 = vrot.lane.b32.xlu0 %v215, 1
    %v460 = vpop.permute.xlu0 %459
    %vm461 = vcmp.lt.s32.totalorder %v250, 1
    %v462 = vsel %vm461, %v454, %v458
    %v463 = vsel %vm461, %v456, %v460
    %v464 = vsel %vm461, %v450, %v454
    %v465 = vsel %vm461, %v452, %v456
    %v466 = vsel %vm461, %v446, %v450
    %v467 = vsel %vm461, %v448, %v452
    %v468 = vsel %vm461, %v458, %v446
    %v469 = vsel %vm461, %v460, %v448
    %v471 = vlaneseq
    %v472 = vshrl.u32 %v471, 7
    %v473 = vsub.s32 0, %v472
    %v474 = vrot.slane %v93, %v473
    %v475 = vlaneseq
    %v476 = vshrl.u32 %v475, 7
    %v477 = vsub.s32 1, %v476
    %v478 = vrot.slane %v93, %v477
    %v479 = vlaneseq
    %v480 = vshrl.u32 %v479, 7
    %v481 = vsub.s32 2, %v480
    %v482 = vrot.slane %v93, %v481
    %v483 = vlaneseq
    %v484 = vshrl.u32 %v483, 7
    %v485 = vsub.s32 3, %v484
    %v486 = vrot.slane %v93, %v485
    %v491 = vmul.f32 %v474, %v468
    %v492 = vmul.f32 %v478, %v466
    %v493 = vmul.f32 %v482, %v464
    %v494 = vmul.f32 %v486, %v462
    %v495 = vmul.f32 %v474, %v469
    %v496 = vmul.f32 %v478, %v467
    %v497 = vmul.f32 %v482, %v465
    %v498 = vmul.f32 %v486, %v463
    %v499 = vmul.f32 %v123, %v491
    %v500 = vmul.f32 %v124, %v492
    %v501 = vmul.f32 %v125, %v493
    %v502 = vmul.f32 %v126, %v494
    %v503 = vmul.f32 %v127, %v495
    %v504 = vmul.f32 %v128, %v496
    %v505 = vmul.f32 %v129, %v497
    %v506 = vmul.f32 %v130, %v498
    %v507 = vadd.f32 %v437, %v499
    %v508 = vadd.f32 %v438, %v500
    %v509 = vadd.f32 %v439, %v501
    %v510 = vadd.f32 %v440, %v502
    %v511 = vadd.f32 %v441, %v503
    %v512 = vadd.f32 %v442, %v504
    %v513 = vadd.f32 %v443, %v505
    %v514 = vadd.f32 %v444, %v506
    %v516 = vlaneseq
    %v517 = vshrl.u32 %v516, 7
    %v518 = vsub.s32 0, %v517
    %v519 = vrot.slane %v94, %v518
    %v520 = vlaneseq
    %v521 = vshrl.u32 %v520, 7
    %v522 = vsub.s32 1, %v521
    %v523 = vrot.slane %v94, %v522
    %v524 = vlaneseq
    %v525 = vshrl.u32 %v524, 7
    %v526 = vsub.s32 2, %v525
    %v527 = vrot.slane %v94, %v526
    %v528 = vlaneseq
    %v529 = vshrl.u32 %v528, 7
    %v530 = vsub.s32 3, %v529
    %v531 = vrot.slane %v94, %v530
    %v536 = vmul.f32 %v519, %v207
    %v537 = vmul.f32 %v523, %v208
    %v538 = vmul.f32 %v527, %v212
    %v539 = vmul.f32 %v531, %v213
    %v540 = vmul.f32 %v519, %v209
    %v541 = vmul.f32 %v523, %v210
    %v542 = vmul.f32 %v527, %v214
    %v543 = vmul.f32 %v531, %v215
    %v544 = vmul.f32 %v131, %v536
    %v545 = vmul.f32 %v132, %v537
    %v546 = vmul.f32 %v133, %v538
    %v547 = vmul.f32 %v134, %v539
    %v548 = vmul.f32 %v135, %v540
    %v549 = vmul.f32 %v136, %v541
    %v550 = vmul.f32 %v137, %v542
    %v551 = vmul.f32 %v138, %v543
    %v552 = vadd.f32 %v507, %v544
    %v553 = vadd.f32 %v508, %v545
    %v554 = vadd.f32 %v509, %v546
    %v555 = vadd.f32 %v510, %v547
    %v556 = vadd.f32 %v511, %v548
    %v557 = vadd.f32 %v512, %v549
    %v558 = vadd.f32 %v513, %v550
    %v559 = vadd.f32 %v514, %v551
    %560 = vrot.lane.b32.xlu0 %v207, 127
    %v561 = vpop.permute.xlu0 %560
    %562 = vrot.lane.b32.xlu0 %v209, 127
    %v563 = vpop.permute.xlu0 %562
    %564 = vrot.lane.b32.xlu0 %v208, 127
    %v565 = vpop.permute.xlu0 %564
    %566 = vrot.lane.b32.xlu0 %v210, 127
    %v567 = vpop.permute.xlu0 %566
    %568 = vrot.lane.b32.xlu0 %v212, 127
    %v569 = vpop.permute.xlu0 %568
    %570 = vrot.lane.b32.xlu0 %v214, 127
    %v571 = vpop.permute.xlu0 %570
    %572 = vrot.lane.b32.xlu0 %v213, 127
    %v573 = vpop.permute.xlu0 %572
    %574 = vrot.lane.b32.xlu0 %v215, 127
    %v575 = vpop.permute.xlu0 %574
    %vm576 = vcmp.lt.s32.totalorder %v250, 127
    %v577 = vsel %vm576, %v569, %v573
    %v578 = vsel %vm576, %v571, %v575
    %v579 = vsel %vm576, %v565, %v569
    %v580 = vsel %vm576, %v567, %v571
    %v581 = vsel %vm576, %v561, %v565
    %v582 = vsel %vm576, %v563, %v567
    %v583 = vsel %vm576, %v573, %v561
    %v584 = vsel %vm576, %v575, %v563
    %v586 = vlaneseq
    %v587 = vshrl.u32 %v586, 7
    %v588 = vsub.s32 0, %v587
    %v589 = vrot.slane %v95, %v588
    %v590 = vlaneseq
    %v591 = vshrl.u32 %v590, 7
    %v592 = vsub.s32 1, %v591
    %v593 = vrot.slane %v95, %v592
    %v594 = vlaneseq
    %v595 = vshrl.u32 %v594, 7
    %v596 = vsub.s32 2, %v595
    %v597 = vrot.slane %v95, %v596
    %v598 = vlaneseq
    %v599 = vshrl.u32 %v598, 7
    %v600 = vsub.s32 3, %v599
    %v601 = vrot.slane %v95, %v600
    %v606 = vmul.f32 %v589, %v581
    %v607 = vmul.f32 %v593, %v579
    %v608 = vmul.f32 %v597, %v577
    %v609 = vmul.f32 %v601, %v583
    %v610 = vmul.f32 %v589, %v582
    %v611 = vmul.f32 %v593, %v580
    %v612 = vmul.f32 %v597, %v578
    %v613 = vmul.f32 %v601, %v584
    %v614 = vmul.f32 %v139, %v606
    %v615 = vmul.f32 %v140, %v607
    %v616 = vmul.f32 %v141, %v608
    %v617 = vmul.f32 %v142, %v609
    %v618 = vmul.f32 %v143, %v610
    %v619 = vmul.f32 %v144, %v611
    %v620 = vmul.f32 %v145, %v612
    %v621 = vmul.f32 %v146, %v613
    %v622 = vadd.f32 %v552, %v614
    %v623 = vadd.f32 %v553, %v615
    %v624 = vadd.f32 %v554, %v616
    %v625 = vadd.f32 %v555, %v617
    %v626 = vadd.f32 %v556, %v618
    %v627 = vadd.f32 %v557, %v619
    %v628 = vadd.f32 %v558, %v620
    %v629 = vadd.f32 %v559, %v621
    %630 = vrot.lane.b32.xlu0 %v207, 113
    %v631 = vpop.permute.xlu0 %630
    %632 = vrot.lane.b32.xlu0 %v209, 113
    %v633 = vpop.permute.xlu0 %632
    %634 = vrot.lane.b32.xlu0 %v208, 113
    %v635 = vpop.permute.xlu0 %634
    %636 = vrot.lane.b32.xlu0 %v210, 113
    %v637 = vpop.permute.xlu0 %636
    %638 = vrot.lane.b32.xlu0 %v212, 113
    %v639 = vpop.permute.xlu0 %638
    %640 = vrot.lane.b32.xlu0 %v214, 113
    %v641 = vpop.permute.xlu0 %640
    %642 = vrot.lane.b32.xlu0 %v213, 113
    %v643 = vpop.permute.xlu0 %642
    %644 = vrot.lane.b32.xlu0 %v215, 113
    %v645 = vpop.permute.xlu0 %644
    %vm646 = vcmp.lt.s32.totalorder %v250, 113
    %v647 = vsel %vm646, %v639, %v643
    %v648 = vsel %vm646, %v641, %v645
    %v649 = vsel %vm646, %v635, %v639
    %v650 = vsel %vm646, %v637, %v641
    %v651 = vsel %vm646, %v631, %v635
    %v652 = vsel %vm646, %v633, %v637
    %v653 = vsel %vm646, %v643, %v631
    %v654 = vsel %vm646, %v645, %v633
    %v656 = vlaneseq
    %v657 = vshrl.u32 %v656, 7
    %v658 = vsub.s32 0, %v657
    %v659 = vrot.slane %v96, %v658
    %v660 = vlaneseq
    %v661 = vshrl.u32 %v660, 7
    %v662 = vsub.s32 1, %v661
    %v663 = vrot.slane %v96, %v662
    %v664 = vlaneseq
    %v665 = vshrl.u32 %v664, 7
    %v666 = vsub.s32 2, %v665
    %v667 = vrot.slane %v96, %v666
    %v668 = vlaneseq
    %v669 = vshrl.u32 %v668, 7
    %v670 = vsub.s32 3, %v669
    %v671 = vrot.slane %v96, %v670
    %v676 = vmul.f32 %v659, %v651
    %v677 = vmul.f32 %v663, %v649
    %v678 = vmul.f32 %v667, %v647
    %v679 = vmul.f32 %v671, %v653
    %v680 = vmul.f32 %v659, %v652
    %v681 = vmul.f32 %v663, %v650
    %v682 = vmul.f32 %v667, %v648
    %v683 = vmul.f32 %v671, %v654
    %v684 = vmul.f32 %v147, %v676
    %v685 = vmul.f32 %v148, %v677
    %v686 = vmul.f32 %v149, %v678
    %v687 = vmul.f32 %v150, %v679
    %v688 = vmul.f32 %v151, %v680
    %v689 = vmul.f32 %v152, %v681
    %v690 = vmul.f32 %v153, %v682
    %v691 = vmul.f32 %v154, %v683
    %v692 = vadd.f32 %v622, %v684
    %v693 = vadd.f32 %v623, %v685
    %v694 = vadd.f32 %v624, %v686
    %v695 = vadd.f32 %v625, %v687
    %v696 = vadd.f32 %v626, %v688
    %v697 = vadd.f32 %v627, %v689
    %v698 = vadd.f32 %v628, %v690
    %v699 = vadd.f32 %v629, %v691
    %700 = vrot.lane.b32.xlu0 %v207, 112
    %v701 = vpop.permute.xlu0 %700
    %702 = vrot.lane.b32.xlu0 %v209, 112
    %v703 = vpop.permute.xlu0 %702
    %704 = vrot.lane.b32.xlu0 %v208, 112
    %v705 = vpop.permute.xlu0 %704
    %706 = vrot.lane.b32.xlu0 %v210, 112
    %v707 = vpop.permute.xlu0 %706
    %708 = vrot.lane.b32.xlu0 %v212, 112
    %v709 = vpop.permute.xlu0 %708
    %710 = vrot.lane.b32.xlu0 %v214, 112
    %v711 = vpop.permute.xlu0 %710
    %712 = vrot.lane.b32.xlu0 %v213, 112
    %v713 = vpop.permute.xlu0 %712
    %714 = vrot.lane.b32.xlu0 %v215, 112
    %v715 = vpop.permute.xlu0 %714
    %vm716 = vcmp.lt.s32.totalorder %v250, 112
    %v717 = vsel %vm716, %v709, %v713
    %v718 = vsel %vm716, %v711, %v715
    %v719 = vsel %vm716, %v705, %v709
    %v720 = vsel %vm716, %v707, %v711
    %v721 = vsel %vm716, %v701, %v705
    %v722 = vsel %vm716, %v703, %v707
    %v723 = vsel %vm716, %v713, %v701
    %v724 = vsel %vm716, %v715, %v703
    %v726 = vlaneseq
    %v727 = vshrl.u32 %v726, 7
    %v728 = vsub.s32 0, %v727
    %v729 = vrot.slane %v97, %v728
    %v730 = vlaneseq
    %v731 = vshrl.u32 %v730, 7
    %v732 = vsub.s32 1, %v731
    %v733 = vrot.slane %v97, %v732
    %v734 = vlaneseq
    %v735 = vshrl.u32 %v734, 7
    %v736 = vsub.s32 2, %v735
    %v737 = vrot.slane %v97, %v736
    %v738 = vlaneseq
    %v739 = vshrl.u32 %v738, 7
    %v740 = vsub.s32 3, %v739
    %v741 = vrot.slane %v97, %v740
    %v746 = vmul.f32 %v729, %v721
    %v747 = vmul.f32 %v733, %v719
    %v748 = vmul.f32 %v737, %v717
    %v749 = vmul.f32 %v741, %v723
    %v750 = vmul.f32 %v729, %v722
    %v751 = vmul.f32 %v733, %v720
    %v752 = vmul.f32 %v737, %v718
    %v753 = vmul.f32 %v741, %v724
    %v754 = vmul.f32 %v155, %v746
    %v755 = vmul.f32 %v156, %v747
    %v756 = vmul.f32 %v157, %v748
    %v757 = vmul.f32 %v158, %v749
    %v758 = vmul.f32 %v159, %v750
    %v759 = vmul.f32 %v160, %v751
    %v760 = vmul.f32 %v161, %v752
    %v761 = vmul.f32 %v162, %v753
    %v762 = vadd.f32 %v692, %v754
    %v763 = vadd.f32 %v693, %v755
    %v764 = vadd.f32 %v694, %v756
    %v765 = vadd.f32 %v695, %v757
    %v766 = vadd.f32 %v696, %v758
    %v767 = vadd.f32 %v697, %v759
    %v768 = vadd.f32 %v698, %v760
    %v769 = vadd.f32 %v699, %v761
    %770 = vrot.lane.b32.xlu0 %v207, 111
    %v771 = vpop.permute.xlu0 %770
    %772 = vrot.lane.b32.xlu0 %v209, 111
    %v773 = vpop.permute.xlu0 %772
    %774 = vrot.lane.b32.xlu0 %v208, 111
    %v775 = vpop.permute.xlu0 %774
    %776 = vrot.lane.b32.xlu0 %v210, 111
    %v777 = vpop.permute.xlu0 %776
    %778 = vrot.lane.b32.xlu0 %v212, 111
    %v779 = vpop.permute.xlu0 %778
    %780 = vrot.lane.b32.xlu0 %v214, 111
    %v781 = vpop.permute.xlu0 %780
    %782 = vrot.lane.b32.xlu0 %v213, 111
    %v783 = vpop.permute.xlu0 %782
    %784 = vrot.lane.b32.xlu0 %v215, 111
    %v785 = vpop.permute.xlu0 %784
    %vm786 = vcmp.lt.s32.totalorder %v250, 111
    %v787 = vsel %vm786, %v779, %v783
    %v788 = vsel %vm786, %v781, %v785
    %v789 = vsel %vm786, %v775, %v779
    %v790 = vsel %vm786, %v777, %v781
    %v791 = vsel %vm786, %v771, %v775
    %v792 = vsel %vm786, %v773, %v777
    %v793 = vsel %vm786, %v783, %v771
    %v794 = vsel %vm786, %v785, %v773
    %v796 = vlaneseq
    %v797 = vshrl.u32 %v796, 7
    %v798 = vsub.s32 0, %v797
    %v799 = vrot.slane %v98, %v798
    %v800 = vlaneseq
    %v801 = vshrl.u32 %v800, 7
    %v802 = vsub.s32 1, %v801
    %v803 = vrot.slane %v98, %v802
    %v804 = vlaneseq
    %v805 = vshrl.u32 %v804, 7
    %v806 = vsub.s32 2, %v805
    %v807 = vrot.slane %v98, %v806
    %v808 = vlaneseq
    %v809 = vshrl.u32 %v808, 7
    %v810 = vsub.s32 3, %v809
    %v811 = vrot.slane %v98, %v810
    %v816 = vmul.f32 %v799, %v791
    %v817 = vmul.f32 %v803, %v789
    %v818 = vmul.f32 %v807, %v787
    %v819 = vmul.f32 %v811, %v793
    %v820 = vmul.f32 %v799, %v792
    %v821 = vmul.f32 %v803, %v790
    %v822 = vmul.f32 %v807, %v788
    %v823 = vmul.f32 %v811, %v794
    %v824 = vmul.f32 %v163, %v816
    %v825 = vmul.f32 %v164, %v817
    %v826 = vmul.f32 %v165, %v818
    %v827 = vmul.f32 %v166, %v819
    %v828 = vmul.f32 %v167, %v820
    %v829 = vmul.f32 %v168, %v821
    %v830 = vmul.f32 %v169, %v822
    %v831 = vmul.f32 %v170, %v823
    %v832 = vadd.f32 %v762, %v824
    %v833 = vadd.f32 %v763, %v825
    %v834 = vadd.f32 %v764, %v826
    %v835 = vadd.f32 %v765, %v827
    %v836 = vadd.f32 %v766, %v828
    %v837 = vadd.f32 %v767, %v829
    %v838 = vadd.f32 %v768, %v830
    %v839 = vadd.f32 %v769, %v831
    %v840 = vld [vmem:[%s5] sm:$0xff]
    %v841 = vld [vmem:[%s5 + $0x8] sm:$0xff]
    %v842 = vld [vmem:[%s5 + $0x10] sm:$0xff]
    %v843 = vld [vmem:[%s5 + $0x18] sm:$0xff]
    %844 = vrot.lane.b32.xlu0 %v832, 17
    %v845 = vpop.permute.xlu0 %844
    %846 = vrot.lane.b32.xlu0 %v836, 17
    %v847 = vpop.permute.xlu0 %846
    %848 = vrot.lane.b32.xlu0 %v216, 17
    %v849 = vpop.permute.xlu0 %848
    %850 = vrot.lane.b32.xlu0 %v218, 17
    %v851 = vpop.permute.xlu0 %850
    %852 = vrot.lane.b32.xlu0 %v833, 17
    %v853 = vpop.permute.xlu0 %852
    %854 = vrot.lane.b32.xlu0 %v837, 17
    %v855 = vpop.permute.xlu0 %854
    %856 = vrot.lane.b32.xlu0 %v217, 17
    %v857 = vpop.permute.xlu0 %856
    %858 = vrot.lane.b32.xlu0 %v219, 17
    %v859 = vpop.permute.xlu0 %858
    %860 = vrot.lane.b32.xlu0 %v834, 17
    %v861 = vpop.permute.xlu0 %860
    %862 = vrot.lane.b32.xlu0 %v838, 17
    %v863 = vpop.permute.xlu0 %862
    %864 = vrot.lane.b32.xlu0 %v221, 17
    %v865 = vpop.permute.xlu0 %864
    %866 = vrot.lane.b32.xlu0 %v223, 17
    %v867 = vpop.permute.xlu0 %866
    %868 = vrot.lane.b32.xlu0 %v835, 17
    %v869 = vpop.permute.xlu0 %868
    %870 = vrot.lane.b32.xlu0 %v839, 17
    %v871 = vpop.permute.xlu0 %870
    %872 = vrot.lane.b32.xlu0 %v222, 17
    %v873 = vpop.permute.xlu0 %872
    %874 = vrot.lane.b32.xlu0 %v224, 17
    %v875 = vpop.permute.xlu0 %874
    %v876 = vsel %vm251, %v861, %v869
    %v877 = vsel %vm251, %v863, %v871
    %v878 = vsel %vm251, %v865, %v873
    %v879 = vsel %vm251, %v867, %v875
    %v880 = vsel %vm251, %v853, %v861
    %v881 = vsel %vm251, %v855, %v863
    %v882 = vsel %vm251, %v857, %v865
    %v883 = vsel %vm251, %v859, %v867
    %v884 = vsel %vm251, %v845, %v853
    %v885 = vsel %vm251, %v847, %v855
    %v886 = vsel %vm251, %v849, %v857
    %v887 = vsel %vm251, %v851, %v859
    %v888 = vsel %vm251, %v869, %v845
    %v889 = vsel %vm251, %v871, %v847
    %v890 = vsel %vm251, %v873, %v849
    %v891 = vsel %vm251, %v875, %v851
    %v892 = vmul.f32 %v264, %v888
    %v893 = vmul.f32 %v268, %v884
    %v894 = vmul.f32 %v272, %v880
    %v895 = vmul.f32 %v276, %v876
    %v896 = vmul.f32 %v264, %v889
    %v897 = vmul.f32 %v268, %v885
    %v898 = vmul.f32 %v272, %v881
    %v899 = vmul.f32 %v276, %v877
    %v900 = vmul.f32 %v264, %v890
    %v901 = vmul.f32 %v268, %v886
    %v902 = vmul.f32 %v272, %v882
    %v903 = vmul.f32 %v276, %v878
    %v904 = vmul.f32 %v264, %v891
    %v905 = vmul.f32 %v268, %v887
    %v906 = vmul.f32 %v272, %v883
    %v907 = vmul.f32 %v276, %v879
    %909 = vset.pattern.permute.xlu0 0
    %910 = vperm.xlu0 %909, %v171
    %v911 = vpop.permute.xlu0 %910
    %914 = vset.pattern.permute.xlu0 0
    %915 = vperm.xlu0 %914, %v172
    %v916 = vpop.permute.xlu0 %915
    %919 = vset.pattern.permute.xlu0 0
    %920 = vperm.xlu0 %919, %v173
    %v921 = vpop.permute.xlu0 %920
    %924 = vset.pattern.permute.xlu0 0
    %925 = vperm.xlu0 %924, %v174
    %v926 = vpop.permute.xlu0 %925
    %v928 = vmul.f32 %v911, %v892
    %v929 = vmul.f32 %v911, %v893
    %v930 = vmul.f32 %v911, %v894
    %v931 = vmul.f32 %v911, %v895
    %v932 = vmul.f32 %v916, %v896
    %v933 = vmul.f32 %v916, %v897
    %v934 = vmul.f32 %v916, %v898
    %v935 = vmul.f32 %v916, %v899
    %v936 = vmul.f32 %v921, %v900
    %v937 = vmul.f32 %v921, %v901
    %v938 = vmul.f32 %v921, %v902
    %v939 = vmul.f32 %v921, %v903
    %v940 = vmul.f32 %v926, %v904
    %v941 = vmul.f32 %v926, %v905
    %v942 = vmul.f32 %v926, %v906
    %v943 = vmul.f32 %v926, %v907
    %945 = vset.pattern.permute.xlu0 0
    %946 = vperm.xlu0 %945, %v840
    %v947 = vpop.permute.xlu0 %946
    %950 = vset.pattern.permute.xlu0 0
    %951 = vperm.xlu0 %950, %v841
    %v952 = vpop.permute.xlu0 %951
    %955 = vset.pattern.permute.xlu0 0
    %956 = vperm.xlu0 %955, %v842
    %v957 = vpop.permute.xlu0 %956
    %960 = vset.pattern.permute.xlu0 0
    %961 = vperm.xlu0 %960, %v843
    %v962 = vpop.permute.xlu0 %961
    %v964 = vadd.f32 %v947, %v928
    %v965 = vadd.f32 %v947, %v929
    %v966 = vadd.f32 %v947, %v930
    %v967 = vadd.f32 %v947, %v931
    %v968 = vadd.f32 %v952, %v932
    %v969 = vadd.f32 %v952, %v933
    %v970 = vadd.f32 %v952, %v934
    %v971 = vadd.f32 %v952, %v935
    %v972 = vadd.f32 %v957, %v936
    %v973 = vadd.f32 %v957, %v937
    %v974 = vadd.f32 %v957, %v938
    %v975 = vadd.f32 %v957, %v939
    %v976 = vadd.f32 %v962, %v940
    %v977 = vadd.f32 %v962, %v941
    %v978 = vadd.f32 %v962, %v942
    %v979 = vadd.f32 %v962, %v943
    %980 = vrot.lane.b32.xlu0 %v832, 16
    %v981 = vpop.permute.xlu0 %980
    %982 = vrot.lane.b32.xlu0 %v836, 16
    %v983 = vpop.permute.xlu0 %982
    %984 = vrot.lane.b32.xlu0 %v216, 16
    %v985 = vpop.permute.xlu0 %984
    %986 = vrot.lane.b32.xlu0 %v218, 16
    %v987 = vpop.permute.xlu0 %986
    %988 = vrot.lane.b32.xlu0 %v833, 16
    %v989 = vpop.permute.xlu0 %988
    %990 = vrot.lane.b32.xlu0 %v837, 16
    %v991 = vpop.permute.xlu0 %990
    %992 = vrot.lane.b32.xlu0 %v217, 16
    %v993 = vpop.permute.xlu0 %992
    %994 = vrot.lane.b32.xlu0 %v219, 16
    %v995 = vpop.permute.xlu0 %994
    %996 = vrot.lane.b32.xlu0 %v834, 16
    %v997 = vpop.permute.xlu0 %996
    %998 = vrot.lane.b32.xlu0 %v838, 16
    %v999 = vpop.permute.xlu0 %998
    %1000 = vrot.lane.b32.xlu0 %v221, 16
    %v1001 = vpop.permute.xlu0 %1000
    %1002 = vrot.lane.b32.xlu0 %v223, 16
    %v1003 = vpop.permute.xlu0 %1002
    %1004 = vrot.lane.b32.xlu0 %v835, 16
    %v1005 = vpop.permute.xlu0 %1004
    %1006 = vrot.lane.b32.xlu0 %v839, 16
    %v1007 = vpop.permute.xlu0 %1006
    %1008 = vrot.lane.b32.xlu0 %v222, 16
    %v1009 = vpop.permute.xlu0 %1008
    %1010 = vrot.lane.b32.xlu0 %v224, 16
    %v1011 = vpop.permute.xlu0 %1010
    %v1012 = vsel %vm321, %v997, %v1005
    %v1013 = vsel %vm321, %v999, %v1007
    %v1014 = vsel %vm321, %v1001, %v1009
    %v1015 = vsel %vm321, %v1003, %v1011
    %v1016 = vsel %vm321, %v989, %v997
    %v1017 = vsel %vm321, %v991, %v999
    %v1018 = vsel %vm321, %v993, %v1001
    %v1019 = vsel %vm321, %v995, %v1003
    %v1020 = vsel %vm321, %v981, %v989
    %v1021 = vsel %vm321, %v983, %v991
    %v1022 = vsel %vm321, %v985, %v993
    %v1023 = vsel %vm321, %v987, %v995
    %v1024 = vsel %vm321, %v1005, %v981
    %v1025 = vsel %vm321, %v1007, %v983
    %v1026 = vsel %vm321, %v1009, %v985
    %v1027 = vsel %vm321, %v1011, %v987
    %v1028 = vmul.f32 %v334, %v1024
    %v1029 = vmul.f32 %v338, %v1020
    %v1030 = vmul.f32 %v342, %v1016
    %v1031 = vmul.f32 %v346, %v1012
    %v1032 = vmul.f32 %v334, %v1025
    %v1033 = vmul.f32 %v338, %v1021
    %v1034 = vmul.f32 %v342, %v1017
    %v1035 = vmul.f32 %v346, %v1013
    %v1036 = vmul.f32 %v334, %v1026
    %v1037 = vmul.f32 %v338, %v1022
    %v1038 = vmul.f32 %v342, %v1018
    %v1039 = vmul.f32 %v346, %v1014
    %v1040 = vmul.f32 %v334, %v1027
    %v1041 = vmul.f32 %v338, %v1023
    %v1042 = vmul.f32 %v342, %v1019
    %v1043 = vmul.f32 %v346, %v1015
    %1045 = vset.pattern.permute.xlu0 0
    %1046 = vperm.xlu0 %1045, %v175
    %v1047 = vpop.permute.xlu0 %1046
    %1050 = vset.pattern.permute.xlu0 0
    %1051 = vperm.xlu0 %1050, %v176
    %v1052 = vpop.permute.xlu0 %1051
    %1055 = vset.pattern.permute.xlu0 0
    %1056 = vperm.xlu0 %1055, %v177
    %v1057 = vpop.permute.xlu0 %1056
    %1060 = vset.pattern.permute.xlu0 0
    %1061 = vperm.xlu0 %1060, %v178
    %v1062 = vpop.permute.xlu0 %1061
    %v1064 = vmul.f32 %v1047, %v1028
    %v1065 = vmul.f32 %v1047, %v1029
    %v1066 = vmul.f32 %v1047, %v1030
    %v1067 = vmul.f32 %v1047, %v1031
    %v1068 = vmul.f32 %v1052, %v1032
    %v1069 = vmul.f32 %v1052, %v1033
    %v1070 = vmul.f32 %v1052, %v1034
    %v1071 = vmul.f32 %v1052, %v1035
    %v1072 = vmul.f32 %v1057, %v1036
    %v1073 = vmul.f32 %v1057, %v1037
    %v1074 = vmul.f32 %v1057, %v1038
    %v1075 = vmul.f32 %v1057, %v1039
    %v1076 = vmul.f32 %v1062, %v1040
    %v1077 = vmul.f32 %v1062, %v1041
    %v1078 = vmul.f32 %v1062, %v1042
    %v1079 = vmul.f32 %v1062, %v1043
    %v1080 = vadd.f32 %v964, %v1064
    %v1081 = vadd.f32 %v965, %v1065
    %v1082 = vadd.f32 %v966, %v1066
    %v1083 = vadd.f32 %v967, %v1067
    %v1084 = vadd.f32 %v968, %v1068
    %v1085 = vadd.f32 %v969, %v1069
    %v1086 = vadd.f32 %v970, %v1070
    %v1087 = vadd.f32 %v971, %v1071
    %v1088 = vadd.f32 %v972, %v1072
    %v1089 = vadd.f32 %v973, %v1073
    %v1090 = vadd.f32 %v974, %v1074
    %v1091 = vadd.f32 %v975, %v1075
    %v1092 = vadd.f32 %v976, %v1076
    %v1093 = vadd.f32 %v977, %v1077
    %v1094 = vadd.f32 %v978, %v1078
    %v1095 = vadd.f32 %v979, %v1079
    %1096 = vrot.lane.b32.xlu0 %v832, 15
    %v1097 = vpop.permute.xlu0 %1096
    %1098 = vrot.lane.b32.xlu0 %v836, 15
    %v1099 = vpop.permute.xlu0 %1098
    %1100 = vrot.lane.b32.xlu0 %v216, 15
    %v1101 = vpop.permute.xlu0 %1100
    %1102 = vrot.lane.b32.xlu0 %v218, 15
    %v1103 = vpop.permute.xlu0 %1102
    %1104 = vrot.lane.b32.xlu0 %v833, 15
    %v1105 = vpop.permute.xlu0 %1104
    %1106 = vrot.lane.b32.xlu0 %v837, 15
    %v1107 = vpop.permute.xlu0 %1106
    %1108 = vrot.lane.b32.xlu0 %v217, 15
    %v1109 = vpop.permute.xlu0 %1108
    %1110 = vrot.lane.b32.xlu0 %v219, 15
    %v1111 = vpop.permute.xlu0 %1110
    %1112 = vrot.lane.b32.xlu0 %v834, 15
    %v1113 = vpop.permute.xlu0 %1112
    %1114 = vrot.lane.b32.xlu0 %v838, 15
    %v1115 = vpop.permute.xlu0 %1114
    %1116 = vrot.lane.b32.xlu0 %v221, 15
    %v1117 = vpop.permute.xlu0 %1116
    %1118 = vrot.lane.b32.xlu0 %v223, 15
    %v1119 = vpop.permute.xlu0 %1118
    %1120 = vrot.lane.b32.xlu0 %v835, 15
    %v1121 = vpop.permute.xlu0 %1120
    %1122 = vrot.lane.b32.xlu0 %v839, 15
    %v1123 = vpop.permute.xlu0 %1122
    %1124 = vrot.lane.b32.xlu0 %v222, 15
    %v1125 = vpop.permute.xlu0 %1124
    %1126 = vrot.lane.b32.xlu0 %v224, 15
    %v1127 = vpop.permute.xlu0 %1126
    %v1128 = vsel %vm391, %v1113, %v1121
    %v1129 = vsel %vm391, %v1115, %v1123
    %v1130 = vsel %vm391, %v1117, %v1125
    %v1131 = vsel %vm391, %v1119, %v1127
    %v1132 = vsel %vm391, %v1105, %v1113
    %v1133 = vsel %vm391, %v1107, %v1115
    %v1134 = vsel %vm391, %v1109, %v1117
    %v1135 = vsel %vm391, %v1111, %v1119
    %v1136 = vsel %vm391, %v1097, %v1105
    %v1137 = vsel %vm391, %v1099, %v1107
    %v1138 = vsel %vm391, %v1101, %v1109
    %v1139 = vsel %vm391, %v1103, %v1111
    %v1140 = vsel %vm391, %v1121, %v1097
    %v1141 = vsel %vm391, %v1123, %v1099
    %v1142 = vsel %vm391, %v1125, %v1101
    %v1143 = vsel %vm391, %v1127, %v1103
    %v1144 = vmul.f32 %v404, %v1140
    %v1145 = vmul.f32 %v408, %v1136
    %v1146 = vmul.f32 %v412, %v1132
    %v1147 = vmul.f32 %v416, %v1128
    %v1148 = vmul.f32 %v404, %v1141
    %v1149 = vmul.f32 %v408, %v1137
    %v1150 = vmul.f32 %v412, %v1133
    %v1151 = vmul.f32 %v416, %v1129
    %v1152 = vmul.f32 %v404, %v1142
    %v1153 = vmul.f32 %v408, %v1138
    %v1154 = vmul.f32 %v412, %v1134
    %v1155 = vmul.f32 %v416, %v1130
    %v1156 = vmul.f32 %v404, %v1143
    %v1157 = vmul.f32 %v408, %v1139
    %v1158 = vmul.f32 %v412, %v1135
    %v1159 = vmul.f32 %v416, %v1131
    %1161 = vset.pattern.permute.xlu0 0
    %1162 = vperm.xlu0 %1161, %v179
    %v1163 = vpop.permute.xlu0 %1162
    %1166 = vset.pattern.permute.xlu0 0
    %1167 = vperm.xlu0 %1166, %v180
    %v1168 = vpop.permute.xlu0 %1167
    %1171 = vset.pattern.permute.xlu0 0
    %1172 = vperm.xlu0 %1171, %v181
    %v1173 = vpop.permute.xlu0 %1172
    %1176 = vset.pattern.permute.xlu0 0
    %1177 = vperm.xlu0 %1176, %v182
    %v1178 = vpop.permute.xlu0 %1177
    %v1180 = vmul.f32 %v1163, %v1144
    %v1181 = vmul.f32 %v1163, %v1145
    %v1182 = vmul.f32 %v1163, %v1146
    %v1183 = vmul.f32 %v1163, %v1147
    %v1184 = vmul.f32 %v1168, %v1148
    %v1185 = vmul.f32 %v1168, %v1149
    %v1186 = vmul.f32 %v1168, %v1150
    %v1187 = vmul.f32 %v1168, %v1151
    %v1188 = vmul.f32 %v1173, %v1152
    %v1189 = vmul.f32 %v1173, %v1153
    %v1190 = vmul.f32 %v1173, %v1154
    %v1191 = vmul.f32 %v1173, %v1155
    %v1192 = vmul.f32 %v1178, %v1156
    %v1193 = vmul.f32 %v1178, %v1157
    %v1194 = vmul.f32 %v1178, %v1158
    %v1195 = vmul.f32 %v1178, %v1159
    %v1196 = vadd.f32 %v1080, %v1180
    %v1197 = vadd.f32 %v1081, %v1181
    %v1198 = vadd.f32 %v1082, %v1182
    %v1199 = vadd.f32 %v1083, %v1183
    %v1200 = vadd.f32 %v1084, %v1184
    %v1201 = vadd.f32 %v1085, %v1185
    %v1202 = vadd.f32 %v1086, %v1186
    %v1203 = vadd.f32 %v1087, %v1187
    %v1204 = vadd.f32 %v1088, %v1188
    %v1205 = vadd.f32 %v1089, %v1189
    %v1206 = vadd.f32 %v1090, %v1190
    %v1207 = vadd.f32 %v1091, %v1191
    %v1208 = vadd.f32 %v1092, %v1192
    %v1209 = vadd.f32 %v1093, %v1193
    %v1210 = vadd.f32 %v1094, %v1194
    %v1211 = vadd.f32 %v1095, %v1195
    %1212 = vrot.lane.b32.xlu0 %v832, 1
    %v1213 = vpop.permute.xlu0 %1212
    %1214 = vrot.lane.b32.xlu0 %v836, 1
    %v1215 = vpop.permute.xlu0 %1214
    %1216 = vrot.lane.b32.xlu0 %v216, 1
    %v1217 = vpop.permute.xlu0 %1216
    %1218 = vrot.lane.b32.xlu0 %v218, 1
    %v1219 = vpop.permute.xlu0 %1218
    %1220 = vrot.lane.b32.xlu0 %v833, 1
    %v1221 = vpop.permute.xlu0 %1220
    %1222 = vrot.lane.b32.xlu0 %v837, 1
    %v1223 = vpop.permute.xlu0 %1222
    %1224 = vrot.lane.b32.xlu0 %v217, 1
    %v1225 = vpop.permute.xlu0 %1224
    %1226 = vrot.lane.b32.xlu0 %v219, 1
    %v1227 = vpop.permute.xlu0 %1226
    %1228 = vrot.lane.b32.xlu0 %v834, 1
    %v1229 = vpop.permute.xlu0 %1228
    %1230 = vrot.lane.b32.xlu0 %v838, 1
    %v1231 = vpop.permute.xlu0 %1230
    %1232 = vrot.lane.b32.xlu0 %v221, 1
    %v1233 = vpop.permute.xlu0 %1232
    %1234 = vrot.lane.b32.xlu0 %v223, 1
    %v1235 = vpop.permute.xlu0 %1234
    %1236 = vrot.lane.b32.xlu0 %v835, 1
    %v1237 = vpop.permute.xlu0 %1236
    %1238 = vrot.lane.b32.xlu0 %v839, 1
    %v1239 = vpop.permute.xlu0 %1238
    %1240 = vrot.lane.b32.xlu0 %v222, 1
    %v1241 = vpop.permute.xlu0 %1240
    %1242 = vrot.lane.b32.xlu0 %v224, 1
    %v1243 = vpop.permute.xlu0 %1242
    %v1244 = vsel %vm461, %v1229, %v1237
    %v1245 = vsel %vm461, %v1231, %v1239
    %v1246 = vsel %vm461, %v1233, %v1241
    %v1247 = vsel %vm461, %v1235, %v1243
    %v1248 = vsel %vm461, %v1221, %v1229
    %v1249 = vsel %vm461, %v1223, %v1231
    %v1250 = vsel %vm461, %v1225, %v1233
    %v1251 = vsel %vm461, %v1227, %v1235
    %v1252 = vsel %vm461, %v1213, %v1221
    %v1253 = vsel %vm461, %v1215, %v1223
    %v1254 = vsel %vm461, %v1217, %v1225
    %v1255 = vsel %vm461, %v1219, %v1227
    %v1256 = vsel %vm461, %v1237, %v1213
    %v1257 = vsel %vm461, %v1239, %v1215
    %v1258 = vsel %vm461, %v1241, %v1217
    %v1259 = vsel %vm461, %v1243, %v1219
    %v1260 = vmul.f32 %v474, %v1256
    %v1261 = vmul.f32 %v478, %v1252
    %v1262 = vmul.f32 %v482, %v1248
    %v1263 = vmul.f32 %v486, %v1244
    %v1264 = vmul.f32 %v474, %v1257
    %v1265 = vmul.f32 %v478, %v1253
    %v1266 = vmul.f32 %v482, %v1249
    %v1267 = vmul.f32 %v486, %v1245
    %v1268 = vmul.f32 %v474, %v1258
    %v1269 = vmul.f32 %v478, %v1254
    %v1270 = vmul.f32 %v482, %v1250
    %v1271 = vmul.f32 %v486, %v1246
    %v1272 = vmul.f32 %v474, %v1259
    %v1273 = vmul.f32 %v478, %v1255
    %v1274 = vmul.f32 %v482, %v1251
    %v1275 = vmul.f32 %v486, %v1247
    %1277 = vset.pattern.permute.xlu0 0
    %1278 = vperm.xlu0 %1277, %v183
    %v1279 = vpop.permute.xlu0 %1278
    %1282 = vset.pattern.permute.xlu0 0
    %1283 = vperm.xlu0 %1282, %v184
    %v1284 = vpop.permute.xlu0 %1283
    %1287 = vset.pattern.permute.xlu0 0
    %1288 = vperm.xlu0 %1287, %v185
    %v1289 = vpop.permute.xlu0 %1288
    %1292 = vset.pattern.permute.xlu0 0
    %1293 = vperm.xlu0 %1292, %v186
    %v1294 = vpop.permute.xlu0 %1293
    %v1296 = vmul.f32 %v1279, %v1260
    %v1297 = vmul.f32 %v1279, %v1261
    %v1298 = vmul.f32 %v1279, %v1262
    %v1299 = vmul.f32 %v1279, %v1263
    %v1300 = vmul.f32 %v1284, %v1264
    %v1301 = vmul.f32 %v1284, %v1265
    %v1302 = vmul.f32 %v1284, %v1266
    %v1303 = vmul.f32 %v1284, %v1267
    %v1304 = vmul.f32 %v1289, %v1268
    %v1305 = vmul.f32 %v1289, %v1269
    %v1306 = vmul.f32 %v1289, %v1270
    %v1307 = vmul.f32 %v1289, %v1271
    %v1308 = vmul.f32 %v1294, %v1272
    %v1309 = vmul.f32 %v1294, %v1273
    %v1310 = vmul.f32 %v1294, %v1274
    %v1311 = vmul.f32 %v1294, %v1275
    %v1312 = vadd.f32 %v1196, %v1296
    %v1313 = vadd.f32 %v1197, %v1297
    %v1314 = vadd.f32 %v1198, %v1298
    %v1315 = vadd.f32 %v1199, %v1299
    %v1316 = vadd.f32 %v1200, %v1300
    %v1317 = vadd.f32 %v1201, %v1301
    %v1318 = vadd.f32 %v1202, %v1302
    %v1319 = vadd.f32 %v1203, %v1303
    %v1320 = vadd.f32 %v1204, %v1304
    %v1321 = vadd.f32 %v1205, %v1305
    %v1322 = vadd.f32 %v1206, %v1306
    %v1323 = vadd.f32 %v1207, %v1307
    %v1324 = vadd.f32 %v1208, %v1308
    %v1325 = vadd.f32 %v1209, %v1309
    %v1326 = vadd.f32 %v1210, %v1310
    %v1327 = vadd.f32 %v1211, %v1311
    %v1328 = vmul.f32 %v519, %v832
    %v1329 = vmul.f32 %v523, %v833
    %v1330 = vmul.f32 %v527, %v834
    %v1331 = vmul.f32 %v531, %v835
    %v1332 = vmul.f32 %v519, %v836
    %v1333 = vmul.f32 %v523, %v837
    %v1334 = vmul.f32 %v527, %v838
    %v1335 = vmul.f32 %v531, %v839
    %v1336 = vmul.f32 %v519, %v216
    %v1337 = vmul.f32 %v523, %v217
    %v1338 = vmul.f32 %v527, %v221
    %v1339 = vmul.f32 %v531, %v222
    %v1340 = vmul.f32 %v519, %v218
    %v1341 = vmul.f32 %v523, %v219
    %v1342 = vmul.f32 %v527, %v223
    %v1343 = vmul.f32 %v531, %v224
    %1345 = vset.pattern.permute.xlu0 0
    %1346 = vperm.xlu0 %1345, %v187
    %v1347 = vpop.permute.xlu0 %1346
    %1350 = vset.pattern.permute.xlu0 0
    %1351 = vperm.xlu0 %1350, %v188
    %v1352 = vpop.permute.xlu0 %1351
    %1355 = vset.pattern.permute.xlu0 0
    %1356 = vperm.xlu0 %1355, %v189
    %v1357 = vpop.permute.xlu0 %1356
    %1360 = vset.pattern.permute.xlu0 0
    %1361 = vperm.xlu0 %1360, %v190
    %v1362 = vpop.permute.xlu0 %1361
    %v1364 = vmul.f32 %v1347, %v1328
    %v1365 = vmul.f32 %v1347, %v1329
    %v1366 = vmul.f32 %v1347, %v1330
    %v1367 = vmul.f32 %v1347, %v1331
    %v1368 = vmul.f32 %v1352, %v1332
    %v1369 = vmul.f32 %v1352, %v1333
    %v1370 = vmul.f32 %v1352, %v1334
    %v1371 = vmul.f32 %v1352, %v1335
    %v1372 = vmul.f32 %v1357, %v1336
    %v1373 = vmul.f32 %v1357, %v1337
    %v1374 = vmul.f32 %v1357, %v1338
    %v1375 = vmul.f32 %v1357, %v1339
    %v1376 = vmul.f32 %v1362, %v1340
    %v1377 = vmul.f32 %v1362, %v1341
    %v1378 = vmul.f32 %v1362, %v1342
    %v1379 = vmul.f32 %v1362, %v1343
    %v1380 = vadd.f32 %v1312, %v1364
    %v1381 = vadd.f32 %v1313, %v1365
    %v1382 = vadd.f32 %v1314, %v1366
    %v1383 = vadd.f32 %v1315, %v1367
    %v1384 = vadd.f32 %v1316, %v1368
    %v1385 = vadd.f32 %v1317, %v1369
    %v1386 = vadd.f32 %v1318, %v1370
    %v1387 = vadd.f32 %v1319, %v1371
    %v1388 = vadd.f32 %v1320, %v1372
    %v1389 = vadd.f32 %v1321, %v1373
    %v1390 = vadd.f32 %v1322, %v1374
    %v1391 = vadd.f32 %v1323, %v1375
    %v1392 = vadd.f32 %v1324, %v1376
    %v1393 = vadd.f32 %v1325, %v1377
    %v1394 = vadd.f32 %v1326, %v1378
    %v1395 = vadd.f32 %v1327, %v1379
    %1396 = vrot.lane.b32.xlu0 %v832, 127
    %v1397 = vpop.permute.xlu0 %1396
    %1398 = vrot.lane.b32.xlu0 %v836, 127
    %v1399 = vpop.permute.xlu0 %1398
    %1400 = vrot.lane.b32.xlu0 %v216, 127
    %v1401 = vpop.permute.xlu0 %1400
    %1402 = vrot.lane.b32.xlu0 %v218, 127
    %v1403 = vpop.permute.xlu0 %1402
    %1404 = vrot.lane.b32.xlu0 %v833, 127
    %v1405 = vpop.permute.xlu0 %1404
    %1406 = vrot.lane.b32.xlu0 %v837, 127
    %v1407 = vpop.permute.xlu0 %1406
    %1408 = vrot.lane.b32.xlu0 %v217, 127
    %v1409 = vpop.permute.xlu0 %1408
    %1410 = vrot.lane.b32.xlu0 %v219, 127
    %v1411 = vpop.permute.xlu0 %1410
    %1412 = vrot.lane.b32.xlu0 %v834, 127
    %v1413 = vpop.permute.xlu0 %1412
    %1414 = vrot.lane.b32.xlu0 %v838, 127
    %v1415 = vpop.permute.xlu0 %1414
    %1416 = vrot.lane.b32.xlu0 %v221, 127
    %v1417 = vpop.permute.xlu0 %1416
    %1418 = vrot.lane.b32.xlu0 %v223, 127
    %v1419 = vpop.permute.xlu0 %1418
    %1420 = vrot.lane.b32.xlu0 %v835, 127
    %v1421 = vpop.permute.xlu0 %1420
    %1422 = vrot.lane.b32.xlu0 %v839, 127
    %v1423 = vpop.permute.xlu0 %1422
    %1424 = vrot.lane.b32.xlu0 %v222, 127
    %v1425 = vpop.permute.xlu0 %1424
    %1426 = vrot.lane.b32.xlu0 %v224, 127
    %v1427 = vpop.permute.xlu0 %1426
    %v1428 = vsel %vm576, %v1413, %v1421
    %v1429 = vsel %vm576, %v1415, %v1423
    %v1430 = vsel %vm576, %v1417, %v1425
    %v1431 = vsel %vm576, %v1419, %v1427
    %v1432 = vsel %vm576, %v1405, %v1413
    %v1433 = vsel %vm576, %v1407, %v1415
    %v1434 = vsel %vm576, %v1409, %v1417
    %v1435 = vsel %vm576, %v1411, %v1419
    %v1436 = vsel %vm576, %v1397, %v1405
    %v1437 = vsel %vm576, %v1399, %v1407
    %v1438 = vsel %vm576, %v1401, %v1409
    %v1439 = vsel %vm576, %v1403, %v1411
    %v1440 = vsel %vm576, %v1421, %v1397
    %v1441 = vsel %vm576, %v1423, %v1399
    %v1442 = vsel %vm576, %v1425, %v1401
    %v1443 = vsel %vm576, %v1427, %v1403
    %v1444 = vmul.f32 %v589, %v1436
    %v1445 = vmul.f32 %v593, %v1432
    %v1446 = vmul.f32 %v597, %v1428
    %v1447 = vmul.f32 %v601, %v1440
    %v1448 = vmul.f32 %v589, %v1437
    %v1449 = vmul.f32 %v593, %v1433
    %v1450 = vmul.f32 %v597, %v1429
    %v1451 = vmul.f32 %v601, %v1441
    %v1452 = vmul.f32 %v589, %v1438
    %v1453 = vmul.f32 %v593, %v1434
    %v1454 = vmul.f32 %v597, %v1430
    %v1455 = vmul.f32 %v601, %v1442
    %v1456 = vmul.f32 %v589, %v1439
    %v1457 = vmul.f32 %v593, %v1435
    %v1458 = vmul.f32 %v597, %v1431
    %v1459 = vmul.f32 %v601, %v1443
    %1461 = vset.pattern.permute.xlu0 0
    %1462 = vperm.xlu0 %1461, %v191
    %v1463 = vpop.permute.xlu0 %1462
    %1466 = vset.pattern.permute.xlu0 0
    %1467 = vperm.xlu0 %1466, %v192
    %v1468 = vpop.permute.xlu0 %1467
    %1471 = vset.pattern.permute.xlu0 0
    %1472 = vperm.xlu0 %1471, %v193
    %v1473 = vpop.permute.xlu0 %1472
    %1476 = vset.pattern.permute.xlu0 0
    %1477 = vperm.xlu0 %1476, %v194
    %v1478 = vpop.permute.xlu0 %1477
    %v1480 = vmul.f32 %v1463, %v1444
    %v1481 = vmul.f32 %v1463, %v1445
    %v1482 = vmul.f32 %v1463, %v1446
    %v1483 = vmul.f32 %v1463, %v1447
    %v1484 = vmul.f32 %v1468, %v1448
    %v1485 = vmul.f32 %v1468, %v1449
    %v1486 = vmul.f32 %v1468, %v1450
    %v1487 = vmul.f32 %v1468, %v1451
    %v1488 = vmul.f32 %v1473, %v1452
    %v1489 = vmul.f32 %v1473, %v1453
    %v1490 = vmul.f32 %v1473, %v1454
    %v1491 = vmul.f32 %v1473, %v1455
    %v1492 = vmul.f32 %v1478, %v1456
    %v1493 = vmul.f32 %v1478, %v1457
    %v1494 = vmul.f32 %v1478, %v1458
    %v1495 = vmul.f32 %v1478, %v1459
    %v1496 = vadd.f32 %v1380, %v1480
    %v1497 = vadd.f32 %v1381, %v1481
    %v1498 = vadd.f32 %v1382, %v1482
    %v1499 = vadd.f32 %v1383, %v1483
    %v1500 = vadd.f32 %v1384, %v1484
    %v1501 = vadd.f32 %v1385, %v1485
    %v1502 = vadd.f32 %v1386, %v1486
    %v1503 = vadd.f32 %v1387, %v1487
    %v1504 = vadd.f32 %v1388, %v1488
    %v1505 = vadd.f32 %v1389, %v1489
    %v1506 = vadd.f32 %v1390, %v1490
    %v1507 = vadd.f32 %v1391, %v1491
    %v1508 = vadd.f32 %v1392, %v1492
    %v1509 = vadd.f32 %v1393, %v1493
    %v1510 = vadd.f32 %v1394, %v1494
    %v1511 = vadd.f32 %v1395, %v1495
    %1512 = vrot.lane.b32.xlu0 %v832, 113
    %v1513 = vpop.permute.xlu0 %1512
    %1514 = vrot.lane.b32.xlu0 %v836, 113
    %v1515 = vpop.permute.xlu0 %1514
    %1516 = vrot.lane.b32.xlu0 %v216, 113
    %v1517 = vpop.permute.xlu0 %1516
    %1518 = vrot.lane.b32.xlu0 %v218, 113
    %v1519 = vpop.permute.xlu0 %1518
    %1520 = vrot.lane.b32.xlu0 %v833, 113
    %v1521 = vpop.permute.xlu0 %1520
    %1522 = vrot.lane.b32.xlu0 %v837, 113
    %v1523 = vpop.permute.xlu0 %1522
    %1524 = vrot.lane.b32.xlu0 %v217, 113
    %v1525 = vpop.permute.xlu0 %1524
    %1526 = vrot.lane.b32.xlu0 %v219, 113
    %v1527 = vpop.permute.xlu0 %1526
    %1528 = vrot.lane.b32.xlu0 %v834, 113
    %v1529 = vpop.permute.xlu0 %1528
    %1530 = vrot.lane.b32.xlu0 %v838, 113
    %v1531 = vpop.permute.xlu0 %1530
    %1532 = vrot.lane.b32.xlu0 %v221, 113
    %v1533 = vpop.permute.xlu0 %1532
    %1534 = vrot.lane.b32.xlu0 %v223, 113
    %v1535 = vpop.permute.xlu0 %1534
    %1536 = vrot.lane.b32.xlu0 %v835, 113
    %v1537 = vpop.permute.xlu0 %1536
    %1538 = vrot.lane.b32.xlu0 %v839, 113
    %v1539 = vpop.permute.xlu0 %1538
    %1540 = vrot.lane.b32.xlu0 %v222, 113
    %v1541 = vpop.permute.xlu0 %1540
    %1542 = vrot.lane.b32.xlu0 %v224, 113
    %v1543 = vpop.permute.xlu0 %1542
    %v1544 = vsel %vm646, %v1529, %v1537
    %v1545 = vsel %vm646, %v1531, %v1539
    %v1546 = vsel %vm646, %v1533, %v1541
    %v1547 = vsel %vm646, %v1535, %v1543
    %v1548 = vsel %vm646, %v1521, %v1529
    %v1549 = vsel %vm646, %v1523, %v1531
    %v1550 = vsel %vm646, %v1525, %v1533
    %v1551 = vsel %vm646, %v1527, %v1535
    %v1552 = vsel %vm646, %v1513, %v1521
    %v1553 = vsel %vm646, %v1515, %v1523
    %v1554 = vsel %vm646, %v1517, %v1525
    %v1555 = vsel %vm646, %v1519, %v1527
    %v1556 = vsel %vm646, %v1537, %v1513
    %v1557 = vsel %vm646, %v1539, %v1515
    %v1558 = vsel %vm646, %v1541, %v1517
    %v1559 = vsel %vm646, %v1543, %v1519
    %v1560 = vmul.f32 %v659, %v1552
    %v1561 = vmul.f32 %v663, %v1548
    %v1562 = vmul.f32 %v667, %v1544
    %v1563 = vmul.f32 %v671, %v1556
    %v1564 = vmul.f32 %v659, %v1553
    %v1565 = vmul.f32 %v663, %v1549
    %v1566 = vmul.f32 %v667, %v1545
    %v1567 = vmul.f32 %v671, %v1557
    %v1568 = vmul.f32 %v659, %v1554
    %v1569 = vmul.f32 %v663, %v1550
    %v1570 = vmul.f32 %v667, %v1546
    %v1571 = vmul.f32 %v671, %v1558
    %v1572 = vmul.f32 %v659, %v1555
    %v1573 = vmul.f32 %v663, %v1551
    %v1574 = vmul.f32 %v667, %v1547
    %v1575 = vmul.f32 %v671, %v1559
    %1577 = vset.pattern.permute.xlu0 0
    %1578 = vperm.xlu0 %1577, %v195
    %v1579 = vpop.permute.xlu0 %1578
    %1582 = vset.pattern.permute.xlu0 0
    %1583 = vperm.xlu0 %1582, %v196
    %v1584 = vpop.permute.xlu0 %1583
    %1587 = vset.pattern.permute.xlu0 0
    %1588 = vperm.xlu0 %1587, %v197
    %v1589 = vpop.permute.xlu0 %1588
    %1592 = vset.pattern.permute.xlu0 0
    %1593 = vperm.xlu0 %1592, %v198
    %v1594 = vpop.permute.xlu0 %1593
    %v1596 = vmul.f32 %v1579, %v1560
    %v1597 = vmul.f32 %v1579, %v1561
    %v1598 = vmul.f32 %v1579, %v1562
    %v1599 = vmul.f32 %v1579, %v1563
    %v1600 = vmul.f32 %v1584, %v1564
    %v1601 = vmul.f32 %v1584, %v1565
    %v1602 = vmul.f32 %v1584, %v1566
    %v1603 = vmul.f32 %v1584, %v1567
    %v1604 = vmul.f32 %v1589, %v1568
    %v1605 = vmul.f32 %v1589, %v1569
    %v1606 = vmul.f32 %v1589, %v1570
    %v1607 = vmul.f32 %v1589, %v1571
    %v1608 = vmul.f32 %v1594, %v1572
    %v1609 = vmul.f32 %v1594, %v1573
    %v1610 = vmul.f32 %v1594, %v1574
    %v1611 = vmul.f32 %v1594, %v1575
    %v1612 = vadd.f32 %v1496, %v1596
    %v1613 = vadd.f32 %v1497, %v1597
    %v1614 = vadd.f32 %v1498, %v1598
    %v1615 = vadd.f32 %v1499, %v1599
    %v1616 = vadd.f32 %v1500, %v1600
    %v1617 = vadd.f32 %v1501, %v1601
    %v1618 = vadd.f32 %v1502, %v1602
    %v1619 = vadd.f32 %v1503, %v1603
    %v1620 = vadd.f32 %v1504, %v1604
    %v1621 = vadd.f32 %v1505, %v1605
    %v1622 = vadd.f32 %v1506, %v1606
    %v1623 = vadd.f32 %v1507, %v1607
    %v1624 = vadd.f32 %v1508, %v1608
    %v1625 = vadd.f32 %v1509, %v1609
    %v1626 = vadd.f32 %v1510, %v1610
    %v1627 = vadd.f32 %v1511, %v1611
    %1628 = vrot.lane.b32.xlu0 %v832, 112
    %v1629 = vpop.permute.xlu0 %1628
    %1630 = vrot.lane.b32.xlu0 %v836, 112
    %v1631 = vpop.permute.xlu0 %1630
    %1632 = vrot.lane.b32.xlu0 %v216, 112
    %v1633 = vpop.permute.xlu0 %1632
    %1634 = vrot.lane.b32.xlu0 %v218, 112
    %v1635 = vpop.permute.xlu0 %1634
    %1636 = vrot.lane.b32.xlu0 %v833, 112
    %v1637 = vpop.permute.xlu0 %1636
    %1638 = vrot.lane.b32.xlu0 %v837, 112
    %v1639 = vpop.permute.xlu0 %1638
    %1640 = vrot.lane.b32.xlu0 %v217, 112
    %v1641 = vpop.permute.xlu0 %1640
    %1642 = vrot.lane.b32.xlu0 %v219, 112
    %v1643 = vpop.permute.xlu0 %1642
    %1644 = vrot.lane.b32.xlu0 %v834, 112
    %v1645 = vpop.permute.xlu0 %1644
    %1646 = vrot.lane.b32.xlu0 %v838, 112
    %v1647 = vpop.permute.xlu0 %1646
    %1648 = vrot.lane.b32.xlu0 %v221, 112
    %v1649 = vpop.permute.xlu0 %1648
    %1650 = vrot.lane.b32.xlu0 %v223, 112
    %v1651 = vpop.permute.xlu0 %1650
    %1652 = vrot.lane.b32.xlu0 %v835, 112
    %v1653 = vpop.permute.xlu0 %1652
    %1654 = vrot.lane.b32.xlu0 %v839, 112
    %v1655 = vpop.permute.xlu0 %1654
    %1656 = vrot.lane.b32.xlu0 %v222, 112
    %v1657 = vpop.permute.xlu0 %1656
    %1658 = vrot.lane.b32.xlu0 %v224, 112
    %v1659 = vpop.permute.xlu0 %1658
    %v1660 = vsel %vm716, %v1645, %v1653
    %v1661 = vsel %vm716, %v1647, %v1655
    %v1662 = vsel %vm716, %v1649, %v1657
    %v1663 = vsel %vm716, %v1651, %v1659
    %v1664 = vsel %vm716, %v1637, %v1645
    %v1665 = vsel %vm716, %v1639, %v1647
    %v1666 = vsel %vm716, %v1641, %v1649
    %v1667 = vsel %vm716, %v1643, %v1651
    %v1668 = vsel %vm716, %v1629, %v1637
    %v1669 = vsel %vm716, %v1631, %v1639
    %v1670 = vsel %vm716, %v1633, %v1641
    %v1671 = vsel %vm716, %v1635, %v1643
    %v1672 = vsel %vm716, %v1653, %v1629
    %v1673 = vsel %vm716, %v1655, %v1631
    %v1674 = vsel %vm716, %v1657, %v1633
    %v1675 = vsel %vm716, %v1659, %v1635
    %v1676 = vmul.f32 %v729, %v1668
    %v1677 = vmul.f32 %v733, %v1664
    %v1678 = vmul.f32 %v737, %v1660
    %v1679 = vmul.f32 %v741, %v1672
    %v1680 = vmul.f32 %v729, %v1669
    %v1681 = vmul.f32 %v733, %v1665
    %v1682 = vmul.f32 %v737, %v1661
    %v1683 = vmul.f32 %v741, %v1673
    %v1684 = vmul.f32 %v729, %v1670
    %v1685 = vmul.f32 %v733, %v1666
    %v1686 = vmul.f32 %v737, %v1662
    %v1687 = vmul.f32 %v741, %v1674
    %v1688 = vmul.f32 %v729, %v1671
    %v1689 = vmul.f32 %v733, %v1667
    %v1690 = vmul.f32 %v737, %v1663
    %v1691 = vmul.f32 %v741, %v1675
    %1693 = vset.pattern.permute.xlu0 0
    %1694 = vperm.xlu0 %1693, %v199
    %v1695 = vpop.permute.xlu0 %1694
    %1698 = vset.pattern.permute.xlu0 0
    %1699 = vperm.xlu0 %1698, %v200
    %v1700 = vpop.permute.xlu0 %1699
    %1703 = vset.pattern.permute.xlu0 0
    %1704 = vperm.xlu0 %1703, %v201
    %v1705 = vpop.permute.xlu0 %1704
    %1708 = vset.pattern.permute.xlu0 0
    %1709 = vperm.xlu0 %1708, %v202
    %v1710 = vpop.permute.xlu0 %1709
    %v1712 = vmul.f32 %v1695, %v1676
    %v1713 = vmul.f32 %v1695, %v1677
    %v1714 = vmul.f32 %v1695, %v1678
    %v1715 = vmul.f32 %v1695, %v1679
    %v1716 = vmul.f32 %v1700, %v1680
    %v1717 = vmul.f32 %v1700, %v1681
    %v1718 = vmul.f32 %v1700, %v1682
    %v1719 = vmul.f32 %v1700, %v1683
    %v1720 = vmul.f32 %v1705, %v1684
    %v1721 = vmul.f32 %v1705, %v1685
    %v1722 = vmul.f32 %v1705, %v1686
    %v1723 = vmul.f32 %v1705, %v1687
    %v1724 = vmul.f32 %v1710, %v1688
    %v1725 = vmul.f32 %v1710, %v1689
    %v1726 = vmul.f32 %v1710, %v1690
    %v1727 = vmul.f32 %v1710, %v1691
    %v1728 = vadd.f32 %v1612, %v1712
    %v1729 = vadd.f32 %v1613, %v1713
    %v1730 = vadd.f32 %v1614, %v1714
    %v1731 = vadd.f32 %v1615, %v1715
    %v1732 = vadd.f32 %v1616, %v1716
    %v1733 = vadd.f32 %v1617, %v1717
    %v1734 = vadd.f32 %v1618, %v1718
    %v1735 = vadd.f32 %v1619, %v1719
    %v1736 = vadd.f32 %v1620, %v1720
    %v1737 = vadd.f32 %v1621, %v1721
    %v1738 = vadd.f32 %v1622, %v1722
    %v1739 = vadd.f32 %v1623, %v1723
    %v1740 = vadd.f32 %v1624, %v1724
    %v1741 = vadd.f32 %v1625, %v1725
    %v1742 = vadd.f32 %v1626, %v1726
    %v1743 = vadd.f32 %v1627, %v1727
    %1744 = vrot.lane.b32.xlu0 %v832, 111
    %v1745 = vpop.permute.xlu0 %1744
    %1746 = vrot.lane.b32.xlu0 %v836, 111
    %v1747 = vpop.permute.xlu0 %1746
    %1748 = vrot.lane.b32.xlu0 %v216, 111
    %v1749 = vpop.permute.xlu0 %1748
    %1750 = vrot.lane.b32.xlu0 %v218, 111
    %v1751 = vpop.permute.xlu0 %1750
    %1752 = vrot.lane.b32.xlu0 %v833, 111
    %v1753 = vpop.permute.xlu0 %1752
    %1754 = vrot.lane.b32.xlu0 %v837, 111
    %v1755 = vpop.permute.xlu0 %1754
    %1756 = vrot.lane.b32.xlu0 %v217, 111
    %v1757 = vpop.permute.xlu0 %1756
    %1758 = vrot.lane.b32.xlu0 %v219, 111
    %v1759 = vpop.permute.xlu0 %1758
    %1760 = vrot.lane.b32.xlu0 %v834, 111
    %v1761 = vpop.permute.xlu0 %1760
    %1762 = vrot.lane.b32.xlu0 %v838, 111
    %v1763 = vpop.permute.xlu0 %1762
    %1764 = vrot.lane.b32.xlu0 %v221, 111
    %v1765 = vpop.permute.xlu0 %1764
    %1766 = vrot.lane.b32.xlu0 %v223, 111
    %v1767 = vpop.permute.xlu0 %1766
    %1768 = vrot.lane.b32.xlu0 %v835, 111
    %v1769 = vpop.permute.xlu0 %1768
    %1770 = vrot.lane.b32.xlu0 %v839, 111
    %v1771 = vpop.permute.xlu0 %1770
    %1772 = vrot.lane.b32.xlu0 %v222, 111
    %v1773 = vpop.permute.xlu0 %1772
    %1774 = vrot.lane.b32.xlu0 %v224, 111
    %v1775 = vpop.permute.xlu0 %1774
    %v1776 = vsel %vm786, %v1761, %v1769
    %v1777 = vsel %vm786, %v1763, %v1771
    %v1778 = vsel %vm786, %v1765, %v1773
    %v1779 = vsel %vm786, %v1767, %v1775
    %v1780 = vsel %vm786, %v1753, %v1761
    %v1781 = vsel %vm786, %v1755, %v1763
    %v1782 = vsel %vm786, %v1757, %v1765
    %v1783 = vsel %vm786, %v1759, %v1767
    %v1784 = vsel %vm786, %v1745, %v1753
    %v1785 = vsel %vm786, %v1747, %v1755
    %v1786 = vsel %vm786, %v1749, %v1757
    %v1787 = vsel %vm786, %v1751, %v1759
    %v1788 = vsel %vm786, %v1769, %v1745
    %v1789 = vsel %vm786, %v1771, %v1747
    %v1790 = vsel %vm786, %v1773, %v1749
    %v1791 = vsel %vm786, %v1775, %v1751
    %v1792 = vmul.f32 %v799, %v1784
    %v1793 = vmul.f32 %v803, %v1780
    %v1794 = vmul.f32 %v807, %v1776
    %v1795 = vmul.f32 %v811, %v1788
    %v1796 = vmul.f32 %v799, %v1785
    %v1797 = vmul.f32 %v803, %v1781
    %v1798 = vmul.f32 %v807, %v1777
    %v1799 = vmul.f32 %v811, %v1789
    %v1800 = vmul.f32 %v799, %v1786
    %v1801 = vmul.f32 %v803, %v1782
    %v1802 = vmul.f32 %v807, %v1778
    %v1803 = vmul.f32 %v811, %v1790
    %v1804 = vmul.f32 %v799, %v1787
    %v1805 = vmul.f32 %v803, %v1783
    %v1806 = vmul.f32 %v807, %v1779
    %v1807 = vmul.f32 %v811, %v1791
    %1809 = vset.pattern.permute.xlu0 0
    %1810 = vperm.xlu0 %1809, %v203
    %v1811 = vpop.permute.xlu0 %1810
    %1814 = vset.pattern.permute.xlu0 0
    %1815 = vperm.xlu0 %1814, %v204
    %v1816 = vpop.permute.xlu0 %1815
    %1819 = vset.pattern.permute.xlu0 0
    %1820 = vperm.xlu0 %1819, %v205
    %v1821 = vpop.permute.xlu0 %1820
    %1824 = vset.pattern.permute.xlu0 0
    %1825 = vperm.xlu0 %1824, %v206
    %v1826 = vpop.permute.xlu0 %1825
    %v1828 = vmul.f32 %v1811, %v1792
    %v1829 = vmul.f32 %v1811, %v1793
    %v1830 = vmul.f32 %v1811, %v1794
    %v1831 = vmul.f32 %v1811, %v1795
    %v1832 = vmul.f32 %v1816, %v1796
    %v1833 = vmul.f32 %v1816, %v1797
    %v1834 = vmul.f32 %v1816, %v1798
    %v1835 = vmul.f32 %v1816, %v1799
    %v1836 = vmul.f32 %v1821, %v1800
    %v1837 = vmul.f32 %v1821, %v1801
    %v1838 = vmul.f32 %v1821, %v1802
    %v1839 = vmul.f32 %v1821, %v1803
    %v1840 = vmul.f32 %v1826, %v1804
    %v1841 = vmul.f32 %v1826, %v1805
    %v1842 = vmul.f32 %v1826, %v1806
    %v1843 = vmul.f32 %v1826, %v1807
    %v1844 = vadd.f32 %v1728, %v1828
    %v1845 = vadd.f32 %v1729, %v1829
    %v1846 = vadd.f32 %v1730, %v1830
    %v1847 = vadd.f32 %v1731, %v1831
    %v1848 = vadd.f32 %v1732, %v1832
    %v1849 = vadd.f32 %v1733, %v1833
    %v1850 = vadd.f32 %v1734, %v1834
    %v1851 = vadd.f32 %v1735, %v1835
    %v1852 = vadd.f32 %v1736, %v1836
    %v1853 = vadd.f32 %v1737, %v1837
    %v1854 = vadd.f32 %v1738, %v1838
    %v1855 = vadd.f32 %v1739, %v1839
    %v1856 = vadd.f32 %v1740, %v1840
    %v1857 = vadd.f32 %v1741, %v1841
    %v1858 = vadd.f32 %v1742, %v1842
    %v1859 = vadd.f32 %v1743, %v1843
    %v1860 = vmul.f32 %v1844, 0.5
    %v1861 = vmul.f32 %v1845, 0.5
    %v1862 = vmul.f32 %v1846, 0.5
    %v1863 = vmul.f32 %v1847, 0.5
    %v1864 = vmul.f32 %v1848, 0.5
    %v1865 = vmul.f32 %v1849, 0.5
    %v1866 = vmul.f32 %v1850, 0.5
    %v1867 = vmul.f32 %v1851, 0.5
    %v1868 = vmul.f32 %v1852, 0.5
    %v1869 = vmul.f32 %v1853, 0.5
    %v1870 = vmul.f32 %v1854, 0.5
    %v1871 = vmul.f32 %v1855, 0.5
    %v1872 = vmul.f32 %v1856, 0.5
    %v1873 = vmul.f32 %v1857, 0.5
    %v1874 = vmul.f32 %v1858, 0.5
    %v1875 = vmul.f32 %v1859, 0.5
    %v1876 = vmul.f32 %v1844, 0.70710677
    %v1877 = vmul.f32 %v1845, 0.70710677
    %v1878 = vmul.f32 %v1846, 0.70710677
    %v1879 = vmul.f32 %v1847, 0.70710677
    %v1880 = vmul.f32 %v1848, 0.70710677
    %v1881 = vmul.f32 %v1849, 0.70710677
    %v1882 = vmul.f32 %v1850, 0.70710677
    %v1883 = vmul.f32 %v1851, 0.70710677
    %v1884 = vmul.f32 %v1852, 0.70710677
    %v1885 = vmul.f32 %v1853, 0.70710677
    %v1886 = vmul.f32 %v1854, 0.70710677
    %v1887 = vmul.f32 %v1855, 0.70710677
    %v1888 = vmul.f32 %v1856, 0.70710677
    %v1889 = vmul.f32 %v1857, 0.70710677
    %v1890 = vmul.f32 %v1858, 0.70710677
    %v1891 = vmul.f32 %v1859, 0.70710677
    %v1892 = verf.f32.pop %v1876
    %v1893 = verf.f32.pop %v1877
    %v1894 = verf.f32.pop %v1878
    %v1895 = verf.f32.pop %v1879
    %v1896 = verf.f32.pop %v1880
    %v1897 = verf.f32.pop %v1881
    %v1898 = verf.f32.pop %v1882
    %v1899 = verf.f32.pop %v1883
    %v1900 = verf.f32.pop %v1884
    %v1901 = verf.f32.pop %v1885
    %v1902 = verf.f32.pop %v1886
    %v1903 = verf.f32.pop %v1887
    %v1904 = verf.f32.pop %v1888
    %v1905 = verf.f32.pop %v1889
    %v1906 = verf.f32.pop %v1890
    %v1907 = verf.f32.pop %v1891
    %v1908 = vadd.f32 %v1892, 1.0
    %v1909 = vadd.f32 %v1893, 1.0
    %v1910 = vadd.f32 %v1894, 1.0
    %v1911 = vadd.f32 %v1895, 1.0
    %v1912 = vadd.f32 %v1896, 1.0
    %v1913 = vadd.f32 %v1897, 1.0
    %v1914 = vadd.f32 %v1898, 1.0
    %v1915 = vadd.f32 %v1899, 1.0
    %v1916 = vadd.f32 %v1900, 1.0
    %v1917 = vadd.f32 %v1901, 1.0
    %v1918 = vadd.f32 %v1902, 1.0
    %v1919 = vadd.f32 %v1903, 1.0
    %v1920 = vadd.f32 %v1904, 1.0
    %v1921 = vadd.f32 %v1905, 1.0
    %v1922 = vadd.f32 %v1906, 1.0
    %v1923 = vadd.f32 %v1907, 1.0
    %v1924 = vmul.f32 %v1860, %v1908
    %v1925 = vmul.f32 %v1861, %v1909
    %v1926 = vmul.f32 %v1862, %v1910
    %v1927 = vmul.f32 %v1863, %v1911
    %v1928 = vmul.f32 %v1864, %v1912
    %v1929 = vmul.f32 %v1865, %v1913
    %v1930 = vmul.f32 %v1866, %v1914
    %v1931 = vmul.f32 %v1867, %v1915
    %v1932 = vmul.f32 %v1868, %v1916
    %v1933 = vmul.f32 %v1869, %v1917
    %v1934 = vmul.f32 %v1870, %v1918
    %v1935 = vmul.f32 %v1871, %v1919
    %v1936 = vmul.f32 %v1872, %v1920
    %v1937 = vmul.f32 %v1873, %v1921
    %v1938 = vmul.f32 %v1874, %v1922
    %v1939 = vmul.f32 %v1875, %v1923
    %v1940 = vld [vmem:[%s6] sm:$0xff]
    %v1941 = vld [vmem:[%s6 + $0x8] sm:$0xff]
    %v1942 = vld [vmem:[%s6 + $0x10] sm:$0xff]
    %v1943 = vld [vmem:[%s6 + $0x18] sm:$0xff]
    %v1944 = vld [vmem:[%s7] sm:$0xff]
    %v1945 = vld [vmem:[%s7 + $0x8] sm:$0xff]
    %v1946 = vld [vmem:[%s7 + $0x10] sm:$0xff]
    %v1947 = vld [vmem:[%s7 + $0x18] sm:$0xff]
    %v1948 = vadd.f32 %v1924, %v1925
    %v1949 = vadd.f32 %v1948, %v1926
    %v1950 = vadd.f32 %v1949, %v1927
    %1951 = vadd.xlane.f32.xlu0 %v1950
    %v1952 = vpop.xlane.xlu0 %1951
    %v1953 = vadd.f32 %v1928, %v1929
    %v1954 = vadd.f32 %v1953, %v1930
    %v1955 = vadd.f32 %v1954, %v1931
    %1956 = vadd.xlane.f32.xlu0 %v1955
    %v1957 = vpop.xlane.xlu0 %1956
    %v1958 = vadd.f32 %v1932, %v1933
    %v1959 = vadd.f32 %v1958, %v1934
    %v1960 = vadd.f32 %v1959, %v1935
    %1961 = vadd.xlane.f32.xlu0 %v1960
    %v1962 = vpop.xlane.xlu0 %1961
    %v1963 = vadd.f32 %v1936, %v1937
    %v1964 = vadd.f32 %v1963, %v1938
    %v1965 = vadd.f32 %v1964, %v1939
    %1966 = vadd.xlane.f32.xlu0 %v1965
    %v1967 = vpop.xlane.xlu0 %1966
    %v1968 = vmul.f32 %v1952, 0.001953125
    %v1969 = vmul.f32 %v1957, 0.001953125
    %v1970 = vmul.f32 %v1962, 0.001953125
    %v1971 = vmul.f32 %v1967, 0.001953125
    %v1972 = vmul.f32 %v1924, %v1924
    %v1973 = vmul.f32 %v1925, %v1925
    %v1974 = vmul.f32 %v1926, %v1926
    %v1975 = vmul.f32 %v1927, %v1927
    %v1976 = vmul.f32 %v1928, %v1928
    %v1977 = vmul.f32 %v1929, %v1929
    %v1978 = vmul.f32 %v1930, %v1930
    %v1979 = vmul.f32 %v1931, %v1931
    %v1980 = vmul.f32 %v1932, %v1932
    %v1981 = vmul.f32 %v1933, %v1933
    %v1982 = vmul.f32 %v1934, %v1934
    %v1983 = vmul.f32 %v1935, %v1935
    %v1984 = vmul.f32 %v1936, %v1936
    %v1985 = vmul.f32 %v1937, %v1937
    %v1986 = vmul.f32 %v1938, %v1938
    %v1987 = vmul.f32 %v1939, %v1939
    %v1988 = vadd.f32 %v1972, %v1973
    %v1989 = vadd.f32 %v1988, %v1974
    %v1990 = vadd.f32 %v1989, %v1975
    %1991 = vadd.xlane.f32.xlu0 %v1990
    %v1992 = vpop.xlane.xlu0 %1991
    %v1993 = vadd.f32 %v1976, %v1977
    %v1994 = vadd.f32 %v1993, %v1978
    %v1995 = vadd.f32 %v1994, %v1979
    %1996 = vadd.xlane.f32.xlu0 %v1995
    %v1997 = vpop.xlane.xlu0 %1996
    %v1998 = vadd.f32 %v1980, %v1981
    %v1999 = vadd.f32 %v1998, %v1982
    %v2000 = vadd.f32 %v1999, %v1983
    %2001 = vadd.xlane.f32.xlu0 %v2000
    %v2002 = vpop.xlane.xlu0 %2001
    %v2003 = vadd.f32 %v1984, %v1985
    %v2004 = vadd.f32 %v2003, %v1986
    %v2005 = vadd.f32 %v2004, %v1987
    %2006 = vadd.xlane.f32.xlu0 %v2005
    %v2007 = vpop.xlane.xlu0 %2006
    %v2008 = vmul.f32 %v1992, 0.001953125
    %v2009 = vmul.f32 %v1997, 0.001953125
    %v2010 = vmul.f32 %v2002, 0.001953125
    %v2011 = vmul.f32 %v2007, 0.001953125
    %v2012 = vmul.f32 %v1968, %v1968
    %v2013 = vmul.f32 %v1969, %v1969
    %v2014 = vmul.f32 %v1970, %v1970
    %v2015 = vmul.f32 %v1971, %v1971
    %v2016 = vsub.f32 %v2008, %v2012
    %v2017 = vsub.f32 %v2009, %v2013
    %v2018 = vsub.f32 %v2010, %v2014
    %v2019 = vsub.f32 %v2011, %v2015
    %v2020 = vadd.f32 %v2016, 1e-05
    %v2021 = vadd.f32 %v2017, 1e-05
    %v2022 = vadd.f32 %v2018, 1e-05
    %v2023 = vadd.f32 %v2019, 1e-05
    %v2024 = vrsqrt.pop %v2020
    %v2025 = vrsqrt.pop %v2021
    %v2026 = vrsqrt.pop %v2022
    %v2027 = vrsqrt.pop %v2023
    %v2028 = vmul.f32 %v1940, %v2024
    %v2029 = vmul.f32 %v1941, %v2025
    %v2030 = vmul.f32 %v1942, %v2026
    %v2031 = vmul.f32 %v1943, %v2027
    %v2032 = vmul.f32 %v1968, %v2028
    %v2033 = vmul.f32 %v1969, %v2029
    %v2034 = vmul.f32 %v1970, %v2030
    %v2035 = vmul.f32 %v1971, %v2031
    %v2036 = vsub.f32 %v1944, %v2032
    %v2037 = vsub.f32 %v1945, %v2033
    %v2038 = vsub.f32 %v1946, %v2034
    %v2039 = vsub.f32 %v1947, %v2035
    %v2040 = vld [vmem:[%s8] sm:$0xff]
    %v2041 = vld [vmem:[%s8 + $0x8] sm:$0xff]
    %2043 = vset.pattern.permute.xlu0 0
    %2044 = vperm.xlu0 %2043, %v2028
    %v2045 = vpop.permute.xlu0 %2044
    %2048 = vset.pattern.permute.xlu0 0
    %2049 = vperm.xlu0 %2048, %v2029
    %v2050 = vpop.permute.xlu0 %2049
    %2053 = vset.pattern.permute.xlu0 0
    %2054 = vperm.xlu0 %2053, %v2030
    %v2055 = vpop.permute.xlu0 %2054
    %2058 = vset.pattern.permute.xlu0 0
    %2059 = vperm.xlu0 %2058, %v2031
    %v2060 = vpop.permute.xlu0 %2059
    %v2062 = vmul.f32 %v1924, %v2045
    %v2063 = vmul.f32 %v1925, %v2045
    %v2064 = vmul.f32 %v1926, %v2045
    %v2065 = vmul.f32 %v1927, %v2045
    %v2066 = vmul.f32 %v1928, %v2050
    %v2067 = vmul.f32 %v1929, %v2050
    %v2068 = vmul.f32 %v1930, %v2050
    %v2069 = vmul.f32 %v1931, %v2050
    %v2070 = vmul.f32 %v1932, %v2055
    %v2071 = vmul.f32 %v1933, %v2055
    %v2072 = vmul.f32 %v1934, %v2055
    %v2073 = vmul.f32 %v1935, %v2055
    %v2074 = vmul.f32 %v1936, %v2060
    %v2075 = vmul.f32 %v1937, %v2060
    %v2076 = vmul.f32 %v1938, %v2060
    %v2077 = vmul.f32 %v1939, %v2060
    %2079 = vset.pattern.permute.xlu0 0
    %2080 = vperm.xlu0 %2079, %v2036
    %v2081 = vpop.permute.xlu0 %2080
    %2084 = vset.pattern.permute.xlu0 0
    %2085 = vperm.xlu0 %2084, %v2037
    %v2086 = vpop.permute.xlu0 %2085
    %2089 = vset.pattern.permute.xlu0 0
    %2090 = vperm.xlu0 %2089, %v2038
    %v2091 = vpop.permute.xlu0 %2090
    %2094 = vset.pattern.permute.xlu0 0
    %2095 = vperm.xlu0 %2094, %v2039
    %v2096 = vpop.permute.xlu0 %2095
    %v2098 = vadd.f32 %v2062, %v2081
    %v2099 = vadd.f32 %v2063, %v2081
    %v2100 = vadd.f32 %v2064, %v2081
    %v2101 = vadd.f32 %v2065, %v2081
    %v2102 = vadd.f32 %v2066, %v2086
    %v2103 = vadd.f32 %v2067, %v2086
    %v2104 = vadd.f32 %v2068, %v2086
    %v2105 = vadd.f32 %v2069, %v2086
    %v2106 = vadd.f32 %v2070, %v2091
    %v2107 = vadd.f32 %v2071, %v2091
    %v2108 = vadd.f32 %v2072, %v2091
    %v2109 = vadd.f32 %v2073, %v2091
    %v2110 = vadd.f32 %v2074, %v2096
    %v2111 = vadd.f32 %v2075, %v2096
    %v2112 = vadd.f32 %v2076, %v2096
    %v2113 = vadd.f32 %v2077, %v2096
    %v2114 = vpack.c.bf16 %v2041, %v2040
    %v2115 = vpack.c.bf16 %v2102, %v2098
    %v2116 = vpack.c.bf16 %v2103, %v2099
    %v2117 = vpack.c.bf16 %v2104, %v2100
    %v2118 = vpack.c.bf16 %v2105, %v2101
    %v2119 = vpack.c.bf16 %v2110, %v2106
    %v2120 = vpack.c.bf16 %v2111, %v2107
    %v2121 = vpack.c.bf16 %v2112, %v2108
    %v2122 = vpack.c.bf16 %v2113, %v2109
    %v2123 = vld [vmem:[%s9] sm:$0xff]
    %v2124 = vld [vmem:[%s9 + $0x8] sm:$0xff]
    %2126 = vset.pattern.permute.xlu0 0
    %2127 = vperm.xlu0 %2126, %v2123
    %v2128 = vpop.permute.xlu0 %2127
    %2131 = vset.pattern.permute.xlu0 0
    %2132 = vperm.xlu0 %2131, %v2124
    %v2133 = vpop.permute.xlu0 %2132
    %vm2135 = vcmask 261120
    %v2137 = vsel %vm2135, %v2114, 0
    %2139 = vmatprep.subr.bf16.mxu0 %v2116
    %2140 = vmatpush1.bf16.msra.mxu0 %v2115
    %2141 = vmatprep.subr.bf16.mxu0 %v2120
    %2142 = vmatpush1.bf16.msra.mxu0 %v2119
    %2143 = vmatprep.subr.bf16.mxu0 0
    %2144 = vmatpush1.bf16.msra.mxu0 0
    %2145 = vmatprep.subr.bf16.mxu0 0
    %2146 = vmatpush1.bf16.msra.mxu0 0
    %2147 = vmatprep.subr.bf16.mxu0 0
    %2148 = vmatpush1.bf16.msra.mxu0 0
    %2149 = vmatprep.subr.bf16.mxu0 0
    %2150 = vmatpush1.bf16.msra.mxu0 0
    %2151 = vmatprep.subr.bf16.mxu0 0
    %2152 = vmatpush1.bf16.msra.mxu0 0
    %2153 = vmatprep.subr.bf16.mxu0 0
    %2154 = vmatpush1.bf16.msra.mxu0 0
    %2155 = vmatprep.subr.bf16.mxu0 0
    %2156 = vmatpush1.bf16.msra.mxu0 0
    %2157 = vmatprep.subr.bf16.mxu0 0
    %2158 = vmatpush1.bf16.msra.mxu0 0
    %2159 = vmatprep.subr.bf16.mxu0 0
    %2160 = vmatpush1.bf16.msra.mxu0 0
    %2161 = vmatprep.subr.bf16.mxu0 0
    %2162 = vmatpush1.bf16.msra.mxu0 0
    %2163 = vmatprep.subr.bf16.mxu0 0
    %2164 = vmatpush1.bf16.msra.mxu0 0
    %2165 = vmatprep.subr.bf16.mxu0 0
    %2166 = vmatpush1.bf16.msra.mxu0 0
    %2167 = vmatprep.subr.bf16.mxu0 0
    %2168 = vmatpush1.bf16.msra.mxu0 0
    %2169 = vmatprep.subr.bf16.mxu0 0
    %2170 = vmatpush1.bf16.msra.mxu0 0
    %2171 = vmatprep.mubr.bf16.mxu0 0
    %2172 = vmatmul.mubr.bf16.gmra.mrb[0].mxu0 %v2137
    %v2173 = vpop.f32.mrb[0].mxu0
    %v2174 = vadd.f32 %v2128, %v2173
    %v2175 = vpop.f32.mrb[0].mxu0
    %v2176 = vadd.f32 %v2128, %v2175
    %v2177 = vpop.f32.mrb[0].mxu0
    %v2178 = vadd.f32 %v2133, %v2177
    %v2179 = vpop.f32.mrb[0].mxu0
    %v2180 = vadd.f32 %v2133, %v2179
    %2181 = vdwg.mxu0
    %2182 = vmatprep.subr.bf16.mxu0 %v2118
    %2183 = vmatpush1.bf16.msra.mxu0 %v2117
    %2184 = vmatprep.subr.bf16.mxu0 %v2122
    %2185 = vmatpush1.bf16.msra.mxu0 %v2121
    %2186 = vmatprep.subr.bf16.mxu0 0
    %2187 = vmatpush1.bf16.msra.mxu0 0
    %2188 = vmatprep.subr.bf16.mxu0 0
    %2189 = vmatpush1.bf16.msra.mxu0 0
    %2190 = vmatprep.subr.bf16.mxu0 0
    %2191 = vmatpush1.bf16.msra.mxu0 0
    %2192 = vmatprep.subr.bf16.mxu0 0
    %2193 = vmatpush1.bf16.msra.mxu0 0
    %2194 = vmatprep.subr.bf16.mxu0 0
    %2195 = vmatpush1.bf16.msra.mxu0 0
    %2196 = vmatprep.subr.bf16.mxu0 0
    %2197 = vmatpush1.bf16.msra.mxu0 0
    %2198 = vmatprep.subr.bf16.mxu0 0
    %2199 = vmatpush1.bf16.msra.mxu0 0
    %2200 = vmatprep.subr.bf16.mxu0 0
    %2201 = vmatpush1.bf16.msra.mxu0 0
    %2202 = vmatprep.subr.bf16.mxu0 0
    %2203 = vmatpush1.bf16.msra.mxu0 0
    %2204 = vmatprep.subr.bf16.mxu0 0
    %2205 = vmatpush1.bf16.msra.mxu0 0
    %2206 = vmatprep.subr.bf16.mxu0 0
    %2207 = vmatpush1.bf16.msra.mxu0 0
    %2208 = vmatprep.subr.bf16.mxu0 0
    %2209 = vmatpush1.bf16.msra.mxu0 0
    %2210 = vmatprep.subr.bf16.mxu0 0
    %2211 = vmatpush1.bf16.msra.mxu0 0
    %2212 = vmatprep.subr.bf16.mxu0 0
    %2213 = vmatpush1.bf16.msra.mxu0 0
    %2214 = vmatprep.mubr.bf16.mxu0 0
    %2215 = vmatmul.mubr.bf16.gmra.mrb[0].mxu0 %v2137
    %v2216 = vpop.f32.mrb[0].mxu0
    %v2217 = vadd.f32 %v2128, %v2216
    %v2218 = vpop.f32.mrb[0].mxu0
    %v2219 = vadd.f32 %v2128, %v2218
    %v2220 = vpop.f32.mrb[0].mxu0
    %v2221 = vadd.f32 %v2133, %v2220
    %v2222 = vpop.f32.mrb[0].mxu0
    %v2223 = vadd.f32 %v2133, %v2222
    %2224 = vdwg.mxu0
    %v2225 = vmul.f32 %v2174, 0.5
    %v2226 = vmul.f32 %v2176, 0.5
    %v2227 = vmul.f32 %v2217, 0.5
    %v2228 = vmul.f32 %v2219, 0.5
    %v2229 = vmul.f32 %v2178, 0.5
    %v2230 = vmul.f32 %v2180, 0.5
    %v2231 = vmul.f32 %v2221, 0.5
    %v2232 = vmul.f32 %v2223, 0.5
    %v2233 = vmul.f32 %v2174, 0.70710677
    %v2234 = vmul.f32 %v2176, 0.70710677
    %v2235 = vmul.f32 %v2217, 0.70710677
    %v2236 = vmul.f32 %v2219, 0.70710677
    %v2237 = vmul.f32 %v2178, 0.70710677
    %v2238 = vmul.f32 %v2180, 0.70710677
    %v2239 = vmul.f32 %v2221, 0.70710677
    %v2240 = vmul.f32 %v2223, 0.70710677
    %v2241 = verf.f32.pop %v2233
    %v2242 = verf.f32.pop %v2234
    %v2243 = verf.f32.pop %v2235
    %v2244 = verf.f32.pop %v2236
    %v2245 = verf.f32.pop %v2237
    %v2246 = verf.f32.pop %v2238
    %v2247 = verf.f32.pop %v2239
    %v2248 = verf.f32.pop %v2240
    %v2249 = vadd.f32 %v2241, 1.0
    %v2250 = vadd.f32 %v2242, 1.0
    %v2251 = vadd.f32 %v2243, 1.0
    %v2252 = vadd.f32 %v2244, 1.0
    %v2253 = vadd.f32 %v2245, 1.0
    %v2254 = vadd.f32 %v2246, 1.0
    %v2255 = vadd.f32 %v2247, 1.0
    %v2256 = vadd.f32 %v2248, 1.0
    %v2257 = vmul.f32 %v2225, %v2249
    %v2258 = vmul.f32 %v2226, %v2250
    %v2259 = vmul.f32 %v2227, %v2251
    %v2260 = vmul.f32 %v2228, %v2252
    %v2261 = vmul.f32 %v2229, %v2253
    %v2262 = vmul.f32 %v2230, %v2254
    %v2263 = vmul.f32 %v2231, %v2255
    %v2264 = vmul.f32 %v2232, %v2256
    %v2265 = vld [vmem:[%s10] sm:$0xff]
    %v2266 = vld [vmem:[%s10 + $0x8] sm:$0xff]
    %v2267 = vld [vmem:[%s11] sm:$0xff]
    %v2268 = vld [vmem:[%s11 + $0x8] sm:$0xff]
    %v2269 = vadd.f32 %v2257, %v2258
    %v2270 = vadd.f32 %v2269, %v2259
    %v2271 = vadd.f32 %v2270, %v2260
    %2272 = vadd.xlane.f32.xlu0 %v2271
    %v2273 = vpop.xlane.xlu0 %2272
    %v2274 = vadd.f32 %v2261, %v2262
    %v2275 = vadd.f32 %v2274, %v2263
    %v2276 = vadd.f32 %v2275, %v2264
    %2277 = vadd.xlane.f32.xlu0 %v2276
    %v2278 = vpop.xlane.xlu0 %2277
    %v2279 = vmul.f32 %v2273, 0.001953125
    %v2280 = vmul.f32 %v2278, 0.001953125
    %v2281 = vmul.f32 %v2257, %v2257
    %v2282 = vmul.f32 %v2258, %v2258
    %v2283 = vmul.f32 %v2259, %v2259
    %v2284 = vmul.f32 %v2260, %v2260
    %v2285 = vmul.f32 %v2261, %v2261
    %v2286 = vmul.f32 %v2262, %v2262
    %v2287 = vmul.f32 %v2263, %v2263
    %v2288 = vmul.f32 %v2264, %v2264
    %v2289 = vadd.f32 %v2281, %v2282
    %v2290 = vadd.f32 %v2289, %v2283
    %v2291 = vadd.f32 %v2290, %v2284
    %2292 = vadd.xlane.f32.xlu0 %v2291
    %v2293 = vpop.xlane.xlu0 %2292
    %v2294 = vadd.f32 %v2285, %v2286
    %v2295 = vadd.f32 %v2294, %v2287
    %v2296 = vadd.f32 %v2295, %v2288
    %2297 = vadd.xlane.f32.xlu0 %v2296
    %v2298 = vpop.xlane.xlu0 %2297
    %v2299 = vmul.f32 %v2293, 0.001953125
    %v2300 = vmul.f32 %v2298, 0.001953125
    %v2301 = vmul.f32 %v2279, %v2279
    %v2302 = vmul.f32 %v2280, %v2280
    %v2303 = vsub.f32 %v2299, %v2301
    %v2304 = vsub.f32 %v2300, %v2302
    %v2305 = vadd.f32 %v2303, 1e-05
    %v2306 = vadd.f32 %v2304, 1e-05
    %v2307 = vrsqrt.pop %v2305
    %v2308 = vrsqrt.pop %v2306
    %v2309 = vmul.f32 %v2265, %v2307
    %v2310 = vmul.f32 %v2266, %v2308
    %v2311 = vmul.f32 %v2279, %v2309
    %v2312 = vmul.f32 %v2280, %v2310
    %v2313 = vsub.f32 %v2267, %v2311
    %v2314 = vsub.f32 %v2268, %v2312
    %v2315 = vld [vmem:[%s12] sm:$0xff]
    %v2316 = vld [vmem:[%s12 + $0x8] sm:$0xff]
    %v2317 = vld [vmem:[%s12 + $0x10] sm:$0xff]
    %v2318 = vld [vmem:[%s12 + $0x18] sm:$0xff]
    %2320 = vset.pattern.permute.xlu0 0
    %2321 = vperm.xlu0 %2320, %v2309
    %v2322 = vpop.permute.xlu0 %2321
    %2325 = vset.pattern.permute.xlu0 0
    %2326 = vperm.xlu0 %2325, %v2310
    %v2327 = vpop.permute.xlu0 %2326
    %v2329 = vmul.f32 %v2257, %v2322
    %v2330 = vmul.f32 %v2258, %v2322
    %v2331 = vmul.f32 %v2259, %v2322
    %v2332 = vmul.f32 %v2260, %v2322
    %v2333 = vmul.f32 %v2261, %v2327
    %v2334 = vmul.f32 %v2262, %v2327
    %v2335 = vmul.f32 %v2263, %v2327
    %v2336 = vmul.f32 %v2264, %v2327
    %2338 = vset.pattern.permute.xlu0 0
    %2339 = vperm.xlu0 %2338, %v2313
    %v2340 = vpop.permute.xlu0 %2339
    %2343 = vset.pattern.permute.xlu0 0
    %2344 = vperm.xlu0 %2343, %v2314
    %v2345 = vpop.permute.xlu0 %2344
    %v2347 = vadd.f32 %v2329, %v2340
    %v2348 = vadd.f32 %v2330, %v2340
    %v2349 = vadd.f32 %v2331, %v2340
    %v2350 = vadd.f32 %v2332, %v2340
    %v2351 = vadd.f32 %v2333, %v2345
    %v2352 = vadd.f32 %v2334, %v2345
    %v2353 = vadd.f32 %v2335, %v2345
    %v2354 = vadd.f32 %v2336, %v2345
    %v2355 = vpack.c.bf16 %v2316, %v2315
    %v2356 = vpack.c.bf16 %v2318, %v2317
    %v2357 = vpack.c.bf16 %v2351, %v2347
    %v2358 = vpack.c.bf16 %v2352, %v2348
    %v2359 = vpack.c.bf16 %v2353, %v2349
    %v2360 = vpack.c.bf16 %v2354, %v2350
    %v2361 = vld [vmem:[%s13] sm:$0xff]
    %v2362 = vld [vmem:[%s13 + $0x8] sm:$0xff]
    %v2363 = vld [vmem:[%s13 + $0x10] sm:$0xff]
    %v2364 = vld [vmem:[%s13 + $0x18] sm:$0xff]
    %2366 = vset.pattern.permute.xlu0 0
    %2367 = vperm.xlu0 %2366, %v2361
    %v2368 = vpop.permute.xlu0 %2367
    %2371 = vset.pattern.permute.xlu0 0
    %2372 = vperm.xlu0 %2371, %v2362
    %v2373 = vpop.permute.xlu0 %2372
    %2376 = vset.pattern.permute.xlu0 0
    %2377 = vperm.xlu0 %2376, %v2363
    %v2378 = vpop.permute.xlu0 %2377
    %2381 = vset.pattern.permute.xlu0 0
    %2382 = vperm.xlu0 %2381, %v2364
    %v2383 = vpop.permute.xlu0 %2382
    %vm2385 = vcmask 130048
    %v2387 = vsel %vm2385, %v2355, 0
    %v2390 = vsel %vm2385, %v2356, 0
    %2392 = vmatprep.subr.bf16.mxu0 %v2358
    %2393 = vmatpush1.bf16.msra.mxu0 %v2357
    %2394 = vmatprep.subr.bf16.mxu0 0
    %2395 = vmatpush1.bf16.msra.mxu0 0
    %2396 = vmatprep.subr.bf16.mxu0 0
    %2397 = vmatpush1.bf16.msra.mxu0 0
    %2398 = vmatprep.subr.bf16.mxu0 0
    %2399 = vmatpush1.bf16.msra.mxu0 0
    %2400 = vmatprep.subr.bf16.mxu0 0
    %2401 = vmatpush1.bf16.msra.mxu0 0
    %2402 = vmatprep.subr.bf16.mxu0 0
    %2403 = vmatpush1.bf16.msra.mxu0 0
    %2404 = vmatprep.subr.bf16.mxu0 0
    %2405 = vmatpush1.bf16.msra.mxu0 0
    %2406 = vmatprep.subr.bf16.mxu0 0
    %2407 = vmatpush1.bf16.msra.mxu0 0
    %2408 = vmatprep.subr.bf16.mxu0 0
    %2409 = vmatpush1.bf16.msra.mxu0 0
    %2410 = vmatprep.subr.bf16.mxu0 0
    %2411 = vmatpush1.bf16.msra.mxu0 0
    %2412 = vmatprep.subr.bf16.mxu0 0
    %2413 = vmatpush1.bf16.msra.mxu0 0
    %2414 = vmatprep.subr.bf16.mxu0 0
    %2415 = vmatpush1.bf16.msra.mxu0 0
    %2416 = vmatprep.subr.bf16.mxu0 0
    %2417 = vmatpush1.bf16.msra.mxu0 0
    %2418 = vmatprep.subr.bf16.mxu0 0
    %2419 = vmatpush1.bf16.msra.mxu0 0
    %2420 = vmatprep.subr.bf16.mxu0 0
    %2421 = vmatpush1.bf16.msra.mxu0 0
    %2422 = vmatprep.subr.bf16.mxu0 0
    %2423 = vmatpush1.bf16.msra.mxu0 0
    %2424 = vmatprep.mubr.bf16.mxu0 0
    %2425 = vmatmul.mubr.bf16.gmra.mrb[0].mxu0 %v2387
    %v2426 = vpop.f32.mrb[0].mxu0
    %v2427 = vadd.f32 %v2368, %v2426
    %v2428 = vpop.f32.mrb[0].mxu0
    %v2429 = vadd.f32 %v2368, %v2428
    %v2430 = vpop.f32.mrb[0].mxu0
    %v2431 = vadd.f32 %v2373, %v2430
    %v2432 = vpop.f32.mrb[0].mxu0
    %v2433 = vadd.f32 %v2373, %v2432
    %2434 = vmatprep.mubr.bf16.mxu0 0
    %2435 = vmatmul.mubr.bf16.gmra.mrb[0].mxu0 %v2390
    %v2436 = vpop.f32.mrb[0].mxu0
    %v2437 = vadd.f32 %v2378, %v2436
    %v2438 = vpop.f32.mrb[0].mxu0
    %v2439 = vadd.f32 %v2378, %v2438
    %v2440 = vpop.f32.mrb[0].mxu0
    %v2441 = vadd.f32 %v2383, %v2440
    %v2442 = vpop.f32.mrb[0].mxu0
    %v2443 = vadd.f32 %v2383, %v2442
    %2444 = vdwg.mxu0
    %2445 = vmatprep.subr.bf16.mxu0 %v2360
    %2446 = vmatpush1.bf16.msra.mxu0 %v2359
    %2447 = vmatprep.subr.bf16.mxu0 0
    %2448 = vmatpush1.bf16.msra.mxu0 0
    %2449 = vmatprep.subr.bf16.mxu0 0
    %2450 = vmatpush1.bf16.msra.mxu0 0
    %2451 = vmatprep.subr.bf16.mxu0 0
    %2452 = vmatpush1.bf16.msra.mxu0 0
    %2453 = vmatprep.subr.bf16.mxu0 0
    %2454 = vmatpush1.bf16.msra.mxu0 0
    %2455 = vmatprep.subr.bf16.mxu0 0
    %2456 = vmatpush1.bf16.msra.mxu0 0
    %2457 = vmatprep.subr.bf16.mxu0 0
    %2458 = vmatpush1.bf16.msra.mxu0 0
    %2459 = vmatprep.subr.bf16.mxu0 0
    %2460 = vmatpush1.bf16.msra.mxu0 0
    %2461 = vmatprep.subr.bf16.mxu0 0
    %2462 = vmatpush1.bf16.msra.mxu0 0
    %2463 = vmatprep.subr.bf16.mxu0 0
    %2464 = vmatpush1.bf16.msra.mxu0 0
    %2465 = vmatprep.subr.bf16.mxu0 0
    %2466 = vmatpush1.bf16.msra.mxu0 0
    %2467 = vmatprep.subr.bf16.mxu0 0
    %2468 = vmatpush1.bf16.msra.mxu0 0
    %2469 = vmatprep.subr.bf16.mxu0 0
    %2470 = vmatpush1.bf16.msra.mxu0 0
    %2471 = vmatprep.subr.bf16.mxu0 0
    %2472 = vmatpush1.bf16.msra.mxu0 0
    %2473 = vmatprep.subr.bf16.mxu0 0
    %2474 = vmatpush1.bf16.msra.mxu0 0
    %2475 = vmatprep.subr.bf16.mxu0 0
    %2476 = vmatpush1.bf16.msra.mxu0 0
    %2477 = vmatprep.mubr.bf16.mxu0 0
    %2478 = vmatmul.mubr.bf16.gmra.mrb[0].mxu0 %v2387
    %v2479 = vpop.f32.mrb[0].mxu0
    %v2480 = vadd.f32 %v2368, %v2479
    %v2481 = vpop.f32.mrb[0].mxu0
    %v2482 = vadd.f32 %v2368, %v2481
    %v2483 = vpop.f32.mrb[0].mxu0
    %v2484 = vadd.f32 %v2373, %v2483
    %v2485 = vpop.f32.mrb[0].mxu0
    %v2486 = vadd.f32 %v2373, %v2485
    %2487 = vmatprep.mubr.bf16.mxu0 0
    %2488 = vmatmul.mubr.bf16.gmra.mrb[0].mxu0 %v2390
    %v2489 = vpop.f32.mrb[0].mxu0
    %v2490 = vadd.f32 %v2378, %v2489
    %v2491 = vpop.f32.mrb[0].mxu0
    %v2492 = vadd.f32 %v2378, %v2491
    %v2493 = vpop.f32.mrb[0].mxu0
    %v2494 = vadd.f32 %v2383, %v2493
    %v2495 = vpop.f32.mrb[0].mxu0
    %v2496 = vadd.f32 %v2383, %v2495
    %2497 = vdwg.mxu0
    %v2498 = vld [vmem:[%s14] sm:$0xff]
    %v2499 = vld [vmem:[%s14 + $0x8] sm:$0xff]
    %v2500 = vld [vmem:[%s14 + $0x10] sm:$0xff]
    %v2501 = vld [vmem:[%s14 + $0x18] sm:$0xff]
    %v2502 = vld [vmem:[%s15] sm:$0xff]
    %v2503 = vld [vmem:[%s15 + $0x8] sm:$0xff]
    %v2504 = vld [vmem:[%s15 + $0x10] sm:$0xff]
    %v2505 = vld [vmem:[%s15 + $0x18] sm:$0xff]
    %v2506 = vadd.f32 %v2427, %v2429
    %v2507 = vadd.f32 %v2506, %v2480
    %v2508 = vadd.f32 %v2507, %v2482
    %2509 = vadd.xlane.f32.xlu0 %v2508
    %v2510 = vpop.xlane.xlu0 %2509
    %v2511 = vadd.f32 %v2431, %v2433
    %v2512 = vadd.f32 %v2511, %v2484
    %v2513 = vadd.f32 %v2512, %v2486
    %2514 = vadd.xlane.f32.xlu0 %v2513
    %v2515 = vpop.xlane.xlu0 %2514
    %v2516 = vadd.f32 %v2437, %v2439
    %v2517 = vadd.f32 %v2516, %v2490
    %v2518 = vadd.f32 %v2517, %v2492
    %2519 = vadd.xlane.f32.xlu0 %v2518
    %v2520 = vpop.xlane.xlu0 %2519
    %v2521 = vadd.f32 %v2441, %v2443
    %v2522 = vadd.f32 %v2521, %v2494
    %v2523 = vadd.f32 %v2522, %v2496
    %2524 = vadd.xlane.f32.xlu0 %v2523
    %v2525 = vpop.xlane.xlu0 %2524
    %v2526 = vmul.f32 %v2510, 0.001953125
    %v2527 = vmul.f32 %v2515, 0.001953125
    %v2528 = vmul.f32 %v2520, 0.001953125
    %v2529 = vmul.f32 %v2525, 0.001953125
    %v2530 = vmul.f32 %v2427, %v2427
    %v2531 = vmul.f32 %v2429, %v2429
    %v2532 = vmul.f32 %v2480, %v2480
    %v2533 = vmul.f32 %v2482, %v2482
    %v2534 = vmul.f32 %v2431, %v2431
    %v2535 = vmul.f32 %v2433, %v2433
    %v2536 = vmul.f32 %v2484, %v2484
    %v2537 = vmul.f32 %v2486, %v2486
    %v2538 = vmul.f32 %v2437, %v2437
    %v2539 = vmul.f32 %v2439, %v2439
    %v2540 = vmul.f32 %v2490, %v2490
    %v2541 = vmul.f32 %v2492, %v2492
    %v2542 = vmul.f32 %v2441, %v2441
    %v2543 = vmul.f32 %v2443, %v2443
    %v2544 = vmul.f32 %v2494, %v2494
    %v2545 = vmul.f32 %v2496, %v2496
    %v2546 = vadd.f32 %v2530, %v2531
    %v2547 = vadd.f32 %v2546, %v2532
    %v2548 = vadd.f32 %v2547, %v2533
    %2549 = vadd.xlane.f32.xlu0 %v2548
    %v2550 = vpop.xlane.xlu0 %2549
    %v2551 = vadd.f32 %v2534, %v2535
    %v2552 = vadd.f32 %v2551, %v2536
    %v2553 = vadd.f32 %v2552, %v2537
    %2554 = vadd.xlane.f32.xlu0 %v2553
    %v2555 = vpop.xlane.xlu0 %2554
    %v2556 = vadd.f32 %v2538, %v2539
    %v2557 = vadd.f32 %v2556, %v2540
    %v2558 = vadd.f32 %v2557, %v2541
    %2559 = vadd.xlane.f32.xlu0 %v2558
    %v2560 = vpop.xlane.xlu0 %2559
    %v2561 = vadd.f32 %v2542, %v2543
    %v2562 = vadd.f32 %v2561, %v2544
    %v2563 = vadd.f32 %v2562, %v2545
    %2564 = vadd.xlane.f32.xlu0 %v2563
    %v2565 = vpop.xlane.xlu0 %2564
    %v2566 = vmul.f32 %v2550, 0.001953125
    %v2567 = vmul.f32 %v2555, 0.001953125
    %v2568 = vmul.f32 %v2560, 0.001953125
    %v2569 = vmul.f32 %v2565, 0.001953125
    %v2570 = vmul.f32 %v2526, %v2526
    %v2571 = vmul.f32 %v2527, %v2527
    %v2572 = vmul.f32 %v2528, %v2528
    %v2573 = vmul.f32 %v2529, %v2529
    %v2574 = vsub.f32 %v2566, %v2570
    %v2575 = vsub.f32 %v2567, %v2571
    %v2576 = vsub.f32 %v2568, %v2572
    %v2577 = vsub.f32 %v2569, %v2573
    %v2578 = vadd.f32 %v2574, 1e-05
    %v2579 = vadd.f32 %v2575, 1e-05
    %v2580 = vadd.f32 %v2576, 1e-05
    %v2581 = vadd.f32 %v2577, 1e-05
    %v2582 = vrsqrt.pop %v2578
    %v2583 = vrsqrt.pop %v2579
    %v2584 = vrsqrt.pop %v2580
    %v2585 = vrsqrt.pop %v2581
    %v2586 = vmul.f32 %v2498, %v2582
    %v2587 = vmul.f32 %v2499, %v2583
    %v2588 = vmul.f32 %v2500, %v2584
    %v2589 = vmul.f32 %v2501, %v2585
    %v2590 = vmul.f32 %v2526, %v2586
    %v2591 = vmul.f32 %v2527, %v2587
    %v2592 = vmul.f32 %v2528, %v2588
    %v2593 = vmul.f32 %v2529, %v2589
    %v2594 = vsub.f32 %v2502, %v2590
    %v2595 = vsub.f32 %v2503, %v2591
    %v2596 = vsub.f32 %v2504, %v2592
    %v2597 = vsub.f32 %v2505, %v2593
    %2599 = vset.pattern.permute.xlu0 0
    %2600 = vperm.xlu0 %2599, %v2586
    %v2601 = vpop.permute.xlu0 %2600
    %2604 = vset.pattern.permute.xlu0 0
    %2605 = vperm.xlu0 %2604, %v2587
    %v2606 = vpop.permute.xlu0 %2605
    %2609 = vset.pattern.permute.xlu0 0
    %2610 = vperm.xlu0 %2609, %v2588
    %v2611 = vpop.permute.xlu0 %2610
    %2614 = vset.pattern.permute.xlu0 0
    %2615 = vperm.xlu0 %2614, %v2589
    %v2616 = vpop.permute.xlu0 %2615
    %v2618 = vmul.f32 %v2427, %v2601
    %v2619 = vmul.f32 %v2429, %v2601
    %v2620 = vmul.f32 %v2480, %v2601
    %v2621 = vmul.f32 %v2482, %v2601
    %v2622 = vmul.f32 %v2431, %v2606
    %v2623 = vmul.f32 %v2433, %v2606
    %v2624 = vmul.f32 %v2484, %v2606
    %v2625 = vmul.f32 %v2486, %v2606
    %v2626 = vmul.f32 %v2437, %v2611
    %v2627 = vmul.f32 %v2439, %v2611
    %v2628 = vmul.f32 %v2490, %v2611
    %v2629 = vmul.f32 %v2492, %v2611
    %v2630 = vmul.f32 %v2441, %v2616
    %v2631 = vmul.f32 %v2443, %v2616
    %v2632 = vmul.f32 %v2494, %v2616
    %v2633 = vmul.f32 %v2496, %v2616
    %2635 = vset.pattern.permute.xlu0 0
    %2636 = vperm.xlu0 %2635, %v2594
    %v2637 = vpop.permute.xlu0 %2636
    %2640 = vset.pattern.permute.xlu0 0
    %2641 = vperm.xlu0 %2640, %v2595
    %v2642 = vpop.permute.xlu0 %2641
    %2645 = vset.pattern.permute.xlu0 0
    %2646 = vperm.xlu0 %2645, %v2596
    %v2647 = vpop.permute.xlu0 %2646
    %2650 = vset.pattern.permute.xlu0 0
    %2651 = vperm.xlu0 %2650, %v2597
    %v2652 = vpop.permute.xlu0 %2651
    %v2654 = vadd.f32 %v2618, %v2637
    %v2655 = vadd.f32 %v2619, %v2637
    %v2656 = vadd.f32 %v2620, %v2637
    %v2657 = vadd.f32 %v2621, %v2637
    %v2658 = vadd.f32 %v2622, %v2642
    %v2659 = vadd.f32 %v2623, %v2642
    %v2660 = vadd.f32 %v2624, %v2642
    %v2661 = vadd.f32 %v2625, %v2642
    %v2662 = vadd.f32 %v2626, %v2647
    %v2663 = vadd.f32 %v2627, %v2647
    %v2664 = vadd.f32 %v2628, %v2647
    %v2665 = vadd.f32 %v2629, %v2647
    %v2666 = vadd.f32 %v2630, %v2652
    %v2667 = vadd.f32 %v2631, %v2652
    %v2668 = vadd.f32 %v2632, %v2652
    %v2669 = vadd.f32 %v2633, %v2652
    %v2670 = vadd.f32 %v2654, %v832
    %v2671 = vadd.f32 %v2655, %v833
    %v2672 = vadd.f32 %v2656, %v834
    %v2673 = vadd.f32 %v2657, %v835
    %v2674 = vadd.f32 %v2658, %v836
    %v2675 = vadd.f32 %v2659, %v837
    %v2676 = vadd.f32 %v2660, %v838
    %v2677 = vadd.f32 %v2661, %v839
    %v2678 = vadd.f32 %v2662, %v216
    %v2679 = vadd.f32 %v2663, %v217
    %v2680 = vadd.f32 %v2664, %v221
    %v2681 = vadd.f32 %v2665, %v222
    %v2682 = vadd.f32 %v2666, %v218
    %v2683 = vadd.f32 %v2667, %v219
    %v2684 = vadd.f32 %v2668, %v223
    %v2685 = vadd.f32 %v2669, %v224
    %2686 = vst [vmem:[%s17] sm:$0xff] %v2670
    %2687 = vst [vmem:[%s17 + $0x8] sm:$0xff] %v2671
    %2688 = vst [vmem:[%s17 + $0x10] sm:$0xff] %v2674
    %2689 = vst [vmem:[%s17 + $0x18] sm:$0xff] %v2675
    %2690 = vst [vmem:[%s17 + $0x20] sm:$0xff] %v2678
    %2691 = vst [vmem:[%s17 + $0x28] sm:$0xff] %v2679
    %2692 = vst [vmem:[%s17 + $0x30] sm:$0xff] %v2682
    %2693 = vst [vmem:[%s17 + $0x38] sm:$0xff] %v2683
    %s2694 = scalar_lea.vmem %s17, 64
    %2695 = vst [vmem:[%s2694] sm:$0xff] %v2672
    %2696 = vst [vmem:[%s2694 + $0x8] sm:$0xff] %v2673
    %2697 = vst [vmem:[%s2694 + $0x10] sm:$0xff] %v2676
    %2698 = vst [vmem:[%s2694 + $0x18] sm:$0xff] %v2677
    %2699 = vst [vmem:[%s2694 + $0x20] sm:$0xff] %v2680
    %2700 = vst [vmem:[%s2694 + $0x28] sm:$0xff] %v2681
    %2701 = vst [vmem:[%s2694 + $0x30] sm:$0xff] %v2684
    %2702 = vst [vmem:[%s2694 + $0x38] sm:$0xff] %v2685
    // Predicated region
    $region93: #{hybrid_token_mixer.3} parent=1 // pred_check
      _
    $region94: #{hybrid_token_mixer.3} parent=1 // pred_check_branch
      %2704 = sbr.rel (0) target = $region96
    $region95: #{hybrid_token_mixer.3} parent=1 // pred_region
      _
    $region96: #{hybrid_token_mixer.3} parent=1 // pred_fallthru
      _
    // Predicated region
    $region97: #{hybrid_token_mixer.3} parent=1 // pred_check
      _
    $region98: #{hybrid_token_mixer.3} parent=1 // pred_check_branch
      %2706 = sbr.rel (0) target = $region100
    $region99: #{hybrid_token_mixer.3} parent=1 // pred_region
      _
    $region100: #{hybrid_token_mixer.3} parent=1 // pred_fallthru
      _

// kernel: hybrid_token_mixer.2
$region0: #{hybrid_token_mixer.2}
  #allocation0 [shape = 'u32[]', space=smem, size = 0x4, offset = 0x4, fixed_abs, tag = 'smem constant byte address 0x4 - core index']
  #allocation1 [shape = 'u32[144,128]{1,0:T(1,128)}', space=vmem, size = 0x12000, scoped, tag = 'internal scratch']
  %s0 = inlined_call_operand.vmem [shape: f32[2,32,256], index: 0, kind: input, shape index: {}]
  %s1 = inlined_call_operand.vmem [shape: f32[16,16], index: 1, kind: input, shape index: {}]
  %s2 = inlined_call_operand.vmem [shape: f32[16,1], index: 2, kind: input, shape index: {}]
  %s3 = inlined_call_operand.vmem [shape: f32[32,16], index: 3, kind: input, shape index: {}]
  %s4 = inlined_call_operand.vmem [shape: f32[32,1], index: 4, kind: input, shape index: {}]
  %s5 = inlined_call_operand.vmem [shape: f32[9,16,1], index: 5, kind: input, shape index: {}]
  %s6 = inlined_call_operand.vmem [shape: f32[16,1], index: 6, kind: input, shape index: {}]
  %s7 = inlined_call_operand.vmem [shape: f32[9,1,512], index: 7, kind: input, shape index: {}]
  %s8 = inlined_call_operand.vmem [shape: f32[2,16,256], index: 8, kind: output, shape index: {}]
  %s9 = sld [smem:[#allocation0]]
  $region65: #{hybrid_token_mixer.2} parent=0
    _
  %s11 = ssub.s32 1, %s9
  %s12 = scalar_select 0, %s11, %s9
  $region1: #{hybrid_token_mixer.2} parent=0
    #allocation2 [shape = 'u8[32768]{0}', space=vmem, size = 0x8000, scoped, tag = 'input window, operand 0, single buffered']
    // Predicated region
    $region2: #{hybrid_token_mixer.2} parent=1 // pred_check
      _
    $region3: #{hybrid_token_mixer.2} parent=1 // pred_check_branch
      %14 = sbr.rel (0) target = $region5
    $region4: #{hybrid_token_mixer.2} parent=1 // pred_region
      %s15 = scalar_lea.vmem %s0, 32
      // Predicated region
      $region6: #{hybrid_token_mixer.2} parent=4 // pred_check
        _
      $region7: #{hybrid_token_mixer.2} parent=4 // pred_check_branch
        %17 = sbr.rel (0) target = $region9
      $region8: #{hybrid_token_mixer.2} parent=4 // pred_region
        // Predicated region
        $region10: #{hybrid_token_mixer.2} parent=8 // pred_check
          _
        $region11: #{hybrid_token_mixer.2} parent=8 // pred_check_branch
          %19 = sbr.rel (0) target = $region13
        $region12: #{hybrid_token_mixer.2} parent=8 // pred_region
          loop: start=0, step=1, limit=1
          $region14: #{hybrid_token_mixer.2} parent=12 // loop_pre_header
            _
          $region15: #{hybrid_token_mixer.2} parent=12 // loop_header
            %s21 = sphi 0, %s25
            %p22 = scmp.ge.s32.totalorder %s21, 1
            %s26 = sphi %s15, %s15
            %s27 = sphi [#allocation2], [#allocation2]
          $region16: #{hybrid_token_mixer.2} parent=12 // loop_header_branch
            %24 = sbr.rel (%p22) target = $region20
          $region17: #{hybrid_token_mixer.2} parent=12 // loop_body
            %v28 = vld [vmem:[%s26] sm:$0xff]
            %29 = vst [vmem:[%s27] sm:$0xff] %v28
            %v30 = vld [vmem:[%s26 + $0x8] sm:$0xff]
            %31 = vst [vmem:[%s27 + $0x8] sm:$0xff] %v30
            %v32 = vld [vmem:[%s26 + $0x10] sm:$0xff]
            %33 = vst [vmem:[%s27 + $0x10] sm:$0xff] %v32
            %v34 = vld [vmem:[%s26 + $0x18] sm:$0xff]
            %35 = vst [vmem:[%s27 + $0x18] sm:$0xff] %v34
            %v36 = vld [vmem:[%s26 + $0x40] sm:$0xff]
            %37 = vst [vmem:[%s27 + $0x20] sm:$0xff] %v36
            %v38 = vld [vmem:[%s26 + $0x48] sm:$0xff]
            %39 = vst [vmem:[%s27 + $0x28] sm:$0xff] %v38
            %v40 = vld [vmem:[%s26 + $0x50] sm:$0xff]
            %41 = vst [vmem:[%s27 + $0x30] sm:$0xff] %v40
            %v42 = vld [vmem:[%s26 + $0x58] sm:$0xff]
            %43 = vst [vmem:[%s27 + $0x38] sm:$0xff] %v42
          $region18: #{hybrid_token_mixer.2} parent=12 // loop_footer
            %s25 = sadd.s32 1, %s21
          $region19: #{hybrid_token_mixer.2} parent=12 // loop_footer_branch
            %20 = sbr.rel target = $region15
          $region20: #{hybrid_token_mixer.2} parent=12 // loop_exit
            _
        $region13: #{hybrid_token_mixer.2} parent=8 // pred_fallthru
          _
        // Predicated region
        $region21: #{hybrid_token_mixer.2} parent=8 // pred_check
          _
        $region22: #{hybrid_token_mixer.2} parent=8 // pred_check_branch
          %45 = sbr.rel target = $region24
        $region23: #{hybrid_token_mixer.2} parent=8 // pred_region
          _
        $region24: #{hybrid_token_mixer.2} parent=8 // pred_fallthru
          _
      $region9: #{hybrid_token_mixer.2} parent=4 // pred_fallthru
        _
      %46 = vnop
    $region5: #{hybrid_token_mixer.2} parent=1 // pred_fallthru
      _
    // Predicated region
    $region25: #{hybrid_token_mixer.2} parent=1 // pred_check
      _
    $region26: #{hybrid_token_mixer.2} parent=1 // pred_check_branch
      %48 = sbr.rel (0) target = $region28
    $region27: #{hybrid_token_mixer.2} parent=1 // pred_region
      _
    $region28: #{hybrid_token_mixer.2} parent=1 // pred_fallthru
      _
    // Predicated region
    $region29: #{hybrid_token_mixer.2} parent=1 // pred_check
      _
    $region30: #{hybrid_token_mixer.2} parent=1 // pred_check_branch
      %50 = sbr.rel (0) target = $region32
    $region31: #{hybrid_token_mixer.2} parent=1 // pred_region
      _
    $region32: #{hybrid_token_mixer.2} parent=1 // pred_fallthru
      _
    // Predicated region
    $region33: #{hybrid_token_mixer.2} parent=1 // pred_check
      _
    $region34: #{hybrid_token_mixer.2} parent=1 // pred_check_branch
      %52 = sbr.rel (0) target = $region36
    $region35: #{hybrid_token_mixer.2} parent=1 // pred_region
      _
    $region36: #{hybrid_token_mixer.2} parent=1 // pred_fallthru
      _
    // Predicated region
    $region37: #{hybrid_token_mixer.2} parent=1 // pred_check
      _
    $region38: #{hybrid_token_mixer.2} parent=1 // pred_check_branch
      %54 = sbr.rel (0) target = $region40
    $region39: #{hybrid_token_mixer.2} parent=1 // pred_region
      _
    $region40: #{hybrid_token_mixer.2} parent=1 // pred_fallthru
      _
    // Predicated region
    $region41: #{hybrid_token_mixer.2} parent=1 // pred_check
      _
    $region42: #{hybrid_token_mixer.2} parent=1 // pred_check_branch
      %56 = sbr.rel (0) target = $region44
    $region43: #{hybrid_token_mixer.2} parent=1 // pred_region
      _
    $region44: #{hybrid_token_mixer.2} parent=1 // pred_fallthru
      _
    // Predicated region
    $region45: #{hybrid_token_mixer.2} parent=1 // pred_check
      _
    $region46: #{hybrid_token_mixer.2} parent=1 // pred_check_branch
      %58 = sbr.rel (0) target = $region48
    $region47: #{hybrid_token_mixer.2} parent=1 // pred_region
      _
    $region48: #{hybrid_token_mixer.2} parent=1 // pred_fallthru
      _
    // Predicated region
    $region49: #{hybrid_token_mixer.2} parent=1 // pred_check
      _
    $region50: #{hybrid_token_mixer.2} parent=1 // pred_check_branch
      %60 = sbr.rel (0) target = $region52
    $region51: #{hybrid_token_mixer.2} parent=1 // pred_region
      _
    $region52: #{hybrid_token_mixer.2} parent=1 // pred_fallthru
      _
    // Predicated region
    $region53: #{hybrid_token_mixer.2} parent=1 // pred_check
      _
    $region54: #{hybrid_token_mixer.2} parent=1 // pred_check_branch
      %62 = sbr.rel (0) target = $region56
    $region55: #{hybrid_token_mixer.2} parent=1 // pred_region
      _
    $region56: #{hybrid_token_mixer.2} parent=1 // pred_fallthru
      _
    %v64 = vld [vmem:[#allocation2] sm:$0xff]
    %v65 = vld [vmem:[#allocation2 + $0x8] sm:$0xff]
    %v66 = vld [vmem:[#allocation2 + $0x10] sm:$0xff]
    %v67 = vld [vmem:[#allocation2 + $0x18] sm:$0xff]
    %s68 = scalar_lea.vmem [#allocation2], 32
    %v69 = vld [vmem:[%s68] sm:$0xff]
    %v70 = vld [vmem:[%s68 + $0x8] sm:$0xff]
    %v71 = vld [vmem:[%s68 + $0x10] sm:$0xff]
    %v72 = vld [vmem:[%s68 + $0x18] sm:$0xff]
    %v73 = vld [vmem:[%s7] sm:$0xf]
    %v74 = vld [vmem:[%s7 + $0x4] sm:$0xf]
    %v75 = vld [vmem:[%s7 + $0x8] sm:$0xf]
    %v76 = vld [vmem:[%s7 + $0xc] sm:$0xf]
    %v77 = vld [vmem:[%s7 + $0x10] sm:$0xf]
    %v78 = vld [vmem:[%s7 + $0x14] sm:$0xf]
    %v79 = vld [vmem:[%s7 + $0x18] sm:$0xf]
    %v80 = vld [vmem:[%s7 + $0x1c] sm:$0xf]
    %v81 = vld [vmem:[%s7 + $0x20] sm:$0xf]
    %v82 = vld [vmem:[%s5] sm:$0xff]
    %v83 = vld [vmem:[%s5 + $0x8] sm:$0xff]
    %v84 = vld [vmem:[%s5 + $0x10] sm:$0xff]
    %v85 = vld [vmem:[%s5 + $0x18] sm:$0xff]
    %v86 = vld [vmem:[%s5 + $0x20] sm:$0xff]
    %v87 = vld [vmem:[%s5 + $0x28] sm:$0xff]
    %v88 = vld [vmem:[%s5 + $0x30] sm:$0xff]
    %v89 = vld [vmem:[%s5 + $0x38] sm:$0xff]
    %v90 = vld [vmem:[%s5 + $0x40] sm:$0xff]
    %v91 = vld [vmem:[%s5 + $0x48] sm:$0xff]
    %v92 = vld [vmem:[%s5 + $0x50] sm:$0xff]
    %v93 = vld [vmem:[%s5 + $0x58] sm:$0xff]
    %v94 = vld [vmem:[%s5 + $0x60] sm:$0xff]
    %v95 = vld [vmem:[%s5 + $0x68] sm:$0xff]
    %v96 = vld [vmem:[%s5 + $0x70] sm:$0xff]
    %v97 = vld [vmem:[%s5 + $0x78] sm:$0xff]
    %v98 = vld [vmem:[%s5 + $0x80] sm:$0xff]
    %v99 = vld [vmem:[%s5 + $0x88] sm:$0xff]
    %v100 = vld [vmem:[%s6] sm:$0xff]
    %v101 = vld [vmem:[%s6 + $0x8] sm:$0xff]
    %103 = vset.pattern.permute.xlu0 0
    %104 = vperm.xlu0 %103, %v100
    %v105 = vpop.permute.xlu0 %104
    %108 = vset.pattern.permute.xlu0 0
    %109 = vperm.xlu0 %108, %v101
    %v110 = vpop.permute.xlu0 %109
    %v112 = vadd.f32 %v64, %v105
    %v113 = vadd.f32 %v65, %v105
    %v114 = vadd.f32 %v69, %v105
    %v115 = vadd.f32 %v70, %v105
    %v116 = vadd.f32 %v66, %v110
    %v117 = vadd.f32 %v67, %v110
    %v118 = vadd.f32 %v71, %v110
    %v119 = vadd.f32 %v72, %v110
    %120 = vrot.lane.b32.xlu0 %v64, 17
    %v121 = vpop.permute.xlu0 %120
    %122 = vrot.lane.b32.xlu0 %v66, 17
    %v123 = vpop.permute.xlu0 %122
    %124 = vrot.lane.b32.xlu0 %v65, 17
    %v125 = vpop.permute.xlu0 %124
    %126 = vrot.lane.b32.xlu0 %v67, 17
    %v127 = vpop.permute.xlu0 %126
    %128 = vrot.lane.b32.xlu0 %v69, 17
    %v129 = vpop.permute.xlu0 %128
    %130 = vrot.lane.b32.xlu0 %v71, 17
    %v131 = vpop.permute.xlu0 %130
    %132 = vrot.lane.b32.xlu0 %v70, 17
    %v133 = vpop.permute.xlu0 %132
    %134 = vrot.lane.b32.xlu0 %v72, 17
    %v135 = vpop.permute.xlu0 %134
    %v136 = vlaneseq
    %v137 = vand.u32 %v136, 127
    %vm138 = vcmp.lt.s32.totalorder %v137, 17
    %v139 = vsel %vm138, %v129, %v133
    %v140 = vsel %vm138, %v131, %v135
    %v141 = vsel %vm138, %v125, %v129
    %v142 = vsel %vm138, %v127, %v131
    %v143 = vsel %vm138, %v121, %v125
    %v144 = vsel %vm138, %v123, %v127
    %v145 = vsel %vm138, %v133, %v121
    %v146 = vsel %vm138, %v135, %v123
    %v148 = vlaneseq
    %v149 = vshrl.u32 %v148, 7
    %v150 = vsub.s32 0, %v149
    %v151 = vrot.slane %v73, %v150
    %v152 = vlaneseq
    %v153 = vshrl.u32 %v152, 7
    %v154 = vsub.s32 1, %v153
    %v155 = vrot.slane %v73, %v154
    %v156 = vlaneseq
    %v157 = vshrl.u32 %v156, 7
    %v158 = vsub.s32 2, %v157
    %v159 = vrot.slane %v73, %v158
    %v160 = vlaneseq
    %v161 = vshrl.u32 %v160, 7
    %v162 = vsub.s32 3, %v161
    %v163 = vrot.slane %v73, %v162
    %v168 = vmul.f32 %v151, %v145
    %v169 = vmul.f32 %v155, %v143
    %v170 = vmul.f32 %v159, %v141
    %v171 = vmul.f32 %v163, %v139
    %v172 = vmul.f32 %v151, %v146
    %v173 = vmul.f32 %v155, %v144
    %v174 = vmul.f32 %v159, %v142
    %v175 = vmul.f32 %v163, %v140
    %177 = vset.pattern.permute.xlu0 0
    %178 = vperm.xlu0 %177, %v82
    %v179 = vpop.permute.xlu0 %178
    %182 = vset.pattern.permute.xlu0 0
    %183 = vperm.xlu0 %182, %v83
    %v184 = vpop.permute.xlu0 %183
    %v186 = vmul.f32 %v179, %v168
    %v187 = vmul.f32 %v179, %v169
    %v188 = vmul.f32 %v179, %v170
    %v189 = vmul.f32 %v179, %v171
    %v190 = vmul.f32 %v184, %v172
    %v191 = vmul.f32 %v184, %v173
    %v192 = vmul.f32 %v184, %v174
    %v193 = vmul.f32 %v184, %v175
    %v194 = vadd.f32 %v112, %v186
    %v195 = vadd.f32 %v113, %v187
    %v196 = vadd.f32 %v114, %v188
    %v197 = vadd.f32 %v115, %v189
    %v198 = vadd.f32 %v116, %v190
    %v199 = vadd.f32 %v117, %v191
    %v200 = vadd.f32 %v118, %v192
    %v201 = vadd.f32 %v119, %v193
    %202 = vrot.lane.b32.xlu0 %v64, 16
    %v203 = vpop.permute.xlu0 %202
    %204 = vrot.lane.b32.xlu0 %v66, 16
    %v205 = vpop.permute.xlu0 %204
    %206 = vrot.lane.b32.xlu0 %v65, 16
    %v207 = vpop.permute.xlu0 %206
    %208 = vrot.lane.b32.xlu0 %v67, 16
    %v209 = vpop.permute.xlu0 %208
    %210 = vrot.lane.b32.xlu0 %v69, 16
    %v211 = vpop.permute.xlu0 %210
    %212 = vrot.lane.b32.xlu0 %v71, 16
    %v213 = vpop.permute.xlu0 %212
    %214 = vrot.lane.b32.xlu0 %v70, 16
    %v215 = vpop.permute.xlu0 %214
    %216 = vrot.lane.b32.xlu0 %v72, 16
    %v217 = vpop.permute.xlu0 %216
    %vm218 = vcmp.lt.s32.totalorder %v137, 16
    %v219 = vsel %vm218, %v211, %v215
    %v220 = vsel %vm218, %v213, %v217
    %v221 = vsel %vm218, %v207, %v211
    %v222 = vsel %vm218, %v209, %v213
    %v223 = vsel %vm218, %v203, %v207
    %v224 = vsel %vm218, %v205, %v209
    %v225 = vsel %vm218, %v215, %v203
    %v226 = vsel %vm218, %v217, %v205
    %v228 = vlaneseq
    %v229 = vshrl.u32 %v228, 7
    %v230 = vsub.s32 0, %v229
    %v231 = vrot.slane %v74, %v230
    %v232 = vlaneseq
    %v233 = vshrl.u32 %v232, 7
    %v234 = vsub.s32 1, %v233
    %v235 = vrot.slane %v74, %v234
    %v236 = vlaneseq
    %v237 = vshrl.u32 %v236, 7
    %v238 = vsub.s32 2, %v237
    %v239 = vrot.slane %v74, %v238
    %v240 = vlaneseq
    %v241 = vshrl.u32 %v240, 7
    %v242 = vsub.s32 3, %v241
    %v243 = vrot.slane %v74, %v242
    %v248 = vmul.f32 %v231, %v225
    %v249 = vmul.f32 %v235, %v223
    %v250 = vmul.f32 %v239, %v221
    %v251 = vmul.f32 %v243, %v219
    %v252 = vmul.f32 %v231, %v226
    %v253 = vmul.f32 %v235, %v224
    %v254 = vmul.f32 %v239, %v222
    %v255 = vmul.f32 %v243, %v220
    %257 = vset.pattern.permute.xlu0 0
    %258 = vperm.xlu0 %257, %v84
    %v259 = vpop.permute.xlu0 %258
    %262 = vset.pattern.permute.xlu0 0
    %263 = vperm.xlu0 %262, %v85
    %v264 = vpop.permute.xlu0 %263
    %v266 = vmul.f32 %v259, %v248
    %v267 = vmul.f32 %v259, %v249
    %v268 = vmul.f32 %v259, %v250
    %v269 = vmul.f32 %v259, %v251
    %v270 = vmul.f32 %v264, %v252
    %v271 = vmul.f32 %v264, %v253
    %v272 = vmul.f32 %v264, %v254
    %v273 = vmul.f32 %v264, %v255
    %v274 = vadd.f32 %v194, %v266
    %v275 = vadd.f32 %v195, %v267
    %v276 = vadd.f32 %v196, %v268
    %v277 = vadd.f32 %v197, %v269
    %v278 = vadd.f32 %v198, %v270
    %v279 = vadd.f32 %v199, %v271
    %v280 = vadd.f32 %v200, %v272
    %v281 = vadd.f32 %v201, %v273
    %282 = vrot.lane.b32.xlu0 %v64, 15
    %v283 = vpop.permute.xlu0 %282
    %284 = vrot.lane.b32.xlu0 %v66, 15
    %v285 = vpop.permute.xlu0 %284
    %286 = vrot.lane.b32.xlu0 %v65, 15
    %v287 = vpop.permute.xlu0 %286
    %288 = vrot.lane.b32.xlu0 %v67, 15
    %v289 = vpop.permute.xlu0 %288
    %290 = vrot.lane.b32.xlu0 %v69, 15
    %v291 = vpop.permute.xlu0 %290
    %292 = vrot.lane.b32.xlu0 %v71, 15
    %v293 = vpop.permute.xlu0 %292
    %294 = vrot.lane.b32.xlu0 %v70, 15
    %v295 = vpop.permute.xlu0 %294
    %296 = vrot.lane.b32.xlu0 %v72, 15
    %v297 = vpop.permute.xlu0 %296
    %vm298 = vcmp.lt.s32.totalorder %v137, 15
    %v299 = vsel %vm298, %v291, %v295
    %v300 = vsel %vm298, %v293, %v297
    %v301 = vsel %vm298, %v287, %v291
    %v302 = vsel %vm298, %v289, %v293
    %v303 = vsel %vm298, %v283, %v287
    %v304 = vsel %vm298, %v285, %v289
    %v305 = vsel %vm298, %v295, %v283
    %v306 = vsel %vm298, %v297, %v285
    %v308 = vlaneseq
    %v309 = vshrl.u32 %v308, 7
    %v310 = vsub.s32 0, %v309
    %v311 = vrot.slane %v75, %v310
    %v312 = vlaneseq
    %v313 = vshrl.u32 %v312, 7
    %v314 = vsub.s32 1, %v313
    %v315 = vrot.slane %v75, %v314
    %v316 = vlaneseq
    %v317 = vshrl.u32 %v316, 7
    %v318 = vsub.s32 2, %v317
    %v319 = vrot.slane %v75, %v318
    %v320 = vlaneseq
    %v321 = vshrl.u32 %v320, 7
    %v322 = vsub.s32 3, %v321
    %v323 = vrot.slane %v75, %v322
    %v328 = vmul.f32 %v311, %v305
    %v329 = vmul.f32 %v315, %v303
    %v330 = vmul.f32 %v319, %v301
    %v331 = vmul.f32 %v323, %v299
    %v332 = vmul.f32 %v311, %v306
    %v333 = vmul.f32 %v315, %v304
    %v334 = vmul.f32 %v319, %v302
    %v335 = vmul.f32 %v323, %v300
    %337 = vset.pattern.permute.xlu0 0
    %338 = vperm.xlu0 %337, %v86
    %v339 = vpop.permute.xlu0 %338
    %342 = vset.pattern.permute.xlu0 0
    %343 = vperm.xlu0 %342, %v87
    %v344 = vpop.permute.xlu0 %343
    %v346 = vmul.f32 %v339, %v328
    %v347 = vmul.f32 %v339, %v329
    %v348 = vmul.f32 %v339, %v330
    %v349 = vmul.f32 %v339, %v331
    %v350 = vmul.f32 %v344, %v332
    %v351 = vmul.f32 %v344, %v333
    %v352 = vmul.f32 %v344, %v334
    %v353 = vmul.f32 %v344, %v335
    %v354 = vadd.f32 %v274, %v346
    %v355 = vadd.f32 %v275, %v347
    %v356 = vadd.f32 %v276, %v348
    %v357 = vadd.f32 %v277, %v349
    %v358 = vadd.f32 %v278, %v350
    %v359 = vadd.f32 %v279, %v351
    %v360 = vadd.f32 %v280, %v352
    %v361 = vadd.f32 %v281, %v353
    %362 = vrot.lane.b32.xlu0 %v64, 1
    %v363 = vpop.permute.xlu0 %362
    %364 = vrot.lane.b32.xlu0 %v66, 1
    %v365 = vpop.permute.xlu0 %364
    %366 = vrot.lane.b32.xlu0 %v65, 1
    %v367 = vpop.permute.xlu0 %366
    %368 = vrot.lane.b32.xlu0 %v67, 1
    %v369 = vpop.permute.xlu0 %368
    %370 = vrot.lane.b32.xlu0 %v69, 1
    %v371 = vpop.permute.xlu0 %370
    %372 = vrot.lane.b32.xlu0 %v71, 1
    %v373 = vpop.permute.xlu0 %372
    %374 = vrot.lane.b32.xlu0 %v70, 1
    %v375 = vpop.permute.xlu0 %374
    %376 = vrot.lane.b32.xlu0 %v72, 1
    %v377 = vpop.permute.xlu0 %376
    %vm378 = vcmp.lt.s32.totalorder %v137, 1
    %v379 = vsel %vm378, %v371, %v375
    %v380 = vsel %vm378, %v373, %v377
    %v381 = vsel %vm378, %v367, %v371
    %v382 = vsel %vm378, %v369, %v373
    %v383 = vsel %vm378, %v363, %v367
    %v384 = vsel %vm378, %v365, %v369
    %v385 = vsel %vm378, %v375, %v363
    %v386 = vsel %vm378, %v377, %v365
    %v388 = vlaneseq
    %v389 = vshrl.u32 %v388, 7
    %v390 = vsub.s32 0, %v389
    %v391 = vrot.slane %v76, %v390
    %v392 = vlaneseq
    %v393 = vshrl.u32 %v392, 7
    %v394 = vsub.s32 1, %v393
    %v395 = vrot.slane %v76, %v394
    %v396 = vlaneseq
    %v397 = vshrl.u32 %v396, 7
    %v398 = vsub.s32 2, %v397
    %v399 = vrot.slane %v76, %v398
    %v400 = vlaneseq
    %v401 = vshrl.u32 %v400, 7
    %v402 = vsub.s32 3, %v401
    %v403 = vrot.slane %v76, %v402
    %v408 = vmul.f32 %v391, %v385
    %v409 = vmul.f32 %v395, %v383
    %v410 = vmul.f32 %v399, %v381
    %v411 = vmul.f32 %v403, %v379
    %v412 = vmul.f32 %v391, %v386
    %v413 = vmul.f32 %v395, %v384
    %v414 = vmul.f32 %v399, %v382
    %v415 = vmul.f32 %v403, %v380
    %417 = vset.pattern.permute.xlu0 0
    %418 = vperm.xlu0 %417, %v88
    %v419 = vpop.permute.xlu0 %418
    %422 = vset.pattern.permute.xlu0 0
    %423 = vperm.xlu0 %422, %v89
    %v424 = vpop.permute.xlu0 %423
    %v426 = vmul.f32 %v419, %v408
    %v427 = vmul.f32 %v419, %v409
    %v428 = vmul.f32 %v419, %v410
    %v429 = vmul.f32 %v419, %v411
    %v430 = vmul.f32 %v424, %v412
    %v431 = vmul.f32 %v424, %v413
    %v432 = vmul.f32 %v424, %v414
    %v433 = vmul.f32 %v424, %v415
    %v434 = vadd.f32 %v354, %v426
    %v435 = vadd.f32 %v355, %v427
    %v436 = vadd.f32 %v356, %v428
    %v437 = vadd.f32 %v357, %v429
    %v438 = vadd.f32 %v358, %v430
    %v439 = vadd.f32 %v359, %v431
    %v440 = vadd.f32 %v360, %v432
    %v441 = vadd.f32 %v361, %v433
    %v443 = vlaneseq
    %v444 = vshrl.u32 %v443, 7
    %v445 = vsub.s32 0, %v444
    %v446 = vrot.slane %v77, %v445
    %v447 = vlaneseq
    %v448 = vshrl.u32 %v447, 7
    %v449 = vsub.s32 1, %v448
    %v450 = vrot.slane %v77, %v449
    %v451 = vlaneseq
    %v452 = vshrl.u32 %v451, 7
    %v453 = vsub.s32 2, %v452
    %v454 = vrot.slane %v77, %v453
    %v455 = vlaneseq
    %v456 = vshrl.u32 %v455, 7
    %v457 = vsub.s32 3, %v456
    %v458 = vrot.slane %v77, %v457
    %v463 = vmul.f32 %v446, %v64
    %v464 = vmul.f32 %v450, %v65
    %v465 = vmul.f32 %v454, %v69
    %v466 = vmul.f32 %v458, %v70
    %v467 = vmul.f32 %v446, %v66
    %v468 = vmul.f32 %v450, %v67
    %v469 = vmul.f32 %v454, %v71
    %v470 = vmul.f32 %v458, %v72
    %472 = vset.pattern.permute.xlu0 0
    %473 = vperm.xlu0 %472, %v90
    %v474 = vpop.permute.xlu0 %473
    %477 = vset.pattern.permute.xlu0 0
    %478 = vperm.xlu0 %477, %v91
    %v479 = vpop.permute.xlu0 %478
    %v481 = vmul.f32 %v474, %v463
    %v482 = vmul.f32 %v474, %v464
    %v483 = vmul.f32 %v474, %v465
    %v484 = vmul.f32 %v474, %v466
    %v485 = vmul.f32 %v479, %v467
    %v486 = vmul.f32 %v479, %v468
    %v487 = vmul.f32 %v479, %v469
    %v488 = vmul.f32 %v479, %v470
    %v489 = vadd.f32 %v434, %v481
    %v490 = vadd.f32 %v435, %v482
    %v491 = vadd.f32 %v436, %v483
    %v492 = vadd.f32 %v437, %v484
    %v493 = vadd.f32 %v438, %v485
    %v494 = vadd.f32 %v439, %v486
    %v495 = vadd.f32 %v440, %v487
    %v496 = vadd.f32 %v441, %v488
    %497 = vrot.lane.b32.xlu0 %v64, 127
    %v498 = vpop.permute.xlu0 %497
    %499 = vrot.lane.b32.xlu0 %v66, 127
    %v500 = vpop.permute.xlu0 %499
    %501 = vrot.lane.b32.xlu0 %v65, 127
    %v502 = vpop.permute.xlu0 %501
    %503 = vrot.lane.b32.xlu0 %v67, 127
    %v504 = vpop.permute.xlu0 %503
    %505 = vrot.lane.b32.xlu0 %v69, 127
    %v506 = vpop.permute.xlu0 %505
    %507 = vrot.lane.b32.xlu0 %v71, 127
    %v508 = vpop.permute.xlu0 %507
    %509 = vrot.lane.b32.xlu0 %v70, 127
    %v510 = vpop.permute.xlu0 %509
    %511 = vrot.lane.b32.xlu0 %v72, 127
    %v512 = vpop.permute.xlu0 %511
    %vm513 = vcmp.lt.s32.totalorder %v137, 127
    %v514 = vsel %vm513, %v506, %v510
    %v515 = vsel %vm513, %v508, %v512
    %v516 = vsel %vm513, %v502, %v506
    %v517 = vsel %vm513, %v504, %v508
    %v518 = vsel %vm513, %v498, %v502
    %v519 = vsel %vm513, %v500, %v504
    %v520 = vsel %vm513, %v510, %v498
    %v521 = vsel %vm513, %v512, %v500
    %v523 = vlaneseq
    %v524 = vshrl.u32 %v523, 7
    %v525 = vsub.s32 0, %v524
    %v526 = vrot.slane %v78, %v525
    %v527 = vlaneseq
    %v528 = vshrl.u32 %v527, 7
    %v529 = vsub.s32 1, %v528
    %v530 = vrot.slane %v78, %v529
    %v531 = vlaneseq
    %v532 = vshrl.u32 %v531, 7
    %v533 = vsub.s32 2, %v532
    %v534 = vrot.slane %v78, %v533
    %v535 = vlaneseq
    %v536 = vshrl.u32 %v535, 7
    %v537 = vsub.s32 3, %v536
    %v538 = vrot.slane %v78, %v537
    %v543 = vmul.f32 %v526, %v518
    %v544 = vmul.f32 %v530, %v516
    %v545 = vmul.f32 %v534, %v514
    %v546 = vmul.f32 %v538, %v520
    %v547 = vmul.f32 %v526, %v519
    %v548 = vmul.f32 %v530, %v517
    %v549 = vmul.f32 %v534, %v515
    %v550 = vmul.f32 %v538, %v521
    %552 = vset.pattern.permute.xlu0 0
    %553 = vperm.xlu0 %552, %v92
    %v554 = vpop.permute.xlu0 %553
    %557 = vset.pattern.permute.xlu0 0
    %558 = vperm.xlu0 %557, %v93
    %v559 = vpop.permute.xlu0 %558
    %v561 = vmul.f32 %v554, %v543
    %v562 = vmul.f32 %v554, %v544
    %v563 = vmul.f32 %v554, %v545
    %v564 = vmul.f32 %v554, %v546
    %v565 = vmul.f32 %v559, %v547
    %v566 = vmul.f32 %v559, %v548
    %v567 = vmul.f32 %v559, %v549
    %v568 = vmul.f32 %v559, %v550
    %v569 = vadd.f32 %v489, %v561
    %v570 = vadd.f32 %v490, %v562
    %v571 = vadd.f32 %v491, %v563
    %v572 = vadd.f32 %v492, %v564
    %v573 = vadd.f32 %v493, %v565
    %v574 = vadd.f32 %v494, %v566
    %v575 = vadd.f32 %v495, %v567
    %v576 = vadd.f32 %v496, %v568
    %577 = vrot.lane.b32.xlu0 %v64, 113
    %v578 = vpop.permute.xlu0 %577
    %579 = vrot.lane.b32.xlu0 %v66, 113
    %v580 = vpop.permute.xlu0 %579
    %581 = vrot.lane.b32.xlu0 %v65, 113
    %v582 = vpop.permute.xlu0 %581
    %583 = vrot.lane.b32.xlu0 %v67, 113
    %v584 = vpop.permute.xlu0 %583
    %585 = vrot.lane.b32.xlu0 %v69, 113
    %v586 = vpop.permute.xlu0 %585
    %587 = vrot.lane.b32.xlu0 %v71, 113
    %v588 = vpop.permute.xlu0 %587
    %589 = vrot.lane.b32.xlu0 %v70, 113
    %v590 = vpop.permute.xlu0 %589
    %591 = vrot.lane.b32.xlu0 %v72, 113
    %v592 = vpop.permute.xlu0 %591
    %vm593 = vcmp.lt.s32.totalorder %v137, 113
    %v594 = vsel %vm593, %v586, %v590
    %v595 = vsel %vm593, %v588, %v592
    %v596 = vsel %vm593, %v582, %v586
    %v597 = vsel %vm593, %v584, %v588
    %v598 = vsel %vm593, %v578, %v582
    %v599 = vsel %vm593, %v580, %v584
    %v600 = vsel %vm593, %v590, %v578
    %v601 = vsel %vm593, %v592, %v580
    %v603 = vlaneseq
    %v604 = vshrl.u32 %v603, 7
    %v605 = vsub.s32 0, %v604
    %v606 = vrot.slane %v79, %v605
    %v607 = vlaneseq
    %v608 = vshrl.u32 %v607, 7
    %v609 = vsub.s32 1, %v608
    %v610 = vrot.slane %v79, %v609
    %v611 = vlaneseq
    %v612 = vshrl.u32 %v611, 7
    %v613 = vsub.s32 2, %v612
    %v614 = vrot.slane %v79, %v613
    %v615 = vlaneseq
    %v616 = vshrl.u32 %v615, 7
    %v617 = vsub.s32 3, %v616
    %v618 = vrot.slane %v79, %v617
    %v623 = vmul.f32 %v606, %v598
    %v624 = vmul.f32 %v610, %v596
    %v625 = vmul.f32 %v614, %v594
    %v626 = vmul.f32 %v618, %v600
    %v627 = vmul.f32 %v606, %v599
    %v628 = vmul.f32 %v610, %v597
    %v629 = vmul.f32 %v614, %v595
    %v630 = vmul.f32 %v618, %v601
    %632 = vset.pattern.permute.xlu0 0
    %633 = vperm.xlu0 %632, %v94
    %v634 = vpop.permute.xlu0 %633
    %637 = vset.pattern.permute.xlu0 0
    %638 = vperm.xlu0 %637, %v95
    %v639 = vpop.permute.xlu0 %638
    %v641 = vmul.f32 %v634, %v623
    %v642 = vmul.f32 %v634, %v624
    %v643 = vmul.f32 %v634, %v625
    %v644 = vmul.f32 %v634, %v626
    %v645 = vmul.f32 %v639, %v627
    %v646 = vmul.f32 %v639, %v628
    %v647 = vmul.f32 %v639, %v629
    %v648 = vmul.f32 %v639, %v630
    %v649 = vadd.f32 %v569, %v641
    %v650 = vadd.f32 %v570, %v642
    %v651 = vadd.f32 %v571, %v643
    %v652 = vadd.f32 %v572, %v644
    %v653 = vadd.f32 %v573, %v645
    %v654 = vadd.f32 %v574, %v646
    %v655 = vadd.f32 %v575, %v647
    %v656 = vadd.f32 %v576, %v648
    %657 = vrot.lane.b32.xlu0 %v64, 112
    %v658 = vpop.permute.xlu0 %657
    %659 = vrot.lane.b32.xlu0 %v66, 112
    %v660 = vpop.permute.xlu0 %659
    %661 = vrot.lane.b32.xlu0 %v65, 112
    %v662 = vpop.permute.xlu0 %661
    %663 = vrot.lane.b32.xlu0 %v67, 112
    %v664 = vpop.permute.xlu0 %663
    %665 = vrot.lane.b32.xlu0 %v69, 112
    %v666 = vpop.permute.xlu0 %665
    %667 = vrot.lane.b32.xlu0 %v71, 112
    %v668 = vpop.permute.xlu0 %667
    %669 = vrot.lane.b32.xlu0 %v70, 112
    %v670 = vpop.permute.xlu0 %669
    %671 = vrot.lane.b32.xlu0 %v72, 112
    %v672 = vpop.permute.xlu0 %671
    %vm673 = vcmp.lt.s32.totalorder %v137, 112
    %v674 = vsel %vm673, %v666, %v670
    %v675 = vsel %vm673, %v668, %v672
    %v676 = vsel %vm673, %v662, %v666
    %v677 = vsel %vm673, %v664, %v668
    %v678 = vsel %vm673, %v658, %v662
    %v679 = vsel %vm673, %v660, %v664
    %v680 = vsel %vm673, %v670, %v658
    %v681 = vsel %vm673, %v672, %v660
    %v683 = vlaneseq
    %v684 = vshrl.u32 %v683, 7
    %v685 = vsub.s32 0, %v684
    %v686 = vrot.slane %v80, %v685
    %v687 = vlaneseq
    %v688 = vshrl.u32 %v687, 7
    %v689 = vsub.s32 1, %v688
    %v690 = vrot.slane %v80, %v689
    %v691 = vlaneseq
    %v692 = vshrl.u32 %v691, 7
    %v693 = vsub.s32 2, %v692
    %v694 = vrot.slane %v80, %v693
    %v695 = vlaneseq
    %v696 = vshrl.u32 %v695, 7
    %v697 = vsub.s32 3, %v696
    %v698 = vrot.slane %v80, %v697
    %v703 = vmul.f32 %v686, %v678
    %v704 = vmul.f32 %v690, %v676
    %v705 = vmul.f32 %v694, %v674
    %v706 = vmul.f32 %v698, %v680
    %v707 = vmul.f32 %v686, %v679
    %v708 = vmul.f32 %v690, %v677
    %v709 = vmul.f32 %v694, %v675
    %v710 = vmul.f32 %v698, %v681
    %712 = vset.pattern.permute.xlu0 0
    %713 = vperm.xlu0 %712, %v96
    %v714 = vpop.permute.xlu0 %713
    %717 = vset.pattern.permute.xlu0 0
    %718 = vperm.xlu0 %717, %v97
    %v719 = vpop.permute.xlu0 %718
    %v721 = vmul.f32 %v714, %v703
    %v722 = vmul.f32 %v714, %v704
    %v723 = vmul.f32 %v714, %v705
    %v724 = vmul.f32 %v714, %v706
    %v725 = vmul.f32 %v719, %v707
    %v726 = vmul.f32 %v719, %v708
    %v727 = vmul.f32 %v719, %v709
    %v728 = vmul.f32 %v719, %v710
    %v729 = vadd.f32 %v649, %v721
    %v730 = vadd.f32 %v650, %v722
    %v731 = vadd.f32 %v651, %v723
    %v732 = vadd.f32 %v652, %v724
    %v733 = vadd.f32 %v653, %v725
    %v734 = vadd.f32 %v654, %v726
    %v735 = vadd.f32 %v655, %v727
    %v736 = vadd.f32 %v656, %v728
    %737 = vrot.lane.b32.xlu0 %v64, 111
    %v738 = vpop.permute.xlu0 %737
    %739 = vrot.lane.b32.xlu0 %v66, 111
    %v740 = vpop.permute.xlu0 %739
    %741 = vrot.lane.b32.xlu0 %v65, 111
    %v742 = vpop.permute.xlu0 %741
    %743 = vrot.lane.b32.xlu0 %v67, 111
    %v744 = vpop.permute.xlu0 %743
    %745 = vrot.lane.b32.xlu0 %v69, 111
    %v746 = vpop.permute.xlu0 %745
    %747 = vrot.lane.b32.xlu0 %v71, 111
    %v748 = vpop.permute.xlu0 %747
    %749 = vrot.lane.b32.xlu0 %v70, 111
    %v750 = vpop.permute.xlu0 %749
    %751 = vrot.lane.b32.xlu0 %v72, 111
    %v752 = vpop.permute.xlu0 %751
    %vm753 = vcmp.lt.s32.totalorder %v137, 111
    %v754 = vsel %vm753, %v746, %v750
    %v755 = vsel %vm753, %v748, %v752
    %v756 = vsel %vm753, %v742, %v746
    %v757 = vsel %vm753, %v744, %v748
    %v758 = vsel %vm753, %v738, %v742
    %v759 = vsel %vm753, %v740, %v744
    %v760 = vsel %vm753, %v750, %v738
    %v761 = vsel %vm753, %v752, %v740
    %v763 = vlaneseq
    %v764 = vshrl.u32 %v763, 7
    %v765 = vsub.s32 0, %v764
    %v766 = vrot.slane %v81, %v765
    %v767 = vlaneseq
    %v768 = vshrl.u32 %v767, 7
    %v769 = vsub.s32 1, %v768
    %v770 = vrot.slane %v81, %v769
    %v771 = vlaneseq
    %v772 = vshrl.u32 %v771, 7
    %v773 = vsub.s32 2, %v772
    %v774 = vrot.slane %v81, %v773
    %v775 = vlaneseq
    %v776 = vshrl.u32 %v775, 7
    %v777 = vsub.s32 3, %v776
    %v778 = vrot.slane %v81, %v777
    %v783 = vmul.f32 %v766, %v758
    %v784 = vmul.f32 %v770, %v756
    %v785 = vmul.f32 %v774, %v754
    %v786 = vmul.f32 %v778, %v760
    %v787 = vmul.f32 %v766, %v759
    %v788 = vmul.f32 %v770, %v757
    %v789 = vmul.f32 %v774, %v755
    %v790 = vmul.f32 %v778, %v761
    %792 = vset.pattern.permute.xlu0 0
    %793 = vperm.xlu0 %792, %v98
    %v794 = vpop.permute.xlu0 %793
    %797 = vset.pattern.permute.xlu0 0
    %798 = vperm.xlu0 %797, %v99
    %v799 = vpop.permute.xlu0 %798
    %v801 = vmul.f32 %v794, %v783
    %v802 = vmul.f32 %v794, %v784
    %v803 = vmul.f32 %v794, %v785
    %v804 = vmul.f32 %v794, %v786
    %v805 = vmul.f32 %v799, %v787
    %v806 = vmul.f32 %v799, %v788
    %v807 = vmul.f32 %v799, %v789
    %v808 = vmul.f32 %v799, %v790
    %v809 = vadd.f32 %v729, %v801
    %v810 = vadd.f32 %v730, %v802
    %v811 = vadd.f32 %v731, %v803
    %v812 = vadd.f32 %v732, %v804
    %v813 = vadd.f32 %v733, %v805
    %v814 = vadd.f32 %v734, %v806
    %v815 = vadd.f32 %v735, %v807
    %v816 = vadd.f32 %v736, %v808
    %v817 = vld [vmem:[%s1] sm:$0xff]
    %v818 = vld [vmem:[%s1 + $0x8] sm:$0xff]
    %v819 = vpack.c.bf16 %v818, %v817
    %v820 = vpack.c.bf16 %v66, %v64
    %v821 = vpack.c.bf16 %v67, %v65
    %v822 = vpack.c.bf16 %v71, %v69
    %v823 = vpack.c.bf16 %v72, %v70
    %v824 = vld [vmem:[%s2] sm:$0xff]
    %v825 = vld [vmem:[%s2 + $0x8] sm:$0xff]
    %827 = vset.pattern.permute.xlu0 0
    %828 = vperm.xlu0 %827, %v824
    %v829 = vpop.permute.xlu0 %828
    %832 = vset.pattern.permute.xlu0 0
    %833 = vperm.xlu0 %832, %v825
    %v834 = vpop.permute.xlu0 %833
    %vm836 = vcmask 130048
    %v838 = vsel %vm836, %v819, 0
    %840 = vmatprep.subr.bf16.mxu0 %v821
    %841 = vmatpush1.bf16.msra.mxu0 %v820
    %842 = vmatprep.subr.bf16.mxu0 0
    %843 = vmatpush1.bf16.msra.mxu0 0
    %844 = vmatprep.subr.bf16.mxu0 0
    %845 = vmatpush1.bf16.msra.mxu0 0
    %846 = vmatprep.subr.bf16.mxu0 0
    %847 = vmatpush1.bf16.msra.mxu0 0
    %848 = vmatprep.subr.bf16.mxu0 0
    %849 = vmatpush1.bf16.msra.mxu0 0
    %850 = vmatprep.subr.bf16.mxu0 0
    %851 = vmatpush1.bf16.msra.mxu0 0
    %852 = vmatprep.subr.bf16.mxu0 0
    %853 = vmatpush1.bf16.msra.mxu0 0
    %854 = vmatprep.subr.bf16.mxu0 0
    %855 = vmatpush1.bf16.msra.mxu0 0
    %856 = vmatprep.subr.bf16.mxu0 0
    %857 = vmatpush1.bf16.msra.mxu0 0
    %858 = vmatprep.subr.bf16.mxu0 0
    %859 = vmatpush1.bf16.msra.mxu0 0
    %860 = vmatprep.subr.bf16.mxu0 0
    %861 = vmatpush1.bf16.msra.mxu0 0
    %862 = vmatprep.subr.bf16.mxu0 0
    %863 = vmatpush1.bf16.msra.mxu0 0
    %864 = vmatprep.subr.bf16.mxu0 0
    %865 = vmatpush1.bf16.msra.mxu0 0
    %866 = vmatprep.subr.bf16.mxu0 0
    %867 = vmatpush1.bf16.msra.mxu0 0
    %868 = vmatprep.subr.bf16.mxu0 0
    %869 = vmatpush1.bf16.msra.mxu0 0
    %870 = vmatprep.subr.bf16.mxu0 0
    %871 = vmatpush1.bf16.msra.mxu0 0
    %872 = vmatprep.mubr.bf16.mxu0 0
    %873 = vmatmul.mubr.bf16.gmra.mrb[0].mxu0 %v838
    %v874 = vpop.f32.mrb[0].mxu0
    %v875 = vadd.f32 %v829, %v874
    %v876 = vpop.f32.mrb[0].mxu0
    %v877 = vadd.f32 %v829, %v876
    %v878 = vpop.f32.mrb[0].mxu0
    %v879 = vadd.f32 %v834, %v878
    %v880 = vpop.f32.mrb[0].mxu0
    %v881 = vadd.f32 %v834, %v880
    %882 = vdwg.mxu0
    %883 = vmatprep.subr.bf16.mxu0 %v823
    %884 = vmatpush1.bf16.msra.mxu0 %v822
    %885 = vmatprep.subr.bf16.mxu0 0
    %886 = vmatpush1.bf16.msra.mxu0 0
    %887 = vmatprep.subr.bf16.mxu0 0
    %888 = vmatpush1.bf16.msra.mxu0 0
    %889 = vmatprep.subr.bf16.mxu0 0
    %890 = vmatpush1.bf16.msra.mxu0 0
    %891 = vmatprep.subr.bf16.mxu0 0
    %892 = vmatpush1.bf16.msra.mxu0 0
    %893 = vmatprep.subr.bf16.mxu0 0
    %894 = vmatpush1.bf16.msra.mxu0 0
    %895 = vmatprep.subr.bf16.mxu0 0
    %896 = vmatpush1.bf16.msra.mxu0 0
    %897 = vmatprep.subr.bf16.mxu0 0
    %898 = vmatpush1.bf16.msra.mxu0 0
    %899 = vmatprep.subr.bf16.mxu0 0
    %900 = vmatpush1.bf16.msra.mxu0 0
    %901 = vmatprep.subr.bf16.mxu0 0
    %902 = vmatpush1.bf16.msra.mxu0 0
    %903 = vmatprep.subr.bf16.mxu0 0
    %904 = vmatpush1.bf16.msra.mxu0 0
    %905 = vmatprep.subr.bf16.mxu0 0
    %906 = vmatpush1.bf16.msra.mxu0 0
    %907 = vmatprep.subr.bf16.mxu0 0
    %908 = vmatpush1.bf16.msra.mxu0 0
    %909 = vmatprep.subr.bf16.mxu0 0
    %910 = vmatpush1.bf16.msra.mxu0 0
    %911 = vmatprep.subr.bf16.mxu0 0
    %912 = vmatpush1.bf16.msra.mxu0 0
    %913 = vmatprep.subr.bf16.mxu0 0
    %914 = vmatpush1.bf16.msra.mxu0 0
    %915 = vmatprep.mubr.bf16.mxu0 0
    %916 = vmatmul.mubr.bf16.gmra.mrb[0].mxu0 %v838
    %v917 = vpop.f32.mrb[0].mxu0
    %v918 = vadd.f32 %v829, %v917
    %v919 = vpop.f32.mrb[0].mxu0
    %v920 = vadd.f32 %v829, %v919
    %v921 = vpop.f32.mrb[0].mxu0
    %v922 = vadd.f32 %v834, %v921
    %v923 = vpop.f32.mrb[0].mxu0
    %v924 = vadd.f32 %v834, %v923
    %925 = vdwg.mxu0
    %v926 = vld [vmem:[%s3] sm:$0xff]
    %v927 = vld [vmem:[%s3 + $0x8] sm:$0xff]
    %v928 = vld [vmem:[%s3 + $0x10] sm:$0xff]
    %v929 = vld [vmem:[%s3 + $0x18] sm:$0xff]
    %v930 = vpack.c.bf16 %v927, %v926
    %v931 = vpack.c.bf16 %v929, %v928
    %v932 = vpack.c.bf16 %v813, %v809
    %v933 = vpack.c.bf16 %v814, %v810
    %v934 = vpack.c.bf16 %v815, %v811
    %v935 = vpack.c.bf16 %v816, %v812
    %v936 = vld [vmem:[%s4] sm:$0xff]
    %v937 = vld [vmem:[%s4 + $0x8] sm:$0xff]
    %v938 = vld [vmem:[%s4 + $0x10] sm:$0xff]
    %v939 = vld [vmem:[%s4 + $0x18] sm:$0xff]
    %941 = vset.pattern.permute.xlu0 0
    %942 = vperm.xlu0 %941, %v936
    %v943 = vpop.permute.xlu0 %942
    %946 = vset.pattern.permute.xlu0 0
    %947 = vperm.xlu0 %946, %v937
    %v948 = vpop.permute.xlu0 %947
    %951 = vset.pattern.permute.xlu0 0
    %952 = vperm.xlu0 %951, %v938
    %v953 = vpop.permute.xlu0 %952
    %956 = vset.pattern.permute.xlu0 0
    %957 = vperm.xlu0 %956, %v939
    %v958 = vpop.permute.xlu0 %957
    %v961 = vsel %vm836, %v930, 0
    %v964 = vsel %vm836, %v931, 0
    %966 = vmatprep.subr.bf16.mxu0 %v933
    %967 = vmatpush1.bf16.msra.mxu0 %v932
    %968 = vmatprep.subr.bf16.mxu0 0
    %969 = vmatpush1.bf16.msra.mxu0 0
    %970 = vmatprep.subr.bf16.mxu0 0
    %971 = vmatpush1.bf16.msra.mxu0 0
    %972 = vmatprep.subr.bf16.mxu0 0
    %973 = vmatpush1.bf16.msra.mxu0 0
    %974 = vmatprep.subr.bf16.mxu0 0
    %975 = vmatpush1.bf16.msra.mxu0 0
    %976 = vmatprep.subr.bf16.mxu0 0
    %977 = vmatpush1.bf16.msra.mxu0 0
    %978 = vmatprep.subr.bf16.mxu0 0
    %979 = vmatpush1.bf16.msra.mxu0 0
    %980 = vmatprep.subr.bf16.mxu0 0
    %981 = vmatpush1.bf16.msra.mxu0 0
    %982 = vmatprep.subr.bf16.mxu0 0
    %983 = vmatpush1.bf16.msra.mxu0 0
    %984 = vmatprep.subr.bf16.mxu0 0
    %985 = vmatpush1.bf16.msra.mxu0 0
    %986 = vmatprep.subr.bf16.mxu0 0
    %987 = vmatpush1.bf16.msra.mxu0 0
    %988 = vmatprep.subr.bf16.mxu0 0
    %989 = vmatpush1.bf16.msra.mxu0 0
    %990 = vmatprep.subr.bf16.mxu0 0
    %991 = vmatpush1.bf16.msra.mxu0 0
    %992 = vmatprep.subr.bf16.mxu0 0
    %993 = vmatpush1.bf16.msra.mxu0 0
    %994 = vmatprep.subr.bf16.mxu0 0
    %995 = vmatpush1.bf16.msra.mxu0 0
    %996 = vmatprep.subr.bf16.mxu0 0
    %997 = vmatpush1.bf16.msra.mxu0 0
    %998 = vmatprep.mubr.bf16.mxu0 0
    %999 = vmatmul.mubr.bf16.gmra.mrb[0].mxu0 %v961
    %v1000 = vpop.f32.mrb[0].mxu0
    %v1001 = vadd.f32 %v943, %v1000
    %v1002 = vpop.f32.mrb[0].mxu0
    %v1003 = vadd.f32 %v943, %v1002
    %v1004 = vpop.f32.mrb[0].mxu0
    %v1005 = vadd.f32 %v948, %v1004
    %v1006 = vpop.f32.mrb[0].mxu0
    %v1007 = vadd.f32 %v948, %v1006
    %1008 = vmatprep.mubr.bf16.mxu0 0
    %1009 = vmatmul.mubr.bf16.gmra.mrb[0].mxu0 %v964
    %v1010 = vpop.f32.mrb[0].mxu0
    %v1011 = vadd.f32 %v953, %v1010
    %v1012 = vpop.f32.mrb[0].mxu0
    %v1013 = vadd.f32 %v953, %v1012
    %v1014 = vpop.f32.mrb[0].mxu0
    %v1015 = vadd.f32 %v958, %v1014
    %v1016 = vpop.f32.mrb[0].mxu0
    %v1017 = vadd.f32 %v958, %v1016
    %1018 = vdwg.mxu0
    %1019 = vmatprep.subr.bf16.mxu0 %v935
    %1020 = vmatpush1.bf16.msra.mxu0 %v934
    %1021 = vmatprep.subr.bf16.mxu0 0
    %1022 = vmatpush1.bf16.msra.mxu0 0
    %1023 = vmatprep.subr.bf16.mxu0 0
    %1024 = vmatpush1.bf16.msra.mxu0 0
    %1025 = vmatprep.subr.bf16.mxu0 0
    %1026 = vmatpush1.bf16.msra.mxu0 0
    %1027 = vmatprep.subr.bf16.mxu0 0
    %1028 = vmatpush1.bf16.msra.mxu0 0
    %1029 = vmatprep.subr.bf16.mxu0 0
    %1030 = vmatpush1.bf16.msra.mxu0 0
    %1031 = vmatprep.subr.bf16.mxu0 0
    %1032 = vmatpush1.bf16.msra.mxu0 0
    %1033 = vmatprep.subr.bf16.mxu0 0
    %1034 = vmatpush1.bf16.msra.mxu0 0
    %1035 = vmatprep.subr.bf16.mxu0 0
    %1036 = vmatpush1.bf16.msra.mxu0 0
    %1037 = vmatprep.subr.bf16.mxu0 0
    %1038 = vmatpush1.bf16.msra.mxu0 0
    %1039 = vmatprep.subr.bf16.mxu0 0
    %1040 = vmatpush1.bf16.msra.mxu0 0
    %1041 = vmatprep.subr.bf16.mxu0 0
    %1042 = vmatpush1.bf16.msra.mxu0 0
    %1043 = vmatprep.subr.bf16.mxu0 0
    %1044 = vmatpush1.bf16.msra.mxu0 0
    %1045 = vmatprep.subr.bf16.mxu0 0
    %1046 = vmatpush1.bf16.msra.mxu0 0
    %1047 = vmatprep.subr.bf16.mxu0 0
    %1048 = vmatpush1.bf16.msra.mxu0 0
    %1049 = vmatprep.subr.bf16.mxu0 0
    %1050 = vmatpush1.bf16.msra.mxu0 0
    %1051 = vmatprep.mubr.bf16.mxu0 0
    %1052 = vmatmul.mubr.bf16.gmra.mrb[0].mxu0 %v961
    %v1053 = vpop.f32.mrb[0].mxu0
    %v1054 = vadd.f32 %v943, %v1053
    %v1055 = vpop.f32.mrb[0].mxu0
    %v1056 = vadd.f32 %v943, %v1055
    %v1057 = vpop.f32.mrb[0].mxu0
    %v1058 = vadd.f32 %v948, %v1057
    %v1059 = vpop.f32.mrb[0].mxu0
    %v1060 = vadd.f32 %v948, %v1059
    %1061 = vmatprep.mubr.bf16.mxu0 0
    %1062 = vmatmul.mubr.bf16.gmra.mrb[0].mxu0 %v964
    %v1063 = vpop.f32.mrb[0].mxu0
    %v1064 = vadd.f32 %v953, %v1063
    %v1065 = vpop.f32.mrb[0].mxu0
    %v1066 = vadd.f32 %v953, %v1065
    %v1067 = vpop.f32.mrb[0].mxu0
    %v1068 = vadd.f32 %v958, %v1067
    %v1069 = vpop.f32.mrb[0].mxu0
    %v1070 = vadd.f32 %v958, %v1069
    %1071 = vdwg.mxu0
    %v1072 = vpack.c.bf16 %v879, %v875
    %v1073 = vpack.c.bf16 %v881, %v877
    %v1074 = vpack.c.bf16 %v1005, %v1001
    %v1075 = vpack.c.bf16 %v1007, %v1003
    %1076 = vxpose.xlu0.c.b16.start [1/8] %v1072, 128
    %1077 = vxpose.xlu0.c.b16.cont [2/8] 0, 128
    %1078 = vxpose.xlu0.c.b16.cont [3/8] 0, 128
    %1079 = vxpose.xlu0.c.b16.cont [4/8] 0, 128
    %1080 = vxpose.xlu0.c.b16.cont [5/8] 0, 128
    %1081 = vxpose.xlu0.c.b16.cont [6/8] 0, 128
    %1082 = vxpose.xlu0.c.b16.cont [7/8] 0, 128
    %1083 = vxpose.xlu0.c.b16.end [8/8] 0, 128
    %v1084 = vpop.trf.xlu0
    %v1085 = vpop.trf.xlu0
    %v1086 = vpop.trf.xlu0
    %v1087 = vpop.trf.xlu0
    %v1088 = vpop.trf.xlu0
    %v1089 = vpop.trf.xlu0
    %v1090 = vpop.trf.xlu0
    %v1091 = vpop.trf.xlu0
    %1092 = vxpose.xlu0.c.b16.start [1/8] %v1073, 128
    %1093 = vxpose.xlu0.c.b16.cont [2/8] 0, 128
    %1094 = vxpose.xlu0.c.b16.cont [3/8] 0, 128
    %1095 = vxpose.xlu0.c.b16.cont [4/8] 0, 128
    %1096 = vxpose.xlu0.c.b16.cont [5/8] 0, 128
    %1097 = vxpose.xlu0.c.b16.cont [6/8] 0, 128
    %1098 = vxpose.xlu0.c.b16.cont [7/8] 0, 128
    %1099 = vxpose.xlu0.c.b16.end [8/8] 0, 128
    %v1100 = vpop.trf.xlu0
    %v1101 = vpop.trf.xlu0
    %v1102 = vpop.trf.xlu0
    %v1103 = vpop.trf.xlu0
    %v1104 = vpop.trf.xlu0
    %v1105 = vpop.trf.xlu0
    %v1106 = vpop.trf.xlu0
    %v1107 = vpop.trf.xlu0
    %v1109 = vsel %vm836, %v1084, 0
    %v1112 = vsel %vm836, %v1085, 0
    %v1115 = vsel %vm836, %v1086, 0
    %v1118 = vsel %vm836, %v1087, 0
    %v1121 = vsel %vm836, %v1088, 0
    %v1124 = vsel %vm836, %v1089, 0
    %v1127 = vsel %vm836, %v1090, 0
    %v1130 = vsel %vm836, %v1091, 0
    %v1133 = vsel %vm836, %v1100, 0
    %v1136 = vsel %vm836, %v1101, 0
    %v1139 = vsel %vm836, %v1102, 0
    %v1142 = vsel %vm836, %v1103, 0
    %v1145 = vsel %vm836, %v1104, 0
    %v1148 = vsel %vm836, %v1105, 0
    %v1151 = vsel %vm836, %v1106, 0
    %v1154 = vsel %vm836, %v1107, 0
    %1156 = vmatprep.subr.bf16.mxu0 %v1075
    %1157 = vmatpush1.bf16.msra.mxu0 %v1074
    %1158 = vmatprep.subr.bf16.mxu0 0
    %1159 = vmatpush1.bf16.msra.mxu0 0
    %1160 = vmatprep.subr.bf16.mxu0 0
    %1161 = vmatpush1.bf16.msra.mxu0 0
    %1162 = vmatprep.subr.bf16.mxu0 0
    %1163 = vmatpush1.bf16.msra.mxu0 0
    %1164 = vmatprep.subr.bf16.mxu0 0
    %1165 = vmatpush1.bf16.msra.mxu0 0
    %1166 = vmatprep.subr.bf16.mxu0 0
    %1167 = vmatpush1.bf16.msra.mxu0 0
    %1168 = vmatprep.subr.bf16.mxu0 0
    %1169 = vmatpush1.bf16.msra.mxu0 0
    %1170 = vmatprep.subr.bf16.mxu0 0
    %1171 = vmatpush1.bf16.msra.mxu0 0
    %1172 = vmatprep.subr.bf16.mxu0 0
    %1173 = vmatpush1.bf16.msra.mxu0 0
    %1174 = vmatprep.subr.bf16.mxu0 0
    %1175 = vmatpush1.bf16.msra.mxu0 0
    %1176 = vmatprep.subr.bf16.mxu0 0
    %1177 = vmatpush1.bf16.msra.mxu0 0
    %1178 = vmatprep.subr.bf16.mxu0 0
    %1179 = vmatpush1.bf16.msra.mxu0 0
    %1180 = vmatprep.subr.bf16.mxu0 0
    %1181 = vmatpush1.bf16.msra.mxu0 0
    %1182 = vmatprep.subr.bf16.mxu0 0
    %1183 = vmatpush1.bf16.msra.mxu0 0
    %1184 = vmatprep.subr.bf16.mxu0 0
    %1185 = vmatpush1.bf16.msra.mxu0 0
    %1186 = vmatprep.subr.bf16.mxu0 0
    %1187 = vmatpush1.bf16.msra.mxu0 0
    %1188 = vmatprep.mubr.bf16.mxu0 0
    %1189 = vmatmul.mubr.bf16.gmra.mrb[0].mxu0 %v1109
    %v1190 = vpop.f32.mrb[0].mxu0
    %v1191 = vadd.f32 0.0, %v1190
    %v1192 = vpop.f32.mrb[0].mxu0
    %v1193 = vadd.f32 0.0, %v1192
    %v1194 = vpop.f32.mrb[0].mxu0
    %v1195 = vadd.f32 0.0, %v1194
    %v1196 = vpop.f32.mrb[0].mxu0
    %v1197 = vadd.f32 0.0, %v1196
    %1198 = vmatprep.mubr.bf16.mxu0 0
    %1199 = vmatmul.mubr.bf16.gmra.mrb[0].mxu0 %v1112
    %v1200 = vpop.f32.mrb[0].mxu0
    %v1201 = vadd.f32 0.0, %v1200
    %v1202 = vpop.f32.mrb[0].mxu0
    %v1203 = vadd.f32 0.0, %v1202
    %v1204 = vpop.f32.mrb[0].mxu0
    %v1205 = vadd.f32 0.0, %v1204
    %v1206 = vpop.f32.mrb[0].mxu0
    %v1207 = vadd.f32 0.0, %v1206
    %1208 = vmatprep.mubr.bf16.mxu0 0
    %1209 = vmatmul.mubr.bf16.gmra.mrb[0].mxu0 %v1115
    %v1210 = vpop.f32.mrb[0].mxu0
    %v1211 = vadd.f32 0.0, %v1210
    %v1212 = vpop.f32.mrb[0].mxu0
    %v1213 = vadd.f32 0.0, %v1212
    %v1214 = vpop.f32.mrb[0].mxu0
    %v1215 = vadd.f32 0.0, %v1214
    %v1216 = vpop.f32.mrb[0].mxu0
    %v1217 = vadd.f32 0.0, %v1216
    %1218 = vmatprep.mubr.bf16.mxu0 0
    %1219 = vmatmul.mubr.bf16.gmra.mrb[0].mxu0 %v1118
    %v1220 = vpop.f32.mrb[0].mxu0
    %v1221 = vadd.f32 0.0, %v1220
    %v1222 = vpop.f32.mrb[0].mxu0
    %v1223 = vadd.f32 0.0, %v1222
    %v1224 = vpop.f32.mrb[0].mxu0
    %v1225 = vadd.f32 0.0, %v1224
    %v1226 = vpop.f32.mrb[0].mxu0
    %v1227 = vadd.f32 0.0, %v1226
    %1228 = vmatprep.mubr.bf16.mxu0 0
    %1229 = vmatmul.mubr.bf16.gmra.mrb[0].mxu0 %v1121
    %v1230 = vpop.f32.mrb[0].mxu0
    %v1231 = vadd.f32 0.0, %v1230
    %v1232 = vpop.f32.mrb[0].mxu0
    %v1233 = vadd.f32 0.0, %v1232
    %v1234 = vpop.f32.mrb[0].mxu0
    %v1235 = vadd.f32 0.0, %v1234
    %v1236 = vpop.f32.mrb[0].mxu0
    %v1237 = vadd.f32 0.0, %v1236
    %1238 = vmatprep.mubr.bf16.mxu0 0
    %1239 = vmatmul.mubr.bf16.gmra.mrb[0].mxu0 %v1124
    %v1240 = vpop.f32.mrb[0].mxu0
    %v1241 = vadd.f32 0.0, %v1240
    %v1242 = vpop.f32.mrb[0].mxu0
    %v1243 = vadd.f32 0.0, %v1242
    %v1244 = vpop.f32.mrb[0].mxu0
    %v1245 = vadd.f32 0.0, %v1244
    %v1246 = vpop.f32.mrb[0].mxu0
    %v1247 = vadd.f32 0.0, %v1246
    %1248 = vmatprep.mubr.bf16.mxu0 0
    %1249 = vmatmul.mubr.bf16.gmra.mrb[0].mxu0 %v1127
    %v1250 = vpop.f32.mrb[0].mxu0
    %v1251 = vadd.f32 0.0, %v1250
    %v1252 = vpop.f32.mrb[0].mxu0
    %v1253 = vadd.f32 0.0, %v1252
    %v1254 = vpop.f32.mrb[0].mxu0
    %v1255 = vadd.f32 0.0, %v1254
    %v1256 = vpop.f32.mrb[0].mxu0
    %v1257 = vadd.f32 0.0, %v1256
    %1258 = vmatprep.mubr.bf16.mxu0 0
    %1259 = vmatmul.mubr.bf16.gmra.mrb[0].mxu0 %v1130
    %v1260 = vpop.f32.mrb[0].mxu0
    %v1261 = vadd.f32 0.0, %v1260
    %v1262 = vpop.f32.mrb[0].mxu0
    %v1263 = vadd.f32 0.0, %v1262
    %v1264 = vpop.f32.mrb[0].mxu0
    %v1265 = vadd.f32 0.0, %v1264
    %v1266 = vpop.f32.mrb[0].mxu0
    %v1267 = vadd.f32 0.0, %v1266
    %1268 = vmatprep.mubr.bf16.mxu0 0
    %1269 = vmatmul.mubr.bf16.gmra.mrb[0].mxu0 %v1133
    %v1270 = vpop.f32.mrb[0].mxu0
    %v1271 = vadd.f32 0.0, %v1270
    %v1272 = vpop.f32.mrb[0].mxu0
    %v1273 = vadd.f32 0.0, %v1272
    %v1274 = vpop.f32.mrb[0].mxu0
    %v1275 = vadd.f32 0.0, %v1274
    %v1276 = vpop.f32.mrb[0].mxu0
    %v1277 = vadd.f32 0.0, %v1276
    %1278 = vmatprep.mubr.bf16.mxu0 0
    %1279 = vmatmul.mubr.bf16.gmra.mrb[0].mxu0 %v1136
    %v1280 = vpop.f32.mrb[0].mxu0
    %v1281 = vadd.f32 0.0, %v1280
    %v1282 = vpop.f32.mrb[0].mxu0
    %v1283 = vadd.f32 0.0, %v1282
    %v1284 = vpop.f32.mrb[0].mxu0
    %v1285 = vadd.f32 0.0, %v1284
    %v1286 = vpop.f32.mrb[0].mxu0
    %v1287 = vadd.f32 0.0, %v1286
    %1288 = vmatprep.mubr.bf16.mxu0 0
    %1289 = vmatmul.mubr.bf16.gmra.mrb[0].mxu0 %v1139
    %v1290 = vpop.f32.mrb[0].mxu0
    %v1291 = vadd.f32 0.0, %v1290
    %v1292 = vpop.f32.mrb[0].mxu0
    %v1293 = vadd.f32 0.0, %v1292
    %v1294 = vpop.f32.mrb[0].mxu0
    %v1295 = vadd.f32 0.0, %v1294
    %v1296 = vpop.f32.mrb[0].mxu0
    %v1297 = vadd.f32 0.0, %v1296
    %1298 = vmatprep.mubr.bf16.mxu0 0
    %1299 = vmatmul.mubr.bf16.gmra.mrb[0].mxu0 %v1142
    %v1300 = vpop.f32.mrb[0].mxu0
    %v1301 = vadd.f32 0.0, %v1300
    %v1302 = vpop.f32.mrb[0].mxu0
    %v1303 = vadd.f32 0.0, %v1302
    %v1304 = vpop.f32.mrb[0].mxu0
    %v1305 = vadd.f32 0.0, %v1304
    %v1306 = vpop.f32.mrb[0].mxu0
    %v1307 = vadd.f32 0.0, %v1306
    %1308 = vmatprep.mubr.bf16.mxu0 0
    %1309 = vmatmul.mubr.bf16.gmra.mrb[0].mxu0 %v1145
    %v1310 = vpop.f32.mrb[0].mxu0
    %v1311 = vadd.f32 0.0, %v1310
    %v1312 = vpop.f32.mrb[0].mxu0
    %v1313 = vadd.f32 0.0, %v1312
    %v1314 = vpop.f32.mrb[0].mxu0
    %v1315 = vadd.f32 0.0, %v1314
    %v1316 = vpop.f32.mrb[0].mxu0
    %v1317 = vadd.f32 0.0, %v1316
    %1318 = vmatprep.mubr.bf16.mxu0 0
    %1319 = vmatmul.mubr.bf16.gmra.mrb[0].mxu0 %v1148
    %v1320 = vpop.f32.mrb[0].mxu0
    %v1321 = vadd.f32 0.0, %v1320
    %v1322 = vpop.f32.mrb[0].mxu0
    %v1323 = vadd.f32 0.0, %v1322
    %v1324 = vpop.f32.mrb[0].mxu0
    %v1325 = vadd.f32 0.0, %v1324
    %v1326 = vpop.f32.mrb[0].mxu0
    %v1327 = vadd.f32 0.0, %v1326
    %1328 = vmatprep.mubr.bf16.mxu0 0
    %1329 = vmatmul.mubr.bf16.gmra.mrb[0].mxu0 %v1151
    %v1330 = vpop.f32.mrb[0].mxu0
    %v1331 = vadd.f32 0.0, %v1330
    %v1332 = vpop.f32.mrb[0].mxu0
    %v1333 = vadd.f32 0.0, %v1332
    %v1334 = vpop.f32.mrb[0].mxu0
    %v1335 = vadd.f32 0.0, %v1334
    %v1336 = vpop.f32.mrb[0].mxu0
    %v1337 = vadd.f32 0.0, %v1336
    %1338 = vmatprep.mubr.bf16.mxu0 0
    %1339 = vmatmul.mubr.bf16.gmra.mrb[0].mxu0 %v1154
    %v1340 = vpop.f32.mrb[0].mxu0
    %v1341 = vadd.f32 0.0, %v1340
    %v1342 = vpop.f32.mrb[0].mxu0
    %v1343 = vadd.f32 0.0, %v1342
    %v1344 = vpop.f32.mrb[0].mxu0
    %v1345 = vadd.f32 0.0, %v1344
    %v1346 = vpop.f32.mrb[0].mxu0
    %v1347 = vadd.f32 0.0, %v1346
    %1348 = vdwg.mxu0
    %v1349 = vmul.f32 %v1191, 0.25
    %v1350 = vmul.f32 %v1193, 0.25
    %v1351 = vmul.f32 %v1195, 0.25
    %v1352 = vmul.f32 %v1197, 0.25
    %v1353 = vmul.f32 %v1201, 0.25
    %v1354 = vmul.f32 %v1203, 0.25
    %v1355 = vmul.f32 %v1205, 0.25
    %v1356 = vmul.f32 %v1207, 0.25
    %v1357 = vmul.f32 %v1211, 0.25
    %v1358 = vmul.f32 %v1213, 0.25
    %v1359 = vmul.f32 %v1215, 0.25
    %v1360 = vmul.f32 %v1217, 0.25
    %v1361 = vmul.f32 %v1221, 0.25
    %v1362 = vmul.f32 %v1223, 0.25
    %v1363 = vmul.f32 %v1225, 0.25
    %v1364 = vmul.f32 %v1227, 0.25
    %v1365 = vmul.f32 %v1231, 0.25
    %v1366 = vmul.f32 %v1233, 0.25
    %v1367 = vmul.f32 %v1235, 0.25
    %v1368 = vmul.f32 %v1237, 0.25
    %v1369 = vmul.f32 %v1241, 0.25
    %v1370 = vmul.f32 %v1243, 0.25
    %v1371 = vmul.f32 %v1245, 0.25
    %v1372 = vmul.f32 %v1247, 0.25
    %v1373 = vmul.f32 %v1251, 0.25
    %v1374 = vmul.f32 %v1253, 0.25
    %v1375 = vmul.f32 %v1255, 0.25
    %v1376 = vmul.f32 %v1257, 0.25
    %v1377 = vmul.f32 %v1261, 0.25
    %v1378 = vmul.f32 %v1263, 0.25
    %v1379 = vmul.f32 %v1265, 0.25
    %v1380 = vmul.f32 %v1267, 0.25
    %v1381 = vmul.f32 %v1271, 0.25
    %v1382 = vmul.f32 %v1273, 0.25
    %v1383 = vmul.f32 %v1275, 0.25
    %v1384 = vmul.f32 %v1277, 0.25
    %v1385 = vmul.f32 %v1281, 0.25
    %v1386 = vmul.f32 %v1283, 0.25
    %v1387 = vmul.f32 %v1285, 0.25
    %v1388 = vmul.f32 %v1287, 0.25
    %v1389 = vmul.f32 %v1291, 0.25
    %v1390 = vmul.f32 %v1293, 0.25
    %v1391 = vmul.f32 %v1295, 0.25
    %v1392 = vmul.f32 %v1297, 0.25
    %v1393 = vmul.f32 %v1301, 0.25
    %v1394 = vmul.f32 %v1303, 0.25
    %v1395 = vmul.f32 %v1305, 0.25
    %v1396 = vmul.f32 %v1307, 0.25
    %v1397 = vmul.f32 %v1311, 0.25
    %v1398 = vmul.f32 %v1313, 0.25
    %v1399 = vmul.f32 %v1315, 0.25
    %v1400 = vmul.f32 %v1317, 0.25
    %v1401 = vmul.f32 %v1321, 0.25
    %v1402 = vmul.f32 %v1323, 0.25
    %v1403 = vmul.f32 %v1325, 0.25
    %v1404 = vmul.f32 %v1327, 0.25
    %v1405 = vmul.f32 %v1331, 0.25
    %v1406 = vmul.f32 %v1333, 0.25
    %v1407 = vmul.f32 %v1335, 0.25
    %v1408 = vmul.f32 %v1337, 0.25
    %v1409 = vmul.f32 %v1341, 0.25
    %v1410 = vmul.f32 %v1343, 0.25
    %v1411 = vmul.f32 %v1345, 0.25
    %v1412 = vmul.f32 %v1347, 0.25
    %v1413 = vmax.f32 %v1349, %v1350
    %1414 = vmax.xlane.f32.xlu0 %v1413
    %v1415 = vpop.xlane.xlu0 %1414
    %v1416 = vmax.f32 %v1351, %v1352
    %1417 = vmax.xlane.f32.xlu0 %v1416
    %v1418 = vpop.xlane.xlu0 %1417
    %v1419 = vmax.f32 %v1353, %v1354
    %1420 = vmax.xlane.f32.xlu0 %v1419
    %v1421 = vpop.xlane.xlu0 %1420
    %v1422 = vmax.f32 %v1355, %v1356
    %1423 = vmax.xlane.f32.xlu0 %v1422
    %v1424 = vpop.xlane.xlu0 %1423
    %v1425 = vmax.f32 %v1357, %v1358
    %1426 = vmax.xlane.f32.xlu0 %v1425
    %v1427 = vpop.xlane.xlu0 %1426
    %v1428 = vmax.f32 %v1359, %v1360
    %1429 = vmax.xlane.f32.xlu0 %v1428
    %v1430 = vpop.xlane.xlu0 %1429
    %v1431 = vmax.f32 %v1361, %v1362
    %1432 = vmax.xlane.f32.xlu0 %v1431
    %v1433 = vpop.xlane.xlu0 %1432
    %v1434 = vmax.f32 %v1363, %v1364
    %1435 = vmax.xlane.f32.xlu0 %v1434
    %v1436 = vpop.xlane.xlu0 %1435
    %v1437 = vmax.f32 %v1365, %v1366
    %1438 = vmax.xlane.f32.xlu0 %v1437
    %v1439 = vpop.xlane.xlu0 %1438
    %v1440 = vmax.f32 %v1367, %v1368
    %1441 = vmax.xlane.f32.xlu0 %v1440
    %v1442 = vpop.xlane.xlu0 %1441
    %v1443 = vmax.f32 %v1369, %v1370
    %1444 = vmax.xlane.f32.xlu0 %v1443
    %v1445 = vpop.xlane.xlu0 %1444
    %v1446 = vmax.f32 %v1371, %v1372
    %1447 = vmax.xlane.f32.xlu0 %v1446
    %v1448 = vpop.xlane.xlu0 %1447
    %v1449 = vmax.f32 %v1373, %v1374
    %1450 = vmax.xlane.f32.xlu0 %v1449
    %v1451 = vpop.xlane.xlu0 %1450
    %v1452 = vmax.f32 %v1375, %v1376
    %1453 = vmax.xlane.f32.xlu0 %v1452
    %v1454 = vpop.xlane.xlu0 %1453
    %v1455 = vmax.f32 %v1377, %v1378
    %1456 = vmax.xlane.f32.xlu0 %v1455
    %v1457 = vpop.xlane.xlu0 %1456
    %v1458 = vmax.f32 %v1379, %v1380
    %1459 = vmax.xlane.f32.xlu0 %v1458
    %v1460 = vpop.xlane.xlu0 %1459
    %v1461 = vmax.f32 %v1381, %v1382
    %1462 = vmax.xlane.f32.xlu0 %v1461
    %v1463 = vpop.xlane.xlu0 %1462
    %v1464 = vmax.f32 %v1383, %v1384
    %1465 = vmax.xlane.f32.xlu0 %v1464
    %v1466 = vpop.xlane.xlu0 %1465
    %v1467 = vmax.f32 %v1385, %v1386
    %1468 = vmax.xlane.f32.xlu0 %v1467
    %v1469 = vpop.xlane.xlu0 %1468
    %v1470 = vmax.f32 %v1387, %v1388
    %1471 = vmax.xlane.f32.xlu0 %v1470
    %v1472 = vpop.xlane.xlu0 %1471
    %v1473 = vmax.f32 %v1389, %v1390
    %1474 = vmax.xlane.f32.xlu0 %v1473
    %v1475 = vpop.xlane.xlu0 %1474
    %v1476 = vmax.f32 %v1391, %v1392
    %1477 = vmax.xlane.f32.xlu0 %v1476
    %v1478 = vpop.xlane.xlu0 %1477
    %v1479 = vmax.f32 %v1393, %v1394
    %1480 = vmax.xlane.f32.xlu0 %v1479
    %v1481 = vpop.xlane.xlu0 %1480
    %v1482 = vmax.f32 %v1395, %v1396
    %1483 = vmax.xlane.f32.xlu0 %v1482
    %v1484 = vpop.xlane.xlu0 %1483
    %v1485 = vmax.f32 %v1397, %v1398
    %1486 = vmax.xlane.f32.xlu0 %v1485
    %v1487 = vpop.xlane.xlu0 %1486
    %v1488 = vmax.f32 %v1399, %v1400
    %1489 = vmax.xlane.f32.xlu0 %v1488
    %v1490 = vpop.xlane.xlu0 %1489
    %v1491 = vmax.f32 %v1401, %v1402
    %1492 = vmax.xlane.f32.xlu0 %v1491
    %v1493 = vpop.xlane.xlu0 %1492
    %v1494 = vmax.f32 %v1403, %v1404
    %1495 = vmax.xlane.f32.xlu0 %v1494
    %v1496 = vpop.xlane.xlu0 %1495
    %v1497 = vmax.f32 %v1405, %v1406
    %1498 = vmax.xlane.f32.xlu0 %v1497
    %v1499 = vpop.xlane.xlu0 %1498
    %v1500 = vmax.f32 %v1407, %v1408
    %1501 = vmax.xlane.f32.xlu0 %v1500
    %v1502 = vpop.xlane.xlu0 %1501
    %v1503 = vmax.f32 %v1409, %v1410
    %1504 = vmax.xlane.f32.xlu0 %v1503
    %v1505 = vpop.xlane.xlu0 %1504
    %v1506 = vmax.f32 %v1411, %v1412
    %1507 = vmax.xlane.f32.xlu0 %v1506
    %v1508 = vpop.xlane.xlu0 %1507
    %v1509 = vsub.f32 %v1349, %v1415
    %v1510 = vsub.f32 %v1350, %v1415
    %v1511 = vsub.f32 %v1351, %v1418
    %v1512 = vsub.f32 %v1352, %v1418
    %v1513 = vsub.f32 %v1353, %v1421
    %v1514 = vsub.f32 %v1354, %v1421
    %v1515 = vsub.f32 %v1355, %v1424
    %v1516 = vsub.f32 %v1356, %v1424
    %v1517 = vsub.f32 %v1357, %v1427
    %v1518 = vsub.f32 %v1358, %v1427
    %v1519 = vsub.f32 %v1359, %v1430
    %v1520 = vsub.f32 %v1360, %v1430
    %v1521 = vsub.f32 %v1361, %v1433
    %v1522 = vsub.f32 %v1362, %v1433
    %v1523 = vsub.f32 %v1363, %v1436
    %v1524 = vsub.f32 %v1364, %v1436
    %v1525 = vsub.f32 %v1365, %v1439
    %v1526 = vsub.f32 %v1366, %v1439
    %v1527 = vsub.f32 %v1367, %v1442
    %v1528 = vsub.f32 %v1368, %v1442
    %v1529 = vsub.f32 %v1369, %v1445
    %v1530 = vsub.f32 %v1370, %v1445
    %v1531 = vsub.f32 %v1371, %v1448
    %v1532 = vsub.f32 %v1372, %v1448
    %v1533 = vsub.f32 %v1373, %v1451
    %v1534 = vsub.f32 %v1374, %v1451
    %v1535 = vsub.f32 %v1375, %v1454
    %v1536 = vsub.f32 %v1376, %v1454
    %v1537 = vsub.f32 %v1377, %v1457
    %v1538 = vsub.f32 %v1378, %v1457
    %v1539 = vsub.f32 %v1379, %v1460
    %v1540 = vsub.f32 %v1380, %v1460
    %v1541 = vsub.f32 %v1381, %v1463
    %v1542 = vsub.f32 %v1382, %v1463
    %v1543 = vsub.f32 %v1383, %v1466
    %v1544 = vsub.f32 %v1384, %v1466
    %v1545 = vsub.f32 %v1385, %v1469
    %v1546 = vsub.f32 %v1386, %v1469
    %v1547 = vsub.f32 %v1387, %v1472
    %v1548 = vsub.f32 %v1388, %v1472
    %v1549 = vsub.f32 %v1389, %v1475
    %v1550 = vsub.f32 %v1390, %v1475
    %v1551 = vsub.f32 %v1391, %v1478
    %v1552 = vsub.f32 %v1392, %v1478
    %v1553 = vsub.f32 %v1393, %v1481
    %v1554 = vsub.f32 %v1394, %v1481
    %v1555 = vsub.f32 %v1395, %v1484
    %v1556 = vsub.f32 %v1396, %v1484
    %v1557 = vsub.f32 %v1397, %v1487
    %v1558 = vsub.f32 %v1398, %v1487
    %v1559 = vsub.f32 %v1399, %v1490
    %v1560 = vsub.f32 %v1400, %v1490
    %v1561 = vsub.f32 %v1401, %v1493
    %v1562 = vsub.f32 %v1402, %v1493
    %v1563 = vsub.f32 %v1403, %v1496
    %v1564 = vsub.f32 %v1404, %v1496
    %v1565 = vsub.f32 %v1405, %v1499
    %v1566 = vsub.f32 %v1406, %v1499
    %v1567 = vsub.f32 %v1407, %v1502
    %v1568 = vsub.f32 %v1408, %v1502
    %v1569 = vsub.f32 %v1409, %v1505
    %v1570 = vsub.f32 %v1410, %v1505
    %v1571 = vsub.f32 %v1411, %v1508
    %v1572 = vsub.f32 %v1412, %v1508
    %v1573 = vmul.f32 %v1509, 1.442695
    %v1574 = vpow.pop %v1573
    %v1575 = vmul.f32 %v1510, 1.442695
    %v1576 = vpow.pop %v1575
    %v1577 = vmul.f32 %v1511, 1.442695
    %v1578 = vpow.pop %v1577
    %v1579 = vmul.f32 %v1512, 1.442695
    %v1580 = vpow.pop %v1579
    %v1581 = vmul.f32 %v1513, 1.442695
    %v1582 = vpow.pop %v1581
    %v1583 = vmul.f32 %v1514, 1.442695
    %v1584 = vpow.pop %v1583
    %v1585 = vmul.f32 %v1515, 1.442695
    %v1586 = vpow.pop %v1585
    %v1587 = vmul.f32 %v1516, 1.442695
    %v1588 = vpow.pop %v1587
    %v1589 = vmul.f32 %v1517, 1.442695
    %v1590 = vpow.pop %v1589
    %v1591 = vmul.f32 %v1518, 1.442695
    %v1592 = vpow.pop %v1591
    %v1593 = vmul.f32 %v1519, 1.442695
    %v1594 = vpow.pop %v1593
    %v1595 = vmul.f32 %v1520, 1.442695
    %v1596 = vpow.pop %v1595
    %v1597 = vmul.f32 %v1521, 1.442695
    %v1598 = vpow.pop %v1597
    %v1599 = vmul.f32 %v1522, 1.442695
    %v1600 = vpow.pop %v1599
    %v1601 = vmul.f32 %v1523, 1.442695
    %v1602 = vpow.pop %v1601
    %v1603 = vmul.f32 %v1524, 1.442695
    %v1604 = vpow.pop %v1603
    %v1605 = vmul.f32 %v1525, 1.442695
    %v1606 = vpow.pop %v1605
    %v1607 = vmul.f32 %v1526, 1.442695
    %v1608 = vpow.pop %v1607
    %v1609 = vmul.f32 %v1527, 1.442695
    %v1610 = vpow.pop %v1609
    %v1611 = vmul.f32 %v1528, 1.442695
    %v1612 = vpow.pop %v1611
    %v1613 = vmul.f32 %v1529, 1.442695
    %v1614 = vpow.pop %v1613
    %v1615 = vmul.f32 %v1530, 1.442695
    %v1616 = vpow.pop %v1615
    %v1617 = vmul.f32 %v1531, 1.442695
    %v1618 = vpow.pop %v1617
    %v1619 = vmul.f32 %v1532, 1.442695
    %v1620 = vpow.pop %v1619
    %v1621 = vmul.f32 %v1533, 1.442695
    %v1622 = vpow.pop %v1621
    %v1623 = vmul.f32 %v1534, 1.442695
    %v1624 = vpow.pop %v1623
    %v1625 = vmul.f32 %v1535, 1.442695
    %v1626 = vpow.pop %v1625
    %v1627 = vmul.f32 %v1536, 1.442695
    %v1628 = vpow.pop %v1627
    %v1629 = vmul.f32 %v1537, 1.442695
    %v1630 = vpow.pop %v1629
    %v1631 = vmul.f32 %v1538, 1.442695
    %v1632 = vpow.pop %v1631
    %v1633 = vmul.f32 %v1539, 1.442695
    %v1634 = vpow.pop %v1633
    %v1635 = vmul.f32 %v1540, 1.442695
    %v1636 = vpow.pop %v1635
    %v1637 = vmul.f32 %v1541, 1.442695
    %v1638 = vpow.pop %v1637
    %v1639 = vmul.f32 %v1542, 1.442695
    %v1640 = vpow.pop %v1639
    %v1641 = vmul.f32 %v1543, 1.442695
    %v1642 = vpow.pop %v1641
    %v1643 = vmul.f32 %v1544, 1.442695
    %v1644 = vpow.pop %v1643
    %v1645 = vmul.f32 %v1545, 1.442695
    %v1646 = vpow.pop %v1645
    %v1647 = vmul.f32 %v1546, 1.442695
    %v1648 = vpow.pop %v1647
    %v1649 = vmul.f32 %v1547, 1.442695
    %v1650 = vpow.pop %v1649
    %v1651 = vmul.f32 %v1548, 1.442695
    %v1652 = vpow.pop %v1651
    %v1653 = vmul.f32 %v1549, 1.442695
    %v1654 = vpow.pop %v1653
    %v1655 = vmul.f32 %v1550, 1.442695
    %v1656 = vpow.pop %v1655
    %v1657 = vmul.f32 %v1551, 1.442695
    %v1658 = vpow.pop %v1657
    %v1659 = vmul.f32 %v1552, 1.442695
    %v1660 = vpow.pop %v1659
    %v1661 = vmul.f32 %v1553, 1.442695
    %v1662 = vpow.pop %v1661
    %v1663 = vmul.f32 %v1554, 1.442695
    %v1664 = vpow.pop %v1663
    %v1665 = vmul.f32 %v1555, 1.442695
    %v1666 = vpow.pop %v1665
    %v1667 = vmul.f32 %v1556, 1.442695
    %v1668 = vpow.pop %v1667
    %v1669 = vmul.f32 %v1557, 1.442695
    %v1670 = vpow.pop %v1669
    %v1671 = vmul.f32 %v1558, 1.442695
    %v1672 = vpow.pop %v1671
    %v1673 = vmul.f32 %v1559, 1.442695
    %v1674 = vpow.pop %v1673
    %v1675 = vmul.f32 %v1560, 1.442695
    %v1676 = vpow.pop %v1675
    %v1677 = vmul.f32 %v1561, 1.442695
    %v1678 = vpow.pop %v1677
    %v1679 = vmul.f32 %v1562, 1.442695
    %v1680 = vpow.pop %v1679
    %v1681 = vmul.f32 %v1563, 1.442695
    %v1682 = vpow.pop %v1681
    %v1683 = vmul.f32 %v1564, 1.442695
    %v1684 = vpow.pop %v1683
    %v1685 = vmul.f32 %v1565, 1.442695
    %v1686 = vpow.pop %v1685
    %v1687 = vmul.f32 %v1566, 1.442695
    %v1688 = vpow.pop %v1687
    %v1689 = vmul.f32 %v1567, 1.442695
    %v1690 = vpow.pop %v1689
    %v1691 = vmul.f32 %v1568, 1.442695
    %v1692 = vpow.pop %v1691
    %v1693 = vmul.f32 %v1569, 1.442695
    %v1694 = vpow.pop %v1693
    %v1695 = vmul.f32 %v1570, 1.442695
    %v1696 = vpow.pop %v1695
    %v1697 = vmul.f32 %v1571, 1.442695
    %v1698 = vpow.pop %v1697
    %v1699 = vmul.f32 %v1572, 1.442695
    %v1700 = vpow.pop %v1699
    %v1701 = vadd.f32 %v1574, %v1576
    %1702 = vadd.xlane.f32.xlu0 %v1701
    %v1703 = vpop.xlane.xlu0 %1702
    %v1704 = vadd.f32 %v1578, %v1580
    %1705 = vadd.xlane.f32.xlu0 %v1704
    %v1706 = vpop.xlane.xlu0 %1705
    %v1707 = vadd.f32 %v1582, %v1584
    %1708 = vadd.xlane.f32.xlu0 %v1707
    %v1709 = vpop.xlane.xlu0 %1708
    %v1710 = vadd.f32 %v1586, %v1588
    %1711 = vadd.xlane.f32.xlu0 %v1710
    %v1712 = vpop.xlane.xlu0 %1711
    %v1713 = vadd.f32 %v1590, %v1592
    %1714 = vadd.xlane.f32.xlu0 %v1713
    %v1715 = vpop.xlane.xlu0 %1714
    %v1716 = vadd.f32 %v1594, %v1596
    %1717 = vadd.xlane.f32.xlu0 %v1716
    %v1718 = vpop.xlane.xlu0 %1717
    %v1719 = vadd.f32 %v1598, %v1600
    %1720 = vadd.xlane.f32.xlu0 %v1719
    %v1721 = vpop.xlane.xlu0 %1720
    %v1722 = vadd.f32 %v1602, %v1604
    %1723 = vadd.xlane.f32.xlu0 %v1722
    %v1724 = vpop.xlane.xlu0 %1723
    %v1725 = vadd.f32 %v1606, %v1608
    %1726 = vadd.xlane.f32.xlu0 %v1725
    %v1727 = vpop.xlane.xlu0 %1726
    %v1728 = vadd.f32 %v1610, %v1612
    %1729 = vadd.xlane.f32.xlu0 %v1728
    %v1730 = vpop.xlane.xlu0 %1729
    %v1731 = vadd.f32 %v1614, %v1616
    %1732 = vadd.xlane.f32.xlu0 %v1731
    %v1733 = vpop.xlane.xlu0 %1732
    %v1734 = vadd.f32 %v1618, %v1620
    %1735 = vadd.xlane.f32.xlu0 %v1734
    %v1736 = vpop.xlane.xlu0 %1735
    %v1737 = vadd.f32 %v1622, %v1624
    %1738 = vadd.xlane.f32.xlu0 %v1737
    %v1739 = vpop.xlane.xlu0 %1738
    %v1740 = vadd.f32 %v1626, %v1628
    %1741 = vadd.xlane.f32.xlu0 %v1740
    %v1742 = vpop.xlane.xlu0 %1741
    %v1743 = vadd.f32 %v1630, %v1632
    %1744 = vadd.xlane.f32.xlu0 %v1743
    %v1745 = vpop.xlane.xlu0 %1744
    %v1746 = vadd.f32 %v1634, %v1636
    %1747 = vadd.xlane.f32.xlu0 %v1746
    %v1748 = vpop.xlane.xlu0 %1747
    %v1749 = vadd.f32 %v1638, %v1640
    %1750 = vadd.xlane.f32.xlu0 %v1749
    %v1751 = vpop.xlane.xlu0 %1750
    %v1752 = vadd.f32 %v1642, %v1644
    %1753 = vadd.xlane.f32.xlu0 %v1752
    %v1754 = vpop.xlane.xlu0 %1753
    %v1755 = vadd.f32 %v1646, %v1648
    %1756 = vadd.xlane.f32.xlu0 %v1755
    %v1757 = vpop.xlane.xlu0 %1756
    %v1758 = vadd.f32 %v1650, %v1652
    %1759 = vadd.xlane.f32.xlu0 %v1758
    %v1760 = vpop.xlane.xlu0 %1759
    %v1761 = vadd.f32 %v1654, %v1656
    %1762 = vadd.xlane.f32.xlu0 %v1761
    %v1763 = vpop.xlane.xlu0 %1762
    %v1764 = vadd.f32 %v1658, %v1660
    %1765 = vadd.xlane.f32.xlu0 %v1764
    %v1766 = vpop.xlane.xlu0 %1765
    %v1767 = vadd.f32 %v1662, %v1664
    %1768 = vadd.xlane.f32.xlu0 %v1767
    %v1769 = vpop.xlane.xlu0 %1768
    %v1770 = vadd.f32 %v1666, %v1668
    %1771 = vadd.xlane.f32.xlu0 %v1770
    %v1772 = vpop.xlane.xlu0 %1771
    %v1773 = vadd.f32 %v1670, %v1672
    %1774 = vadd.xlane.f32.xlu0 %v1773
    %v1775 = vpop.xlane.xlu0 %1774
    %v1776 = vadd.f32 %v1674, %v1676
    %1777 = vadd.xlane.f32.xlu0 %v1776
    %v1778 = vpop.xlane.xlu0 %1777
    %v1779 = vadd.f32 %v1678, %v1680
    %1780 = vadd.xlane.f32.xlu0 %v1779
    %v1781 = vpop.xlane.xlu0 %1780
    %v1782 = vadd.f32 %v1682, %v1684
    %1783 = vadd.xlane.f32.xlu0 %v1782
    %v1784 = vpop.xlane.xlu0 %1783
    %v1785 = vadd.f32 %v1686, %v1688
    %1786 = vadd.xlane.f32.xlu0 %v1785
    %v1787 = vpop.xlane.xlu0 %1786
    %v1788 = vadd.f32 %v1690, %v1692
    %1789 = vadd.xlane.f32.xlu0 %v1788
    %v1790 = vpop.xlane.xlu0 %1789
    %v1791 = vadd.f32 %v1694, %v1696
    %1792 = vadd.xlane.f32.xlu0 %v1791
    %v1793 = vpop.xlane.xlu0 %1792
    %v1794 = vadd.f32 %v1698, %v1700
    %1795 = vadd.xlane.f32.xlu0 %v1794
    %v1796 = vpop.xlane.xlu0 %1795
    %v1797 = vrcp.pop %v1703
    %v1798 = vrcp.pop %v1706
    %v1799 = vrcp.pop %v1709
    %v1800 = vrcp.pop %v1712
    %v1801 = vrcp.pop %v1715
    %v1802 = vrcp.pop %v1718
    %v1803 = vrcp.pop %v1721
    %v1804 = vrcp.pop %v1724
    %v1805 = vrcp.pop %v1727
    %v1806 = vrcp.pop %v1730
    %v1807 = vrcp.pop %v1733
    %v1808 = vrcp.pop %v1736
    %v1809 = vrcp.pop %v1739
    %v1810 = vrcp.pop %v1742
    %v1811 = vrcp.pop %v1745
    %v1812 = vrcp.pop %v1748
    %v1813 = vrcp.pop %v1751
    %v1814 = vrcp.pop %v1754
    %v1815 = vrcp.pop %v1757
    %v1816 = vrcp.pop %v1760
    %v1817 = vrcp.pop %v1763
    %v1818 = vrcp.pop %v1766
    %v1819 = vrcp.pop %v1769
    %v1820 = vrcp.pop %v1772
    %v1821 = vrcp.pop %v1775
    %v1822 = vrcp.pop %v1778
    %v1823 = vrcp.pop %v1781
    %v1824 = vrcp.pop %v1784
    %v1825 = vrcp.pop %v1787
    %v1826 = vrcp.pop %v1790
    %v1827 = vrcp.pop %v1793
    %v1828 = vrcp.pop %v1796
    %v1829 = vmul.f32 %v1574, %v1797
    %v1830 = vmul.f32 %v1576, %v1797
    %v1831 = vmul.f32 %v1578, %v1798
    %v1832 = vmul.f32 %v1580, %v1798
    %v1833 = vmul.f32 %v1582, %v1799
    %v1834 = vmul.f32 %v1584, %v1799
    %v1835 = vmul.f32 %v1586, %v1800
    %v1836 = vmul.f32 %v1588, %v1800
    %v1837 = vmul.f32 %v1590, %v1801
    %v1838 = vmul.f32 %v1592, %v1801
    %v1839 = vmul.f32 %v1594, %v1802
    %v1840 = vmul.f32 %v1596, %v1802
    %v1841 = vmul.f32 %v1598, %v1803
    %v1842 = vmul.f32 %v1600, %v1803
    %v1843 = vmul.f32 %v1602, %v1804
    %v1844 = vmul.f32 %v1604, %v1804
    %v1845 = vmul.f32 %v1606, %v1805
    %v1846 = vmul.f32 %v1608, %v1805
    %v1847 = vmul.f32 %v1610, %v1806
    %v1848 = vmul.f32 %v1612, %v1806
    %v1849 = vmul.f32 %v1614, %v1807
    %v1850 = vmul.f32 %v1616, %v1807
    %v1851 = vmul.f32 %v1618, %v1808
    %v1852 = vmul.f32 %v1620, %v1808
    %v1853 = vmul.f32 %v1622, %v1809
    %v1854 = vmul.f32 %v1624, %v1809
    %v1855 = vmul.f32 %v1626, %v1810
    %v1856 = vmul.f32 %v1628, %v1810
    %v1857 = vmul.f32 %v1630, %v1811
    %v1858 = vmul.f32 %v1632, %v1811
    %v1859 = vmul.f32 %v1634, %v1812
    %v1860 = vmul.f32 %v1636, %v1812
    %v1861 = vmul.f32 %v1638, %v1813
    %v1862 = vmul.f32 %v1640, %v1813
    %v1863 = vmul.f32 %v1642, %v1814
    %v1864 = vmul.f32 %v1644, %v1814
    %v1865 = vmul.f32 %v1646, %v1815
    %v1866 = vmul.f32 %v1648, %v1815
    %v1867 = vmul.f32 %v1650, %v1816
    %v1868 = vmul.f32 %v1652, %v1816
    %v1869 = vmul.f32 %v1654, %v1817
    %v1870 = vmul.f32 %v1656, %v1817
    %v1871 = vmul.f32 %v1658, %v1818
    %v1872 = vmul.f32 %v1660, %v1818
    %v1873 = vmul.f32 %v1662, %v1819
    %v1874 = vmul.f32 %v1664, %v1819
    %v1875 = vmul.f32 %v1666, %v1820
    %v1876 = vmul.f32 %v1668, %v1820
    %v1877 = vmul.f32 %v1670, %v1821
    %v1878 = vmul.f32 %v1672, %v1821
    %v1879 = vmul.f32 %v1674, %v1822
    %v1880 = vmul.f32 %v1676, %v1822
    %v1881 = vmul.f32 %v1678, %v1823
    %v1882 = vmul.f32 %v1680, %v1823
    %v1883 = vmul.f32 %v1682, %v1824
    %v1884 = vmul.f32 %v1684, %v1824
    %v1885 = vmul.f32 %v1686, %v1825
    %v1886 = vmul.f32 %v1688, %v1825
    %v1887 = vmul.f32 %v1690, %v1826
    %v1888 = vmul.f32 %v1692, %v1826
    %v1889 = vmul.f32 %v1694, %v1827
    %v1890 = vmul.f32 %v1696, %v1827
    %v1891 = vmul.f32 %v1698, %v1828
    %v1892 = vmul.f32 %v1700, %v1828
    %v1893 = vpack.c.bf16 %v1015, %v1011
    %v1894 = vpack.c.bf16 %v1017, %v1013
    %v1895 = vpack.c.bf16 %v1831, %v1829
    %v1896 = vpack.c.bf16 %v1832, %v1830
    %v1897 = vpack.c.bf16 %v1835, %v1833
    %v1898 = vpack.c.bf16 %v1836, %v1834
    %v1899 = vpack.c.bf16 %v1839, %v1837
    %v1900 = vpack.c.bf16 %v1840, %v1838
    %v1901 = vpack.c.bf16 %v1843, %v1841
    %v1902 = vpack.c.bf16 %v1844, %v1842
    %v1903 = vpack.c.bf16 %v1847, %v1845
    %v1904 = vpack.c.bf16 %v1848, %v1846
    %v1905 = vpack.c.bf16 %v1851, %v1849
    %v1906 = vpack.c.bf16 %v1852, %v1850
    %v1907 = vpack.c.bf16 %v1855, %v1853
    %v1908 = vpack.c.bf16 %v1856, %v1854
    %v1909 = vpack.c.bf16 %v1859, %v1857
    %v1910 = vpack.c.bf16 %v1860, %v1858
    %v1911 = vpack.c.bf16 %v1863, %v1861
    %v1912 = vpack.c.bf16 %v1864, %v1862
    %v1913 = vpack.c.bf16 %v1867, %v1865
    %v1914 = vpack.c.bf16 %v1868, %v1866
    %v1915 = vpack.c.bf16 %v1871, %v1869
    %v1916 = vpack.c.bf16 %v1872, %v1870
    %v1917 = vpack.c.bf16 %v1875, %v1873
    %v1918 = vpack.c.bf16 %v1876, %v1874
    %v1919 = vpack.c.bf16 %v1879, %v1877
    %v1920 = vpack.c.bf16 %v1880, %v1878
    %v1921 = vpack.c.bf16 %v1883, %v1881
    %v1922 = vpack.c.bf16 %v1884, %v1882
    %v1923 = vpack.c.bf16 %v1887, %v1885
    %v1924 = vpack.c.bf16 %v1888, %v1886
    %v1925 = vpack.c.bf16 %v1891, %v1889
    %v1926 = vpack.c.bf16 %v1892, %v1890
    %1927 = vmatprep.subr.bf16.mxu0 %v1896
    %1928 = vmatpush1.bf16.xpose.msra.mxu0 %v1895
    %1929 = vmatprep.subr.bf16.mxu0 %v1898
    %1930 = vmatpush1.bf16.xpose.msra.mxu0 %v1897
    %1931 = vmatprep.subr.bf16.mxu0 %v1900
    %1932 = vmatpush1.bf16.xpose.msra.mxu0 %v1899
    %1933 = vmatprep.subr.bf16.mxu0 %v1902
    %1934 = vmatpush1.bf16.xpose.msra.mxu0 %v1901
    %1935 = vmatprep.subr.bf16.mxu0 %v1904
    %1936 = vmatpush1.bf16.xpose.msra.mxu0 %v1903
    %1937 = vmatprep.subr.bf16.mxu0 %v1906
    %1938 = vmatpush1.bf16.xpose.msra.mxu0 %v1905
    %1939 = vmatprep.subr.bf16.mxu0 %v1908
    %1940 = vmatpush1.bf16.xpose.msra.mxu0 %v1907
    %1941 = vmatprep.subr.bf16.mxu0 %v1910
    %1942 = vmatpush1.bf16.xpose.msra.mxu0 %v1909
    %1943 = vmatprep.subr.bf16.mxu0 %v1912
    %1944 = vmatpush1.bf16.xpose.msra.mxu0 %v1911
    %1945 = vmatprep.subr.bf16.mxu0 %v1914
    %1946 = vmatpush1.bf16.xpose.msra.mxu0 %v1913
    %1947 = vmatprep.subr.bf16.mxu0 %v1916
    %1948 = vmatpush1.bf16.xpose.msra.mxu0 %v1915
    %1949 = vmatprep.subr.bf16.mxu0 %v1918
    %1950 = vmatpush1.bf16.xpose.msra.mxu0 %v1917
    %1951 = vmatprep.subr.bf16.mxu0 %v1920
    %1952 = vmatpush1.bf16.xpose.msra.mxu0 %v1919
    %1953 = vmatprep.subr.bf16.mxu0 %v1922
    %1954 = vmatpush1.bf16.xpose.msra.mxu0 %v1921
    %1955 = vmatprep.subr.bf16.mxu0 %v1924
    %1956 = vmatpush1.bf16.xpose.msra.mxu0 %v1923
    %1957 = vmatprep.subr.bf16.mxu0 %v1926
    %1958 = vmatpush1.bf16.xpose.msra.mxu0 %v1925
    %1959 = vmatprep.mubr.bf16.mxu0 %v1894
    %1960 = vmatmul.mubr.bf16.gmra.mrb[0].mxu0 %v1893
    %v1961 = vpop.f32.mrb[0].mxu0
    %v1962 = vadd.f32 0.0, %v1961
    %v1963 = vpop.f32.mrb[0].mxu0
    %v1964 = vadd.f32 0.0, %v1963
    %v1965 = vpop.f32.mrb[0].mxu0
    %v1966 = vadd.f32 0.0, %v1965
    %v1967 = vpop.f32.mrb[0].mxu0
    %v1968 = vadd.f32 0.0, %v1967
    %1969 = vdwg.mxu0
    %1970 = vst [vmem:[%s8] sm:$0xff] %v1962
    %1971 = vst [vmem:[%s8 + $0x8] sm:$0xff] %v1964
    %1972 = vst [vmem:[%s8 + $0x10] sm:$0xff] %v1966
    %1973 = vst [vmem:[%s8 + $0x18] sm:$0xff] %v1968
    %v1974 = vpack.c.bf16 %v922, %v918
    %v1975 = vpack.c.bf16 %v924, %v920
    %v1976 = vpack.c.bf16 %v1058, %v1054
    %v1977 = vpack.c.bf16 %v1060, %v1056
    %1978 = vxpose.xlu0.c.b16.start [1/8] %v1974, 128
    %1979 = vxpose.xlu0.c.b16.cont [2/8] 0, 128
    %1980 = vxpose.xlu0.c.b16.cont [3/8] 0, 128
    %1981 = vxpose.xlu0.c.b16.cont [4/8] 0, 128
    %1982 = vxpose.xlu0.c.b16.cont [5/8] 0, 128
    %1983 = vxpose.xlu0.c.b16.cont [6/8] 0, 128
    %1984 = vxpose.xlu0.c.b16.cont [7/8] 0, 128
    %1985 = vxpose.xlu0.c.b16.end [8/8] 0, 128
    %v1986 = vpop.trf.xlu0
    %v1987 = vpop.trf.xlu0
    %v1988 = vpop.trf.xlu0
    %v1989 = vpop.trf.xlu0
    %v1990 = vpop.trf.xlu0
    %v1991 = vpop.trf.xlu0
    %v1992 = vpop.trf.xlu0
    %v1993 = vpop.trf.xlu0
    %1994 = vxpose.xlu0.c.b16.start [1/8] %v1975, 128
    %1995 = vxpose.xlu0.c.b16.cont [2/8] 0, 128
    %1996 = vxpose.xlu0.c.b16.cont [3/8] 0, 128
    %1997 = vxpose.xlu0.c.b16.cont [4/8] 0, 128
    %1998 = vxpose.xlu0.c.b16.cont [5/8] 0, 128
    %1999 = vxpose.xlu0.c.b16.cont [6/8] 0, 128
    %2000 = vxpose.xlu0.c.b16.cont [7/8] 0, 128
    %2001 = vxpose.xlu0.c.b16.end [8/8] 0, 128
    %v2002 = vpop.trf.xlu0
    %v2003 = vpop.trf.xlu0
    %v2004 = vpop.trf.xlu0
    %v2005 = vpop.trf.xlu0
    %v2006 = vpop.trf.xlu0
    %v2007 = vpop.trf.xlu0
    %v2008 = vpop.trf.xlu0
    %v2009 = vpop.trf.xlu0
    %v2011 = vsel %vm836, %v1986, 0
    %v2014 = vsel %vm836, %v1987, 0
    %v2017 = vsel %vm836, %v1988, 0
    %v2020 = vsel %vm836, %v1989, 0
    %v2023 = vsel %vm836, %v1990, 0
    %v2026 = vsel %vm836, %v1991, 0
    %v2029 = vsel %vm836, %v1992, 0
    %v2032 = vsel %vm836, %v1993, 0
    %v2035 = vsel %vm836, %v2002, 0
    %v2038 = vsel %vm836, %v2003, 0
    %v2041 = vsel %vm836, %v2004, 0
    %v2044 = vsel %vm836, %v2005, 0
    %v2047 = vsel %vm836, %v2006, 0
    %v2050 = vsel %vm836, %v2007, 0
    %v2053 = vsel %vm836, %v2008, 0
    %v2056 = vsel %vm836, %v2009, 0
    %2058 = vmatprep.subr.bf16.mxu0 %v1977
    %2059 = vmatpush1.bf16.msra.mxu0 %v1976
    %2060 = vmatprep.subr.bf16.mxu0 0
    %2061 = vmatpush1.bf16.msra.mxu0 0
    %2062 = vmatprep.subr.bf16.mxu0 0
    %2063 = vmatpush1.bf16.msra.mxu0 0
    %2064 = vmatprep.subr.bf16.mxu0 0
    %2065 = vmatpush1.bf16.msra.mxu0 0
    %2066 = vmatprep.subr.bf16.mxu0 0
    %2067 = vmatpush1.bf16.msra.mxu0 0
    %2068 = vmatprep.subr.bf16.mxu0 0
    %2069 = vmatpush1.bf16.msra.mxu0 0
    %2070 = vmatprep.subr.bf16.mxu0 0
    %2071 = vmatpush1.bf16.msra.mxu0 0
    %2072 = vmatprep.subr.bf16.mxu0 0
    %2073 = vmatpush1.bf16.msra.mxu0 0
    %2074 = vmatprep.subr.bf16.mxu0 0
    %2075 = vmatpush1.bf16.msra.mxu0 0
    %2076 = vmatprep.subr.bf16.mxu0 0
    %2077 = vmatpush1.bf16.msra.mxu0 0
    %2078 = vmatprep.subr.bf16.mxu0 0
    %2079 = vmatpush1.bf16.msra.mxu0 0
    %2080 = vmatprep.subr.bf16.mxu0 0
    %2081 = vmatpush1.bf16.msra.mxu0 0
    %2082 = vmatprep.subr.bf16.mxu0 0
    %2083 = vmatpush1.bf16.msra.mxu0 0
    %2084 = vmatprep.subr.bf16.mxu0 0
    %2085 = vmatpush1.bf16.msra.mxu0 0
    %2086 = vmatprep.subr.bf16.mxu0 0
    %2087 = vmatpush1.bf16.msra.mxu0 0
    %2088 = vmatprep.subr.bf16.mxu0 0
    %2089 = vmatpush1.bf16.msra.mxu0 0
    %2090 = vmatprep.mubr.bf16.mxu0 0
    %2091 = vmatmul.mubr.bf16.gmra.mrb[0].mxu0 %v2011
    %v2092 = vpop.f32.mrb[0].mxu0
    %v2093 = vadd.f32 0.0, %v2092
    %v2094 = vpop.f32.mrb[0].mxu0
    %v2095 = vadd.f32 0.0, %v2094
    %v2096 = vpop.f32.mrb[0].mxu0
    %v2097 = vadd.f32 0.0, %v2096
    %v2098 = vpop.f32.mrb[0].mxu0
    %v2099 = vadd.f32 0.0, %v2098
    %2100 = vmatprep.mubr.bf16.mxu0 0
    %2101 = vmatmul.mubr.bf16.gmra.mrb[0].mxu0 %v2014
    %v2102 = vpop.f32.mrb[0].mxu0
    %v2103 = vadd.f32 0.0, %v2102
    %v2104 = vpop.f32.mrb[0].mxu0
    %v2105 = vadd.f32 0.0, %v2104
    %v2106 = vpop.f32.mrb[0].mxu0
    %v2107 = vadd.f32 0.0, %v2106
    %v2108 = vpop.f32.mrb[0].mxu0
    %v2109 = vadd.f32 0.0, %v2108
    %2110 = vmatprep.mubr.bf16.mxu0 0
    %2111 = vmatmul.mubr.bf16.gmra.mrb[0].mxu0 %v2017
    %v2112 = vpop.f32.mrb[0].mxu0
    %v2113 = vadd.f32 0.0, %v2112
    %v2114 = vpop.f32.mrb[0].mxu0
    %v2115 = vadd.f32 0.0, %v2114
    %v2116 = vpop.f32.mrb[0].mxu0
    %v2117 = vadd.f32 0.0, %v2116
    %v2118 = vpop.f32.mrb[0].mxu0
    %v2119 = vadd.f32 0.0, %v2118
    %2120 = vmatprep.mubr.bf16.mxu0 0
    %2121 = vmatmul.mubr.bf16.gmra.mrb[0].mxu0 %v2020
    %v2122 = vpop.f32.mrb[0].mxu0
    %v2123 = vadd.f32 0.0, %v2122
    %v2124 = vpop.f32.mrb[0].mxu0
    %v2125 = vadd.f32 0.0, %v2124
    %v2126 = vpop.f32.mrb[0].mxu0
    %v2127 = vadd.f32 0.0, %v2126
    %v2128 = vpop.f32.mrb[0].mxu0
    %v2129 = vadd.f32 0.0, %v2128
    %2130 = vmatprep.mubr.bf16.mxu0 0
    %2131 = vmatmul.mubr.bf16.gmra.mrb[0].mxu0 %v2023
    %v2132 = vpop.f32.mrb[0].mxu0
    %v2133 = vadd.f32 0.0, %v2132
    %v2134 = vpop.f32.mrb[0].mxu0
    %v2135 = vadd.f32 0.0, %v2134
    %v2136 = vpop.f32.mrb[0].mxu0
    %v2137 = vadd.f32 0.0, %v2136
    %v2138 = vpop.f32.mrb[0].mxu0
    %v2139 = vadd.f32 0.0, %v2138
    %2140 = vmatprep.mubr.bf16.mxu0 0
    %2141 = vmatmul.mubr.bf16.gmra.mrb[0].mxu0 %v2026
    %v2142 = vpop.f32.mrb[0].mxu0
    %v2143 = vadd.f32 0.0, %v2142
    %v2144 = vpop.f32.mrb[0].mxu0
    %v2145 = vadd.f32 0.0, %v2144
    %v2146 = vpop.f32.mrb[0].mxu0
    %v2147 = vadd.f32 0.0, %v2146
    %v2148 = vpop.f32.mrb[0].mxu0
    %v2149 = vadd.f32 0.0, %v2148
    %2150 = vmatprep.mubr.bf16.mxu0 0
    %2151 = vmatmul.mubr.bf16.gmra.mrb[0].mxu0 %v2029
    %v2152 = vpop.f32.mrb[0].mxu0
    %v2153 = vadd.f32 0.0, %v2152
    %v2154 = vpop.f32.mrb[0].mxu0
    %v2155 = vadd.f32 0.0, %v2154
    %v2156 = vpop.f32.mrb[0].mxu0
    %v2157 = vadd.f32 0.0, %v2156
    %v2158 = vpop.f32.mrb[0].mxu0
    %v2159 = vadd.f32 0.0, %v2158
    %2160 = vmatprep.mubr.bf16.mxu0 0
    %2161 = vmatmul.mubr.bf16.gmra.mrb[0].mxu0 %v2032
    %v2162 = vpop.f32.mrb[0].mxu0
    %v2163 = vadd.f32 0.0, %v2162
    %v2164 = vpop.f32.mrb[0].mxu0
    %v2165 = vadd.f32 0.0, %v2164
    %v2166 = vpop.f32.mrb[0].mxu0
    %v2167 = vadd.f32 0.0, %v2166
    %v2168 = vpop.f32.mrb[0].mxu0
    %v2169 = vadd.f32 0.0, %v2168
    %2170 = vmatprep.mubr.bf16.mxu0 0
    %2171 = vmatmul.mubr.bf16.gmra.mrb[0].mxu0 %v2035
    %v2172 = vpop.f32.mrb[0].mxu0
    %v2173 = vadd.f32 0.0, %v2172
    %v2174 = vpop.f32.mrb[0].mxu0
    %v2175 = vadd.f32 0.0, %v2174
    %v2176 = vpop.f32.mrb[0].mxu0
    %v2177 = vadd.f32 0.0, %v2176
    %v2178 = vpop.f32.mrb[0].mxu0
    %v2179 = vadd.f32 0.0, %v2178
    %2180 = vmatprep.mubr.bf16.mxu0 0
    %2181 = vmatmul.mubr.bf16.gmra.mrb[0].mxu0 %v2038
    %v2182 = vpop.f32.mrb[0].mxu0
    %v2183 = vadd.f32 0.0, %v2182
    %v2184 = vpop.f32.mrb[0].mxu0
    %v2185 = vadd.f32 0.0, %v2184
    %v2186 = vpop.f32.mrb[0].mxu0
    %v2187 = vadd.f32 0.0, %v2186
    %v2188 = vpop.f32.mrb[0].mxu0
    %v2189 = vadd.f32 0.0, %v2188
    %2190 = vmatprep.mubr.bf16.mxu0 0
    %2191 = vmatmul.mubr.bf16.gmra.mrb[0].mxu0 %v2041
    %v2192 = vpop.f32.mrb[0].mxu0
    %v2193 = vadd.f32 0.0, %v2192
    %v2194 = vpop.f32.mrb[0].mxu0
    %v2195 = vadd.f32 0.0, %v2194
    %v2196 = vpop.f32.mrb[0].mxu0
    %v2197 = vadd.f32 0.0, %v2196
    %v2198 = vpop.f32.mrb[0].mxu0
    %v2199 = vadd.f32 0.0, %v2198
    %2200 = vmatprep.mubr.bf16.mxu0 0
    %2201 = vmatmul.mubr.bf16.gmra.mrb[0].mxu0 %v2044
    %v2202 = vpop.f32.mrb[0].mxu0
    %v2203 = vadd.f32 0.0, %v2202
    %v2204 = vpop.f32.mrb[0].mxu0
    %v2205 = vadd.f32 0.0, %v2204
    %v2206 = vpop.f32.mrb[0].mxu0
    %v2207 = vadd.f32 0.0, %v2206
    %v2208 = vpop.f32.mrb[0].mxu0
    %v2209 = vadd.f32 0.0, %v2208
    %2210 = vmatprep.mubr.bf16.mxu0 0
    %2211 = vmatmul.mubr.bf16.gmra.mrb[0].mxu0 %v2047
    %v2212 = vpop.f32.mrb[0].mxu0
    %v2213 = vadd.f32 0.0, %v2212
    %v2214 = vpop.f32.mrb[0].mxu0
    %v2215 = vadd.f32 0.0, %v2214
    %v2216 = vpop.f32.mrb[0].mxu0
    %v2217 = vadd.f32 0.0, %v2216
    %v2218 = vpop.f32.mrb[0].mxu0
    %v2219 = vadd.f32 0.0, %v2218
    %2220 = vmatprep.mubr.bf16.mxu0 0
    %2221 = vmatmul.mubr.bf16.gmra.mrb[0].mxu0 %v2050
    %v2222 = vpop.f32.mrb[0].mxu0
    %v2223 = vadd.f32 0.0, %v2222
    %v2224 = vpop.f32.mrb[0].mxu0
    %v2225 = vadd.f32 0.0, %v2224
    %v2226 = vpop.f32.mrb[0].mxu0
    %v2227 = vadd.f32 0.0, %v2226
    %v2228 = vpop.f32.mrb[0].mxu0
    %v2229 = vadd.f32 0.0, %v2228
    %2230 = vmatprep.mubr.bf16.mxu0 0
    %2231 = vmatmul.mubr.bf16.gmra.mrb[0].mxu0 %v2053
    %v2232 = vpop.f32.mrb[0].mxu0
    %v2233 = vadd.f32 0.0, %v2232
    %v2234 = vpop.f32.mrb[0].mxu0
    %v2235 = vadd.f32 0.0, %v2234
    %v2236 = vpop.f32.mrb[0].mxu0
    %v2237 = vadd.f32 0.0, %v2236
    %v2238 = vpop.f32.mrb[0].mxu0
    %v2239 = vadd.f32 0.0, %v2238
    %2240 = vmatprep.mubr.bf16.mxu0 0
    %2241 = vmatmul.mubr.bf16.gmra.mrb[0].mxu0 %v2056
    %v2242 = vpop.f32.mrb[0].mxu0
    %v2243 = vadd.f32 0.0, %v2242
    %v2244 = vpop.f32.mrb[0].mxu0
    %v2245 = vadd.f32 0.0, %v2244
    %v2246 = vpop.f32.mrb[0].mxu0
    %v2247 = vadd.f32 0.0, %v2246
    %v2248 = vpop.f32.mrb[0].mxu0
    %v2249 = vadd.f32 0.0, %v2248
    %2250 = vdwg.mxu0
    %v2251 = vmul.f32 %v2093, 0.25
    %v2252 = vmul.f32 %v2095, 0.25
    %v2253 = vmul.f32 %v2097, 0.25
    %v2254 = vmul.f32 %v2099, 0.25
    %v2255 = vmul.f32 %v2103, 0.25
    %v2256 = vmul.f32 %v2105, 0.25
    %v2257 = vmul.f32 %v2107, 0.25
    %v2258 = vmul.f32 %v2109, 0.25
    %v2259 = vmul.f32 %v2113, 0.25
    %v2260 = vmul.f32 %v2115, 0.25
    %v2261 = vmul.f32 %v2117, 0.25
    %v2262 = vmul.f32 %v2119, 0.25
    %v2263 = vmul.f32 %v2123, 0.25
    %v2264 = vmul.f32 %v2125, 0.25
    %v2265 = vmul.f32 %v2127, 0.25
    %v2266 = vmul.f32 %v2129, 0.25
    %v2267 = vmul.f32 %v2133, 0.25
    %v2268 = vmul.f32 %v2135, 0.25
    %v2269 = vmul.f32 %v2137, 0.25
    %v2270 = vmul.f32 %v2139, 0.25
    %v2271 = vmul.f32 %v2143, 0.25
    %v2272 = vmul.f32 %v2145, 0.25
    %v2273 = vmul.f32 %v2147, 0.25
    %v2274 = vmul.f32 %v2149, 0.25
    %v2275 = vmul.f32 %v2153, 0.25
    %v2276 = vmul.f32 %v2155, 0.25
    %v2277 = vmul.f32 %v2157, 0.25
    %v2278 = vmul.f32 %v2159, 0.25
    %v2279 = vmul.f32 %v2163, 0.25
    %v2280 = vmul.f32 %v2165, 0.25
    %v2281 = vmul.f32 %v2167, 0.25
    %v2282 = vmul.f32 %v2169, 0.25
    %v2283 = vmul.f32 %v2173, 0.25
    %v2284 = vmul.f32 %v2175, 0.25
    %v2285 = vmul.f32 %v2177, 0.25
    %v2286 = vmul.f32 %v2179, 0.25
    %v2287 = vmul.f32 %v2183, 0.25
    %v2288 = vmul.f32 %v2185, 0.25
    %v2289 = vmul.f32 %v2187, 0.25
    %v2290 = vmul.f32 %v2189, 0.25
    %v2291 = vmul.f32 %v2193, 0.25
    %v2292 = vmul.f32 %v2195, 0.25
    %v2293 = vmul.f32 %v2197, 0.25
    %v2294 = vmul.f32 %v2199, 0.25
    %v2295 = vmul.f32 %v2203, 0.25
    %v2296 = vmul.f32 %v2205, 0.25
    %v2297 = vmul.f32 %v2207, 0.25
    %v2298 = vmul.f32 %v2209, 0.25
    %v2299 = vmul.f32 %v2213, 0.25
    %v2300 = vmul.f32 %v2215, 0.25
    %v2301 = vmul.f32 %v2217, 0.25
    %v2302 = vmul.f32 %v2219, 0.25
    %v2303 = vmul.f32 %v2223, 0.25
    %v2304 = vmul.f32 %v2225, 0.25
    %v2305 = vmul.f32 %v2227, 0.25
    %v2306 = vmul.f32 %v2229, 0.25
    %v2307 = vmul.f32 %v2233, 0.25
    %v2308 = vmul.f32 %v2235, 0.25
    %v2309 = vmul.f32 %v2237, 0.25
    %v2310 = vmul.f32 %v2239, 0.25
    %v2311 = vmul.f32 %v2243, 0.25
    %v2312 = vmul.f32 %v2245, 0.25
    %v2313 = vmul.f32 %v2247, 0.25
    %v2314 = vmul.f32 %v2249, 0.25
    %v2315 = vmax.f32 %v2251, %v2252
    %2316 = vmax.xlane.f32.xlu0 %v2315
    %v2317 = vpop.xlane.xlu0 %2316
    %v2318 = vmax.f32 %v2253, %v2254
    %2319 = vmax.xlane.f32.xlu0 %v2318
    %v2320 = vpop.xlane.xlu0 %2319
    %v2321 = vmax.f32 %v2255, %v2256
    %2322 = vmax.xlane.f32.xlu0 %v2321
    %v2323 = vpop.xlane.xlu0 %2322
    %v2324 = vmax.f32 %v2257, %v2258
    %2325 = vmax.xlane.f32.xlu0 %v2324
    %v2326 = vpop.xlane.xlu0 %2325
    %v2327 = vmax.f32 %v2259, %v2260
    %2328 = vmax.xlane.f32.xlu0 %v2327
    %v2329 = vpop.xlane.xlu0 %2328
    %v2330 = vmax.f32 %v2261, %v2262
    %2331 = vmax.xlane.f32.xlu0 %v2330
    %v2332 = vpop.xlane.xlu0 %2331
    %v2333 = vmax.f32 %v2263, %v2264
    %2334 = vmax.xlane.f32.xlu0 %v2333
    %v2335 = vpop.xlane.xlu0 %2334
    %v2336 = vmax.f32 %v2265, %v2266
    %2337 = vmax.xlane.f32.xlu0 %v2336
    %v2338 = vpop.xlane.xlu0 %2337
    %v2339 = vmax.f32 %v2267, %v2268
    %2340 = vmax.xlane.f32.xlu0 %v2339
    %v2341 = vpop.xlane.xlu0 %2340
    %v2342 = vmax.f32 %v2269, %v2270
    %2343 = vmax.xlane.f32.xlu0 %v2342
    %v2344 = vpop.xlane.xlu0 %2343
    %v2345 = vmax.f32 %v2271, %v2272
    %2346 = vmax.xlane.f32.xlu0 %v2345
    %v2347 = vpop.xlane.xlu0 %2346
    %v2348 = vmax.f32 %v2273, %v2274
    %2349 = vmax.xlane.f32.xlu0 %v2348
    %v2350 = vpop.xlane.xlu0 %2349
    %v2351 = vmax.f32 %v2275, %v2276
    %2352 = vmax.xlane.f32.xlu0 %v2351
    %v2353 = vpop.xlane.xlu0 %2352
    %v2354 = vmax.f32 %v2277, %v2278
    %2355 = vmax.xlane.f32.xlu0 %v2354
    %v2356 = vpop.xlane.xlu0 %2355
    %v2357 = vmax.f32 %v2279, %v2280
    %2358 = vmax.xlane.f32.xlu0 %v2357
    %v2359 = vpop.xlane.xlu0 %2358
    %v2360 = vmax.f32 %v2281, %v2282
    %2361 = vmax.xlane.f32.xlu0 %v2360
    %v2362 = vpop.xlane.xlu0 %2361
    %v2363 = vmax.f32 %v2283, %v2284
    %2364 = vmax.xlane.f32.xlu0 %v2363
    %v2365 = vpop.xlane.xlu0 %2364
    %v2366 = vmax.f32 %v2285, %v2286
    %2367 = vmax.xlane.f32.xlu0 %v2366
    %v2368 = vpop.xlane.xlu0 %2367
    %v2369 = vmax.f32 %v2287, %v2288
    %2370 = vmax.xlane.f32.xlu0 %v2369
    %v2371 = vpop.xlane.xlu0 %2370
    %v2372 = vmax.f32 %v2289, %v2290
    %2373 = vmax.xlane.f32.xlu0 %v2372
    %v2374 = vpop.xlane.xlu0 %2373
    %v2375 = vmax.f32 %v2291, %v2292
    %2376 = vmax.xlane.f32.xlu0 %v2375
    %v2377 = vpop.xlane.xlu0 %2376
    %v2378 = vmax.f32 %v2293, %v2294
    %2379 = vmax.xlane.f32.xlu0 %v2378
    %v2380 = vpop.xlane.xlu0 %2379
    %v2381 = vmax.f32 %v2295, %v2296
    %2382 = vmax.xlane.f32.xlu0 %v2381
    %v2383 = vpop.xlane.xlu0 %2382
    %v2384 = vmax.f32 %v2297, %v2298
    %2385 = vmax.xlane.f32.xlu0 %v2384
    %v2386 = vpop.xlane.xlu0 %2385
    %v2387 = vmax.f32 %v2299, %v2300
    %2388 = vmax.xlane.f32.xlu0 %v2387
    %v2389 = vpop.xlane.xlu0 %2388
    %v2390 = vmax.f32 %v2301, %v2302
    %2391 = vmax.xlane.f32.xlu0 %v2390
    %v2392 = vpop.xlane.xlu0 %2391
    %v2393 = vmax.f32 %v2303, %v2304
    %2394 = vmax.xlane.f32.xlu0 %v2393
    %v2395 = vpop.xlane.xlu0 %2394
    %v2396 = vmax.f32 %v2305, %v2306
    %2397 = vmax.xlane.f32.xlu0 %v2396
    %v2398 = vpop.xlane.xlu0 %2397
    %v2399 = vmax.f32 %v2307, %v2308
    %2400 = vmax.xlane.f32.xlu0 %v2399
    %v2401 = vpop.xlane.xlu0 %2400
    %v2402 = vmax.f32 %v2309, %v2310
    %2403 = vmax.xlane.f32.xlu0 %v2402
    %v2404 = vpop.xlane.xlu0 %2403
    %v2405 = vmax.f32 %v2311, %v2312
    %2406 = vmax.xlane.f32.xlu0 %v2405
    %v2407 = vpop.xlane.xlu0 %2406
    %v2408 = vmax.f32 %v2313, %v2314
    %2409 = vmax.xlane.f32.xlu0 %v2408
    %v2410 = vpop.xlane.xlu0 %2409
    %v2411 = vsub.f32 %v2251, %v2317
    %v2412 = vsub.f32 %v2252, %v2317
    %v2413 = vsub.f32 %v2253, %v2320
    %v2414 = vsub.f32 %v2254, %v2320
    %v2415 = vsub.f32 %v2255, %v2323
    %v2416 = vsub.f32 %v2256, %v2323
    %v2417 = vsub.f32 %v2257, %v2326
    %v2418 = vsub.f32 %v2258, %v2326
    %v2419 = vsub.f32 %v2259, %v2329
    %v2420 = vsub.f32 %v2260, %v2329
    %v2421 = vsub.f32 %v2261, %v2332
    %v2422 = vsub.f32 %v2262, %v2332
    %v2423 = vsub.f32 %v2263, %v2335
    %v2424 = vsub.f32 %v2264, %v2335
    %v2425 = vsub.f32 %v2265, %v2338
    %v2426 = vsub.f32 %v2266, %v2338
    %v2427 = vsub.f32 %v2267, %v2341
    %v2428 = vsub.f32 %v2268, %v2341
    %v2429 = vsub.f32 %v2269, %v2344
    %v2430 = vsub.f32 %v2270, %v2344
    %v2431 = vsub.f32 %v2271, %v2347
    %v2432 = vsub.f32 %v2272, %v2347
    %v2433 = vsub.f32 %v2273, %v2350
    %v2434 = vsub.f32 %v2274, %v2350
    %v2435 = vsub.f32 %v2275, %v2353
    %v2436 = vsub.f32 %v2276, %v2353
    %v2437 = vsub.f32 %v2277, %v2356
    %v2438 = vsub.f32 %v2278, %v2356
    %v2439 = vsub.f32 %v2279, %v2359
    %v2440 = vsub.f32 %v2280, %v2359
    %v2441 = vsub.f32 %v2281, %v2362
    %v2442 = vsub.f32 %v2282, %v2362
    %v2443 = vsub.f32 %v2283, %v2365
    %v2444 = vsub.f32 %v2284, %v2365
    %v2445 = vsub.f32 %v2285, %v2368
    %v2446 = vsub.f32 %v2286, %v2368
    %v2447 = vsub.f32 %v2287, %v2371
    %v2448 = vsub.f32 %v2288, %v2371
    %v2449 = vsub.f32 %v2289, %v2374
    %v2450 = vsub.f32 %v2290, %v2374
    %v2451 = vsub.f32 %v2291, %v2377
    %v2452 = vsub.f32 %v2292, %v2377
    %v2453 = vsub.f32 %v2293, %v2380
    %v2454 = vsub.f32 %v2294, %v2380
    %v2455 = vsub.f32 %v2295, %v2383
    %v2456 = vsub.f32 %v2296, %v2383
    %v2457 = vsub.f32 %v2297, %v2386
    %v2458 = vsub.f32 %v2298, %v2386
    %v2459 = vsub.f32 %v2299, %v2389
    %v2460 = vsub.f32 %v2300, %v2389
    %v2461 = vsub.f32 %v2301, %v2392
    %v2462 = vsub.f32 %v2302, %v2392
    %v2463 = vsub.f32 %v2303, %v2395
    %v2464 = vsub.f32 %v2304, %v2395
    %v2465 = vsub.f32 %v2305, %v2398
    %v2466 = vsub.f32 %v2306, %v2398
    %v2467 = vsub.f32 %v2307, %v2401
    %v2468 = vsub.f32 %v2308, %v2401
    %v2469 = vsub.f32 %v2309, %v2404
    %v2470 = vsub.f32 %v2310, %v2404
    %v2471 = vsub.f32 %v2311, %v2407
    %v2472 = vsub.f32 %v2312, %v2407
    %v2473 = vsub.f32 %v2313, %v2410
    %v2474 = vsub.f32 %v2314, %v2410
    %v2475 = vmul.f32 %v2411, 1.442695
    %v2476 = vpow.pop %v2475
    %v2477 = vmul.f32 %v2412, 1.442695
    %v2478 = vpow.pop %v2477
    %v2479 = vmul.f32 %v2413, 1.442695
    %v2480 = vpow.pop %v2479
    %v2481 = vmul.f32 %v2414, 1.442695
    %v2482 = vpow.pop %v2481
    %v2483 = vmul.f32 %v2415, 1.442695
    %v2484 = vpow.pop %v2483
    %v2485 = vmul.f32 %v2416, 1.442695
    %v2486 = vpow.pop %v2485
    %v2487 = vmul.f32 %v2417, 1.442695
    %v2488 = vpow.pop %v2487
    %v2489 = vmul.f32 %v2418, 1.442695
    %v2490 = vpow.pop %v2489
    %v2491 = vmul.f32 %v2419, 1.442695
    %v2492 = vpow.pop %v2491
    %v2493 = vmul.f32 %v2420, 1.442695
    %v2494 = vpow.pop %v2493
    %v2495 = vmul.f32 %v2421, 1.442695
    %v2496 = vpow.pop %v2495
    %v2497 = vmul.f32 %v2422, 1.442695
    %v2498 = vpow.pop %v2497
    %v2499 = vmul.f32 %v2423, 1.442695
    %v2500 = vpow.pop %v2499
    %v2501 = vmul.f32 %v2424, 1.442695
    %v2502 = vpow.pop %v2501
    %v2503 = vmul.f32 %v2425, 1.442695
    %v2504 = vpow.pop %v2503
    %v2505 = vmul.f32 %v2426, 1.442695
    %v2506 = vpow.pop %v2505
    %v2507 = vmul.f32 %v2427, 1.442695
    %v2508 = vpow.pop %v2507
    %v2509 = vmul.f32 %v2428, 1.442695
    %v2510 = vpow.pop %v2509
    %v2511 = vmul.f32 %v2429, 1.442695
    %v2512 = vpow.pop %v2511
    %v2513 = vmul.f32 %v2430, 1.442695
    %v2514 = vpow.pop %v2513
    %v2515 = vmul.f32 %v2431, 1.442695
    %v2516 = vpow.pop %v2515
    %v2517 = vmul.f32 %v2432, 1.442695
    %v2518 = vpow.pop %v2517
    %v2519 = vmul.f32 %v2433, 1.442695
    %v2520 = vpow.pop %v2519
    %v2521 = vmul.f32 %v2434, 1.442695
    %v2522 = vpow.pop %v2521
    %v2523 = vmul.f32 %v2435, 1.442695
    %v2524 = vpow.pop %v2523
    %v2525 = vmul.f32 %v2436, 1.442695
    %v2526 = vpow.pop %v2525
    %v2527 = vmul.f32 %v2437, 1.442695
    %v2528 = vpow.pop %v2527
    %v2529 = vmul.f32 %v2438, 1.442695
    %v2530 = vpow.pop %v2529
    %v2531 = vmul.f32 %v2439, 1.442695
    %v2532 = vpow.pop %v2531
    %v2533 = vmul.f32 %v2440, 1.442695
    %v2534 = vpow.pop %v2533
    %v2535 = vmul.f32 %v2441, 1.442695
    %v2536 = vpow.pop %v2535
    %v2537 = vmul.f32 %v2442, 1.442695
    %v2538 = vpow.pop %v2537
    %v2539 = vmul.f32 %v2443, 1.442695
    %v2540 = vpow.pop %v2539
    %v2541 = vmul.f32 %v2444, 1.442695
    %v2542 = vpow.pop %v2541
    %v2543 = vmul.f32 %v2445, 1.442695
    %v2544 = vpow.pop %v2543
    %v2545 = vmul.f32 %v2446, 1.442695
    %v2546 = vpow.pop %v2545
    %v2547 = vmul.f32 %v2447, 1.442695
    %v2548 = vpow.pop %v2547
    %v2549 = vmul.f32 %v2448, 1.442695
    %v2550 = vpow.pop %v2549
    %v2551 = vmul.f32 %v2449, 1.442695
    %v2552 = vpow.pop %v2551
    %v2553 = vmul.f32 %v2450, 1.442695
    %v2554 = vpow.pop %v2553
    %v2555 = vmul.f32 %v2451, 1.442695
    %v2556 = vpow.pop %v2555
    %v2557 = vmul.f32 %v2452, 1.442695
    %v2558 = vpow.pop %v2557
    %v2559 = vmul.f32 %v2453, 1.442695
    %v2560 = vpow.pop %v2559
    %v2561 = vmul.f32 %v2454, 1.442695
    %v2562 = vpow.pop %v2561
    %v2563 = vmul.f32 %v2455, 1.442695
    %v2564 = vpow.pop %v2563
    %v2565 = vmul.f32 %v2456, 1.442695
    %v2566 = vpow.pop %v2565
    %v2567 = vmul.f32 %v2457, 1.442695
    %v2568 = vpow.pop %v2567
    %v2569 = vmul.f32 %v2458, 1.442695
    %v2570 = vpow.pop %v2569
    %v2571 = vmul.f32 %v2459, 1.442695
    %v2572 = vpow.pop %v2571
    %v2573 = vmul.f32 %v2460, 1.442695
    %v2574 = vpow.pop %v2573
    %v2575 = vmul.f32 %v2461, 1.442695
    %v2576 = vpow.pop %v2575
    %v2577 = vmul.f32 %v2462, 1.442695
    %v2578 = vpow.pop %v2577
    %v2579 = vmul.f32 %v2463, 1.442695
    %v2580 = vpow.pop %v2579
    %v2581 = vmul.f32 %v2464, 1.442695
    %v2582 = vpow.pop %v2581
    %v2583 = vmul.f32 %v2465, 1.442695
    %v2584 = vpow.pop %v2583
    %v2585 = vmul.f32 %v2466, 1.442695
    %v2586 = vpow.pop %v2585
    %v2587 = vmul.f32 %v2467, 1.442695
    %v2588 = vpow.pop %v2587
    %v2589 = vmul.f32 %v2468, 1.442695
    %v2590 = vpow.pop %v2589
    %v2591 = vmul.f32 %v2469, 1.442695
    %v2592 = vpow.pop %v2591
    %v2593 = vmul.f32 %v2470, 1.442695
    %v2594 = vpow.pop %v2593
    %v2595 = vmul.f32 %v2471, 1.442695
    %v2596 = vpow.pop %v2595
    %v2597 = vmul.f32 %v2472, 1.442695
    %v2598 = vpow.pop %v2597
    %v2599 = vmul.f32 %v2473, 1.442695
    %v2600 = vpow.pop %v2599
    %v2601 = vmul.f32 %v2474, 1.442695
    %v2602 = vpow.pop %v2601
    %v2603 = vadd.f32 %v2476, %v2478
    %2604 = vadd.xlane.f32.xlu0 %v2603
    %v2605 = vpop.xlane.xlu0 %2604
    %v2606 = vadd.f32 %v2480, %v2482
    %2607 = vadd.xlane.f32.xlu0 %v2606
    %v2608 = vpop.xlane.xlu0 %2607
    %v2609 = vadd.f32 %v2484, %v2486
    %2610 = vadd.xlane.f32.xlu0 %v2609
    %v2611 = vpop.xlane.xlu0 %2610
    %v2612 = vadd.f32 %v2488, %v2490
    %2613 = vadd.xlane.f32.xlu0 %v2612
    %v2614 = vpop.xlane.xlu0 %2613
    %v2615 = vadd.f32 %v2492, %v2494
    %2616 = vadd.xlane.f32.xlu0 %v2615
    %v2617 = vpop.xlane.xlu0 %2616
    %v2618 = vadd.f32 %v2496, %v2498
    %2619 = vadd.xlane.f32.xlu0 %v2618
    %v2620 = vpop.xlane.xlu0 %2619
    %v2621 = vadd.f32 %v2500, %v2502
    %2622 = vadd.xlane.f32.xlu0 %v2621
    %v2623 = vpop.xlane.xlu0 %2622
    %v2624 = vadd.f32 %v2504, %v2506
    %2625 = vadd.xlane.f32.xlu0 %v2624
    %v2626 = vpop.xlane.xlu0 %2625
    %v2627 = vadd.f32 %v2508, %v2510
    %2628 = vadd.xlane.f32.xlu0 %v2627
    %v2629 = vpop.xlane.xlu0 %2628
    %v2630 = vadd.f32 %v2512, %v2514
    %2631 = vadd.xlane.f32.xlu0 %v2630
    %v2632 = vpop.xlane.xlu0 %2631
    %v2633 = vadd.f32 %v2516, %v2518
    %2634 = vadd.xlane.f32.xlu0 %v2633
    %v2635 = vpop.xlane.xlu0 %2634
    %v2636 = vadd.f32 %v2520, %v2522
    %2637 = vadd.xlane.f32.xlu0 %v2636
    %v2638 = vpop.xlane.xlu0 %2637
    %v2639 = vadd.f32 %v2524, %v2526
    %2640 = vadd.xlane.f32.xlu0 %v2639
    %v2641 = vpop.xlane.xlu0 %2640
    %v2642 = vadd.f32 %v2528, %v2530
    %2643 = vadd.xlane.f32.xlu0 %v2642
    %v2644 = vpop.xlane.xlu0 %2643
    %v2645 = vadd.f32 %v2532, %v2534
    %2646 = vadd.xlane.f32.xlu0 %v2645
    %v2647 = vpop.xlane.xlu0 %2646
    %v2648 = vadd.f32 %v2536, %v2538
    %2649 = vadd.xlane.f32.xlu0 %v2648
    %v2650 = vpop.xlane.xlu0 %2649
    %v2651 = vadd.f32 %v2540, %v2542
    %2652 = vadd.xlane.f32.xlu0 %v2651
    %v2653 = vpop.xlane.xlu0 %2652
    %v2654 = vadd.f32 %v2544, %v2546
    %2655 = vadd.xlane.f32.xlu0 %v2654
    %v2656 = vpop.xlane.xlu0 %2655
    %v2657 = vadd.f32 %v2548, %v2550
    %2658 = vadd.xlane.f32.xlu0 %v2657
    %v2659 = vpop.xlane.xlu0 %2658
    %v2660 = vadd.f32 %v2552, %v2554
    %2661 = vadd.xlane.f32.xlu0 %v2660
    %v2662 = vpop.xlane.xlu0 %2661
    %v2663 = vadd.f32 %v2556, %v2558
    %2664 = vadd.xlane.f32.xlu0 %v2663
    %v2665 = vpop.xlane.xlu0 %2664
    %v2666 = vadd.f32 %v2560, %v2562
    %2667 = vadd.xlane.f32.xlu0 %v2666
    %v2668 = vpop.xlane.xlu0 %2667
    %v2669 = vadd.f32 %v2564, %v2566
    %2670 = vadd.xlane.f32.xlu0 %v2669
    %v2671 = vpop.xlane.xlu0 %2670
    %v2672 = vadd.f32 %v2568, %v2570
    %2673 = vadd.xlane.f32.xlu0 %v2672
    %v2674 = vpop.xlane.xlu0 %2673
    %v2675 = vadd.f32 %v2572, %v2574
    %2676 = vadd.xlane.f32.xlu0 %v2675
    %v2677 = vpop.xlane.xlu0 %2676
    %v2678 = vadd.f32 %v2576, %v2578
    %2679 = vadd.xlane.f32.xlu0 %v2678
    %v2680 = vpop.xlane.xlu0 %2679
    %v2681 = vadd.f32 %v2580, %v2582
    %2682 = vadd.xlane.f32.xlu0 %v2681
    %v2683 = vpop.xlane.xlu0 %2682
    %v2684 = vadd.f32 %v2584, %v2586
    %2685 = vadd.xlane.f32.xlu0 %v2684
    %v2686 = vpop.xlane.xlu0 %2685
    %v2687 = vadd.f32 %v2588, %v2590
    %2688 = vadd.xlane.f32.xlu0 %v2687
    %v2689 = vpop.xlane.xlu0 %2688
    %v2690 = vadd.f32 %v2592, %v2594
    %2691 = vadd.xlane.f32.xlu0 %v2690
    %v2692 = vpop.xlane.xlu0 %2691
    %v2693 = vadd.f32 %v2596, %v2598
    %2694 = vadd.xlane.f32.xlu0 %v2693
    %v2695 = vpop.xlane.xlu0 %2694
    %v2696 = vadd.f32 %v2600, %v2602
    %2697 = vadd.xlane.f32.xlu0 %v2696
    %v2698 = vpop.xlane.xlu0 %2697
    %v2699 = vrcp.pop %v2605
    %v2700 = vrcp.pop %v2608
    %v2701 = vrcp.pop %v2611
    %v2702 = vrcp.pop %v2614
    %v2703 = vrcp.pop %v2617
    %v2704 = vrcp.pop %v2620
    %v2705 = vrcp.pop %v2623
    %v2706 = vrcp.pop %v2626
    %v2707 = vrcp.pop %v2629
    %v2708 = vrcp.pop %v2632
    %v2709 = vrcp.pop %v2635
    %v2710 = vrcp.pop %v2638
    %v2711 = vrcp.pop %v2641
    %v2712 = vrcp.pop %v2644
    %v2713 = vrcp.pop %v2647
    %v2714 = vrcp.pop %v2650
    %v2715 = vrcp.pop %v2653
    %v2716 = vrcp.pop %v2656
    %v2717 = vrcp.pop %v2659
    %v2718 = vrcp.pop %v2662
    %v2719 = vrcp.pop %v2665
    %v2720 = vrcp.pop %v2668
    %v2721 = vrcp.pop %v2671
    %v2722 = vrcp.pop %v2674
    %v2723 = vrcp.pop %v2677
    %v2724 = vrcp.pop %v2680
    %v2725 = vrcp.pop %v2683
    %v2726 = vrcp.pop %v2686
    %v2727 = vrcp.pop %v2689
    %v2728 = vrcp.pop %v2692
    %v2729 = vrcp.pop %v2695
    %v2730 = vrcp.pop %v2698
    %v2731 = vmul.f32 %v2476, %v2699
    %v2732 = vmul.f32 %v2478, %v2699
    %v2733 = vmul.f32 %v2480, %v2700
    %v2734 = vmul.f32 %v2482, %v2700
    %v2735 = vmul.f32 %v2484, %v2701
    %v2736 = vmul.f32 %v2486, %v2701
    %v2737 = vmul.f32 %v2488, %v2702
    %v2738 = vmul.f32 %v2490, %v2702
    %v2739 = vmul.f32 %v2492, %v2703
    %v2740 = vmul.f32 %v2494, %v2703
    %v2741 = vmul.f32 %v2496, %v2704
    %v2742 = vmul.f32 %v2498, %v2704
    %v2743 = vmul.f32 %v2500, %v2705
    %v2744 = vmul.f32 %v2502, %v2705
    %v2745 = vmul.f32 %v2504, %v2706
    %v2746 = vmul.f32 %v2506, %v2706
    %v2747 = vmul.f32 %v2508, %v2707
    %v2748 = vmul.f32 %v2510, %v2707
    %v2749 = vmul.f32 %v2512, %v2708
    %v2750 = vmul.f32 %v2514, %v2708
    %v2751 = vmul.f32 %v2516, %v2709
    %v2752 = vmul.f32 %v2518, %v2709
    %v2753 = vmul.f32 %v2520, %v2710
    %v2754 = vmul.f32 %v2522, %v2710
    %v2755 = vmul.f32 %v2524, %v2711
    %v2756 = vmul.f32 %v2526, %v2711
    %v2757 = vmul.f32 %v2528, %v2712
    %v2758 = vmul.f32 %v2530, %v2712
    %v2759 = vmul.f32 %v2532, %v2713
    %v2760 = vmul.f32 %v2534, %v2713
    %v2761 = vmul.f32 %v2536, %v2714
    %v2762 = vmul.f32 %v2538, %v2714
    %v2763 = vmul.f32 %v2540, %v2715
    %v2764 = vmul.f32 %v2542, %v2715
    %v2765 = vmul.f32 %v2544, %v2716
    %v2766 = vmul.f32 %v2546, %v2716
    %v2767 = vmul.f32 %v2548, %v2717
    %v2768 = vmul.f32 %v2550, %v2717
    %v2769 = vmul.f32 %v2552, %v2718
    %v2770 = vmul.f32 %v2554, %v2718
    %v2771 = vmul.f32 %v2556, %v2719
    %v2772 = vmul.f32 %v2558, %v2719
    %v2773 = vmul.f32 %v2560, %v2720
    %v2774 = vmul.f32 %v2562, %v2720
    %v2775 = vmul.f32 %v2564, %v2721
    %v2776 = vmul.f32 %v2566, %v2721
    %v2777 = vmul.f32 %v2568, %v2722
    %v2778 = vmul.f32 %v2570, %v2722
    %v2779 = vmul.f32 %v2572, %v2723
    %v2780 = vmul.f32 %v2574, %v2723
    %v2781 = vmul.f32 %v2576, %v2724
    %v2782 = vmul.f32 %v2578, %v2724
    %v2783 = vmul.f32 %v2580, %v2725
    %v2784 = vmul.f32 %v2582, %v2725
    %v2785 = vmul.f32 %v2584, %v2726
    %v2786 = vmul.f32 %v2586, %v2726
    %v2787 = vmul.f32 %v2588, %v2727
    %v2788 = vmul.f32 %v2590, %v2727
    %v2789 = vmul.f32 %v2592, %v2728
    %v2790 = vmul.f32 %v2594, %v2728
    %v2791 = vmul.f32 %v2596, %v2729
    %v2792 = vmul.f32 %v2598, %v2729
    %v2793 = vmul.f32 %v2600, %v2730
    %v2794 = vmul.f32 %v2602, %v2730
    %v2795 = vpack.c.bf16 %v1068, %v1064
    %v2796 = vpack.c.bf16 %v1070, %v1066
    %v2797 = vpack.c.bf16 %v2733, %v2731
    %v2798 = vpack.c.bf16 %v2734, %v2732
    %v2799 = vpack.c.bf16 %v2737, %v2735
    %v2800 = vpack.c.bf16 %v2738, %v2736
    %v2801 = vpack.c.bf16 %v2741, %v2739
    %v2802 = vpack.c.bf16 %v2742, %v2740
    %v2803 = vpack.c.bf16 %v2745, %v2743
    %v2804 = vpack.c.bf16 %v2746, %v2744
    %v2805 = vpack.c.bf16 %v2749, %v2747
    %v2806 = vpack.c.bf16 %v2750, %v2748
    %v2807 = vpack.c.bf16 %v2753, %v2751
    %v2808 = vpack.c.bf16 %v2754, %v2752
    %v2809 = vpack.c.bf16 %v2757, %v2755
    %v2810 = vpack.c.bf16 %v2758, %v2756
    %v2811 = vpack.c.bf16 %v2761, %v2759
    %v2812 = vpack.c.bf16 %v2762, %v2760
    %v2813 = vpack.c.bf16 %v2765, %v2763
    %v2814 = vpack.c.bf16 %v2766, %v2764
    %v2815 = vpack.c.bf16 %v2769, %v2767
    %v2816 = vpack.c.bf16 %v2770, %v2768
    %v2817 = vpack.c.bf16 %v2773, %v2771
    %v2818 = vpack.c.bf16 %v2774, %v2772
    %v2819 = vpack.c.bf16 %v2777, %v2775
    %v2820 = vpack.c.bf16 %v2778, %v2776
    %v2821 = vpack.c.bf16 %v2781, %v2779
    %v2822 = vpack.c.bf16 %v2782, %v2780
    %v2823 = vpack.c.bf16 %v2785, %v2783
    %v2824 = vpack.c.bf16 %v2786, %v2784
    %v2825 = vpack.c.bf16 %v2789, %v2787
    %v2826 = vpack.c.bf16 %v2790, %v2788
    %v2827 = vpack.c.bf16 %v2793, %v2791
    %v2828 = vpack.c.bf16 %v2794, %v2792
    %2829 = vmatprep.subr.bf16.mxu0 %v2798
    %2830 = vmatpush1.bf16.xpose.msra.mxu0 %v2797
    %2831 = vmatprep.subr.bf16.mxu0 %v2800
    %2832 = vmatpush1.bf16.xpose.msra.mxu0 %v2799
    %2833 = vmatprep.subr.bf16.mxu0 %v2802
    %2834 = vmatpush1.bf16.xpose.msra.mxu0 %v2801
    %2835 = vmatprep.subr.bf16.mxu0 %v2804
    %2836 = vmatpush1.bf16.xpose.msra.mxu0 %v2803
    %2837 = vmatprep.subr.bf16.mxu0 %v2806
    %2838 = vmatpush1.bf16.xpose.msra.mxu0 %v2805
    %2839 = vmatprep.subr.bf16.mxu0 %v2808
    %2840 = vmatpush1.bf16.xpose.msra.mxu0 %v2807
    %2841 = vmatprep.subr.bf16.mxu0 %v2810
    %2842 = vmatpush1.bf16.xpose.msra.mxu0 %v2809
    %2843 = vmatprep.subr.bf16.mxu0 %v2812
    %2844 = vmatpush1.bf16.xpose.msra.mxu0 %v2811
    %2845 = vmatprep.subr.bf16.mxu0 %v2814
    %2846 = vmatpush1.bf16.xpose.msra.mxu0 %v2813
    %2847 = vmatprep.subr.bf16.mxu0 %v2816
    %2848 = vmatpush1.bf16.xpose.msra.mxu0 %v2815
    %2849 = vmatprep.subr.bf16.mxu0 %v2818
    %2850 = vmatpush1.bf16.xpose.msra.mxu0 %v2817
    %2851 = vmatprep.subr.bf16.mxu0 %v2820
    %2852 = vmatpush1.bf16.xpose.msra.mxu0 %v2819
    %2853 = vmatprep.subr.bf16.mxu0 %v2822
    %2854 = vmatpush1.bf16.xpose.msra.mxu0 %v2821
    %2855 = vmatprep.subr.bf16.mxu0 %v2824
    %2856 = vmatpush1.bf16.xpose.msra.mxu0 %v2823
    %2857 = vmatprep.subr.bf16.mxu0 %v2826
    %2858 = vmatpush1.bf16.xpose.msra.mxu0 %v2825
    %2859 = vmatprep.subr.bf16.mxu0 %v2828
    %2860 = vmatpush1.bf16.xpose.msra.mxu0 %v2827
    %2861 = vmatprep.mubr.bf16.mxu0 %v2796
    %2862 = vmatmul.mubr.bf16.gmra.mrb[0].mxu0 %v2795
    %v2863 = vpop.f32.mrb[0].mxu0
    %v2864 = vadd.f32 0.0, %v2863
    %v2865 = vpop.f32.mrb[0].mxu0
    %v2866 = vadd.f32 0.0, %v2865
    %v2867 = vpop.f32.mrb[0].mxu0
    %v2868 = vadd.f32 0.0, %v2867
    %v2869 = vpop.f32.mrb[0].mxu0
    %v2870 = vadd.f32 0.0, %v2869
    %2871 = vdwg.mxu0
    %s2872 = scalar_lea.vmem %s8, 32
    %2873 = vst [vmem:[%s2872] sm:$0xff] %v2864
    %2874 = vst [vmem:[%s2872 + $0x8] sm:$0xff] %v2866
    %2875 = vst [vmem:[%s2872 + $0x10] sm:$0xff] %v2868
    %2876 = vst [vmem:[%s2872 + $0x18] sm:$0xff] %v2870
    // Predicated region
    $region57: #{hybrid_token_mixer.2} parent=1 // pred_check
      _
    $region58: #{hybrid_token_mixer.2} parent=1 // pred_check_branch
      %2878 = sbr.rel (0) target = $region60
    $region59: #{hybrid_token_mixer.2} parent=1 // pred_region
      _
    $region60: #{hybrid_token_mixer.2} parent=1 // pred_fallthru
      _
    // Predicated region
    $region61: #{hybrid_token_mixer.2} parent=1 // pred_check
      _
    $region62: #{hybrid_token_mixer.2} parent=1 // pred_check_branch
      %2880 = sbr.rel (0) target = $region64
    $region63: #{hybrid_token_mixer.2} parent=1 // pred_region
      _
    $region64: #{hybrid_token_mixer.2} parent=1 // pred_fallthru
      _

</llo_original>
